<compile_context>
chip_gen: v7x
topology: tpu7x:2x2x1
jax: 0.10.0
libtpu: 0.0.40
codegen_flags: <defaults>
</compile_context>

<pallas_src>
import functools

import jax
import jax.numpy as jnp
from jax import lax
from jax.experimental import pallas as pl
from jax.experimental.pallas import tpu as pltpu


_N_AFP = 17  # number of parameter arrays per AFP block (see _init_afp)


# ------------------------------ kernel helpers -------------------------------

def _dot(a, b):
    """MXU matmul: bf16 inputs, f32 accumulation (native fast path on all gens)."""
    return jnp.dot(a.astype(jnp.bfloat16), b.astype(jnp.bfloat16),
                   preferred_element_type=jnp.float32)


def _shift_rows(x, pad_val, first_mask, last_mask):
    """x_prev[n] = x[n-1], x_next[n] = x[n+1]; out-of-range rows = pad_val.

    first/last masks are precomputed (N, 1) booleans, shared across all widths.
    """
    n = x.shape[0]
    x_prev = jnp.where(first_mask, pad_val, pltpu.roll(x, shift=1, axis=0))
    x_next = jnp.where(last_mask, pad_val, pltpu.roll(x, shift=n - 1, axis=0))
    return x_prev, x_next


def _conv3(v, p_ref, b_ref, first_mask, last_mask):
    """Conv1d(kernel=3, padding=1) in (N, C) layout; p: (3, Cin, Cout), b: (1, Cout)."""
    vp, vn = _shift_rows(v, jnp.float32(0.0), first_mask, last_mask)
    p = p_ref[...]
    return _dot(vp, p[0]) + _dot(v, p[1]) + _dot(vn, p[2]) + b_ref[...]


def _afp(x, wsm_ref, prm, first_mask, last_mask):
    """AFP block.  Returns (base, p1, p2) such that AFP(x) == base ++ channel-wise
    placement of p1 (first C/4 channels) and p2 (last 3C/4 channels); the caller
    folds p1/p2 into the next 1x1 conv by splitting its weight rows, so the full
    width branch3 tensor is never materialized."""
    (wA1, bA1, wB1, bB1, wC1, bC1, wA2, bA2, wB2, bB2,
     sw1a, sw1b, sb1, sw2a, sb2a, sw2b, sb2b) = prm

    # branch1: MaxPool1d(3, 1, padding=1)  (implicit -inf padding)
    xp_m, xn_m = _shift_rows(x, jnp.float32(-jnp.inf), first_mask, last_mask)
    b1 = jnp.maximum(jnp.maximum(xp_m, x), xn_m)
    # branch2: AvgPool1d(3, 1, padding=1)  (zero padding, count_include_pad=True)
    xp_z, xn_z = _shift_rows(x, jnp.float32(0.0), first_mask, last_mask)
    b2 = (xp_z + x + xn_z) * jnp.float32(1.0 / 3.0)

    # branch3_1: conv1x1(C->C/4) -> conv3 -> conv3     (narrow, no zero padding)
    q1 = _dot(x, wA1[...]) + bA1[...]
    q1 = _conv3(q1, wB1, bB1, first_mask, last_mask)
    q1 = _conv3(q1, wC1, bC1, first_mask, last_mask)
    # branch3_2: conv1x1(C->3C/4) -> conv3
    q2 = _dot(x, wA2[...]) + bA2[...]
    q2 = _conv3(q2, wB2, bB2, first_mask, last_mask)

    # SE block on the (virtually concatenated) branch3 output.  The SE weights
    # were split at init along the branch boundary so no lane concat is needed.
    s1 = jnp.mean(q1, axis=0, keepdims=True)              # (1, C/4)
    s2 = jnp.mean(q2, axis=0, keepdims=True)              # (1, 3C/4)
    h = jnp.maximum(_dot(s1, sw1a[...]) + _dot(s2, sw1b[...]) + sb1[...], 0.0)
    gate1 = jax.nn.sigmoid(_dot(h, sw2a[...]) + sb2a[...])   # (1, C/4)
    gate2 = jax.nn.sigmoid(_dot(h, sw2b[...]) + sb2b[...])   # (1, 3C/4)

    # softmax-normalized combination weights (scalars in SMEM).
    w1 = wsm_ref[0]
    w2 = wsm_ref[1]
    w3 = wsm_ref[2]
    w4 = wsm_ref[3]
    base = b1 * w1 + b2 * w2 + x * w4
    return base, (gate1 * w3) * q1, (gate2 * w3) * q2


def _afp_conv_bn_relu(base, p1, p2, w_ref, wa_ref, wb_ref, b_ref):
    """Folded-BN 1x1 conv + ReLU applied to (AFP output), with the AFP branch3
    contribution folded in via row-split weights: exact because matmul distributes
    over the channel split."""
    y = (_dot(base, w_ref[...]) + _dot(p1, wa_ref[...]) + _dot(p2, wb_ref[...])
         + b_ref[...])
    return jnp.maximum(y, 0.0)


def _skconv(x1, x2, prm):
    fc1w, fc1s, fc1t, w_a, w_b = prm
    u = x1 + x2
    s = jnp.mean(u, axis=0, keepdims=True)                 # global avg pool (1, C)
    z = jnp.maximum(_dot(s, fc1w[...]) * fc1s[...] + fc1t[...], 0.0)
    a1 = _dot(z, w_a[...])                                 # (1, C) logits, m = 0
    a2 = _dot(z, w_b[...])                                 # (1, C) logits, m = 1
    m = jnp.maximum(a1, a2)
    e1 = jnp.exp(a1 - m)
    e2 = jnp.exp(a2 - m)
    inv = 1.0 / (e1 + e2)
    return x1 * (e1 * inv) + x2 * (e2 * inv)


# --------------------------------- fused kernel --------------------------------

def _fused_kernel(*refs):
    wsm1_ref, wsm2_ref, emb_ref, g1_ref, g2_ref = refs[:5]
    i = 5
    f1_prm = refs[i:i + _N_AFP]; i += _N_AFP
    f2_prm = refs[i:i + _N_AFP]; i += _N_AFP
    e1_w, e1_wa, e1_wb, e1_b = refs[i:i + 4]; i += 4
    gc1_w, gc1_wa, gc1_wb, gc1_b = refs[i:i + 4]; i += 4
    e2_w, e2_b = refs[i:i + 2]; i += 2
    gc2_w, gc2_b = refs[i:i + 2]; i += 2
    sk1_prm = refs[i:i + 5]; i += 5
    sk2_prm = refs[i:i + 5]; i += 5
    w5a, w5b, b5, w6, b6 = refs[i:i + 5]; i += 5
    out_ref = refs[i]

    # Row-boundary masks for the 3-tap pools/convs, built once and reused.
    n = emb_ref.shape[0]
    ridx = lax.broadcasted_iota(jnp.int32, (n, 1), 0)
    first_mask = ridx == 0
    last_mask = ridx == n - 1

    emb = emb_ref[...]                                     # (N, 32)
    g1x = g1_ref[...]                                      # (N, 128)
    g2x = g2_ref[...]                                      # (N, 256)

    # AFP(32) -> e_conv1 + BN + ReLU   (32 -> 64)
    base1, p1a, p1b = _afp(emb, wsm1_ref, f1_prm, first_mask, last_mask)
    emb64 = _afp_conv_bn_relu(base1, p1a, p1b, e1_w, e1_wa, e1_wb, e1_b)

    # AFP(128) -> g_conv1 + BN + ReLU  (128 -> 64)
    base2, p2a, p2b = _afp(g1x, wsm2_ref, f2_prm, first_mask, last_mask)
    g64 = _afp_conv_bn_relu(base2, p2a, p2b, gc1_w, gc1_wa, gc1_wb, gc1_b)

    pf1 = _skconv(emb64, g64, sk1_prm)                     # SKConv(64)

    emb128 = jnp.maximum(_dot(emb64, e2_w[...]) + e2_b[...], 0.0)   # 64 -> 128
    g128 = jnp.maximum(_dot(g2x, gc2_w[...]) + gc2_b[...], 0.0)     # 256 -> 128

    pf2 = _skconv(emb128, g128, sk2_prm)                   # SKConv(128)

    # conv5 on concat([pf1, pf2]) realized as row-split weights (no lane concat).
    h = jnp.maximum(_dot(pf1, w5a[...]) + _dot(pf2, w5b[...]) + b5[...], 0.0)
    h = jnp.maximum(_dot(h, w6[...]) + b6[...], 0.0)       # (N, 512)
    out_ref[...] = jnp.max(h, axis=0, keepdims=True)       # MaxPool1d(num_points)


# ------------------------------ pallas_call glue ------------------------------

_SMEM_SPEC = pl.BlockSpec(memory_space=pltpu.MemorySpace.SMEM)


def _full_spec(arr):
    zeros = (0,) * arr.ndim
    return pl.BlockSpec(arr.shape, lambda b, _z=zeros: _z)


def _batched_spec(shape):
    tail = tuple(shape[1:])
    nz = (0,) * len(tail)
    return pl.BlockSpec((None,) + tail, lambda b, _nz=nz: (b,) + _nz)


def _flatten_params(p):
    return (tuple(p["fusion1"]) + tuple(p["fusion2"])
            + tuple(p["e_conv1"]) + tuple(p["g_conv1"])
            + tuple(p["e_conv2"]) + tuple(p["g_conv2"])
            + tuple(p["fusion_conv1"]) + tuple(p["fusion_conv2"])
            + tuple(p["head"]))


def pose_refine_net_feat(params, emb, g1, g2, weight1, weight2, weight3, weight4):
    """emb: (B, 32, N), g1: (B, 128, N), g2: (B, 256, N) in PyTorch NCW layout.
    weight3 / weight4 are accepted for signature parity but unused, exactly as in
    the reference forward."""
    del weight3, weight4
    emb = jnp.transpose(emb, (0, 2, 1)).astype(jnp.float32)
    g1 = jnp.transpose(g1, (0, 2, 1)).astype(jnp.float32)
    g2 = jnp.transpose(g2, (0, 2, 1)).astype(jnp.float32)
    wsm1 = jax.nn.softmax(weight1.astype(jnp.float32))   # exp(w_i)/sum(exp(w))
    wsm2 = jax.nn.softmax(weight2.astype(jnp.float32))
    B = emb.shape[0]

    flat_params = _flatten_params(params)
    in_specs = ([_SMEM_SPEC, _SMEM_SPEC,
                 _batched_spec(emb.shape), _batched_spec(g1.shape),
                 _batched_spec(g2.shape)]
                + [_full_spec(p) for p in flat_params])

    out = pl.pallas_call(
        _fused_kernel,
        out_shape=jax.ShapeDtypeStruct((B, 1, 512), jnp.float32),
        grid=(B,),
        in_specs=in_specs,
        out_specs=_batched_spec((B, 1, 512)),
        compiler_params=pltpu.CompilerParams(
            dimension_semantics=("parallel",)),
    )(wsm1, wsm2, emb, g1, g2, *flat_params)
    return out.reshape(B, 512)


# ------------------------------ parameter setup --------------------------------

def _normal(key, shape, scale=0.1):
    return scale * jax.random.normal(key, shape, dtype=jnp.float32)


def _init_conv1x1(key, cin, cout):
    kw, kb = jax.random.split(key)
    return _normal(kw, (cin, cout)), _normal(kb, (1, cout))


def _init_conv3(key, cin, cout):
    kw, kb = jax.random.split(key)
    return _normal(kw, (3, cin, cout)), _normal(kb, (1, cout))


def _init_bn(key, c, eps=1e-5):
    k1, k2, k3, k4 = jax.random.split(key, 4)
    gamma = 1.0 + _normal(k1, (1, c))
    beta = _normal(k2, (1, c))
    mean = _normal(k3, (1, c))
    var = 1.0 + 0.1 * jax.random.uniform(k4, (1, c), dtype=jnp.float32)
    scale = gamma / jnp.sqrt(var + eps)
    shift = beta - mean * scale
    return scale, shift


def _init_afp(key, c):
    c4 = c // 4
    keys = jax.random.split(key, 7)
    wA1, bA1 = _init_conv1x1(keys[0], c, c4)        # branch3_1: 1x1
    wB1, bB1 = _init_conv3(keys[1], c4, c4)         # branch3_1: 3-conv
    wC1, bC1 = _init_conv3(keys[2], c4, c4)         # branch3_1: 3-conv
    wA2, bA2 = _init_conv1x1(keys[3], c, c - c4)    # branch3_2: 1x1
    wB2, bB2 = _init_conv3(keys[4], c - c4, c - c4)  # branch3_2: 3-conv
    sw1, sb1 = _init_conv1x1(keys[5], c, c // 2)    # SE fc1
    sw2, sb2 = _init_conv1x1(keys[6], c // 2, c)    # SE fc2
    # Split the SE weights at the branch boundary so the kernel never has to
    # concatenate the two branch3 sub-widths along the lane dimension.
    return (wA1, bA1, wB1, bB1, wC1, bC1, wA2, bA2, wB2, bB2,
            sw1[:c4], sw1[c4:], sb1,
            sw2[:, :c4], sb2[:, :c4], sw2[:, c4:], sb2[:, c4:])


def _fold_conv_bn(key, cin, cout):
    k1, k2 = jax.random.split(key)
    w, b = _init_conv1x1(k1, cin, cout)
    scale, shift = _init_bn(k2, cout)
    return w * scale, b * scale + shift             # BN (eval mode) folded into conv


def _init_conv_bn(key, cin, cout):
    return _fold_conv_bn(key, cin, cout)


def _init_conv_bn_split(key, cin, cout, c4):
    """Folded conv+BN whose input is an AFP output: also provide row-split weights
    (first c4 rows / remaining rows) for the fused AFP-branch3 contribution."""
    wf, bf = _fold_conv_bn(key, cin, cout)
    return wf, wf[:c4], wf[c4:], bf


def _init_skconv(key, c, r=16, L=32):
    d = max(c // r, L)
    k1, k2, k3 = jax.random.split(key, 3)
    fc1w = _normal(k1, (c, d))                      # Conv1d(c, d, 1, bias=False)
    scale, shift = _init_bn(k2, d)                  # BatchNorm1d(d), eval mode
    fc2w = _normal(k3, (d, 2 * c))                  # Conv1d(d, 2c, 1, bias=False)
    return fc1w, scale, shift, fc2w[:, :c], fc2w[:, c:]


def init_pose_refine_net_feat(key):
    keys = jax.random.split(key, 10)
    w5, b5 = _init_conv1x1(keys[8], 192, 256)
    w6, b6 = _init_conv1x1(keys[9], 256, 512)
    return {
        "fusion1": _init_afp(keys[0], 32),
        "fusion2": _init_afp(keys[1], 128),
        "e_conv1": _init_conv_bn_split(keys[2], 32, 64, 32 // 4),    # e_conv1 + lay1
        "g_conv1": _init_conv_bn_split(keys[3], 128, 64, 128 // 4),  # g_conv1 + lay2
        "e_conv2": _init_conv_bn(keys[4], 64, 128),                  # e_conv2 + lay3
        "g_conv2": _init_conv_bn(keys[5], 256, 128),                 # g_conv2 + lay4
        "fusion_conv1": _init_skconv(keys[6], 64),
        "fusion_conv2": _init_skconv(keys[7], 128),
        # conv5 weight pre-split along the pf1/pf2 channel concat boundary.
        "head": (w5[:64], w5[64:], b5, w6, b6),
        # TODO(synk): self.tarcon is defined in __init__ but never used in forward.
    }


# ----------------------------------- main --------------------------------------

if __name__ == "__main__":
    B, N = 2, 64                      # batch_size=2, num_points=64
    key = jax.random.PRNGKey(0)
    kp, k1, k2, k3, k4, k5 = jax.random.split(key, 6)
    params = init_pose_refine_net_feat(kp)
    emb = jax.random.normal(k1, (B, 32, N), jnp.float32)
    g1 = jax.random.normal(k2, (B, 128, N), jnp.float32)
    g2 = jax.random.normal(k3, (B, 256, N), jnp.float32)
    weight1 = jax.random.normal(k4, (4,), jnp.float32)
    weight2 = jax.random.normal(k5, (4,), jnp.float32)
    weight3 = jnp.zeros((4,), jnp.float32)
    weight4 = jnp.zeros((4,), jnp.float32)

    fwd = jax.jit(functools.partial(pose_refine_net_feat, params))
    out = fwd(emb, g1, g2, weight1, weight2, weight3, weight4)
    jax.block_until_ready(out)
    assert out.shape == (B, 512) and out.dtype == jnp.float32
    assert bool(jnp.all(jnp.isfinite(out)))
    print("KERNEL_OK")
</pallas_src>

<mosaic_0001>
module attributes {stable_mosaic.version = 11 : i64} {
  func.func @_fused_kernel(%arg0: i32, %arg1: memref<4xf32, #tpu.memory_space<smem>>, %arg2: memref<4xf32, #tpu.memory_space<smem>>, %arg3: memref<1x64x32xf32, #tpu.memory_space<vmem>>, %arg4: memref<1x64x128xf32, #tpu.memory_space<vmem>>, %arg5: memref<1x64x256xf32, #tpu.memory_space<vmem>>, %arg6: memref<32x8xf32, #tpu.memory_space<vmem>>, %arg7: memref<1x8xf32, #tpu.memory_space<vmem>>, %arg8: memref<3x8x8xf32, #tpu.memory_space<vmem>>, %arg9: memref<1x8xf32, #tpu.memory_space<vmem>>, %arg10: memref<3x8x8xf32, #tpu.memory_space<vmem>>, %arg11: memref<1x8xf32, #tpu.memory_space<vmem>>, %arg12: memref<32x24xf32, #tpu.memory_space<vmem>>, %arg13: memref<1x24xf32, #tpu.memory_space<vmem>>, %arg14: memref<3x24x24xf32, #tpu.memory_space<vmem>>, %arg15: memref<1x24xf32, #tpu.memory_space<vmem>>, %arg16: memref<8x16xf32, #tpu.memory_space<vmem>>, %arg17: memref<24x16xf32, #tpu.memory_space<vmem>>, %arg18: memref<1x16xf32, #tpu.memory_space<vmem>>, %arg19: memref<16x8xf32, #tpu.memory_space<vmem>>, %arg20: memref<1x8xf32, #tpu.memory_space<vmem>>, %arg21: memref<16x24xf32, #tpu.memory_space<vmem>>, %arg22: memref<1x24xf32, #tpu.memory_space<vmem>>, %arg23: memref<128x32xf32, #tpu.memory_space<vmem>>, %arg24: memref<1x32xf32, #tpu.memory_space<vmem>>, %arg25: memref<3x32x32xf32, #tpu.memory_space<vmem>>, %arg26: memref<1x32xf32, #tpu.memory_space<vmem>>, %arg27: memref<3x32x32xf32, #tpu.memory_space<vmem>>, %arg28: memref<1x32xf32, #tpu.memory_space<vmem>>, %arg29: memref<128x96xf32, #tpu.memory_space<vmem>>, %arg30: memref<1x96xf32, #tpu.memory_space<vmem>>, %arg31: memref<3x96x96xf32, #tpu.memory_space<vmem>>, %arg32: memref<1x96xf32, #tpu.memory_space<vmem>>, %arg33: memref<32x64xf32, #tpu.memory_space<vmem>>, %arg34: memref<96x64xf32, #tpu.memory_space<vmem>>, %arg35: memref<1x64xf32, #tpu.memory_space<vmem>>, %arg36: memref<64x32xf32, #tpu.memory_space<vmem>>, %arg37: memref<1x32xf32, #tpu.memory_space<vmem>>, %arg38: memref<64x96xf32, #tpu.memory_space<vmem>>, %arg39: memref<1x96xf32, #tpu.memory_space<vmem>>, %arg40: memref<32x64xf32, #tpu.memory_space<vmem>>, %arg41: memref<8x64xf32, #tpu.memory_space<vmem>>, %arg42: memref<24x64xf32, #tpu.memory_space<vmem>>, %arg43: memref<1x64xf32, #tpu.memory_space<vmem>>, %arg44: memref<128x64xf32, #tpu.memory_space<vmem>>, %arg45: memref<32x64xf32, #tpu.memory_space<vmem>>, %arg46: memref<96x64xf32, #tpu.memory_space<vmem>>, %arg47: memref<1x64xf32, #tpu.memory_space<vmem>>, %arg48: memref<64x128xf32, #tpu.memory_space<vmem>>, %arg49: memref<1x128xf32, #tpu.memory_space<vmem>>, %arg50: memref<256x128xf32, #tpu.memory_space<vmem>>, %arg51: memref<1x128xf32, #tpu.memory_space<vmem>>, %arg52: memref<64x32xf32, #tpu.memory_space<vmem>>, %arg53: memref<1x32xf32, #tpu.memory_space<vmem>>, %arg54: memref<1x32xf32, #tpu.memory_space<vmem>>, %arg55: memref<32x64xf32, #tpu.memory_space<vmem>>, %arg56: memref<32x64xf32, #tpu.memory_space<vmem>>, %arg57: memref<128x32xf32, #tpu.memory_space<vmem>>, %arg58: memref<1x32xf32, #tpu.memory_space<vmem>>, %arg59: memref<1x32xf32, #tpu.memory_space<vmem>>, %arg60: memref<32x128xf32, #tpu.memory_space<vmem>>, %arg61: memref<32x128xf32, #tpu.memory_space<vmem>>, %arg62: memref<64x256xf32, #tpu.memory_space<vmem>>, %arg63: memref<128x256xf32, #tpu.memory_space<vmem>>, %arg64: memref<1x256xf32, #tpu.memory_space<vmem>>, %arg65: memref<256x512xf32, #tpu.memory_space<vmem>>, %arg66: memref<1x512xf32, #tpu.memory_space<vmem>>, %arg67: memref<1x1x512xf32, #tpu.memory_space<vmem>>) attributes {dimension_semantics = [#tpu.dimension_semantics<parallel>], iteration_bounds = array<i64: 2>, scalar_prefetch = 0 : i64, scratch_operands = 0 : i64, tpu.core_type = #tpu.core_type<tc>, window_params = [{transform_indices = @transform_0, window_bounds = array<i64: 4>}, {transform_indices = @transform_1, window_bounds = array<i64: 4>}, {transform_indices = @transform_2, window_bounds = array<i64: 1, 64, 32>}, {transform_indices = @transform_3, window_bounds = array<i64: 1, 64, 128>}, {transform_indices = @transform_4, window_bounds = array<i64: 1, 64, 256>}, {pipeline_mode = #tpu.pipeline_mode<synchronous>, transform_indices = @transform_5, window_bounds = array<i64: 32, 8>}, {pipeline_mode = #tpu.pipeline_mode<synchronous>, transform_indices = @transform_6, window_bounds = array<i64: 1, 8>}, {pipeline_mode = #tpu.pipeline_mode<synchronous>, transform_indices = @transform_7, window_bounds = array<i64: 3, 8, 8>}, {pipeline_mode = #tpu.pipeline_mode<synchronous>, transform_indices = @transform_8, window_bounds = array<i64: 1, 8>}, {pipeline_mode = #tpu.pipeline_mode<synchronous>, transform_indices = @transform_9, window_bounds = array<i64: 3, 8, 8>}, {pipeline_mode = #tpu.pipeline_mode<synchronous>, transform_indices = @transform_10, window_bounds = array<i64: 1, 8>}, {pipeline_mode = #tpu.pipeline_mode<synchronous>, transform_indices = @transform_11, window_bounds = array<i64: 32, 24>}, {pipeline_mode = #tpu.pipeline_mode<synchronous>, transform_indices = @transform_12, window_bounds = array<i64: 1, 24>}, {pipeline_mode = #tpu.pipeline_mode<synchronous>, transform_indices = @transform_13, window_bounds = array<i64: 3, 24, 24>}, {pipeline_mode = #tpu.pipeline_mode<synchronous>, transform_indices = @transform_14, window_bounds = array<i64: 1, 24>}, {pipeline_mode = #tpu.pipeline_mode<synchronous>, transform_indices = @transform_15, window_bounds = array<i64: 8, 16>}, {pipeline_mode = #tpu.pipeline_mode<synchronous>, transform_indices = @transform_16, window_bounds = array<i64: 24, 16>}, {pipeline_mode = #tpu.pipeline_mode<synchronous>, transform_indices = @transform_17, window_bounds = array<i64: 1, 16>}, {pipeline_mode = #tpu.pipeline_mode<synchronous>, transform_indices = @transform_18, window_bounds = array<i64: 16, 8>}, {pipeline_mode = #tpu.pipeline_mode<synchronous>, transform_indices = @transform_19, window_bounds = array<i64: 1, 8>}, {pipeline_mode = #tpu.pipeline_mode<synchronous>, transform_indices = @transform_20, window_bounds = array<i64: 16, 24>}, {pipeline_mode = #tpu.pipeline_mode<synchronous>, transform_indices = @transform_21, window_bounds = array<i64: 1, 24>}, {pipeline_mode = #tpu.pipeline_mode<synchronous>, transform_indices = @transform_22, window_bounds = array<i64: 128, 32>}, {pipeline_mode = #tpu.pipeline_mode<synchronous>, transform_indices = @transform_23, window_bounds = array<i64: 1, 32>}, {pipeline_mode = #tpu.pipeline_mode<synchronous>, transform_indices = @transform_24, window_bounds = array<i64: 3, 32, 32>}, {pipeline_mode = #tpu.pipeline_mode<synchronous>, transform_indices = @transform_25, window_bounds = array<i64: 1, 32>}, {pipeline_mode = #tpu.pipeline_mode<synchronous>, transform_indices = @transform_26, window_bounds = array<i64: 3, 32, 32>}, {pipeline_mode = #tpu.pipeline_mode<synchronous>, transform_indices = @transform_27, window_bounds = array<i64: 1, 32>}, {pipeline_mode = #tpu.pipeline_mode<synchronous>, transform_indices = @transform_28, window_bounds = array<i64: 128, 96>}, {pipeline_mode = #tpu.pipeline_mode<synchronous>, transform_indices = @transform_29, window_bounds = array<i64: 1, 96>}, {pipeline_mode = #tpu.pipeline_mode<synchronous>, transform_indices = @transform_30, window_bounds = array<i64: 3, 96, 96>}, {pipeline_mode = #tpu.pipeline_mode<synchronous>, transform_indices = @transform_31, window_bounds = array<i64: 1, 96>}, {pipeline_mode = #tpu.pipeline_mode<synchronous>, transform_indices = @transform_32, window_bounds = array<i64: 32, 64>}, {pipeline_mode = #tpu.pipeline_mode<synchronous>, transform_indices = @transform_33, window_bounds = array<i64: 96, 64>}, {pipeline_mode = #tpu.pipeline_mode<synchronous>, transform_indices = @transform_34, window_bounds = array<i64: 1, 64>}, {pipeline_mode = #tpu.pipeline_mode<synchronous>, transform_indices = @transform_35, window_bounds = array<i64: 64, 32>}, {pipeline_mode = #tpu.pipeline_mode<synchronous>, transform_indices = @transform_36, window_bounds = array<i64: 1, 32>}, {pipeline_mode = #tpu.pipeline_mode<synchronous>, transform_indices = @transform_37, window_bounds = array<i64: 64, 96>}, {pipeline_mode = #tpu.pipeline_mode<synchronous>, transform_indices = @transform_38, window_bounds = array<i64: 1, 96>}, {pipeline_mode = #tpu.pipeline_mode<synchronous>, transform_indices = @transform_39, window_bounds = array<i64: 32, 64>}, {pipeline_mode = #tpu.pipeline_mode<synchronous>, transform_indices = @transform_40, window_bounds = array<i64: 8, 64>}, {pipeline_mode = #tpu.pipeline_mode<synchronous>, transform_indices = @transform_41, window_bounds = array<i64: 24, 64>}, {pipeline_mode = #tpu.pipeline_mode<synchronous>, transform_indices = @transform_42, window_bounds = array<i64: 1, 64>}, {pipeline_mode = #tpu.pipeline_mode<synchronous>, transform_indices = @transform_43, window_bounds = array<i64: 128, 64>}, {pipeline_mode = #tpu.pipeline_mode<synchronous>, transform_indices = @transform_44, window_bounds = array<i64: 32, 64>}, {pipeline_mode = #tpu.pipeline_mode<synchronous>, transform_indices = @transform_45, window_bounds = array<i64: 96, 64>}, {pipeline_mode = #tpu.pipeline_mode<synchronous>, transform_indices = @transform_46, window_bounds = array<i64: 1, 64>}, {pipeline_mode = #tpu.pipeline_mode<synchronous>, transform_indices = @transform_47, window_bounds = array<i64: 64, 128>}, {pipeline_mode = #tpu.pipeline_mode<synchronous>, transform_indices = @transform_48, window_bounds = array<i64: 1, 128>}, {pipeline_mode = #tpu.pipeline_mode<synchronous>, transform_indices = @transform_49, window_bounds = array<i64: 256, 128>}, {pipeline_mode = #tpu.pipeline_mode<synchronous>, transform_indices = @transform_50, window_bounds = array<i64: 1, 128>}, {pipeline_mode = #tpu.pipeline_mode<synchronous>, transform_indices = @transform_51, window_bounds = array<i64: 64, 32>}, {pipeline_mode = #tpu.pipeline_mode<synchronous>, transform_indices = @transform_52, window_bounds = array<i64: 1, 32>}, {pipeline_mode = #tpu.pipeline_mode<synchronous>, transform_indices = @transform_53, window_bounds = array<i64: 1, 32>}, {pipeline_mode = #tpu.pipeline_mode<synchronous>, transform_indices = @transform_54, window_bounds = array<i64: 32, 64>}, {pipeline_mode = #tpu.pipeline_mode<synchronous>, transform_indices = @transform_55, window_bounds = array<i64: 32, 64>}, {pipeline_mode = #tpu.pipeline_mode<synchronous>, transform_indices = @transform_56, window_bounds = array<i64: 128, 32>}, {pipeline_mode = #tpu.pipeline_mode<synchronous>, transform_indices = @transform_57, window_bounds = array<i64: 1, 32>}, {pipeline_mode = #tpu.pipeline_mode<synchronous>, transform_indices = @transform_58, window_bounds = array<i64: 1, 32>}, {pipeline_mode = #tpu.pipeline_mode<synchronous>, transform_indices = @transform_59, window_bounds = array<i64: 32, 128>}, {pipeline_mode = #tpu.pipeline_mode<synchronous>, transform_indices = @transform_60, window_bounds = array<i64: 32, 128>}, {pipeline_mode = #tpu.pipeline_mode<synchronous>, transform_indices = @transform_61, window_bounds = array<i64: 64, 256>}, {pipeline_mode = #tpu.pipeline_mode<synchronous>, transform_indices = @transform_62, window_bounds = array<i64: 128, 256>}, {pipeline_mode = #tpu.pipeline_mode<synchronous>, transform_indices = @transform_63, window_bounds = array<i64: 1, 256>}, {pipeline_mode = #tpu.pipeline_mode<synchronous>, transform_indices = @transform_64, window_bounds = array<i64: 256, 512>}, {pipeline_mode = #tpu.pipeline_mode<synchronous>, transform_indices = @transform_65, window_bounds = array<i64: 1, 512>}, {transform_indices = @transform_66, window_bounds = array<i64: 1, 1, 512>}]} {
    %0 = tpu.iota {dimensions = array<i32: 0>} : vector<64x1xi32>
    %c0_i32 = arith.constant 0 : i32
    %1 = vector.broadcast %c0_i32 : i32 to vector<64x1xi32>
    %2 = arith.cmpi eq, %0, %1 : vector<64x1xi32>
    %c63_i32 = arith.constant 63 : i32
    %3 = vector.broadcast %c63_i32 : i32 to vector<64x1xi32>
    %4 = arith.cmpi eq, %0, %3 : vector<64x1xi32>
    %c0 = arith.constant 0 : index
    %c0_0 = arith.constant 0 : index
    %c0_1 = arith.constant 0 : index
    %5 = vector.load %arg3[%c0, %c0_0, %c0_1] : memref<1x64x32xf32, #tpu.memory_space<vmem>>, vector<1x64x32xf32>
    %6 = vector.shape_cast %5 : vector<1x64x32xf32> to vector<64x32xf32>
    %c0_2 = arith.constant 0 : index
    %c0_3 = arith.constant 0 : index
    %c0_4 = arith.constant 0 : index
    %7 = vector.load %arg4[%c0_2, %c0_3, %c0_4] : memref<1x64x128xf32, #tpu.memory_space<vmem>>, vector<1x64x128xf32>
    %8 = vector.shape_cast %7 : vector<1x64x128xf32> to vector<64x128xf32>
    %c0_5 = arith.constant 0 : index
    %c0_6 = arith.constant 0 : index
    %c0_7 = arith.constant 0 : index
    %9 = vector.load %arg5[%c0_5, %c0_6, %c0_7] : memref<1x64x256xf32, #tpu.memory_space<vmem>>, vector<1x64x256xf32>
    %10 = vector.shape_cast %9 : vector<1x64x256xf32> to vector<64x256xf32>
    %c1_i32 = arith.constant 1 : i32
    %11 = tpu.dynamic_rotate %6 by %c1_i32 dim 0 : vector<64x32xf32>, i32 -> vector<64x32xf32>
    %cst = arith.constant 0xFF800000 : f32
    %12 = vector.shape_cast %2 : vector<64x1xi1> to vector<64x1xi1>
    %13 = vector.broadcast %12 : vector<64x1xi1> to vector<64x32xi1>
    %14 = vector.broadcast %cst : f32 to vector<64x32xf32>
    %15 = arith.select %13, %14, %11 : vector<64x32xi1>, vector<64x32xf32>
    %c63_i32_8 = arith.constant 63 : i32
    %16 = tpu.dynamic_rotate %6 by %c63_i32_8 dim 0 : vector<64x32xf32>, i32 -> vector<64x32xf32>
    %cst_9 = arith.constant 0xFF800000 : f32
    %17 = vector.shape_cast %4 : vector<64x1xi1> to vector<64x1xi1>
    %18 = vector.broadcast %17 : vector<64x1xi1> to vector<64x32xi1>
    %19 = vector.broadcast %cst_9 : f32 to vector<64x32xf32>
    %20 = arith.select %18, %19, %16 : vector<64x32xi1>, vector<64x32xf32>
    %21 = arith.maximumf %15, %6 : vector<64x32xf32>
    %22 = arith.maximumf %21, %20 : vector<64x32xf32>
    %c1_i32_10 = arith.constant 1 : i32
    %23 = tpu.dynamic_rotate %6 by %c1_i32_10 dim 0 : vector<64x32xf32>, i32 -> vector<64x32xf32>
    %cst_11 = arith.constant 0.000000e+00 : f32
    %24 = vector.shape_cast %2 : vector<64x1xi1> to vector<64x1xi1>
    %25 = vector.broadcast %24 : vector<64x1xi1> to vector<64x32xi1>
    %26 = vector.broadcast %cst_11 : f32 to vector<64x32xf32>
    %27 = arith.select %25, %26, %23 : vector<64x32xi1>, vector<64x32xf32>
    %c63_i32_12 = arith.constant 63 : i32
    %28 = tpu.dynamic_rotate %6 by %c63_i32_12 dim 0 : vector<64x32xf32>, i32 -> vector<64x32xf32>
    %cst_13 = arith.constant 0.000000e+00 : f32
    %29 = vector.shape_cast %4 : vector<64x1xi1> to vector<64x1xi1>
    %30 = vector.broadcast %29 : vector<64x1xi1> to vector<64x32xi1>
    %31 = vector.broadcast %cst_13 : f32 to vector<64x32xf32>
    %32 = arith.select %30, %31, %28 : vector<64x32xi1>, vector<64x32xf32>
    %33 = arith.addf %27, %6 : vector<64x32xf32>
    %34 = arith.addf %33, %32 : vector<64x32xf32>
    %cst_14 = arith.constant 0.333333343 : f32
    %35 = vector.broadcast %cst_14 : f32 to vector<64x32xf32>
    %36 = arith.mulf %34, %35 : vector<64x32xf32>
    %c0_15 = arith.constant 0 : index
    %c0_16 = arith.constant 0 : index
    %37 = vector.load %arg6[%c0_15, %c0_16] : memref<32x8xf32, #tpu.memory_space<vmem>>, vector<32x8xf32>
    %38 = arith.truncf %6 : vector<64x32xf32> to vector<64x32xbf16>
    %39 = arith.truncf %37 : vector<32x8xf32> to vector<32x8xbf16>
    %cst_17 = arith.constant dense<0.000000e+00> : vector<64x8xf32>
    %40 = tpu.matmul %38, %39, %cst_17 {dimension_numbers = #tpu.dot_dimension_numbers<[1], [0], [0], [1], [0, 0, 1, 1], [], []>} : vector<64x32xbf16>, vector<32x8xbf16>, vector<64x8xf32> -> vector<64x8xf32>
    %c0_18 = arith.constant 0 : index
    %c0_19 = arith.constant 0 : index
    %41 = vector.load %arg7[%c0_18, %c0_19] : memref<1x8xf32, #tpu.memory_space<vmem>>, vector<1x8xf32>
    %42 = vector.broadcast %41 : vector<1x8xf32> to vector<64x8xf32>
    %43 = arith.addf %40, %42 : vector<64x8xf32>
    %c1_i32_20 = arith.constant 1 : i32
    %44 = tpu.dynamic_rotate %43 by %c1_i32_20 dim 0 : vector<64x8xf32>, i32 -> vector<64x8xf32>
    %cst_21 = arith.constant 0.000000e+00 : f32
    %45 = vector.shape_cast %2 : vector<64x1xi1> to vector<64x1xi1>
    %46 = vector.broadcast %45 : vector<64x1xi1> to vector<64x8xi1>
    %47 = vector.broadcast %cst_21 : f32 to vector<64x8xf32>
    %48 = arith.select %46, %47, %44 : vector<64x8xi1>, vector<64x8xf32>
    %c63_i32_22 = arith.constant 63 : i32
    %49 = tpu.dynamic_rotate %43 by %c63_i32_22 dim 0 : vector<64x8xf32>, i32 -> vector<64x8xf32>
    %cst_23 = arith.constant 0.000000e+00 : f32
    %50 = vector.shape_cast %4 : vector<64x1xi1> to vector<64x1xi1>
    %51 = vector.broadcast %50 : vector<64x1xi1> to vector<64x8xi1>
    %52 = vector.broadcast %cst_23 : f32 to vector<64x8xf32>
    %53 = arith.select %51, %52, %49 : vector<64x8xi1>, vector<64x8xf32>
    %c0_24 = arith.constant 0 : index
    %c0_25 = arith.constant 0 : index
    %c0_26 = arith.constant 0 : index
    %54 = vector.load %arg8[%c0_24, %c0_25, %c0_26] : memref<3x8x8xf32, #tpu.memory_space<vmem>>, vector<3x8x8xf32>
    %55 = vector.extract_strided_slice %54 {offsets = [0, 0, 0], sizes = [1, 8, 8], strides = [1, 1, 1]} : vector<3x8x8xf32> to vector<1x8x8xf32>
    %56 = vector.shape_cast %55 : vector<1x8x8xf32> to vector<8x8xf32>
    %57 = arith.truncf %48 : vector<64x8xf32> to vector<64x8xbf16>
    %58 = arith.truncf %56 : vector<8x8xf32> to vector<8x8xbf16>
    %cst_27 = arith.constant dense<0.000000e+00> : vector<64x8xf32>
    %59 = tpu.matmul %57, %58, %cst_27 {dimension_numbers = #tpu.dot_dimension_numbers<[1], [0], [0], [1], [0, 0, 1, 1], [], []>} : vector<64x8xbf16>, vector<8x8xbf16>, vector<64x8xf32> -> vector<64x8xf32>
    %60 = vector.extract_strided_slice %54 {offsets = [1, 0, 0], sizes = [1, 8, 8], strides = [1, 1, 1]} : vector<3x8x8xf32> to vector<1x8x8xf32>
    %61 = vector.shape_cast %60 : vector<1x8x8xf32> to vector<8x8xf32>
    %62 = arith.truncf %43 : vector<64x8xf32> to vector<64x8xbf16>
    %63 = arith.truncf %61 : vector<8x8xf32> to vector<8x8xbf16>
    %cst_28 = arith.constant dense<0.000000e+00> : vector<64x8xf32>
    %64 = tpu.matmul %62, %63, %cst_28 {dimension_numbers = #tpu.dot_dimension_numbers<[1], [0], [0], [1], [0, 0, 1, 1], [], []>} : vector<64x8xbf16>, vector<8x8xbf16>, vector<64x8xf32> -> vector<64x8xf32>
    %65 = arith.addf %59, %64 : vector<64x8xf32>
    %66 = vector.extract_strided_slice %54 {offsets = [2, 0, 0], sizes = [1, 8, 8], strides = [1, 1, 1]} : vector<3x8x8xf32> to vector<1x8x8xf32>
    %67 = vector.shape_cast %66 : vector<1x8x8xf32> to vector<8x8xf32>
    %68 = arith.truncf %53 : vector<64x8xf32> to vector<64x8xbf16>
    %69 = arith.truncf %67 : vector<8x8xf32> to vector<8x8xbf16>
    %cst_29 = arith.constant dense<0.000000e+00> : vector<64x8xf32>
    %70 = tpu.matmul %68, %69, %cst_29 {dimension_numbers = #tpu.dot_dimension_numbers<[1], [0], [0], [1], [0, 0, 1, 1], [], []>} : vector<64x8xbf16>, vector<8x8xbf16>, vector<64x8xf32> -> vector<64x8xf32>
    %71 = arith.addf %65, %70 : vector<64x8xf32>
    %c0_30 = arith.constant 0 : index
    %c0_31 = arith.constant 0 : index
    %72 = vector.load %arg9[%c0_30, %c0_31] : memref<1x8xf32, #tpu.memory_space<vmem>>, vector<1x8xf32>
    %73 = vector.broadcast %72 : vector<1x8xf32> to vector<64x8xf32>
    %74 = arith.addf %71, %73 : vector<64x8xf32>
    %c1_i32_32 = arith.constant 1 : i32
    %75 = tpu.dynamic_rotate %74 by %c1_i32_32 dim 0 : vector<64x8xf32>, i32 -> vector<64x8xf32>
    %cst_33 = arith.constant 0.000000e+00 : f32
    %76 = vector.shape_cast %2 : vector<64x1xi1> to vector<64x1xi1>
    %77 = vector.broadcast %76 : vector<64x1xi1> to vector<64x8xi1>
    %78 = vector.broadcast %cst_33 : f32 to vector<64x8xf32>
    %79 = arith.select %77, %78, %75 : vector<64x8xi1>, vector<64x8xf32>
    %c63_i32_34 = arith.constant 63 : i32
    %80 = tpu.dynamic_rotate %74 by %c63_i32_34 dim 0 : vector<64x8xf32>, i32 -> vector<64x8xf32>
    %cst_35 = arith.constant 0.000000e+00 : f32
    %81 = vector.shape_cast %4 : vector<64x1xi1> to vector<64x1xi1>
    %82 = vector.broadcast %81 : vector<64x1xi1> to vector<64x8xi1>
    %83 = vector.broadcast %cst_35 : f32 to vector<64x8xf32>
    %84 = arith.select %82, %83, %80 : vector<64x8xi1>, vector<64x8xf32>
    %c0_36 = arith.constant 0 : index
    %c0_37 = arith.constant 0 : index
    %c0_38 = arith.constant 0 : index
    %85 = vector.load %arg10[%c0_36, %c0_37, %c0_38] : memref<3x8x8xf32, #tpu.memory_space<vmem>>, vector<3x8x8xf32>
    %86 = vector.extract_strided_slice %85 {offsets = [0, 0, 0], sizes = [1, 8, 8], strides = [1, 1, 1]} : vector<3x8x8xf32> to vector<1x8x8xf32>
    %87 = vector.shape_cast %86 : vector<1x8x8xf32> to vector<8x8xf32>
    %88 = arith.truncf %79 : vector<64x8xf32> to vector<64x8xbf16>
    %89 = arith.truncf %87 : vector<8x8xf32> to vector<8x8xbf16>
    %cst_39 = arith.constant dense<0.000000e+00> : vector<64x8xf32>
    %90 = tpu.matmul %88, %89, %cst_39 {dimension_numbers = #tpu.dot_dimension_numbers<[1], [0], [0], [1], [0, 0, 1, 1], [], []>} : vector<64x8xbf16>, vector<8x8xbf16>, vector<64x8xf32> -> vector<64x8xf32>
    %91 = vector.extract_strided_slice %85 {offsets = [1, 0, 0], sizes = [1, 8, 8], strides = [1, 1, 1]} : vector<3x8x8xf32> to vector<1x8x8xf32>
    %92 = vector.shape_cast %91 : vector<1x8x8xf32> to vector<8x8xf32>
    %93 = arith.truncf %74 : vector<64x8xf32> to vector<64x8xbf16>
    %94 = arith.truncf %92 : vector<8x8xf32> to vector<8x8xbf16>
    %cst_40 = arith.constant dense<0.000000e+00> : vector<64x8xf32>
    %95 = tpu.matmul %93, %94, %cst_40 {dimension_numbers = #tpu.dot_dimension_numbers<[1], [0], [0], [1], [0, 0, 1, 1], [], []>} : vector<64x8xbf16>, vector<8x8xbf16>, vector<64x8xf32> -> vector<64x8xf32>
    %96 = arith.addf %90, %95 : vector<64x8xf32>
    %97 = vector.extract_strided_slice %85 {offsets = [2, 0, 0], sizes = [1, 8, 8], strides = [1, 1, 1]} : vector<3x8x8xf32> to vector<1x8x8xf32>
    %98 = vector.shape_cast %97 : vector<1x8x8xf32> to vector<8x8xf32>
    %99 = arith.truncf %84 : vector<64x8xf32> to vector<64x8xbf16>
    %100 = arith.truncf %98 : vector<8x8xf32> to vector<8x8xbf16>
    %cst_41 = arith.constant dense<0.000000e+00> : vector<64x8xf32>
    %101 = tpu.matmul %99, %100, %cst_41 {dimension_numbers = #tpu.dot_dimension_numbers<[1], [0], [0], [1], [0, 0, 1, 1], [], []>} : vector<64x8xbf16>, vector<8x8xbf16>, vector<64x8xf32> -> vector<64x8xf32>
    %102 = arith.addf %96, %101 : vector<64x8xf32>
    %c0_42 = arith.constant 0 : index
    %c0_43 = arith.constant 0 : index
    %103 = vector.load %arg11[%c0_42, %c0_43] : memref<1x8xf32, #tpu.memory_space<vmem>>, vector<1x8xf32>
    %104 = vector.broadcast %103 : vector<1x8xf32> to vector<64x8xf32>
    %105 = arith.addf %102, %104 : vector<64x8xf32>
    %c0_44 = arith.constant 0 : index
    %c0_45 = arith.constant 0 : index
    %106 = vector.load %arg12[%c0_44, %c0_45] : memref<32x24xf32, #tpu.memory_space<vmem>>, vector<32x24xf32>
    %107 = arith.truncf %6 : vector<64x32xf32> to vector<64x32xbf16>
    %108 = arith.truncf %106 : vector<32x24xf32> to vector<32x24xbf16>
    %cst_46 = arith.constant dense<0.000000e+00> : vector<64x24xf32>
    %109 = tpu.matmul %107, %108, %cst_46 {dimension_numbers = #tpu.dot_dimension_numbers<[1], [0], [0], [1], [0, 0, 1, 1], [], []>} : vector<64x32xbf16>, vector<32x24xbf16>, vector<64x24xf32> -> vector<64x24xf32>
    %c0_47 = arith.constant 0 : index
    %c0_48 = arith.constant 0 : index
    %110 = vector.load %arg13[%c0_47, %c0_48] : memref<1x24xf32, #tpu.memory_space<vmem>>, vector<1x24xf32>
    %111 = vector.broadcast %110 : vector<1x24xf32> to vector<64x24xf32>
    %112 = arith.addf %109, %111 : vector<64x24xf32>
    %c1_i32_49 = arith.constant 1 : i32
    %113 = tpu.dynamic_rotate %112 by %c1_i32_49 dim 0 : vector<64x24xf32>, i32 -> vector<64x24xf32>
    %cst_50 = arith.constant 0.000000e+00 : f32
    %114 = vector.shape_cast %2 : vector<64x1xi1> to vector<64x1xi1>
    %115 = vector.broadcast %114 : vector<64x1xi1> to vector<64x24xi1>
    %116 = vector.broadcast %cst_50 : f32 to vector<64x24xf32>
    %117 = arith.select %115, %116, %113 : vector<64x24xi1>, vector<64x24xf32>
    %c63_i32_51 = arith.constant 63 : i32
    %118 = tpu.dynamic_rotate %112 by %c63_i32_51 dim 0 : vector<64x24xf32>, i32 -> vector<64x24xf32>
    %cst_52 = arith.constant 0.000000e+00 : f32
    %119 = vector.shape_cast %4 : vector<64x1xi1> to vector<64x1xi1>
    %120 = vector.broadcast %119 : vector<64x1xi1> to vector<64x24xi1>
    %121 = vector.broadcast %cst_52 : f32 to vector<64x24xf32>
    %122 = arith.select %120, %121, %118 : vector<64x24xi1>, vector<64x24xf32>
    %c0_53 = arith.constant 0 : index
    %c0_54 = arith.constant 0 : index
    %c0_55 = arith.constant 0 : index
    %123 = vector.load %arg14[%c0_53, %c0_54, %c0_55] : memref<3x24x24xf32, #tpu.memory_space<vmem>>, vector<3x24x24xf32>
    %124 = vector.extract_strided_slice %123 {offsets = [0, 0, 0], sizes = [1, 24, 24], strides = [1, 1, 1]} : vector<3x24x24xf32> to vector<1x24x24xf32>
    %125 = vector.shape_cast %124 : vector<1x24x24xf32> to vector<24x24xf32>
    %126 = arith.truncf %117 : vector<64x24xf32> to vector<64x24xbf16>
    %127 = arith.truncf %125 : vector<24x24xf32> to vector<24x24xbf16>
    %cst_56 = arith.constant dense<0.000000e+00> : vector<64x24xf32>
    %128 = tpu.matmul %126, %127, %cst_56 {dimension_numbers = #tpu.dot_dimension_numbers<[1], [0], [0], [1], [0, 0, 1, 1], [], []>} : vector<64x24xbf16>, vector<24x24xbf16>, vector<64x24xf32> -> vector<64x24xf32>
    %129 = vector.extract_strided_slice %123 {offsets = [1, 0, 0], sizes = [1, 24, 24], strides = [1, 1, 1]} : vector<3x24x24xf32> to vector<1x24x24xf32>
    %130 = vector.shape_cast %129 : vector<1x24x24xf32> to vector<24x24xf32>
    %131 = arith.truncf %112 : vector<64x24xf32> to vector<64x24xbf16>
    %132 = arith.truncf %130 : vector<24x24xf32> to vector<24x24xbf16>
    %cst_57 = arith.constant dense<0.000000e+00> : vector<64x24xf32>
    %133 = tpu.matmul %131, %132, %cst_57 {dimension_numbers = #tpu.dot_dimension_numbers<[1], [0], [0], [1], [0, 0, 1, 1], [], []>} : vector<64x24xbf16>, vector<24x24xbf16>, vector<64x24xf32> -> vector<64x24xf32>
    %134 = arith.addf %128, %133 : vector<64x24xf32>
    %135 = vector.extract_strided_slice %123 {offsets = [2, 0, 0], sizes = [1, 24, 24], strides = [1, 1, 1]} : vector<3x24x24xf32> to vector<1x24x24xf32>
    %136 = vector.shape_cast %135 : vector<1x24x24xf32> to vector<24x24xf32>
    %137 = arith.truncf %122 : vector<64x24xf32> to vector<64x24xbf16>
    %138 = arith.truncf %136 : vector<24x24xf32> to vector<24x24xbf16>
    %cst_58 = arith.constant dense<0.000000e+00> : vector<64x24xf32>
    %139 = tpu.matmul %137, %138, %cst_58 {dimension_numbers = #tpu.dot_dimension_numbers<[1], [0], [0], [1], [0, 0, 1, 1], [], []>} : vector<64x24xbf16>, vector<24x24xbf16>, vector<64x24xf32> -> vector<64x24xf32>
    %140 = arith.addf %134, %139 : vector<64x24xf32>
    %c0_59 = arith.constant 0 : index
    %c0_60 = arith.constant 0 : index
    %141 = vector.load %arg15[%c0_59, %c0_60] : memref<1x24xf32, #tpu.memory_space<vmem>>, vector<1x24xf32>
    %142 = vector.broadcast %141 : vector<1x24xf32> to vector<64x24xf32>
    %143 = arith.addf %140, %142 : vector<64x24xf32>
    %cst_61 = arith.constant dense<0.000000e+00> : vector<8xf32>
    %144 = vector.multi_reduction <add>, %105, %cst_61 [0] : vector<64x8xf32> to vector<8xf32>
    %145 = vector.shape_cast %144 : vector<8xf32> to vector<1x8xf32>
    %cst_62 = arith.constant 6.400000e+01 : f32
    %146 = vector.broadcast %cst_62 : f32 to vector<1x8xf32>
    %147 = arith.divf %145, %146 : vector<1x8xf32>
    %cst_63 = arith.constant dense<0.000000e+00> : vector<24xf32>
    %148 = vector.multi_reduction <add>, %143, %cst_63 [0] : vector<64x24xf32> to vector<24xf32>
    %149 = vector.shape_cast %148 : vector<24xf32> to vector<1x24xf32>
    %cst_64 = arith.constant 6.400000e+01 : f32
    %150 = vector.broadcast %cst_64 : f32 to vector<1x24xf32>
    %151 = arith.divf %149, %150 : vector<1x24xf32>
    %c0_65 = arith.constant 0 : index
    %c0_66 = arith.constant 0 : index
    %152 = vector.load %arg16[%c0_65, %c0_66] : memref<8x16xf32, #tpu.memory_space<vmem>>, vector<8x16xf32>
    %153 = arith.truncf %147 : vector<1x8xf32> to vector<1x8xbf16>
    %154 = arith.truncf %152 : vector<8x16xf32> to vector<8x16xbf16>
    %cst_67 = arith.constant dense<0.000000e+00> : vector<1x16xf32>
    %155 = tpu.matmul %153, %154, %cst_67 {dimension_numbers = #tpu.dot_dimension_numbers<[1], [0], [0], [1], [0, 0, 1, 1], [], []>} : vector<1x8xbf16>, vector<8x16xbf16>, vector<1x16xf32> -> vector<1x16xf32>
    %c0_68 = arith.constant 0 : index
    %c0_69 = arith.constant 0 : index
    %156 = vector.load %arg17[%c0_68, %c0_69] : memref<24x16xf32, #tpu.memory_space<vmem>>, vector<24x16xf32>
    %157 = arith.truncf %151 : vector<1x24xf32> to vector<1x24xbf16>
    %158 = arith.truncf %156 : vector<24x16xf32> to vector<24x16xbf16>
    %cst_70 = arith.constant dense<0.000000e+00> : vector<1x16xf32>
    %159 = tpu.matmul %157, %158, %cst_70 {dimension_numbers = #tpu.dot_dimension_numbers<[1], [0], [0], [1], [0, 0, 1, 1], [], []>} : vector<1x24xbf16>, vector<24x16xbf16>, vector<1x16xf32> -> vector<1x16xf32>
    %160 = arith.addf %155, %159 : vector<1x16xf32>
    %c0_71 = arith.constant 0 : index
    %c0_72 = arith.constant 0 : index
    %161 = vector.load %arg18[%c0_71, %c0_72] : memref<1x16xf32, #tpu.memory_space<vmem>>, vector<1x16xf32>
    %162 = arith.addf %160, %161 : vector<1x16xf32>
    %cst_73 = arith.constant 0.000000e+00 : f32
    %163 = vector.broadcast %cst_73 : f32 to vector<1x16xf32>
    %164 = arith.maximumf %162, %163 : vector<1x16xf32>
    %c0_74 = arith.constant 0 : index
    %c0_75 = arith.constant 0 : index
    %165 = vector.load %arg19[%c0_74, %c0_75] : memref<16x8xf32, #tpu.memory_space<vmem>>, vector<16x8xf32>
    %166 = arith.truncf %164 : vector<1x16xf32> to vector<1x16xbf16>
    %167 = arith.truncf %165 : vector<16x8xf32> to vector<16x8xbf16>
    %cst_76 = arith.constant dense<0.000000e+00> : vector<1x8xf32>
    %168 = tpu.matmul %166, %167, %cst_76 {dimension_numbers = #tpu.dot_dimension_numbers<[1], [0], [0], [1], [0, 0, 1, 1], [], []>} : vector<1x16xbf16>, vector<16x8xbf16>, vector<1x8xf32> -> vector<1x8xf32>
    %c0_77 = arith.constant 0 : index
    %c0_78 = arith.constant 0 : index
    %169 = vector.load %arg20[%c0_77, %c0_78] : memref<1x8xf32, #tpu.memory_space<vmem>>, vector<1x8xf32>
    %170 = arith.addf %168, %169 : vector<1x8xf32>
    %171 = arith.negf %170 : vector<1x8xf32>
    %172 = math.exp %171 : vector<1x8xf32>
    %cst_79 = arith.constant 1.000000e+00 : f32
    %173 = vector.broadcast %cst_79 : f32 to vector<1x8xf32>
    %174 = arith.addf %173, %172 : vector<1x8xf32>
    %175 = arith.divf %173, %174 : vector<1x8xf32>
    %c0_80 = arith.constant 0 : index
    %c0_81 = arith.constant 0 : index
    %176 = vector.load %arg21[%c0_80, %c0_81] : memref<16x24xf32, #tpu.memory_space<vmem>>, vector<16x24xf32>
    %177 = arith.truncf %164 : vector<1x16xf32> to vector<1x16xbf16>
    %178 = arith.truncf %176 : vector<16x24xf32> to vector<16x24xbf16>
    %cst_82 = arith.constant dense<0.000000e+00> : vector<1x24xf32>
    %179 = tpu.matmul %177, %178, %cst_82 {dimension_numbers = #tpu.dot_dimension_numbers<[1], [0], [0], [1], [0, 0, 1, 1], [], []>} : vector<1x16xbf16>, vector<16x24xbf16>, vector<1x24xf32> -> vector<1x24xf32>
    %c0_83 = arith.constant 0 : index
    %c0_84 = arith.constant 0 : index
    %180 = vector.load %arg22[%c0_83, %c0_84] : memref<1x24xf32, #tpu.memory_space<vmem>>, vector<1x24xf32>
    %181 = arith.addf %179, %180 : vector<1x24xf32>
    %182 = arith.negf %181 : vector<1x24xf32>
    %183 = math.exp %182 : vector<1x24xf32>
    %cst_85 = arith.constant 1.000000e+00 : f32
    %184 = vector.broadcast %cst_85 : f32 to vector<1x24xf32>
    %185 = arith.addf %184, %183 : vector<1x24xf32>
    %186 = arith.divf %184, %185 : vector<1x24xf32>
    %c0_86 = arith.constant 0 : index
    %187 = memref.load %arg1[%c0_86] : memref<4xf32, #tpu.memory_space<smem>>
    %c1 = arith.constant 1 : index
    %188 = memref.load %arg1[%c1] : memref<4xf32, #tpu.memory_space<smem>>
    %c2 = arith.constant 2 : index
    %189 = memref.load %arg1[%c2] : memref<4xf32, #tpu.memory_space<smem>>
    %c3 = arith.constant 3 : index
    %190 = memref.load %arg1[%c3] : memref<4xf32, #tpu.memory_space<smem>>
    %191 = vector.broadcast %187 : f32 to vector<64x32xf32>
    %192 = arith.mulf %22, %191 : vector<64x32xf32>
    %193 = vector.broadcast %188 : f32 to vector<64x32xf32>
    %194 = arith.mulf %36, %193 : vector<64x32xf32>
    %195 = arith.addf %192, %194 : vector<64x32xf32>
    %196 = vector.broadcast %190 : f32 to vector<64x32xf32>
    %197 = arith.mulf %6, %196 : vector<64x32xf32>
    %198 = arith.addf %195, %197 : vector<64x32xf32>
    %199 = vector.broadcast %189 : f32 to vector<1x8xf32>
    %200 = arith.mulf %175, %199 : vector<1x8xf32>
    %201 = vector.broadcast %200 : vector<1x8xf32> to vector<64x8xf32>
    %202 = arith.mulf %201, %105 : vector<64x8xf32>
    %203 = vector.broadcast %189 : f32 to vector<1x24xf32>
    %204 = arith.mulf %186, %203 : vector<1x24xf32>
    %205 = vector.broadcast %204 : vector<1x24xf32> to vector<64x24xf32>
    %206 = arith.mulf %205, %143 : vector<64x24xf32>
    %c0_87 = arith.constant 0 : index
    %c0_88 = arith.constant 0 : index
    %207 = vector.load %arg40[%c0_87, %c0_88] : memref<32x64xf32, #tpu.memory_space<vmem>>, vector<32x64xf32>
    %208 = arith.truncf %198 : vector<64x32xf32> to vector<64x32xbf16>
    %209 = arith.truncf %207 : vector<32x64xf32> to vector<32x64xbf16>
    %cst_89 = arith.constant dense<0.000000e+00> : vector<64x64xf32>
    %210 = tpu.matmul %208, %209, %cst_89 {dimension_numbers = #tpu.dot_dimension_numbers<[1], [0], [0], [1], [0, 0, 1, 1], [], []>} : vector<64x32xbf16>, vector<32x64xbf16>, vector<64x64xf32> -> vector<64x64xf32>
    %c0_90 = arith.constant 0 : index
    %c0_91 = arith.constant 0 : index
    %211 = vector.load %arg41[%c0_90, %c0_91] : memref<8x64xf32, #tpu.memory_space<vmem>>, vector<8x64xf32>
    %212 = arith.truncf %202 : vector<64x8xf32> to vector<64x8xbf16>
    %213 = arith.truncf %211 : vector<8x64xf32> to vector<8x64xbf16>
    %cst_92 = arith.constant dense<0.000000e+00> : vector<64x64xf32>
    %214 = tpu.matmul %212, %213, %cst_92 {dimension_numbers = #tpu.dot_dimension_numbers<[1], [0], [0], [1], [0, 0, 1, 1], [], []>} : vector<64x8xbf16>, vector<8x64xbf16>, vector<64x64xf32> -> vector<64x64xf32>
    %215 = arith.addf %210, %214 : vector<64x64xf32>
    %c0_93 = arith.constant 0 : index
    %c0_94 = arith.constant 0 : index
    %216 = vector.load %arg42[%c0_93, %c0_94] : memref<24x64xf32, #tpu.memory_space<vmem>>, vector<24x64xf32>
    %217 = arith.truncf %206 : vector<64x24xf32> to vector<64x24xbf16>
    %218 = arith.truncf %216 : vector<24x64xf32> to vector<24x64xbf16>
    %cst_95 = arith.constant dense<0.000000e+00> : vector<64x64xf32>
    %219 = tpu.matmul %217, %218, %cst_95 {dimension_numbers = #tpu.dot_dimension_numbers<[1], [0], [0], [1], [0, 0, 1, 1], [], []>} : vector<64x24xbf16>, vector<24x64xbf16>, vector<64x64xf32> -> vector<64x64xf32>
    %220 = arith.addf %215, %219 : vector<64x64xf32>
    %c0_96 = arith.constant 0 : index
    %c0_97 = arith.constant 0 : index
    %221 = vector.load %arg43[%c0_96, %c0_97] : memref<1x64xf32, #tpu.memory_space<vmem>>, vector<1x64xf32>
    %222 = vector.broadcast %221 : vector<1x64xf32> to vector<64x64xf32>
    %223 = arith.addf %220, %222 : vector<64x64xf32>
    %cst_98 = arith.constant 0.000000e+00 : f32
    %224 = vector.broadcast %cst_98 : f32 to vector<64x64xf32>
    %225 = arith.maximumf %223, %224 : vector<64x64xf32>
    %c1_i32_99 = arith.constant 1 : i32
    %226 = tpu.dynamic_rotate %8 by %c1_i32_99 dim 0 : vector<64x128xf32>, i32 -> vector<64x128xf32>
    %cst_100 = arith.constant 0xFF800000 : f32
    %227 = vector.shape_cast %2 : vector<64x1xi1> to vector<64x1xi1>
    %228 = vector.broadcast %227 : vector<64x1xi1> to vector<64x128xi1>
    %229 = vector.broadcast %cst_100 : f32 to vector<64x128xf32>
    %230 = arith.select %228, %229, %226 : vector<64x128xi1>, vector<64x128xf32>
    %c63_i32_101 = arith.constant 63 : i32
    %231 = tpu.dynamic_rotate %8 by %c63_i32_101 dim 0 : vector<64x128xf32>, i32 -> vector<64x128xf32>
    %cst_102 = arith.constant 0xFF800000 : f32
    %232 = vector.shape_cast %4 : vector<64x1xi1> to vector<64x1xi1>
    %233 = vector.broadcast %232 : vector<64x1xi1> to vector<64x128xi1>
    %234 = vector.broadcast %cst_102 : f32 to vector<64x128xf32>
    %235 = arith.select %233, %234, %231 : vector<64x128xi1>, vector<64x128xf32>
    %236 = arith.maximumf %230, %8 : vector<64x128xf32>
    %237 = arith.maximumf %236, %235 : vector<64x128xf32>
    %c1_i32_103 = arith.constant 1 : i32
    %238 = tpu.dynamic_rotate %8 by %c1_i32_103 dim 0 : vector<64x128xf32>, i32 -> vector<64x128xf32>
    %cst_104 = arith.constant 0.000000e+00 : f32
    %239 = vector.shape_cast %2 : vector<64x1xi1> to vector<64x1xi1>
    %240 = vector.broadcast %239 : vector<64x1xi1> to vector<64x128xi1>
    %241 = vector.broadcast %cst_104 : f32 to vector<64x128xf32>
    %242 = arith.select %240, %241, %238 : vector<64x128xi1>, vector<64x128xf32>
    %c63_i32_105 = arith.constant 63 : i32
    %243 = tpu.dynamic_rotate %8 by %c63_i32_105 dim 0 : vector<64x128xf32>, i32 -> vector<64x128xf32>
    %cst_106 = arith.constant 0.000000e+00 : f32
    %244 = vector.shape_cast %4 : vector<64x1xi1> to vector<64x1xi1>
    %245 = vector.broadcast %244 : vector<64x1xi1> to vector<64x128xi1>
    %246 = vector.broadcast %cst_106 : f32 to vector<64x128xf32>
    %247 = arith.select %245, %246, %243 : vector<64x128xi1>, vector<64x128xf32>
    %248 = arith.addf %242, %8 : vector<64x128xf32>
    %249 = arith.addf %248, %247 : vector<64x128xf32>
    %cst_107 = arith.constant 0.333333343 : f32
    %250 = vector.broadcast %cst_107 : f32 to vector<64x128xf32>
    %251 = arith.mulf %249, %250 : vector<64x128xf32>
    %c0_108 = arith.constant 0 : index
    %c0_109 = arith.constant 0 : index
    %252 = vector.load %arg23[%c0_108, %c0_109] : memref<128x32xf32, #tpu.memory_space<vmem>>, vector<128x32xf32>
    %253 = arith.truncf %8 : vector<64x128xf32> to vector<64x128xbf16>
    %254 = arith.truncf %252 : vector<128x32xf32> to vector<128x32xbf16>
    %cst_110 = arith.constant dense<0.000000e+00> : vector<64x32xf32>
    %255 = tpu.matmul %253, %254, %cst_110 {dimension_numbers = #tpu.dot_dimension_numbers<[1], [0], [0], [1], [0, 0, 1, 1], [], []>} : vector<64x128xbf16>, vector<128x32xbf16>, vector<64x32xf32> -> vector<64x32xf32>
    %c0_111 = arith.constant 0 : index
    %c0_112 = arith.constant 0 : index
    %256 = vector.load %arg24[%c0_111, %c0_112] : memref<1x32xf32, #tpu.memory_space<vmem>>, vector<1x32xf32>
    %257 = vector.broadcast %256 : vector<1x32xf32> to vector<64x32xf32>
    %258 = arith.addf %255, %257 : vector<64x32xf32>
    %c1_i32_113 = arith.constant 1 : i32
    %259 = tpu.dynamic_rotate %258 by %c1_i32_113 dim 0 : vector<64x32xf32>, i32 -> vector<64x32xf32>
    %cst_114 = arith.constant 0.000000e+00 : f32
    %260 = vector.shape_cast %2 : vector<64x1xi1> to vector<64x1xi1>
    %261 = vector.broadcast %260 : vector<64x1xi1> to vector<64x32xi1>
    %262 = vector.broadcast %cst_114 : f32 to vector<64x32xf32>
    %263 = arith.select %261, %262, %259 : vector<64x32xi1>, vector<64x32xf32>
    %c63_i32_115 = arith.constant 63 : i32
    %264 = tpu.dynamic_rotate %258 by %c63_i32_115 dim 0 : vector<64x32xf32>, i32 -> vector<64x32xf32>
    %cst_116 = arith.constant 0.000000e+00 : f32
    %265 = vector.shape_cast %4 : vector<64x1xi1> to vector<64x1xi1>
    %266 = vector.broadcast %265 : vector<64x1xi1> to vector<64x32xi1>
    %267 = vector.broadcast %cst_116 : f32 to vector<64x32xf32>
    %268 = arith.select %266, %267, %264 : vector<64x32xi1>, vector<64x32xf32>
    %c0_117 = arith.constant 0 : index
    %c0_118 = arith.constant 0 : index
    %c0_119 = arith.constant 0 : index
    %269 = vector.load %arg25[%c0_117, %c0_118, %c0_119] : memref<3x32x32xf32, #tpu.memory_space<vmem>>, vector<3x32x32xf32>
    %270 = vector.extract_strided_slice %269 {offsets = [0, 0, 0], sizes = [1, 32, 32], strides = [1, 1, 1]} : vector<3x32x32xf32> to vector<1x32x32xf32>
    %271 = vector.shape_cast %270 : vector<1x32x32xf32> to vector<32x32xf32>
    %272 = arith.truncf %263 : vector<64x32xf32> to vector<64x32xbf16>
    %273 = arith.truncf %271 : vector<32x32xf32> to vector<32x32xbf16>
    %cst_120 = arith.constant dense<0.000000e+00> : vector<64x32xf32>
    %274 = tpu.matmul %272, %273, %cst_120 {dimension_numbers = #tpu.dot_dimension_numbers<[1], [0], [0], [1], [0, 0, 1, 1], [], []>} : vector<64x32xbf16>, vector<32x32xbf16>, vector<64x32xf32> -> vector<64x32xf32>
    %275 = vector.extract_strided_slice %269 {offsets = [1, 0, 0], sizes = [1, 32, 32], strides = [1, 1, 1]} : vector<3x32x32xf32> to vector<1x32x32xf32>
    %276 = vector.shape_cast %275 : vector<1x32x32xf32> to vector<32x32xf32>
    %277 = arith.truncf %258 : vector<64x32xf32> to vector<64x32xbf16>
    %278 = arith.truncf %276 : vector<32x32xf32> to vector<32x32xbf16>
    %cst_121 = arith.constant dense<0.000000e+00> : vector<64x32xf32>
    %279 = tpu.matmul %277, %278, %cst_121 {dimension_numbers = #tpu.dot_dimension_numbers<[1], [0], [0], [1], [0, 0, 1, 1], [], []>} : vector<64x32xbf16>, vector<32x32xbf16>, vector<64x32xf32> -> vector<64x32xf32>
    %280 = arith.addf %274, %279 : vector<64x32xf32>
    %281 = vector.extract_strided_slice %269 {offsets = [2, 0, 0], sizes = [1, 32, 32], strides = [1, 1, 1]} : vector<3x32x32xf32> to vector<1x32x32xf32>
    %282 = vector.shape_cast %281 : vector<1x32x32xf32> to vector<32x32xf32>
    %283 = arith.truncf %268 : vector<64x32xf32> to vector<64x32xbf16>
    %284 = arith.truncf %282 : vector<32x32xf32> to vector<32x32xbf16>
    %cst_122 = arith.constant dense<0.000000e+00> : vector<64x32xf32>
    %285 = tpu.matmul %283, %284, %cst_122 {dimension_numbers = #tpu.dot_dimension_numbers<[1], [0], [0], [1], [0, 0, 1, 1], [], []>} : vector<64x32xbf16>, vector<32x32xbf16>, vector<64x32xf32> -> vector<64x32xf32>
    %286 = arith.addf %280, %285 : vector<64x32xf32>
    %c0_123 = arith.constant 0 : index
    %c0_124 = arith.constant 0 : index
    %287 = vector.load %arg26[%c0_123, %c0_124] : memref<1x32xf32, #tpu.memory_space<vmem>>, vector<1x32xf32>
    %288 = vector.broadcast %287 : vector<1x32xf32> to vector<64x32xf32>
    %289 = arith.addf %286, %288 : vector<64x32xf32>
    %c1_i32_125 = arith.constant 1 : i32
    %290 = tpu.dynamic_rotate %289 by %c1_i32_125 dim 0 : vector<64x32xf32>, i32 -> vector<64x32xf32>
    %cst_126 = arith.constant 0.000000e+00 : f32
    %291 = vector.shape_cast %2 : vector<64x1xi1> to vector<64x1xi1>
    %292 = vector.broadcast %291 : vector<64x1xi1> to vector<64x32xi1>
    %293 = vector.broadcast %cst_126 : f32 to vector<64x32xf32>
    %294 = arith.select %292, %293, %290 : vector<64x32xi1>, vector<64x32xf32>
    %c63_i32_127 = arith.constant 63 : i32
    %295 = tpu.dynamic_rotate %289 by %c63_i32_127 dim 0 : vector<64x32xf32>, i32 -> vector<64x32xf32>
    %cst_128 = arith.constant 0.000000e+00 : f32
    %296 = vector.shape_cast %4 : vector<64x1xi1> to vector<64x1xi1>
    %297 = vector.broadcast %296 : vector<64x1xi1> to vector<64x32xi1>
    %298 = vector.broadcast %cst_128 : f32 to vector<64x32xf32>
    %299 = arith.select %297, %298, %295 : vector<64x32xi1>, vector<64x32xf32>
    %c0_129 = arith.constant 0 : index
    %c0_130 = arith.constant 0 : index
    %c0_131 = arith.constant 0 : index
    %300 = vector.load %arg27[%c0_129, %c0_130, %c0_131] : memref<3x32x32xf32, #tpu.memory_space<vmem>>, vector<3x32x32xf32>
    %301 = vector.extract_strided_slice %300 {offsets = [0, 0, 0], sizes = [1, 32, 32], strides = [1, 1, 1]} : vector<3x32x32xf32> to vector<1x32x32xf32>
    %302 = vector.shape_cast %301 : vector<1x32x32xf32> to vector<32x32xf32>
    %303 = arith.truncf %294 : vector<64x32xf32> to vector<64x32xbf16>
    %304 = arith.truncf %302 : vector<32x32xf32> to vector<32x32xbf16>
    %cst_132 = arith.constant dense<0.000000e+00> : vector<64x32xf32>
    %305 = tpu.matmul %303, %304, %cst_132 {dimension_numbers = #tpu.dot_dimension_numbers<[1], [0], [0], [1], [0, 0, 1, 1], [], []>} : vector<64x32xbf16>, vector<32x32xbf16>, vector<64x32xf32> -> vector<64x32xf32>
    %306 = vector.extract_strided_slice %300 {offsets = [1, 0, 0], sizes = [1, 32, 32], strides = [1, 1, 1]} : vector<3x32x32xf32> to vector<1x32x32xf32>
    %307 = vector.shape_cast %306 : vector<1x32x32xf32> to vector<32x32xf32>
    %308 = arith.truncf %289 : vector<64x32xf32> to vector<64x32xbf16>
    %309 = arith.truncf %307 : vector<32x32xf32> to vector<32x32xbf16>
    %cst_133 = arith.constant dense<0.000000e+00> : vector<64x32xf32>
    %310 = tpu.matmul %308, %309, %cst_133 {dimension_numbers = #tpu.dot_dimension_numbers<[1], [0], [0], [1], [0, 0, 1, 1], [], []>} : vector<64x32xbf16>, vector<32x32xbf16>, vector<64x32xf32> -> vector<64x32xf32>
    %311 = arith.addf %305, %310 : vector<64x32xf32>
    %312 = vector.extract_strided_slice %300 {offsets = [2, 0, 0], sizes = [1, 32, 32], strides = [1, 1, 1]} : vector<3x32x32xf32> to vector<1x32x32xf32>
    %313 = vector.shape_cast %312 : vector<1x32x32xf32> to vector<32x32xf32>
    %314 = arith.truncf %299 : vector<64x32xf32> to vector<64x32xbf16>
    %315 = arith.truncf %313 : vector<32x32xf32> to vector<32x32xbf16>
    %cst_134 = arith.constant dense<0.000000e+00> : vector<64x32xf32>
    %316 = tpu.matmul %314, %315, %cst_134 {dimension_numbers = #tpu.dot_dimension_numbers<[1], [0], [0], [1], [0, 0, 1, 1], [], []>} : vector<64x32xbf16>, vector<32x32xbf16>, vector<64x32xf32> -> vector<64x32xf32>
    %317 = arith.addf %311, %316 : vector<64x32xf32>
    %c0_135 = arith.constant 0 : index
    %c0_136 = arith.constant 0 : index
    %318 = vector.load %arg28[%c0_135, %c0_136] : memref<1x32xf32, #tpu.memory_space<vmem>>, vector<1x32xf32>
    %319 = vector.broadcast %318 : vector<1x32xf32> to vector<64x32xf32>
    %320 = arith.addf %317, %319 : vector<64x32xf32>
    %c0_137 = arith.constant 0 : index
    %c0_138 = arith.constant 0 : index
    %321 = vector.load %arg29[%c0_137, %c0_138] : memref<128x96xf32, #tpu.memory_space<vmem>>, vector<128x96xf32>
    %322 = arith.truncf %8 : vector<64x128xf32> to vector<64x128xbf16>
    %323 = arith.truncf %321 : vector<128x96xf32> to vector<128x96xbf16>
    %cst_139 = arith.constant dense<0.000000e+00> : vector<64x96xf32>
    %324 = tpu.matmul %322, %323, %cst_139 {dimension_numbers = #tpu.dot_dimension_numbers<[1], [0], [0], [1], [0, 0, 1, 1], [], []>} : vector<64x128xbf16>, vector<128x96xbf16>, vector<64x96xf32> -> vector<64x96xf32>
    %c0_140 = arith.constant 0 : index
    %c0_141 = arith.constant 0 : index
    %325 = vector.load %arg30[%c0_140, %c0_141] : memref<1x96xf32, #tpu.memory_space<vmem>>, vector<1x96xf32>
    %326 = vector.broadcast %325 : vector<1x96xf32> to vector<64x96xf32>
    %327 = arith.addf %324, %326 : vector<64x96xf32>
    %c1_i32_142 = arith.constant 1 : i32
    %328 = tpu.dynamic_rotate %327 by %c1_i32_142 dim 0 : vector<64x96xf32>, i32 -> vector<64x96xf32>
    %cst_143 = arith.constant 0.000000e+00 : f32
    %329 = vector.shape_cast %2 : vector<64x1xi1> to vector<64x1xi1>
    %330 = vector.broadcast %329 : vector<64x1xi1> to vector<64x96xi1>
    %331 = vector.broadcast %cst_143 : f32 to vector<64x96xf32>
    %332 = arith.select %330, %331, %328 : vector<64x96xi1>, vector<64x96xf32>
    %c63_i32_144 = arith.constant 63 : i32
    %333 = tpu.dynamic_rotate %327 by %c63_i32_144 dim 0 : vector<64x96xf32>, i32 -> vector<64x96xf32>
    %cst_145 = arith.constant 0.000000e+00 : f32
    %334 = vector.shape_cast %4 : vector<64x1xi1> to vector<64x1xi1>
    %335 = vector.broadcast %334 : vector<64x1xi1> to vector<64x96xi1>
    %336 = vector.broadcast %cst_145 : f32 to vector<64x96xf32>
    %337 = arith.select %335, %336, %333 : vector<64x96xi1>, vector<64x96xf32>
    %c0_146 = arith.constant 0 : index
    %c0_147 = arith.constant 0 : index
    %c0_148 = arith.constant 0 : index
    %338 = vector.load %arg31[%c0_146, %c0_147, %c0_148] : memref<3x96x96xf32, #tpu.memory_space<vmem>>, vector<3x96x96xf32>
    %339 = vector.extract_strided_slice %338 {offsets = [0, 0, 0], sizes = [1, 96, 96], strides = [1, 1, 1]} : vector<3x96x96xf32> to vector<1x96x96xf32>
    %340 = vector.shape_cast %339 : vector<1x96x96xf32> to vector<96x96xf32>
    %341 = arith.truncf %332 : vector<64x96xf32> to vector<64x96xbf16>
    %342 = arith.truncf %340 : vector<96x96xf32> to vector<96x96xbf16>
    %cst_149 = arith.constant dense<0.000000e+00> : vector<64x96xf32>
    %343 = tpu.matmul %341, %342, %cst_149 {dimension_numbers = #tpu.dot_dimension_numbers<[1], [0], [0], [1], [0, 0, 1, 1], [], []>} : vector<64x96xbf16>, vector<96x96xbf16>, vector<64x96xf32> -> vector<64x96xf32>
    %344 = vector.extract_strided_slice %338 {offsets = [1, 0, 0], sizes = [1, 96, 96], strides = [1, 1, 1]} : vector<3x96x96xf32> to vector<1x96x96xf32>
    %345 = vector.shape_cast %344 : vector<1x96x96xf32> to vector<96x96xf32>
    %346 = arith.truncf %327 : vector<64x96xf32> to vector<64x96xbf16>
    %347 = arith.truncf %345 : vector<96x96xf32> to vector<96x96xbf16>
    %cst_150 = arith.constant dense<0.000000e+00> : vector<64x96xf32>
    %348 = tpu.matmul %346, %347, %cst_150 {dimension_numbers = #tpu.dot_dimension_numbers<[1], [0], [0], [1], [0, 0, 1, 1], [], []>} : vector<64x96xbf16>, vector<96x96xbf16>, vector<64x96xf32> -> vector<64x96xf32>
    %349 = arith.addf %343, %348 : vector<64x96xf32>
    %350 = vector.extract_strided_slice %338 {offsets = [2, 0, 0], sizes = [1, 96, 96], strides = [1, 1, 1]} : vector<3x96x96xf32> to vector<1x96x96xf32>
    %351 = vector.shape_cast %350 : vector<1x96x96xf32> to vector<96x96xf32>
    %352 = arith.truncf %337 : vector<64x96xf32> to vector<64x96xbf16>
    %353 = arith.truncf %351 : vector<96x96xf32> to vector<96x96xbf16>
    %cst_151 = arith.constant dense<0.000000e+00> : vector<64x96xf32>
    %354 = tpu.matmul %352, %353, %cst_151 {dimension_numbers = #tpu.dot_dimension_numbers<[1], [0], [0], [1], [0, 0, 1, 1], [], []>} : vector<64x96xbf16>, vector<96x96xbf16>, vector<64x96xf32> -> vector<64x96xf32>
    %355 = arith.addf %349, %354 : vector<64x96xf32>
    %c0_152 = arith.constant 0 : index
    %c0_153 = arith.constant 0 : index
    %356 = vector.load %arg32[%c0_152, %c0_153] : memref<1x96xf32, #tpu.memory_space<vmem>>, vector<1x96xf32>
    %357 = vector.broadcast %356 : vector<1x96xf32> to vector<64x96xf32>
    %358 = arith.addf %355, %357 : vector<64x96xf32>
    %cst_154 = arith.constant dense<0.000000e+00> : vector<32xf32>
    %359 = vector.multi_reduction <add>, %320, %cst_154 [0] : vector<64x32xf32> to vector<32xf32>
    %360 = vector.shape_cast %359 : vector<32xf32> to vector<1x32xf32>
    %cst_155 = arith.constant 6.400000e+01 : f32
    %361 = vector.broadcast %cst_155 : f32 to vector<1x32xf32>
    %362 = arith.divf %360, %361 : vector<1x32xf32>
    %cst_156 = arith.constant dense<0.000000e+00> : vector<96xf32>
    %363 = vector.multi_reduction <add>, %358, %cst_156 [0] : vector<64x96xf32> to vector<96xf32>
    %364 = vector.shape_cast %363 : vector<96xf32> to vector<1x96xf32>
    %cst_157 = arith.constant 6.400000e+01 : f32
    %365 = vector.broadcast %cst_157 : f32 to vector<1x96xf32>
    %366 = arith.divf %364, %365 : vector<1x96xf32>
    %c0_158 = arith.constant 0 : index
    %c0_159 = arith.constant 0 : index
    %367 = vector.load %arg33[%c0_158, %c0_159] : memref<32x64xf32, #tpu.memory_space<vmem>>, vector<32x64xf32>
    %368 = arith.truncf %362 : vector<1x32xf32> to vector<1x32xbf16>
    %369 = arith.truncf %367 : vector<32x64xf32> to vector<32x64xbf16>
    %cst_160 = arith.constant dense<0.000000e+00> : vector<1x64xf32>
    %370 = tpu.matmul %368, %369, %cst_160 {dimension_numbers = #tpu.dot_dimension_numbers<[1], [0], [0], [1], [0, 0, 1, 1], [], []>} : vector<1x32xbf16>, vector<32x64xbf16>, vector<1x64xf32> -> vector<1x64xf32>
    %c0_161 = arith.constant 0 : index
    %c0_162 = arith.constant 0 : index
    %371 = vector.load %arg34[%c0_161, %c0_162] : memref<96x64xf32, #tpu.memory_space<vmem>>, vector<96x64xf32>
    %372 = arith.truncf %366 : vector<1x96xf32> to vector<1x96xbf16>
    %373 = arith.truncf %371 : vector<96x64xf32> to vector<96x64xbf16>
    %cst_163 = arith.constant dense<0.000000e+00> : vector<1x64xf32>
    %374 = tpu.matmul %372, %373, %cst_163 {dimension_numbers = #tpu.dot_dimension_numbers<[1], [0], [0], [1], [0, 0, 1, 1], [], []>} : vector<1x96xbf16>, vector<96x64xbf16>, vector<1x64xf32> -> vector<1x64xf32>
    %375 = arith.addf %370, %374 : vector<1x64xf32>
    %c0_164 = arith.constant 0 : index
    %c0_165 = arith.constant 0 : index
    %376 = vector.load %arg35[%c0_164, %c0_165] : memref<1x64xf32, #tpu.memory_space<vmem>>, vector<1x64xf32>
    %377 = arith.addf %375, %376 : vector<1x64xf32>
    %cst_166 = arith.constant 0.000000e+00 : f32
    %378 = vector.broadcast %cst_166 : f32 to vector<1x64xf32>
    %379 = arith.maximumf %377, %378 : vector<1x64xf32>
    %c0_167 = arith.constant 0 : index
    %c0_168 = arith.constant 0 : index
    %380 = vector.load %arg36[%c0_167, %c0_168] : memref<64x32xf32, #tpu.memory_space<vmem>>, vector<64x32xf32>
    %381 = arith.truncf %379 : vector<1x64xf32> to vector<1x64xbf16>
    %382 = arith.truncf %380 : vector<64x32xf32> to vector<64x32xbf16>
    %cst_169 = arith.constant dense<0.000000e+00> : vector<1x32xf32>
    %383 = tpu.matmul %381, %382, %cst_169 {dimension_numbers = #tpu.dot_dimension_numbers<[1], [0], [0], [1], [0, 0, 1, 1], [], []>} : vector<1x64xbf16>, vector<64x32xbf16>, vector<1x32xf32> -> vector<1x32xf32>
    %c0_170 = arith.constant 0 : index
    %c0_171 = arith.constant 0 : index
    %384 = vector.load %arg37[%c0_170, %c0_171] : memref<1x32xf32, #tpu.memory_space<vmem>>, vector<1x32xf32>
    %385 = arith.addf %383, %384 : vector<1x32xf32>
    %386 = arith.negf %385 : vector<1x32xf32>
    %387 = math.exp %386 : vector<1x32xf32>
    %cst_172 = arith.constant 1.000000e+00 : f32
    %388 = vector.broadcast %cst_172 : f32 to vector<1x32xf32>
    %389 = arith.addf %388, %387 : vector<1x32xf32>
    %390 = arith.divf %388, %389 : vector<1x32xf32>
    %c0_173 = arith.constant 0 : index
    %c0_174 = arith.constant 0 : index
    %391 = vector.load %arg38[%c0_173, %c0_174] : memref<64x96xf32, #tpu.memory_space<vmem>>, vector<64x96xf32>
    %392 = arith.truncf %379 : vector<1x64xf32> to vector<1x64xbf16>
    %393 = arith.truncf %391 : vector<64x96xf32> to vector<64x96xbf16>
    %cst_175 = arith.constant dense<0.000000e+00> : vector<1x96xf32>
    %394 = tpu.matmul %392, %393, %cst_175 {dimension_numbers = #tpu.dot_dimension_numbers<[1], [0], [0], [1], [0, 0, 1, 1], [], []>} : vector<1x64xbf16>, vector<64x96xbf16>, vector<1x96xf32> -> vector<1x96xf32>
    %c0_176 = arith.constant 0 : index
    %c0_177 = arith.constant 0 : index
    %395 = vector.load %arg39[%c0_176, %c0_177] : memref<1x96xf32, #tpu.memory_space<vmem>>, vector<1x96xf32>
    %396 = arith.addf %394, %395 : vector<1x96xf32>
    %397 = arith.negf %396 : vector<1x96xf32>
    %398 = math.exp %397 : vector<1x96xf32>
    %cst_178 = arith.constant 1.000000e+00 : f32
    %399 = vector.broadcast %cst_178 : f32 to vector<1x96xf32>
    %400 = arith.addf %399, %398 : vector<1x96xf32>
    %401 = arith.divf %399, %400 : vector<1x96xf32>
    %c0_179 = arith.constant 0 : index
    %402 = memref.load %arg2[%c0_179] : memref<4xf32, #tpu.memory_space<smem>>
    %c1_180 = arith.constant 1 : index
    %403 = memref.load %arg2[%c1_180] : memref<4xf32, #tpu.memory_space<smem>>
    %c2_181 = arith.constant 2 : index
    %404 = memref.load %arg2[%c2_181] : memref<4xf32, #tpu.memory_space<smem>>
    %c3_182 = arith.constant 3 : index
    %405 = memref.load %arg2[%c3_182] : memref<4xf32, #tpu.memory_space<smem>>
    %406 = vector.broadcast %402 : f32 to vector<64x128xf32>
    %407 = arith.mulf %237, %406 : vector<64x128xf32>
    %408 = vector.broadcast %403 : f32 to vector<64x128xf32>
    %409 = arith.mulf %251, %408 : vector<64x128xf32>
    %410 = arith.addf %407, %409 : vector<64x128xf32>
    %411 = vector.broadcast %405 : f32 to vector<64x128xf32>
    %412 = arith.mulf %8, %411 : vector<64x128xf32>
    %413 = arith.addf %410, %412 : vector<64x128xf32>
    %414 = vector.broadcast %404 : f32 to vector<1x32xf32>
    %415 = arith.mulf %390, %414 : vector<1x32xf32>
    %416 = vector.broadcast %415 : vector<1x32xf32> to vector<64x32xf32>
    %417 = arith.mulf %416, %320 : vector<64x32xf32>
    %418 = vector.broadcast %404 : f32 to vector<1x96xf32>
    %419 = arith.mulf %401, %418 : vector<1x96xf32>
    %420 = vector.broadcast %419 : vector<1x96xf32> to vector<64x96xf32>
    %421 = arith.mulf %420, %358 : vector<64x96xf32>
    %c0_183 = arith.constant 0 : index
    %c0_184 = arith.constant 0 : index
    %422 = vector.load %arg44[%c0_183, %c0_184] : memref<128x64xf32, #tpu.memory_space<vmem>>, vector<128x64xf32>
    %423 = arith.truncf %413 : vector<64x128xf32> to vector<64x128xbf16>
    %424 = arith.truncf %422 : vector<128x64xf32> to vector<128x64xbf16>
    %cst_185 = arith.constant dense<0.000000e+00> : vector<64x64xf32>
    %425 = tpu.matmul %423, %424, %cst_185 {dimension_numbers = #tpu.dot_dimension_numbers<[1], [0], [0], [1], [0, 0, 1, 1], [], []>} : vector<64x128xbf16>, vector<128x64xbf16>, vector<64x64xf32> -> vector<64x64xf32>
    %c0_186 = arith.constant 0 : index
    %c0_187 = arith.constant 0 : index
    %426 = vector.load %arg45[%c0_186, %c0_187] : memref<32x64xf32, #tpu.memory_space<vmem>>, vector<32x64xf32>
    %427 = arith.truncf %417 : vector<64x32xf32> to vector<64x32xbf16>
    %428 = arith.truncf %426 : vector<32x64xf32> to vector<32x64xbf16>
    %cst_188 = arith.constant dense<0.000000e+00> : vector<64x64xf32>
    %429 = tpu.matmul %427, %428, %cst_188 {dimension_numbers = #tpu.dot_dimension_numbers<[1], [0], [0], [1], [0, 0, 1, 1], [], []>} : vector<64x32xbf16>, vector<32x64xbf16>, vector<64x64xf32> -> vector<64x64xf32>
    %430 = arith.addf %425, %429 : vector<64x64xf32>
    %c0_189 = arith.constant 0 : index
    %c0_190 = arith.constant 0 : index
    %431 = vector.load %arg46[%c0_189, %c0_190] : memref<96x64xf32, #tpu.memory_space<vmem>>, vector<96x64xf32>
    %432 = arith.truncf %421 : vector<64x96xf32> to vector<64x96xbf16>
    %433 = arith.truncf %431 : vector<96x64xf32> to vector<96x64xbf16>
    %cst_191 = arith.constant dense<0.000000e+00> : vector<64x64xf32>
    %434 = tpu.matmul %432, %433, %cst_191 {dimension_numbers = #tpu.dot_dimension_numbers<[1], [0], [0], [1], [0, 0, 1, 1], [], []>} : vector<64x96xbf16>, vector<96x64xbf16>, vector<64x64xf32> -> vector<64x64xf32>
    %435 = arith.addf %430, %434 : vector<64x64xf32>
    %c0_192 = arith.constant 0 : index
    %c0_193 = arith.constant 0 : index
    %436 = vector.load %arg47[%c0_192, %c0_193] : memref<1x64xf32, #tpu.memory_space<vmem>>, vector<1x64xf32>
    %437 = vector.broadcast %436 : vector<1x64xf32> to vector<64x64xf32>
    %438 = arith.addf %435, %437 : vector<64x64xf32>
    %cst_194 = arith.constant 0.000000e+00 : f32
    %439 = vector.broadcast %cst_194 : f32 to vector<64x64xf32>
    %440 = arith.maximumf %438, %439 : vector<64x64xf32>
    %441 = arith.addf %225, %440 : vector<64x64xf32>
    %cst_195 = arith.constant dense<0.000000e+00> : vector<64xf32>
    %442 = vector.multi_reduction <add>, %441, %cst_195 [0] : vector<64x64xf32> to vector<64xf32>
    %443 = vector.shape_cast %442 : vector<64xf32> to vector<1x64xf32>
    %cst_196 = arith.constant 6.400000e+01 : f32
    %444 = vector.broadcast %cst_196 : f32 to vector<1x64xf32>
    %445 = arith.divf %443, %444 : vector<1x64xf32>
    %c0_197 = arith.constant 0 : index
    %c0_198 = arith.constant 0 : index
    %446 = vector.load %arg52[%c0_197, %c0_198] : memref<64x32xf32, #tpu.memory_space<vmem>>, vector<64x32xf32>
    %447 = arith.truncf %445 : vector<1x64xf32> to vector<1x64xbf16>
    %448 = arith.truncf %446 : vector<64x32xf32> to vector<64x32xbf16>
    %cst_199 = arith.constant dense<0.000000e+00> : vector<1x32xf32>
    %449 = tpu.matmul %447, %448, %cst_199 {dimension_numbers = #tpu.dot_dimension_numbers<[1], [0], [0], [1], [0, 0, 1, 1], [], []>} : vector<1x64xbf16>, vector<64x32xbf16>, vector<1x32xf32> -> vector<1x32xf32>
    %c0_200 = arith.constant 0 : index
    %c0_201 = arith.constant 0 : index
    %450 = vector.load %arg53[%c0_200, %c0_201] : memref<1x32xf32, #tpu.memory_space<vmem>>, vector<1x32xf32>
    %451 = arith.mulf %449, %450 : vector<1x32xf32>
    %c0_202 = arith.constant 0 : index
    %c0_203 = arith.constant 0 : index
    %452 = vector.load %arg54[%c0_202, %c0_203] : memref<1x32xf32, #tpu.memory_space<vmem>>, vector<1x32xf32>
    %453 = arith.addf %451, %452 : vector<1x32xf32>
    %cst_204 = arith.constant 0.000000e+00 : f32
    %454 = vector.broadcast %cst_204 : f32 to vector<1x32xf32>
    %455 = arith.maximumf %453, %454 : vector<1x32xf32>
    %c0_205 = arith.constant 0 : index
    %c0_206 = arith.constant 0 : index
    %456 = vector.load %arg55[%c0_205, %c0_206] : memref<32x64xf32, #tpu.memory_space<vmem>>, vector<32x64xf32>
    %457 = arith.truncf %455 : vector<1x32xf32> to vector<1x32xbf16>
    %458 = arith.truncf %456 : vector<32x64xf32> to vector<32x64xbf16>
    %cst_207 = arith.constant dense<0.000000e+00> : vector<1x64xf32>
    %459 = tpu.matmul %457, %458, %cst_207 {dimension_numbers = #tpu.dot_dimension_numbers<[1], [0], [0], [1], [0, 0, 1, 1], [], []>} : vector<1x32xbf16>, vector<32x64xbf16>, vector<1x64xf32> -> vector<1x64xf32>
    %c0_208 = arith.constant 0 : index
    %c0_209 = arith.constant 0 : index
    %460 = vector.load %arg56[%c0_208, %c0_209] : memref<32x64xf32, #tpu.memory_space<vmem>>, vector<32x64xf32>
    %461 = arith.truncf %455 : vector<1x32xf32> to vector<1x32xbf16>
    %462 = arith.truncf %460 : vector<32x64xf32> to vector<32x64xbf16>
    %cst_210 = arith.constant dense<0.000000e+00> : vector<1x64xf32>
    %463 = tpu.matmul %461, %462, %cst_210 {dimension_numbers = #tpu.dot_dimension_numbers<[1], [0], [0], [1], [0, 0, 1, 1], [], []>} : vector<1x32xbf16>, vector<32x64xbf16>, vector<1x64xf32> -> vector<1x64xf32>
    %464 = arith.maximumf %459, %463 : vector<1x64xf32>
    %465 = arith.subf %459, %464 : vector<1x64xf32>
    %466 = math.exp %465 : vector<1x64xf32>
    %467 = arith.subf %463, %464 : vector<1x64xf32>
    %468 = math.exp %467 : vector<1x64xf32>
    %469 = arith.addf %466, %468 : vector<1x64xf32>
    %cst_211 = arith.constant 1.000000e+00 : f32
    %470 = vector.broadcast %cst_211 : f32 to vector<1x64xf32>
    %471 = arith.divf %470, %469 : vector<1x64xf32>
    %472 = arith.mulf %466, %471 : vector<1x64xf32>
    %473 = vector.broadcast %472 : vector<1x64xf32> to vector<64x64xf32>
    %474 = arith.mulf %225, %473 : vector<64x64xf32>
    %475 = arith.mulf %468, %471 : vector<1x64xf32>
    %476 = vector.broadcast %475 : vector<1x64xf32> to vector<64x64xf32>
    %477 = arith.mulf %440, %476 : vector<64x64xf32>
    %478 = arith.addf %474, %477 : vector<64x64xf32>
    %c0_212 = arith.constant 0 : index
    %c0_213 = arith.constant 0 : index
    %479 = vector.load %arg48[%c0_212, %c0_213] : memref<64x128xf32, #tpu.memory_space<vmem>>, vector<64x128xf32>
    %480 = arith.truncf %225 : vector<64x64xf32> to vector<64x64xbf16>
    %481 = arith.truncf %479 : vector<64x128xf32> to vector<64x128xbf16>
    %cst_214 = arith.constant dense<0.000000e+00> : vector<64x128xf32>
    %482 = tpu.matmul %480, %481, %cst_214 {dimension_numbers = #tpu.dot_dimension_numbers<[1], [0], [0], [1], [0, 0, 1, 1], [], []>} : vector<64x64xbf16>, vector<64x128xbf16>, vector<64x128xf32> -> vector<64x128xf32>
    %c0_215 = arith.constant 0 : index
    %c0_216 = arith.constant 0 : index
    %483 = vector.load %arg49[%c0_215, %c0_216] : memref<1x128xf32, #tpu.memory_space<vmem>>, vector<1x128xf32>
    %484 = vector.broadcast %483 : vector<1x128xf32> to vector<64x128xf32>
    %485 = arith.addf %482, %484 : vector<64x128xf32>
    %cst_217 = arith.constant 0.000000e+00 : f32
    %486 = vector.broadcast %cst_217 : f32 to vector<64x128xf32>
    %487 = arith.maximumf %485, %486 : vector<64x128xf32>
    %c0_218 = arith.constant 0 : index
    %c0_219 = arith.constant 0 : index
    %488 = vector.load %arg50[%c0_218, %c0_219] : memref<256x128xf32, #tpu.memory_space<vmem>>, vector<256x128xf32>
    %489 = arith.truncf %10 : vector<64x256xf32> to vector<64x256xbf16>
    %490 = arith.truncf %488 : vector<256x128xf32> to vector<256x128xbf16>
    %cst_220 = arith.constant dense<0.000000e+00> : vector<64x128xf32>
    %491 = tpu.matmul %489, %490, %cst_220 {dimension_numbers = #tpu.dot_dimension_numbers<[1], [0], [0], [1], [0, 0, 1, 1], [], []>} : vector<64x256xbf16>, vector<256x128xbf16>, vector<64x128xf32> -> vector<64x128xf32>
    %c0_221 = arith.constant 0 : index
    %c0_222 = arith.constant 0 : index
    %492 = vector.load %arg51[%c0_221, %c0_222] : memref<1x128xf32, #tpu.memory_space<vmem>>, vector<1x128xf32>
    %493 = vector.broadcast %492 : vector<1x128xf32> to vector<64x128xf32>
    %494 = arith.addf %491, %493 : vector<64x128xf32>
    %cst_223 = arith.constant 0.000000e+00 : f32
    %495 = vector.broadcast %cst_223 : f32 to vector<64x128xf32>
    %496 = arith.maximumf %494, %495 : vector<64x128xf32>
    %497 = arith.addf %487, %496 : vector<64x128xf32>
    %cst_224 = arith.constant dense<0.000000e+00> : vector<128xf32>
    %498 = vector.multi_reduction <add>, %497, %cst_224 [0] : vector<64x128xf32> to vector<128xf32>
    %499 = vector.shape_cast %498 : vector<128xf32> to vector<1x128xf32>
    %cst_225 = arith.constant 6.400000e+01 : f32
    %500 = vector.broadcast %cst_225 : f32 to vector<1x128xf32>
    %501 = arith.divf %499, %500 : vector<1x128xf32>
    %c0_226 = arith.constant 0 : index
    %c0_227 = arith.constant 0 : index
    %502 = vector.load %arg57[%c0_226, %c0_227] : memref<128x32xf32, #tpu.memory_space<vmem>>, vector<128x32xf32>
    %503 = arith.truncf %501 : vector<1x128xf32> to vector<1x128xbf16>
    %504 = arith.truncf %502 : vector<128x32xf32> to vector<128x32xbf16>
    %cst_228 = arith.constant dense<0.000000e+00> : vector<1x32xf32>
    %505 = tpu.matmul %503, %504, %cst_228 {dimension_numbers = #tpu.dot_dimension_numbers<[1], [0], [0], [1], [0, 0, 1, 1], [], []>} : vector<1x128xbf16>, vector<128x32xbf16>, vector<1x32xf32> -> vector<1x32xf32>
    %c0_229 = arith.constant 0 : index
    %c0_230 = arith.constant 0 : index
    %506 = vector.load %arg58[%c0_229, %c0_230] : memref<1x32xf32, #tpu.memory_space<vmem>>, vector<1x32xf32>
    %507 = arith.mulf %505, %506 : vector<1x32xf32>
    %c0_231 = arith.constant 0 : index
    %c0_232 = arith.constant 0 : index
    %508 = vector.load %arg59[%c0_231, %c0_232] : memref<1x32xf32, #tpu.memory_space<vmem>>, vector<1x32xf32>
    %509 = arith.addf %507, %508 : vector<1x32xf32>
    %cst_233 = arith.constant 0.000000e+00 : f32
    %510 = vector.broadcast %cst_233 : f32 to vector<1x32xf32>
    %511 = arith.maximumf %509, %510 : vector<1x32xf32>
    %c0_234 = arith.constant 0 : index
    %c0_235 = arith.constant 0 : index
    %512 = vector.load %arg60[%c0_234, %c0_235] : memref<32x128xf32, #tpu.memory_space<vmem>>, vector<32x128xf32>
    %513 = arith.truncf %511 : vector<1x32xf32> to vector<1x32xbf16>
    %514 = arith.truncf %512 : vector<32x128xf32> to vector<32x128xbf16>
    %cst_236 = arith.constant dense<0.000000e+00> : vector<1x128xf32>
    %515 = tpu.matmul %513, %514, %cst_236 {dimension_numbers = #tpu.dot_dimension_numbers<[1], [0], [0], [1], [0, 0, 1, 1], [], []>} : vector<1x32xbf16>, vector<32x128xbf16>, vector<1x128xf32> -> vector<1x128xf32>
    %c0_237 = arith.constant 0 : index
    %c0_238 = arith.constant 0 : index
    %516 = vector.load %arg61[%c0_237, %c0_238] : memref<32x128xf32, #tpu.memory_space<vmem>>, vector<32x128xf32>
    %517 = arith.truncf %511 : vector<1x32xf32> to vector<1x32xbf16>
    %518 = arith.truncf %516 : vector<32x128xf32> to vector<32x128xbf16>
    %cst_239 = arith.constant dense<0.000000e+00> : vector<1x128xf32>
    %519 = tpu.matmul %517, %518, %cst_239 {dimension_numbers = #tpu.dot_dimension_numbers<[1], [0], [0], [1], [0, 0, 1, 1], [], []>} : vector<1x32xbf16>, vector<32x128xbf16>, vector<1x128xf32> -> vector<1x128xf32>
    %520 = arith.maximumf %515, %519 : vector<1x128xf32>
    %521 = arith.subf %515, %520 : vector<1x128xf32>
    %522 = math.exp %521 : vector<1x128xf32>
    %523 = arith.subf %519, %520 : vector<1x128xf32>
    %524 = math.exp %523 : vector<1x128xf32>
    %525 = arith.addf %522, %524 : vector<1x128xf32>
    %cst_240 = arith.constant 1.000000e+00 : f32
    %526 = vector.broadcast %cst_240 : f32 to vector<1x128xf32>
    %527 = arith.divf %526, %525 : vector<1x128xf32>
    %528 = arith.mulf %522, %527 : vector<1x128xf32>
    %529 = vector.broadcast %528 : vector<1x128xf32> to vector<64x128xf32>
    %530 = arith.mulf %487, %529 : vector<64x128xf32>
    %531 = arith.mulf %524, %527 : vector<1x128xf32>
    %532 = vector.broadcast %531 : vector<1x128xf32> to vector<64x128xf32>
    %533 = arith.mulf %496, %532 : vector<64x128xf32>
    %534 = arith.addf %530, %533 : vector<64x128xf32>
    %c0_241 = arith.constant 0 : index
    %c0_242 = arith.constant 0 : index
    %535 = vector.load %arg62[%c0_241, %c0_242] : memref<64x256xf32, #tpu.memory_space<vmem>>, vector<64x256xf32>
    %536 = arith.truncf %478 : vector<64x64xf32> to vector<64x64xbf16>
    %537 = arith.truncf %535 : vector<64x256xf32> to vector<64x256xbf16>
    %cst_243 = arith.constant dense<0.000000e+00> : vector<64x256xf32>
    %538 = tpu.matmul %536, %537, %cst_243 {dimension_numbers = #tpu.dot_dimension_numbers<[1], [0], [0], [1], [0, 0, 1, 1], [], []>} : vector<64x64xbf16>, vector<64x256xbf16>, vector<64x256xf32> -> vector<64x256xf32>
    %c0_244 = arith.constant 0 : index
    %c0_245 = arith.constant 0 : index
    %539 = vector.load %arg63[%c0_244, %c0_245] : memref<128x256xf32, #tpu.memory_space<vmem>>, vector<128x256xf32>
    %540 = arith.truncf %534 : vector<64x128xf32> to vector<64x128xbf16>
    %541 = arith.truncf %539 : vector<128x256xf32> to vector<128x256xbf16>
    %cst_246 = arith.constant dense<0.000000e+00> : vector<64x256xf32>
    %542 = tpu.matmul %540, %541, %cst_246 {dimension_numbers = #tpu.dot_dimension_numbers<[1], [0], [0], [1], [0, 0, 1, 1], [], []>} : vector<64x128xbf16>, vector<128x256xbf16>, vector<64x256xf32> -> vector<64x256xf32>
    %543 = arith.addf %538, %542 : vector<64x256xf32>
    %c0_247 = arith.constant 0 : index
    %c0_248 = arith.constant 0 : index
    %544 = vector.load %arg64[%c0_247, %c0_248] : memref<1x256xf32, #tpu.memory_space<vmem>>, vector<1x256xf32>
    %545 = vector.broadcast %544 : vector<1x256xf32> to vector<64x256xf32>
    %546 = arith.addf %543, %545 : vector<64x256xf32>
    %cst_249 = arith.constant 0.000000e+00 : f32
    %547 = vector.broadcast %cst_249 : f32 to vector<64x256xf32>
    %548 = arith.maximumf %546, %547 : vector<64x256xf32>
    %c0_250 = arith.constant 0 : index
    %c0_251 = arith.constant 0 : index
    %549 = vector.load %arg65[%c0_250, %c0_251] : memref<256x512xf32, #tpu.memory_space<vmem>>, vector<256x512xf32>
    %550 = arith.truncf %548 : vector<64x256xf32> to vector<64x256xbf16>
    %551 = arith.truncf %549 : vector<256x512xf32> to vector<256x512xbf16>
    %cst_252 = arith.constant dense<0.000000e+00> : vector<64x512xf32>
    %552 = tpu.matmul %550, %551, %cst_252 {dimension_numbers = #tpu.dot_dimension_numbers<[1], [0], [0], [1], [0, 0, 1, 1], [], []>} : vector<64x256xbf16>, vector<256x512xbf16>, vector<64x512xf32> -> vector<64x512xf32>
    %c0_253 = arith.constant 0 : index
    %c0_254 = arith.constant 0 : index
    %553 = vector.load %arg66[%c0_253, %c0_254] : memref<1x512xf32, #tpu.memory_space<vmem>>, vector<1x512xf32>
    %554 = vector.broadcast %553 : vector<1x512xf32> to vector<64x512xf32>
    %555 = arith.addf %552, %554 : vector<64x512xf32>
    %cst_255 = arith.constant 0.000000e+00 : f32
    %556 = vector.broadcast %cst_255 : f32 to vector<64x512xf32>
    %557 = arith.maximumf %555, %556 : vector<64x512xf32>
    %cst_256 = arith.constant dense<0xFF800000> : vector<512xf32>
    %558 = vector.multi_reduction <maximumf>, %557, %cst_256 [0] : vector<64x512xf32> to vector<512xf32>
    %559 = vector.shape_cast %558 : vector<512xf32> to vector<1x512xf32>
    %c0_257 = arith.constant 0 : index
    %c0_258 = arith.constant 0 : index
    %c0_259 = arith.constant 0 : index
    %560 = vector.load %arg67[%c0_257, %c0_258, %c0_259] : memref<1x1x512xf32, #tpu.memory_space<vmem>>, vector<1x1x512xf32>
    %561 = vector.shape_cast %560 : vector<1x1x512xf32> to vector<1x512xf32>
    %562 = vector.shape_cast %559 : vector<1x512xf32> to vector<1x1x512xf32>
    tpu.vector_store %arg67[%c0_257, %c0_258, %c0_259], %562 {strides = array<i32>} : memref<1x1x512xf32, #tpu.memory_space<vmem>>, vector<1x1x512xf32>,
    return
  }
  func.func @transform_0(%arg0: i32) -> i32 {
    %c0_i32 = arith.constant 0 : i32
    %c0_i32_0 = arith.constant 0 : i32
    return %c0_i32 : i32
  }
  func.func @transform_1(%arg0: i32) -> i32 {
    %c0_i32 = arith.constant 0 : i32
    %c0_i32_0 = arith.constant 0 : i32
    return %c0_i32 : i32
  }
  func.func @transform_2(%arg0: i32) -> (i32, i32, i32) {
    %c0_i32 = arith.constant 0 : i32
    %c0_i32_0 = arith.constant 0 : i32
    %c0_i32_1 = arith.constant 0 : i32
    return %arg0, %c0_i32, %c0_i32_0 : i32, i32, i32
  }
  func.func @transform_3(%arg0: i32) -> (i32, i32, i32) {
    %c0_i32 = arith.constant 0 : i32
    %c0_i32_0 = arith.constant 0 : i32
    %c0_i32_1 = arith.constant 0 : i32
    return %arg0, %c0_i32, %c0_i32_0 : i32, i32, i32
  }
  func.func @transform_4(%arg0: i32) -> (i32, i32, i32) {
    %c0_i32 = arith.constant 0 : i32
    %c0_i32_0 = arith.constant 0 : i32
    %c0_i32_1 = arith.constant 0 : i32
    return %arg0, %c0_i32, %c0_i32_0 : i32, i32, i32
  }
  func.func @transform_5(%arg0: i32) -> (i32, i32) {
    %c0_i32 = arith.constant 0 : i32
    %c0_i32_0 = arith.constant 0 : i32
    %c0_i32_1 = arith.constant 0 : i32
    return %c0_i32, %c0_i32_0 : i32, i32
  }
  func.func @transform_6(%arg0: i32) -> (i32, i32) {
    %c0_i32 = arith.constant 0 : i32
    %c0_i32_0 = arith.constant 0 : i32
    %c0_i32_1 = arith.constant 0 : i32
    return %c0_i32, %c0_i32_0 : i32, i32
  }
  func.func @transform_7(%arg0: i32) -> (i32, i32, i32) {
    %c0_i32 = arith.constant 0 : i32
    %c0_i32_0 = arith.constant 0 : i32
    %c0_i32_1 = arith.constant 0 : i32
    %c0_i32_2 = arith.constant 0 : i32
    return %c0_i32, %c0_i32_0, %c0_i32_1 : i32, i32, i32
  }
  func.func @transform_8(%arg0: i32) -> (i32, i32) {
    %c0_i32 = arith.constant 0 : i32
    %c0_i32_0 = arith.constant 0 : i32
    %c0_i32_1 = arith.constant 0 : i32
    return %c0_i32, %c0_i32_0 : i32, i32
  }
  func.func @transform_9(%arg0: i32) -> (i32, i32, i32) {
    %c0_i32 = arith.constant 0 : i32
    %c0_i32_0 = arith.constant 0 : i32
    %c0_i32_1 = arith.constant 0 : i32
    %c0_i32_2 = arith.constant 0 : i32
    return %c0_i32, %c0_i32_0, %c0_i32_1 : i32, i32, i32
  }
  func.func @transform_10(%arg0: i32) -> (i32, i32) {
    %c0_i32 = arith.constant 0 : i32
    %c0_i32_0 = arith.constant 0 : i32
    %c0_i32_1 = arith.constant 0 : i32
    return %c0_i32, %c0_i32_0 : i32, i32
  }
  func.func @transform_11(%arg0: i32) -> (i32, i32) {
    %c0_i32 = arith.constant 0 : i32
    %c0_i32_0 = arith.constant 0 : i32
    %c0_i32_1 = arith.constant 0 : i32
    return %c0_i32, %c0_i32_0 : i32, i32
  }
  func.func @transform_12(%arg0: i32) -> (i32, i32) {
    %c0_i32 = arith.constant 0 : i32
    %c0_i32_0 = arith.constant 0 : i32
    %c0_i32_1 = arith.constant 0 : i32
    return %c0_i32, %c0_i32_0 : i32, i32
  }
  func.func @transform_13(%arg0: i32) -> (i32, i32, i32) {
    %c0_i32 = arith.constant 0 : i32
    %c0_i32_0 = arith.constant 0 : i32
    %c0_i32_1 = arith.constant 0 : i32
    %c0_i32_2 = arith.constant 0 : i32
    return %c0_i32, %c0_i32_0, %c0_i32_1 : i32, i32, i32
  }
  func.func @transform_14(%arg0: i32) -> (i32, i32) {
    %c0_i32 = arith.constant 0 : i32
    %c0_i32_0 = arith.constant 0 : i32
    %c0_i32_1 = arith.constant 0 : i32
    return %c0_i32, %c0_i32_0 : i32, i32
  }
  func.func @transform_15(%arg0: i32) -> (i32, i32) {
    %c0_i32 = arith.constant 0 : i32
    %c0_i32_0 = arith.constant 0 : i32
    %c0_i32_1 = arith.constant 0 : i32
    return %c0_i32, %c0_i32_0 : i32, i32
  }
  func.func @transform_16(%arg0: i32) -> (i32, i32) {
    %c0_i32 = arith.constant 0 : i32
    %c0_i32_0 = arith.constant 0 : i32
    %c0_i32_1 = arith.constant 0 : i32
    return %c0_i32, %c0_i32_0 : i32, i32
  }
  func.func @transform_17(%arg0: i32) -> (i32, i32) {
    %c0_i32 = arith.constant 0 : i32
    %c0_i32_0 = arith.constant 0 : i32
    %c0_i32_1 = arith.constant 0 : i32
    return %c0_i32, %c0_i32_0 : i32, i32
  }
  func.func @transform_18(%arg0: i32) -> (i32, i32) {
    %c0_i32 = arith.constant 0 : i32
    %c0_i32_0 = arith.constant 0 : i32
    %c0_i32_1 = arith.constant 0 : i32
    return %c0_i32, %c0_i32_0 : i32, i32
  }
  func.func @transform_19(%arg0: i32) -> (i32, i32) {
    %c0_i32 = arith.constant 0 : i32
    %c0_i32_0 = arith.constant 0 : i32
    %c0_i32_1 = arith.constant 0 : i32
    return %c0_i32, %c0_i32_0 : i32, i32
  }
  func.func @transform_20(%arg0: i32) -> (i32, i32) {
    %c0_i32 = arith.constant 0 : i32
    %c0_i32_0 = arith.constant 0 : i32
    %c0_i32_1 = arith.constant 0 : i32
    return %c0_i32, %c0_i32_0 : i32, i32
  }
  func.func @transform_21(%arg0: i32) -> (i32, i32) {
    %c0_i32 = arith.constant 0 : i32
    %c0_i32_0 = arith.constant 0 : i32
    %c0_i32_1 = arith.constant 0 : i32
    return %c0_i32, %c0_i32_0 : i32, i32
  }
  func.func @transform_22(%arg0: i32) -> (i32, i32) {
    %c0_i32 = arith.constant 0 : i32
    %c0_i32_0 = arith.constant 0 : i32
    %c0_i32_1 = arith.constant 0 : i32
    return %c0_i32, %c0_i32_0 : i32, i32
  }
  func.func @transform_23(%arg0: i32) -> (i32, i32) {
    %c0_i32 = arith.constant 0 : i32
    %c0_i32_0 = arith.constant 0 : i32
    %c0_i32_1 = arith.constant 0 : i32
    return %c0_i32, %c0_i32_0 : i32, i32
  }
  func.func @transform_24(%arg0: i32) -> (i32, i32, i32) {
    %c0_i32 = arith.constant 0 : i32
    %c0_i32_0 = arith.constant 0 : i32
    %c0_i32_1 = arith.constant 0 : i32
    %c0_i32_2 = arith.constant 0 : i32
    return %c0_i32, %c0_i32_0, %c0_i32_1 : i32, i32, i32
  }
  func.func @transform_25(%arg0: i32) -> (i32, i32) {
    %c0_i32 = arith.constant 0 : i32
    %c0_i32_0 = arith.constant 0 : i32
    %c0_i32_1 = arith.constant 0 : i32
    return %c0_i32, %c0_i32_0 : i32, i32
  }
  func.func @transform_26(%arg0: i32) -> (i32, i32, i32) {
    %c0_i32 = arith.constant 0 : i32
    %c0_i32_0 = arith.constant 0 : i32
    %c0_i32_1 = arith.constant 0 : i32
    %c0_i32_2 = arith.constant 0 : i32
    return %c0_i32, %c0_i32_0, %c0_i32_1 : i32, i32, i32
  }
  func.func @transform_27(%arg0: i32) -> (i32, i32) {
    %c0_i32 = arith.constant 0 : i32
    %c0_i32_0 = arith.constant 0 : i32
    %c0_i32_1 = arith.constant 0 : i32
    return %c0_i32, %c0_i32_0 : i32, i32
  }
  func.func @transform_28(%arg0: i32) -> (i32, i32) {
    %c0_i32 = arith.constant 0 : i32
    %c0_i32_0 = arith.constant 0 : i32
    %c0_i32_1 = arith.constant 0 : i32
    return %c0_i32, %c0_i32_0 : i32, i32
  }
  func.func @transform_29(%arg0: i32) -> (i32, i32) {
    %c0_i32 = arith.constant 0 : i32
    %c0_i32_0 = arith.constant 0 : i32
    %c0_i32_1 = arith.constant 0 : i32
    return %c0_i32, %c0_i32_0 : i32, i32
  }
  func.func @transform_30(%arg0: i32) -> (i32, i32, i32) {
    %c0_i32 = arith.constant 0 : i32
    %c0_i32_0 = arith.constant 0 : i32
    %c0_i32_1 = arith.constant 0 : i32
    %c0_i32_2 = arith.constant 0 : i32
    return %c0_i32, %c0_i32_0, %c0_i32_1 : i32, i32, i32
  }
  func.func @transform_31(%arg0: i32) -> (i32, i32) {
    %c0_i32 = arith.constant 0 : i32
    %c0_i32_0 = arith.constant 0 : i32
    %c0_i32_1 = arith.constant 0 : i32
    return %c0_i32, %c0_i32_0 : i32, i32
  }
  func.func @transform_32(%arg0: i32) -> (i32, i32) {
    %c0_i32 = arith.constant 0 : i32
    %c0_i32_0 = arith.constant 0 : i32
    %c0_i32_1 = arith.constant 0 : i32
    return %c0_i32, %c0_i32_0 : i32, i32
  }
  func.func @transform_33(%arg0: i32) -> (i32, i32) {
    %c0_i32 = arith.constant 0 : i32
    %c0_i32_0 = arith.constant 0 : i32
    %c0_i32_1 = arith.constant 0 : i32
    return %c0_i32, %c0_i32_0 : i32, i32
  }
  func.func @transform_34(%arg0: i32) -> (i32, i32) {
    %c0_i32 = arith.constant 0 : i32
    %c0_i32_0 = arith.constant 0 : i32
    %c0_i32_1 = arith.constant 0 : i32
    return %c0_i32, %c0_i32_0 : i32, i32
  }
  func.func @transform_35(%arg0: i32) -> (i32, i32) {
    %c0_i32 = arith.constant 0 : i32
    %c0_i32_0 = arith.constant 0 : i32
    %c0_i32_1 = arith.constant 0 : i32
    return %c0_i32, %c0_i32_0 : i32, i32
  }
  func.func @transform_36(%arg0: i32) -> (i32, i32) {
    %c0_i32 = arith.constant 0 : i32
    %c0_i32_0 = arith.constant 0 : i32
    %c0_i32_1 = arith.constant 0 : i32
    return %c0_i32, %c0_i32_0 : i32, i32
  }
  func.func @transform_37(%arg0: i32) -> (i32, i32) {
    %c0_i32 = arith.constant 0 : i32
    %c0_i32_0 = arith.constant 0 : i32
    %c0_i32_1 = arith.constant 0 : i32
    return %c0_i32, %c0_i32_0 : i32, i32
  }
  func.func @transform_38(%arg0: i32) -> (i32, i32) {
    %c0_i32 = arith.constant 0 : i32
    %c0_i32_0 = arith.constant 0 : i32
    %c0_i32_1 = arith.constant 0 : i32
    return %c0_i32, %c0_i32_0 : i32, i32
  }
  func.func @transform_39(%arg0: i32) -> (i32, i32) {
    %c0_i32 = arith.constant 0 : i32
    %c0_i32_0 = arith.constant 0 : i32
    %c0_i32_1 = arith.constant 0 : i32
    return %c0_i32, %c0_i32_0 : i32, i32
  }
  func.func @transform_40(%arg0: i32) -> (i32, i32) {
    %c0_i32 = arith.constant 0 : i32
    %c0_i32_0 = arith.constant 0 : i32
    %c0_i32_1 = arith.constant 0 : i32
    return %c0_i32, %c0_i32_0 : i32, i32
  }
  func.func @transform_41(%arg0: i32) -> (i32, i32) {
    %c0_i32 = arith.constant 0 : i32
    %c0_i32_0 = arith.constant 0 : i32
    %c0_i32_1 = arith.constant 0 : i32
    return %c0_i32, %c0_i32_0 : i32, i32
  }
  func.func @transform_42(%arg0: i32) -> (i32, i32) {
    %c0_i32 = arith.constant 0 : i32
    %c0_i32_0 = arith.constant 0 : i32
    %c0_i32_1 = arith.constant 0 : i32
    return %c0_i32, %c0_i32_0 : i32, i32
  }
  func.func @transform_43(%arg0: i32) -> (i32, i32) {
    %c0_i32 = arith.constant 0 : i32
    %c0_i32_0 = arith.constant 0 : i32
    %c0_i32_1 = arith.constant 0 : i32
    return %c0_i32, %c0_i32_0 : i32, i32
  }
  func.func @transform_44(%arg0: i32) -> (i32, i32) {
    %c0_i32 = arith.constant 0 : i32
    %c0_i32_0 = arith.constant 0 : i32
    %c0_i32_1 = arith.constant 0 : i32
    return %c0_i32, %c0_i32_0 : i32, i32
  }
  func.func @transform_45(%arg0: i32) -> (i32, i32) {
    %c0_i32 = arith.constant 0 : i32
    %c0_i32_0 = arith.constant 0 : i32
    %c0_i32_1 = arith.constant 0 : i32
    return %c0_i32, %c0_i32_0 : i32, i32
  }
  func.func @transform_46(%arg0: i32) -> (i32, i32) {
    %c0_i32 = arith.constant 0 : i32
    %c0_i32_0 = arith.constant 0 : i32
    %c0_i32_1 = arith.constant 0 : i32
    return %c0_i32, %c0_i32_0 : i32, i32
  }
  func.func @transform_47(%arg0: i32) -> (i32, i32) {
    %c0_i32 = arith.constant 0 : i32
    %c0_i32_0 = arith.constant 0 : i32
    %c0_i32_1 = arith.constant 0 : i32
    return %c0_i32, %c0_i32_0 : i32, i32
  }
  func.func @transform_48(%arg0: i32) -> (i32, i32) {
    %c0_i32 = arith.constant 0 : i32
    %c0_i32_0 = arith.constant 0 : i32
    %c0_i32_1 = arith.constant 0 : i32
    return %c0_i32, %c0_i32_0 : i32, i32
  }
  func.func @transform_49(%arg0: i32) -> (i32, i32) {
    %c0_i32 = arith.constant 0 : i32
    %c0_i32_0 = arith.constant 0 : i32
    %c0_i32_1 = arith.constant 0 : i32
    return %c0_i32, %c0_i32_0 : i32, i32
  }
  func.func @transform_50(%arg0: i32) -> (i32, i32) {
    %c0_i32 = arith.constant 0 : i32
    %c0_i32_0 = arith.constant 0 : i32
    %c0_i32_1 = arith.constant 0 : i32
    return %c0_i32, %c0_i32_0 : i32, i32
  }
  func.func @transform_51(%arg0: i32) -> (i32, i32) {
    %c0_i32 = arith.constant 0 : i32
    %c0_i32_0 = arith.constant 0 : i32
    %c0_i32_1 = arith.constant 0 : i32
    return %c0_i32, %c0_i32_0 : i32, i32
  }
  func.func @transform_52(%arg0: i32) -> (i32, i32) {
    %c0_i32 = arith.constant 0 : i32
    %c0_i32_0 = arith.constant 0 : i32
    %c0_i32_1 = arith.constant 0 : i32
    return %c0_i32, %c0_i32_0 : i32, i32
  }
  func.func @transform_53(%arg0: i32) -> (i32, i32) {
    %c0_i32 = arith.constant 0 : i32
    %c0_i32_0 = arith.constant 0 : i32
    %c0_i32_1 = arith.constant 0 : i32
    return %c0_i32, %c0_i32_0 : i32, i32
  }
  func.func @transform_54(%arg0: i32) -> (i32, i32) {
    %c0_i32 = arith.constant 0 : i32
    %c0_i32_0 = arith.constant 0 : i32
    %c0_i32_1 = arith.constant 0 : i32
    return %c0_i32, %c0_i32_0 : i32, i32
  }
  func.func @transform_55(%arg0: i32) -> (i32, i32) {
    %c0_i32 = arith.constant 0 : i32
    %c0_i32_0 = arith.constant 0 : i32
    %c0_i32_1 = arith.constant 0 : i32
    return %c0_i32, %c0_i32_0 : i32, i32
  }
  func.func @transform_56(%arg0: i32) -> (i32, i32) {
    %c0_i32 = arith.constant 0 : i32
    %c0_i32_0 = arith.constant 0 : i32
    %c0_i32_1 = arith.constant 0 : i32
    return %c0_i32, %c0_i32_0 : i32, i32
  }
  func.func @transform_57(%arg0: i32) -> (i32, i32) {
    %c0_i32 = arith.constant 0 : i32
    %c0_i32_0 = arith.constant 0 : i32
    %c0_i32_1 = arith.constant 0 : i32
    return %c0_i32, %c0_i32_0 : i32, i32
  }
  func.func @transform_58(%arg0: i32) -> (i32, i32) {
    %c0_i32 = arith.constant 0 : i32
    %c0_i32_0 = arith.constant 0 : i32
    %c0_i32_1 = arith.constant 0 : i32
    return %c0_i32, %c0_i32_0 : i32, i32
  }
  func.func @transform_59(%arg0: i32) -> (i32, i32) {
    %c0_i32 = arith.constant 0 : i32
    %c0_i32_0 = arith.constant 0 : i32
    %c0_i32_1 = arith.constant 0 : i32
    return %c0_i32, %c0_i32_0 : i32, i32
  }
  func.func @transform_60(%arg0: i32) -> (i32, i32) {
    %c0_i32 = arith.constant 0 : i32
    %c0_i32_0 = arith.constant 0 : i32
    %c0_i32_1 = arith.constant 0 : i32
    return %c0_i32, %c0_i32_0 : i32, i32
  }
  func.func @transform_61(%arg0: i32) -> (i32, i32) {
    %c0_i32 = arith.constant 0 : i32
    %c0_i32_0 = arith.constant 0 : i32
    %c0_i32_1 = arith.constant 0 : i32
    return %c0_i32, %c0_i32_0 : i32, i32
  }
  func.func @transform_62(%arg0: i32) -> (i32, i32) {
    %c0_i32 = arith.constant 0 : i32
    %c0_i32_0 = arith.constant 0 : i32
    %c0_i32_1 = arith.constant 0 : i32
    return %c0_i32, %c0_i32_0 : i32, i32
  }
  func.func @transform_63(%arg0: i32) -> (i32, i32) {
    %c0_i32 = arith.constant 0 : i32
    %c0_i32_0 = arith.constant 0 : i32
    %c0_i32_1 = arith.constant 0 : i32
    return %c0_i32, %c0_i32_0 : i32, i32
  }
  func.func @transform_64(%arg0: i32) -> (i32, i32) {
    %c0_i32 = arith.constant 0 : i32
    %c0_i32_0 = arith.constant 0 : i32
    %c0_i32_1 = arith.constant 0 : i32
    return %c0_i32, %c0_i32_0 : i32, i32
  }
  func.func @transform_65(%arg0: i32) -> (i32, i32) {
    %c0_i32 = arith.constant 0 : i32
    %c0_i32_0 = arith.constant 0 : i32
    %c0_i32_1 = arith.constant 0 : i32
    return %c0_i32, %c0_i32_0 : i32, i32
  }
  func.func @transform_66(%arg0: i32) -> (i32, i32, i32) {
    %c0_i32 = arith.constant 0 : i32
    %c0_i32_0 = arith.constant 0 : i32
    %c0_i32_1 = arith.constant 0 : i32
    return %arg0, %c0_i32, %c0_i32_0 : i32, i32, i32
  }
}

</mosaic_0001>

<llo_original>
// kernel: pose_refine_net_feat.1
$region0: #{pose_refine_net_feat.1}
  #allocation0 [shape = 'u32[]', space=smem, size = 0x4, offset = 0x4, fixed_abs, tag = 'smem constant byte address 0x4 - core index']
  #allocation1 [shape = 'u32[144,128]{1,0:T(1,128)}', space=vmem, size = 0x12000, scoped, tag = 'internal scratch']
  %s0 = inlined_call_operand.smem [shape: u32[67], index: -1, kind: input, shape index: {}]
  %s1 = sld [smem:[%s0]]
  %s2 = scalar_lea.smem %s0, 1
  %s3 = sld [smem:[%s2]]
  %s4 = scalar_lea.smem %s0, 2
  %s5 = sld [smem:[%s4]]
  %s6 = scalar_lea.smem %s0, 3
  %s7 = sld [smem:[%s6]]
  %s8 = scalar_lea.smem %s0, 4
  %s9 = sld [smem:[%s8]]
  %s10 = scalar_lea.smem %s0, 5
  %s11 = sld [smem:[%s10]]
  %s12 = scalar_lea.smem %s0, 6
  %s13 = sld [smem:[%s12]]
  %s14 = scalar_lea.smem %s0, 7
  %s15 = sld [smem:[%s14]]
  %s16 = scalar_lea.smem %s0, 8
  %s17 = sld [smem:[%s16]]
  %s18 = scalar_lea.smem %s0, 9
  %s19 = sld [smem:[%s18]]
  %s20 = scalar_lea.smem %s0, 10
  %s21 = sld [smem:[%s20]]
  %s22 = scalar_lea.smem %s0, 11
  %s23 = sld [smem:[%s22]]
  %s24 = scalar_lea.smem %s0, 12
  %s25 = sld [smem:[%s24]]
  %s26 = scalar_lea.smem %s0, 13
  %s27 = sld [smem:[%s26]]
  %s28 = scalar_lea.smem %s0, 14
  %s29 = sld [smem:[%s28]]
  %s30 = scalar_lea.smem %s0, 15
  %s31 = sld [smem:[%s30]]
  %s32 = scalar_lea.smem %s0, 16
  %s33 = sld [smem:[%s32]]
  %s34 = scalar_lea.smem %s0, 17
  %s35 = sld [smem:[%s34]]
  %s36 = scalar_lea.smem %s0, 18
  %s37 = sld [smem:[%s36]]
  %s38 = scalar_lea.smem %s0, 19
  %s39 = sld [smem:[%s38]]
  %s40 = scalar_lea.smem %s0, 20
  %s41 = sld [smem:[%s40]]
  %s42 = scalar_lea.smem %s0, 21
  %s43 = sld [smem:[%s42]]
  %s44 = scalar_lea.smem %s0, 22
  %s45 = sld [smem:[%s44]]
  %s46 = scalar_lea.smem %s0, 23
  %s47 = sld [smem:[%s46]]
  %s48 = scalar_lea.smem %s0, 24
  %s49 = sld [smem:[%s48]]
  %s50 = scalar_lea.smem %s0, 25
  %s51 = sld [smem:[%s50]]
  %s52 = scalar_lea.smem %s0, 26
  %s53 = sld [smem:[%s52]]
  %s54 = scalar_lea.smem %s0, 27
  %s55 = sld [smem:[%s54]]
  %s56 = scalar_lea.smem %s0, 28
  %s57 = sld [smem:[%s56]]
  %s58 = scalar_lea.smem %s0, 29
  %s59 = sld [smem:[%s58]]
  %s60 = scalar_lea.smem %s0, 30
  %s61 = sld [smem:[%s60]]
  %s62 = scalar_lea.smem %s0, 31
  %s63 = sld [smem:[%s62]]
  %s64 = scalar_lea.smem %s0, 32
  %s65 = sld [smem:[%s64]]
  %s66 = scalar_lea.smem %s0, 33
  %s67 = sld [smem:[%s66]]
  %s68 = scalar_lea.smem %s0, 34
  %s69 = sld [smem:[%s68]]
  %s70 = scalar_lea.smem %s0, 35
  %s71 = sld [smem:[%s70]]
  %s72 = scalar_lea.smem %s0, 36
  %s73 = sld [smem:[%s72]]
  %s74 = scalar_lea.smem %s0, 37
  %s75 = sld [smem:[%s74]]
  %s76 = scalar_lea.smem %s0, 38
  %s77 = sld [smem:[%s76]]
  %s78 = scalar_lea.smem %s0, 39
  %s79 = sld [smem:[%s78]]
  %s80 = scalar_lea.smem %s0, 40
  %s81 = sld [smem:[%s80]]
  %s82 = scalar_lea.smem %s0, 41
  %s83 = sld [smem:[%s82]]
  %s84 = scalar_lea.smem %s0, 42
  %s85 = sld [smem:[%s84]]
  %s86 = scalar_lea.smem %s0, 43
  %s87 = sld [smem:[%s86]]
  %s88 = scalar_lea.smem %s0, 44
  %s89 = sld [smem:[%s88]]
  %s90 = scalar_lea.smem %s0, 45
  %s91 = sld [smem:[%s90]]
  %s92 = scalar_lea.smem %s0, 46
  %s93 = sld [smem:[%s92]]
  %s94 = scalar_lea.smem %s0, 47
  %s95 = sld [smem:[%s94]]
  %s96 = scalar_lea.smem %s0, 48
  %s97 = sld [smem:[%s96]]
  %s98 = scalar_lea.smem %s0, 49
  %s99 = sld [smem:[%s98]]
  %s100 = scalar_lea.smem %s0, 50
  %s101 = sld [smem:[%s100]]
  %s102 = scalar_lea.smem %s0, 51
  %s103 = sld [smem:[%s102]]
  %s104 = scalar_lea.smem %s0, 52
  %s105 = sld [smem:[%s104]]
  %s106 = scalar_lea.smem %s0, 53
  %s107 = sld [smem:[%s106]]
  %s108 = scalar_lea.smem %s0, 54
  %s109 = sld [smem:[%s108]]
  %s110 = scalar_lea.smem %s0, 55
  %s111 = sld [smem:[%s110]]
  %s112 = scalar_lea.smem %s0, 56
  %s113 = sld [smem:[%s112]]
  %s114 = scalar_lea.smem %s0, 57
  %s115 = sld [smem:[%s114]]
  %s116 = scalar_lea.smem %s0, 58
  %s117 = sld [smem:[%s116]]
  %s118 = scalar_lea.smem %s0, 59
  %s119 = sld [smem:[%s118]]
  %s120 = scalar_lea.smem %s0, 60
  %s121 = sld [smem:[%s120]]
  %s122 = scalar_lea.smem %s0, 61
  %s123 = sld [smem:[%s122]]
  %s124 = scalar_lea.smem %s0, 62
  %s125 = sld [smem:[%s124]]
  %s126 = scalar_lea.smem %s0, 63
  %s127 = sld [smem:[%s126]]
  %s128 = scalar_lea.smem %s0, 64
  %s129 = sld [smem:[%s128]]
  %s130 = scalar_lea.smem %s0, 65
  %s131 = sld [smem:[%s130]]
  %s132 = scalar_lea.smem %s0, 66
  %s133 = sld [smem:[%s132]]
  %s134 = sld [smem:[#allocation0]]
  $region529: #{pose_refine_net_feat.1} parent=0
    _
  %s136 = ssub.s32 1, %s134
  %s137 = scalar_select 0, %s136, %s134
  $region1: #{pose_refine_net_feat.1} parent=0
    #allocation2 [shape = 'u8[512]{0}', space=smem, size = 0x200, scoped, tag = 'input window, operand 0, single buffered']
    #allocation3 [shape = 's32[2]{0}', space=sflag, size = 0x8, scoped, tag = 'scoped memory for pose_refine_net_feat.1']
    #allocation4 [shape = 's32[2]{0}', space=sflag, size = 0x8, scoped, tag = 'scoped memory for pose_refine_net_feat.1']
    #allocation5 [shape = 'u8[512]{0}', space=smem, size = 0x200, scoped, tag = 'input window, operand 1, single buffered']
    #allocation6 [shape = 's32[1]{0}', space=sflag, size = 0x4, scoped, tag = 'scoped memory for pose_refine_net_feat.1']
    #allocation7 [shape = 'u8[65536]{0}', space=vmem, size = 0x10000, scoped, tag = 'input window, operand 3']
    #allocation8 [shape = 'u8[131072]{0}', space=vmem, size = 0x20000, scoped, tag = 'input window, operand 4']
    #allocation9 [shape = 's32[2]{0}', space=sflag, size = 0x8, scoped, tag = 'scoped memory for pose_refine_net_feat.1']
    #allocation10 [shape = 'u8[16384]{0}', space=vmem, size = 0x4000, scoped, tag = 'input window, operand 5, single buffered']
    #allocation11 [shape = 'u8[512]{0}', space=vmem, size = 0x400, scoped, tag = 'input window, operand 6, single buffered']
    #allocation12 [shape = 's32[1]{0}', space=sflag, size = 0x4, scoped, tag = 'scoped memory for pose_refine_net_feat.1']
    #allocation13 [shape = 'u8[12288]{0}', space=vmem, size = 0x3000, scoped, tag = 'input window, operand 7, single buffered']
    #allocation14 [shape = 'u8[512]{0}', space=vmem, size = 0x400, scoped, tag = 'input window, operand 8, single buffered']
    #allocation15 [shape = 's32[1]{0}', space=sflag, size = 0x4, scoped, tag = 'scoped memory for pose_refine_net_feat.1']
    #allocation16 [shape = 'u8[12288]{0}', space=vmem, size = 0x3000, scoped, tag = 'input window, operand 9, single buffered']
    #allocation17 [shape = 'u8[512]{0}', space=vmem, size = 0x400, scoped, tag = 'input window, operand 10, single buffered']
    #allocation18 [shape = 's32[1]{0}', space=sflag, size = 0x4, scoped, tag = 'scoped memory for pose_refine_net_feat.1']
    #allocation19 [shape = 'u8[16384]{0}', space=vmem, size = 0x4000, scoped, tag = 'input window, operand 11, single buffered']
    #allocation20 [shape = 'u8[512]{0}', space=vmem, size = 0x400, scoped, tag = 'input window, operand 12, single buffered']
    #allocation21 [shape = 's32[1]{0}', space=sflag, size = 0x4, scoped, tag = 'scoped memory for pose_refine_net_feat.1']
    #allocation22 [shape = 'u8[36864]{0}', space=vmem, size = 0x9000, scoped, tag = 'input window, operand 13, single buffered']
    #allocation23 [shape = 'u8[512]{0}', space=vmem, size = 0x400, scoped, tag = 'input window, operand 14, single buffered']
    #allocation24 [shape = 's32[1]{0}', space=sflag, size = 0x4, scoped, tag = 'scoped memory for pose_refine_net_feat.1']
    #allocation25 [shape = 'u8[4096]{0}', space=vmem, size = 0x1000, scoped, tag = 'input window, operand 15, single buffered']
    #allocation26 [shape = 'u8[12288]{0}', space=vmem, size = 0x3000, scoped, tag = 'input window, operand 16, single buffered']
    #allocation27 [shape = 's32[1]{0}', space=sflag, size = 0x4, scoped, tag = 'scoped memory for pose_refine_net_feat.1']
    #allocation28 [shape = 'u8[512]{0}', space=vmem, size = 0x400, scoped, tag = 'input window, operand 17, single buffered']
    #allocation29 [shape = 'u8[8192]{0}', space=vmem, size = 0x2000, scoped, tag = 'input window, operand 18, single buffered']
    #allocation30 [shape = 's32[1]{0}', space=sflag, size = 0x4, scoped, tag = 'scoped memory for pose_refine_net_feat.1']
    #allocation31 [shape = 'u8[512]{0}', space=vmem, size = 0x400, scoped, tag = 'input window, operand 19, single buffered']
    #allocation32 [shape = 'u8[8192]{0}', space=vmem, size = 0x2000, scoped, tag = 'input window, operand 20, single buffered']
    #allocation33 [shape = 's32[1]{0}', space=sflag, size = 0x4, scoped, tag = 'scoped memory for pose_refine_net_feat.1']
    #allocation34 [shape = 'u8[512]{0}', space=vmem, size = 0x400, scoped, tag = 'input window, operand 21, single buffered']
    #allocation35 [shape = 'u8[65536]{0}', space=vmem, size = 0x10000, scoped, tag = 'input window, operand 22, single buffered']
    #allocation36 [shape = 's32[1]{0}', space=sflag, size = 0x4, scoped, tag = 'scoped memory for pose_refine_net_feat.1']
    #allocation37 [shape = 'u8[512]{0}', space=vmem, size = 0x400, scoped, tag = 'input window, operand 23, single buffered']
    #allocation38 [shape = 'u8[49152]{0}', space=vmem, size = 0xc000, scoped, tag = 'input window, operand 24, single buffered']
    #allocation39 [shape = 's32[1]{0}', space=sflag, size = 0x4, scoped, tag = 'scoped memory for pose_refine_net_feat.1']
    #allocation40 [shape = 'u8[512]{0}', space=vmem, size = 0x400, scoped, tag = 'input window, operand 25, single buffered']
    #allocation41 [shape = 'u8[49152]{0}', space=vmem, size = 0xc000, scoped, tag = 'input window, operand 26, single buffered']
    #allocation42 [shape = 's32[1]{0}', space=sflag, size = 0x4, scoped, tag = 'scoped memory for pose_refine_net_feat.1']
    #allocation43 [shape = 'u8[512]{0}', space=vmem, size = 0x400, scoped, tag = 'input window, operand 27, single buffered']
    #allocation44 [shape = 'u8[65536]{0}', space=vmem, size = 0x10000, scoped, tag = 'input window, operand 28, single buffered']
    #allocation45 [shape = 's32[1]{0}', space=sflag, size = 0x4, scoped, tag = 'scoped memory for pose_refine_net_feat.1']
    #allocation46 [shape = 'u8[512]{0}', space=vmem, size = 0x400, scoped, tag = 'input window, operand 29, single buffered']
    #allocation47 [shape = 'u8[512]{0}', space=vmem, size = 0x400, scoped, tag = 'input window, operand 31, single buffered']
    #allocation48 [shape = 's32[1]{0}', space=sflag, size = 0x4, scoped, tag = 'scoped memory for pose_refine_net_feat.1']
    #allocation49 [shape = 'u8[16384]{0}', space=vmem, size = 0x4000, scoped, tag = 'input window, operand 32, single buffered']
    #allocation50 [shape = 'u8[49152]{0}', space=vmem, size = 0xc000, scoped, tag = 'input window, operand 33, single buffered']
    #allocation51 [shape = 's32[1]{0}', space=sflag, size = 0x4, scoped, tag = 'scoped memory for pose_refine_net_feat.1']
    #allocation52 [shape = 'u8[512]{0}', space=vmem, size = 0x400, scoped, tag = 'input window, operand 34, single buffered']
    #allocation53 [shape = 'u8[32768]{0}', space=vmem, size = 0x8000, scoped, tag = 'input window, operand 35, single buffered']
    #allocation54 [shape = 's32[1]{0}', space=sflag, size = 0x4, scoped, tag = 'scoped memory for pose_refine_net_feat.1']
    #allocation55 [shape = 'u8[512]{0}', space=vmem, size = 0x400, scoped, tag = 'input window, operand 36, single buffered']
    #allocation56 [shape = 'u8[32768]{0}', space=vmem, size = 0x8000, scoped, tag = 'input window, operand 37, single buffered']
    #allocation57 [shape = 's32[1]{0}', space=sflag, size = 0x4, scoped, tag = 'scoped memory for pose_refine_net_feat.1']
    #allocation58 [shape = 'u8[512]{0}', space=vmem, size = 0x400, scoped, tag = 'input window, operand 38, single buffered']
    #allocation59 [shape = 'u8[16384]{0}', space=vmem, size = 0x4000, scoped, tag = 'input window, operand 39, single buffered']
    #allocation60 [shape = 's32[1]{0}', space=sflag, size = 0x4, scoped, tag = 'scoped memory for pose_refine_net_feat.1']
    #allocation61 [shape = 'u8[4096]{0}', space=vmem, size = 0x1000, scoped, tag = 'input window, operand 40, single buffered']
    #allocation62 [shape = 'u8[12288]{0}', space=vmem, size = 0x3000, scoped, tag = 'input window, operand 41, single buffered']
    #allocation63 [shape = 's32[1]{0}', space=sflag, size = 0x4, scoped, tag = 'scoped memory for pose_refine_net_feat.1']
    #allocation64 [shape = 'u8[512]{0}', space=vmem, size = 0x400, scoped, tag = 'input window, operand 42, single buffered']
    #allocation65 [shape = 'u8[65536]{0}', space=vmem, size = 0x10000, scoped, tag = 'input window, operand 43, single buffered']
    #allocation66 [shape = 's32[1]{0}', space=sflag, size = 0x4, scoped, tag = 'scoped memory for pose_refine_net_feat.1']
    #allocation67 [shape = 'u8[16384]{0}', space=vmem, size = 0x4000, scoped, tag = 'input window, operand 44, single buffered']
    #allocation68 [shape = 'u8[49152]{0}', space=vmem, size = 0xc000, scoped, tag = 'input window, operand 45, single buffered']
    #allocation69 [shape = 's32[1]{0}', space=sflag, size = 0x4, scoped, tag = 'scoped memory for pose_refine_net_feat.1']
    #allocation70 [shape = 'u8[512]{0}', space=vmem, size = 0x400, scoped, tag = 'input window, operand 46, single buffered']
    #allocation71 [shape = 'u8[32768]{0}', space=vmem, size = 0x8000, scoped, tag = 'input window, operand 47, single buffered']
    #allocation72 [shape = 's32[1]{0}', space=sflag, size = 0x4, scoped, tag = 'scoped memory for pose_refine_net_feat.1']
    #allocation73 [shape = 'u8[512]{0}', space=vmem, size = 0x400, scoped, tag = 'input window, operand 48, single buffered']
    #allocation74 [shape = 'u8[131072]{0}', space=vmem, size = 0x20000, scoped, tag = 'input window, operand 49, single buffered']
    #allocation75 [shape = 's32[1]{0}', space=sflag, size = 0x4, scoped, tag = 'scoped memory for pose_refine_net_feat.1']
    #allocation76 [shape = 'u8[512]{0}', space=vmem, size = 0x400, scoped, tag = 'input window, operand 50, single buffered']
    #allocation77 [shape = 'u8[32768]{0}', space=vmem, size = 0x8000, scoped, tag = 'input window, operand 51, single buffered']
    #allocation78 [shape = 's32[1]{0}', space=sflag, size = 0x4, scoped, tag = 'scoped memory for pose_refine_net_feat.1']
    #allocation79 [shape = 'u8[512]{0}', space=vmem, size = 0x400, scoped, tag = 'input window, operand 52, single buffered']
    #allocation80 [shape = 'u8[512]{0}', space=vmem, size = 0x400, scoped, tag = 'input window, operand 53, single buffered']
    #allocation81 [shape = 's32[1]{0}', space=sflag, size = 0x4, scoped, tag = 'scoped memory for pose_refine_net_feat.1']
    #allocation82 [shape = 'u8[16384]{0}', space=vmem, size = 0x4000, scoped, tag = 'input window, operand 54, single buffered']
    #allocation83 [shape = 'u8[16384]{0}', space=vmem, size = 0x4000, scoped, tag = 'input window, operand 55, single buffered']
    #allocation84 [shape = 's32[1]{0}', space=sflag, size = 0x4, scoped, tag = 'scoped memory for pose_refine_net_feat.1']
    #allocation85 [shape = 'u8[65536]{0}', space=vmem, size = 0x10000, scoped, tag = 'input window, operand 56, single buffered']
    #allocation86 [shape = 'u8[16384]{0}', space=vmem, size = 0x4000, scoped, tag = 'input window, operand 59, single buffered']
    #allocation87 [shape = 's32[1]{0}', space=sflag, size = 0x4, scoped, tag = 'scoped memory for pose_refine_net_feat.1']
    #allocation88 [shape = 'u8[131072]{0}', space=vmem, size = 0x20000, scoped, tag = 'input window, operand 62, single buffered']
    #allocation89 [shape = 'u8[524288]{0}', space=vmem, size = 0x80000, scoped, tag = 'input window, operand 64, single buffered']
    #allocation90 [shape = 's32[1]{0}', space=sflag, size = 0x4, scoped, tag = 'scoped memory for pose_refine_net_feat.1']
    %138 = vsyncpa [#allocation4], 0
    %139 = vsyncpa [#allocation6], 0
    %140 = vsyncpa [#allocation3], 0
    %s141 = scalar_lea.sflag [#allocation3], 1
    %142 = vsyncpa %s141, 0
    %143 = vsyncpa [#allocation9], 0
    %s144 = scalar_lea.sflag [#allocation9], 1
    %145 = vsyncpa %s144, 0
    %146 = vsyncpa [#allocation12], 0
    %147 = vsyncpa [#allocation15], 0
    %148 = vsyncpa [#allocation18], 0
    %149 = vsyncpa [#allocation21], 0
    %150 = vsyncpa [#allocation24], 0
    %151 = vsyncpa [#allocation27], 0
    %152 = vsyncpa [#allocation30], 0
    %153 = vsyncpa [#allocation33], 0
    %154 = vsyncpa [#allocation36], 0
    %155 = vsyncpa [#allocation39], 0
    %156 = vsyncpa [#allocation42], 0
    %157 = vsyncpa [#allocation45], 0
    %158 = vsyncpa [#allocation48], 0
    %159 = vsyncpa [#allocation51], 0
    %160 = vsyncpa [#allocation54], 0
    %161 = vsyncpa [#allocation57], 0
    %162 = vsyncpa [#allocation60], 0
    %163 = vsyncpa [#allocation63], 0
    %164 = vsyncpa [#allocation66], 0
    %165 = vsyncpa [#allocation69], 0
    %166 = vsyncpa [#allocation72], 0
    %167 = vsyncpa [#allocation75], 0
    %168 = vsyncpa [#allocation78], 0
    %169 = vsyncpa [#allocation81], 0
    %170 = vsyncpa [#allocation84], 0
    %171 = vsyncpa [#allocation87], 0
    %172 = vsyncpa [#allocation90], 0
    loop: start=0, step=1, limit=4
    $region2: #{pose_refine_net_feat.1} parent=1 // loop_pre_header
      _
    $region3: #{pose_refine_net_feat.1} parent=1 // loop_header
      %s174 = sphi 0, %s178
      %p175 = scmp.ge.s32.totalorder %s174, 4
      %s182 = sphi 0, %s182
      %s184 = sphi 0, %s182
      %s185 = sphi 0, %s184
      %s199 = sphi 0, %s185
      %s203 = sphi 0, %s203
      %s205 = sphi 0, %s203
      %s206 = sphi 0, %s205
      %s220 = sphi 0, %s206
      %s226 = sphi 0, %s228
      %s229 = sphi 0, %s226
      %s230 = sphi 0, %s229
      %s246 = sphi 0, %s230
      %s252 = sphi 0, %s254
      %s255 = sphi 0, %s252
      %s256 = sphi 0, %s255
      %s272 = sphi 0, %s256
      %s278 = sphi 0, %s280
      %s281 = sphi 0, %s278
      %s282 = sphi 0, %s281
      %s298 = sphi 0, %s282
      %s302 = sphi 0, %s302
      %s304 = sphi 0, %s302
      %s305 = sphi 0, %s304
      %s319 = sphi 0, %s305
      %s323 = sphi 0, %s323
      %s325 = sphi 0, %s323
      %s326 = sphi 0, %s325
      %s340 = sphi 0, %s326
      %s344 = sphi 0, %s344
      %s346 = sphi 0, %s344
      %s347 = sphi 0, %s346
      %s361 = sphi 0, %s347
      %s365 = sphi 0, %s365
      %s367 = sphi 0, %s365
      %s368 = sphi 0, %s367
      %s382 = sphi 0, %s368
      %s386 = sphi 0, %s386
      %s388 = sphi 0, %s386
      %s389 = sphi 0, %s388
      %s403 = sphi 0, %s389
      %s407 = sphi 0, %s407
      %s409 = sphi 0, %s407
      %s410 = sphi 0, %s409
      %s424 = sphi 0, %s410
      %s428 = sphi 0, %s428
      %s430 = sphi 0, %s428
      %s431 = sphi 0, %s430
      %s445 = sphi 0, %s431
      %s449 = sphi 0, %s449
      %s451 = sphi 0, %s449
      %s452 = sphi 0, %s451
      %s466 = sphi 0, %s452
      %s470 = sphi 0, %s470
      %s472 = sphi 0, %s470
      %s473 = sphi 0, %s472
      %s487 = sphi 0, %s473
      %s491 = sphi 0, %s491
      %s493 = sphi 0, %s491
      %s494 = sphi 0, %s493
      %s508 = sphi 0, %s494
      %s512 = sphi 0, %s512
      %s514 = sphi 0, %s512
      %s515 = sphi 0, %s514
      %s529 = sphi 0, %s515
      %s533 = sphi 0, %s533
      %s535 = sphi 0, %s533
      %s536 = sphi 0, %s535
      %s550 = sphi 0, %s536
      %s554 = sphi 0, %s554
      %s556 = sphi 0, %s554
      %s557 = sphi 0, %s556
      %s571 = sphi 0, %s557
      %s575 = sphi 0, %s575
      %s577 = sphi 0, %s575
      %s578 = sphi 0, %s577
      %s592 = sphi 0, %s578
      %s596 = sphi 0, %s596
      %s598 = sphi 0, %s596
      %s599 = sphi 0, %s598
      %s613 = sphi 0, %s599
      %s617 = sphi 0, %s617
      %s619 = sphi 0, %s617
      %s620 = sphi 0, %s619
      %s634 = sphi 0, %s620
      %s638 = sphi 0, %s638
      %s640 = sphi 0, %s638
      %s641 = sphi 0, %s640
      %s655 = sphi 0, %s641
      %s659 = sphi 0, %s659
      %s661 = sphi 0, %s659
      %s662 = sphi 0, %s661
      %s676 = sphi 0, %s662
      %s680 = sphi 0, %s680
      %s682 = sphi 0, %s680
      %s683 = sphi 0, %s682
      %s697 = sphi 0, %s683
      %s701 = sphi 0, %s701
      %s703 = sphi 0, %s701
      %s704 = sphi 0, %s703
      %s718 = sphi 0, %s704
      %s722 = sphi 0, %s722
      %s724 = sphi 0, %s722
      %s725 = sphi 0, %s724
      %s739 = sphi 0, %s725
      %s743 = sphi 0, %s743
      %s745 = sphi 0, %s743
      %s746 = sphi 0, %s745
      %s760 = sphi 0, %s746
      %s764 = sphi 0, %s764
      %s766 = sphi 0, %s764
      %s767 = sphi 0, %s766
      %s781 = sphi 0, %s767
      %s785 = sphi 0, %s785
      %s787 = sphi 0, %s785
      %s788 = sphi 0, %s787
      %s802 = sphi 0, %s788
      %s806 = sphi 0, %s806
      %s808 = sphi 0, %s806
      %s809 = sphi 0, %s808
      %s823 = sphi 0, %s809
      %s827 = sphi 0, %s827
      %s829 = sphi 0, %s827
      %s830 = sphi 0, %s829
      %s844 = sphi 0, %s830
      %s848 = sphi 0, %s848
      %s850 = sphi 0, %s848
      %s851 = sphi 0, %s850
      %s865 = sphi 0, %s851
      %s869 = sphi 0, %s869
      %s871 = sphi 0, %s869
      %s872 = sphi 0, %s871
      %s886 = sphi 0, %s872
      %s890 = sphi 0, %s890
      %s892 = sphi 0, %s890
      %s893 = sphi 0, %s892
      %s907 = sphi 0, %s893
      %s911 = sphi 0, %s911
      %s913 = sphi 0, %s911
      %s914 = sphi 0, %s913
      %s928 = sphi 0, %s914
      %s932 = sphi 0, %s932
      %s934 = sphi 0, %s932
      %s935 = sphi 0, %s934
      %s949 = sphi 0, %s935
      %s953 = sphi 0, %s953
      %s955 = sphi 0, %s953
      %s956 = sphi 0, %s955
      %s970 = sphi 0, %s956
      %s974 = sphi 0, %s974
      %s976 = sphi 0, %s974
      %s977 = sphi 0, %s976
      %s991 = sphi 0, %s977
      %s995 = sphi 0, %s995
      %s997 = sphi 0, %s995
      %s998 = sphi 0, %s997
      %s1012 = sphi 0, %s998
      %s1016 = sphi 0, %s1016
      %s1018 = sphi 0, %s1016
      %s1019 = sphi 0, %s1018
      %s1033 = sphi 0, %s1019
      %s1037 = sphi 0, %s1037
      %s1039 = sphi 0, %s1037
      %s1040 = sphi 0, %s1039
      %s1054 = sphi 0, %s1040
      %s1058 = sphi 0, %s1058
      %s1060 = sphi 0, %s1058
      %s1061 = sphi 0, %s1060
      %s1075 = sphi 0, %s1061
      %s1079 = sphi 0, %s1079
      %s1081 = sphi 0, %s1079
      %s1082 = sphi 0, %s1081
      %s1096 = sphi 0, %s1082
      %s1100 = sphi 0, %s1100
      %s1102 = sphi 0, %s1100
      %s1103 = sphi 0, %s1102
      %s1117 = sphi 0, %s1103
      %s1121 = sphi 0, %s1121
      %s1123 = sphi 0, %s1121
      %s1124 = sphi 0, %s1123
      %s1138 = sphi 0, %s1124
      %s1142 = sphi 0, %s1142
      %s1144 = sphi 0, %s1142
      %s1145 = sphi 0, %s1144
      %s1159 = sphi 0, %s1145
      %s1163 = sphi 0, %s1163
      %s1165 = sphi 0, %s1163
      %s1166 = sphi 0, %s1165
      %s1180 = sphi 0, %s1166
      %s1184 = sphi 0, %s1184
      %s1186 = sphi 0, %s1184
      %s1187 = sphi 0, %s1186
      %s1201 = sphi 0, %s1187
      %s1205 = sphi 0, %s1205
      %s1207 = sphi 0, %s1205
      %s1208 = sphi 0, %s1207
      %s1222 = sphi 0, %s1208
      %s1226 = sphi 0, %s1226
      %s1228 = sphi 0, %s1226
      %s1229 = sphi 0, %s1228
      %s1243 = sphi 0, %s1229
      %s1247 = sphi 0, %s1247
      %s1249 = sphi 0, %s1247
      %s1250 = sphi 0, %s1249
      %s1264 = sphi 0, %s1250
      %s1268 = sphi 0, %s1268
      %s1270 = sphi 0, %s1268
      %s1271 = sphi 0, %s1270
      %s1285 = sphi 0, %s1271
      %s1289 = sphi 0, %s1289
      %s1291 = sphi 0, %s1289
      %s1292 = sphi 0, %s1291
      %s1306 = sphi 0, %s1292
      %s1310 = sphi 0, %s1310
      %s1312 = sphi 0, %s1310
      %s1313 = sphi 0, %s1312
      %s1327 = sphi 0, %s1313
      %s1331 = sphi 0, %s1331
      %s1333 = sphi 0, %s1331
      %s1334 = sphi 0, %s1333
      %s1348 = sphi 0, %s1334
      %s1352 = sphi 0, %s1352
      %s1354 = sphi 0, %s1352
      %s1355 = sphi 0, %s1354
      %s1369 = sphi 0, %s1355
      %s1373 = sphi 0, %s1373
      %s1375 = sphi 0, %s1373
      %s1376 = sphi 0, %s1375
      %s1390 = sphi 0, %s1376
      %s1394 = sphi 0, %s1394
      %s1396 = sphi 0, %s1394
      %s1397 = sphi 0, %s1396
      %s1411 = sphi 0, %s1397
      %s1415 = sphi 0, %s1415
      %s1417 = sphi 0, %s1415
      %s1418 = sphi 0, %s1417
      %s1432 = sphi 0, %s1418
      %s1436 = sphi 0, %s1436
      %s1438 = sphi 0, %s1436
      %s1439 = sphi 0, %s1438
      %s1453 = sphi 0, %s1439
      %s1457 = sphi 0, %s1457
      %s1459 = sphi 0, %s1457
      %s1460 = sphi 0, %s1459
      %s1474 = sphi 0, %s1460
      %s1478 = sphi 0, %s1478
      %s1480 = sphi 0, %s1478
      %s1481 = sphi 0, %s1480
      %s1495 = sphi 0, %s1481
      %s1499 = sphi 0, %s1499
      %s1501 = sphi 0, %s1499
      %s1502 = sphi 0, %s1501
      %s1516 = sphi 0, %s1502
      %s1520 = sphi 0, %s1520
      %s1522 = sphi 0, %s1520
      %s1523 = sphi 0, %s1522
      %s1537 = sphi 0, %s1523
      %s1541 = sphi 0, %s1541
      %s1543 = sphi 0, %s1541
      %s1544 = sphi 0, %s1543
      %s1558 = sphi 0, %s1544
      %s1562 = sphi 0, %s1562
      %s1564 = sphi 0, %s1562
      %s1565 = sphi 0, %s1564
      %s1579 = sphi 0, %s1565
      %s1585 = sphi 0, %s1587
      %s1588 = sphi 0, %s1585
      %s1589 = sphi 0, %s1588
      %s1605 = sphi 0, %s1589
    $region4: #{pose_refine_net_feat.1} parent=1 // loop_header_branch
      %177 = sbr.rel (%p175) target = $region8
    $region5: #{pose_refine_net_feat.1} parent=1 // loop_body
      %s179 = ssub.s32 %s174, 1
      %s180 = ssub.s32 %s174, 2
      %s181 = sadd.s32 %s174, 1
      %s183 = sadd.s32 %s182, 1
      %p186 = scmp.eq.s32.totalorder %s174, 1
      %p187 = scmp.ne.s32.totalorder %s182, %s184
      %p188 = scmp.eq.s32.totalorder %s174, 0
      %p189 = por %p187, %p188
      %p190 = scmp.ne.s32.totalorder %s182, %s184
      %p191 = scmp.eq.s32.totalorder %s179, 1
      %p192 = por %p190, %p191
      %p193 = scmp.ne.s32.totalorder %s184, %s185
      %p194 = scmp.eq.s32.totalorder %s179, 0
      %p195 = por %p193, %p194
      %p196 = scmp.ne.s32.totalorder %s184, %s185
      %p197 = scmp.eq.s32.totalorder %s180, 1
      %p198 = por %p196, %p197
      %p200 = scmp.ne.s32.totalorder %s185, %s199
      %p201 = scmp.eq.s32.totalorder %s180, 0
      %p202 = por %p200, %p201
      %s204 = sadd.s32 %s203, 1
      %p207 = scmp.eq.s32.totalorder %s174, 1
      %p208 = scmp.ne.s32.totalorder %s203, %s205
      %p209 = scmp.eq.s32.totalorder %s174, 0
      %p210 = por %p208, %p209
      %p211 = scmp.ne.s32.totalorder %s203, %s205
      %p212 = scmp.eq.s32.totalorder %s179, 1
      %p213 = por %p211, %p212
      %p214 = scmp.ne.s32.totalorder %s205, %s206
      %p215 = scmp.eq.s32.totalorder %s179, 0
      %p216 = por %p214, %p215
      %p217 = scmp.ne.s32.totalorder %s205, %s206
      %p218 = scmp.eq.s32.totalorder %s180, 1
      %p219 = por %p217, %p218
      %p221 = scmp.ne.s32.totalorder %s206, %s220
      %p222 = scmp.eq.s32.totalorder %s180, 0
      %p223 = por %p221, %p222
      %s224 = ssub.s32 %s174, %s181
      %p225 = scmp.eq.s32.totalorder %s224, 0
      %s227 = sadd.s32 %s226, 1
      %s228 = scalar_select %p225, %s226, %s227
      %p231 = pneg %p225
      %p232 = scmp.eq.s32.totalorder %s174, 1
      %p233 = por %p231, %p232
      %p234 = scmp.ne.s32.totalorder %s226, %s229
      %p235 = scmp.eq.s32.totalorder %s174, 0
      %p236 = por %p234, %p235
      %p237 = scmp.ne.s32.totalorder %s226, %s229
      %p238 = scmp.eq.s32.totalorder %s179, 1
      %p239 = por %p237, %p238
      %p240 = scmp.ne.s32.totalorder %s229, %s230
      %p241 = scmp.eq.s32.totalorder %s179, 0
      %p242 = por %p240, %p241
      %p243 = scmp.ne.s32.totalorder %s229, %s230
      %p244 = scmp.eq.s32.totalorder %s180, 1
      %p245 = por %p243, %p244
      %p247 = scmp.ne.s32.totalorder %s230, %s246
      %p248 = scmp.eq.s32.totalorder %s180, 0
      %p249 = por %p247, %p248
      %s250 = ssub.s32 %s174, %s181
      %p251 = scmp.eq.s32.totalorder %s250, 0
      %s253 = sadd.s32 %s252, 1
      %s254 = scalar_select %p251, %s252, %s253
      %p257 = pneg %p251
      %p258 = scmp.eq.s32.totalorder %s174, 1
      %p259 = por %p257, %p258
      %p260 = scmp.ne.s32.totalorder %s252, %s255
      %p261 = scmp.eq.s32.totalorder %s174, 0
      %p262 = por %p260, %p261
      %p263 = scmp.ne.s32.totalorder %s252, %s255
      %p264 = scmp.eq.s32.totalorder %s179, 1
      %p265 = por %p263, %p264
      %p266 = scmp.ne.s32.totalorder %s255, %s256
      %p267 = scmp.eq.s32.totalorder %s179, 0
      %p268 = por %p266, %p267
      %p269 = scmp.ne.s32.totalorder %s255, %s256
      %p270 = scmp.eq.s32.totalorder %s180, 1
      %p271 = por %p269, %p270
      %p273 = scmp.ne.s32.totalorder %s256, %s272
      %p274 = scmp.eq.s32.totalorder %s180, 0
      %p275 = por %p273, %p274
      %s276 = ssub.s32 %s174, %s181
      %p277 = scmp.eq.s32.totalorder %s276, 0
      %s279 = sadd.s32 %s278, 1
      %s280 = scalar_select %p277, %s278, %s279
      %p283 = pneg %p277
      %p284 = scmp.eq.s32.totalorder %s174, 1
      %p285 = por %p283, %p284
      %p286 = scmp.ne.s32.totalorder %s278, %s281
      %p287 = scmp.eq.s32.totalorder %s174, 0
      %p288 = por %p286, %p287
      %p289 = scmp.ne.s32.totalorder %s278, %s281
      %p290 = scmp.eq.s32.totalorder %s179, 1
      %p291 = por %p289, %p290
      %p292 = scmp.ne.s32.totalorder %s281, %s282
      %p293 = scmp.eq.s32.totalorder %s179, 0
      %p294 = por %p292, %p293
      %p295 = scmp.ne.s32.totalorder %s281, %s282
      %p296 = scmp.eq.s32.totalorder %s180, 1
      %p297 = por %p295, %p296
      %p299 = scmp.ne.s32.totalorder %s282, %s298
      %p300 = scmp.eq.s32.totalorder %s180, 0
      %p301 = por %p299, %p300
      %s303 = sadd.s32 %s302, 1
      %p306 = scmp.eq.s32.totalorder %s174, 1
      %p307 = scmp.ne.s32.totalorder %s302, %s304
      %p308 = scmp.eq.s32.totalorder %s174, 0
      %p309 = por %p307, %p308
      %p310 = scmp.ne.s32.totalorder %s302, %s304
      %p311 = scmp.eq.s32.totalorder %s179, 1
      %p312 = por %p310, %p311
      %p313 = scmp.ne.s32.totalorder %s304, %s305
      %p314 = scmp.eq.s32.totalorder %s179, 0
      %p315 = por %p313, %p314
      %p316 = scmp.ne.s32.totalorder %s304, %s305
      %p317 = scmp.eq.s32.totalorder %s180, 1
      %p318 = por %p316, %p317
      %p320 = scmp.ne.s32.totalorder %s305, %s319
      %p321 = scmp.eq.s32.totalorder %s180, 0
      %p322 = por %p320, %p321
      %s324 = sadd.s32 %s323, 1
      %p327 = scmp.eq.s32.totalorder %s174, 1
      %p328 = scmp.ne.s32.totalorder %s323, %s325
      %p329 = scmp.eq.s32.totalorder %s174, 0
      %p330 = por %p328, %p329
      %p331 = scmp.ne.s32.totalorder %s323, %s325
      %p332 = scmp.eq.s32.totalorder %s179, 1
      %p333 = por %p331, %p332
      %p334 = scmp.ne.s32.totalorder %s325, %s326
      %p335 = scmp.eq.s32.totalorder %s179, 0
      %p336 = por %p334, %p335
      %p337 = scmp.ne.s32.totalorder %s325, %s326
      %p338 = scmp.eq.s32.totalorder %s180, 1
      %p339 = por %p337, %p338
      %p341 = scmp.ne.s32.totalorder %s326, %s340
      %p342 = scmp.eq.s32.totalorder %s180, 0
      %p343 = por %p341, %p342
      %s345 = sadd.s32 %s344, 1
      %p348 = scmp.eq.s32.totalorder %s174, 1
      %p349 = scmp.ne.s32.totalorder %s344, %s346
      %p350 = scmp.eq.s32.totalorder %s174, 0
      %p351 = por %p349, %p350
      %p352 = scmp.ne.s32.totalorder %s344, %s346
      %p353 = scmp.eq.s32.totalorder %s179, 1
      %p354 = por %p352, %p353
      %p355 = scmp.ne.s32.totalorder %s346, %s347
      %p356 = scmp.eq.s32.totalorder %s179, 0
      %p357 = por %p355, %p356
      %p358 = scmp.ne.s32.totalorder %s346, %s347
      %p359 = scmp.eq.s32.totalorder %s180, 1
      %p360 = por %p358, %p359
      %p362 = scmp.ne.s32.totalorder %s347, %s361
      %p363 = scmp.eq.s32.totalorder %s180, 0
      %p364 = por %p362, %p363
      %s366 = sadd.s32 %s365, 1
      %p369 = scmp.eq.s32.totalorder %s174, 1
      %p370 = scmp.ne.s32.totalorder %s365, %s367
      %p371 = scmp.eq.s32.totalorder %s174, 0
      %p372 = por %p370, %p371
      %p373 = scmp.ne.s32.totalorder %s365, %s367
      %p374 = scmp.eq.s32.totalorder %s179, 1
      %p375 = por %p373, %p374
      %p376 = scmp.ne.s32.totalorder %s367, %s368
      %p377 = scmp.eq.s32.totalorder %s179, 0
      %p378 = por %p376, %p377
      %p379 = scmp.ne.s32.totalorder %s367, %s368
      %p380 = scmp.eq.s32.totalorder %s180, 1
      %p381 = por %p379, %p380
      %p383 = scmp.ne.s32.totalorder %s368, %s382
      %p384 = scmp.eq.s32.totalorder %s180, 0
      %p385 = por %p383, %p384
      %s387 = sadd.s32 %s386, 1
      %p390 = scmp.eq.s32.totalorder %s174, 1
      %p391 = scmp.ne.s32.totalorder %s386, %s388
      %p392 = scmp.eq.s32.totalorder %s174, 0
      %p393 = por %p391, %p392
      %p394 = scmp.ne.s32.totalorder %s386, %s388
      %p395 = scmp.eq.s32.totalorder %s179, 1
      %p396 = por %p394, %p395
      %p397 = scmp.ne.s32.totalorder %s388, %s389
      %p398 = scmp.eq.s32.totalorder %s179, 0
      %p399 = por %p397, %p398
      %p400 = scmp.ne.s32.totalorder %s388, %s389
      %p401 = scmp.eq.s32.totalorder %s180, 1
      %p402 = por %p400, %p401
      %p404 = scmp.ne.s32.totalorder %s389, %s403
      %p405 = scmp.eq.s32.totalorder %s180, 0
      %p406 = por %p404, %p405
      %s408 = sadd.s32 %s407, 1
      %p411 = scmp.eq.s32.totalorder %s174, 1
      %p412 = scmp.ne.s32.totalorder %s407, %s409
      %p413 = scmp.eq.s32.totalorder %s174, 0
      %p414 = por %p412, %p413
      %p415 = scmp.ne.s32.totalorder %s407, %s409
      %p416 = scmp.eq.s32.totalorder %s179, 1
      %p417 = por %p415, %p416
      %p418 = scmp.ne.s32.totalorder %s409, %s410
      %p419 = scmp.eq.s32.totalorder %s179, 0
      %p420 = por %p418, %p419
      %p421 = scmp.ne.s32.totalorder %s409, %s410
      %p422 = scmp.eq.s32.totalorder %s180, 1
      %p423 = por %p421, %p422
      %p425 = scmp.ne.s32.totalorder %s410, %s424
      %p426 = scmp.eq.s32.totalorder %s180, 0
      %p427 = por %p425, %p426
      %s429 = sadd.s32 %s428, 1
      %p432 = scmp.eq.s32.totalorder %s174, 1
      %p433 = scmp.ne.s32.totalorder %s428, %s430
      %p434 = scmp.eq.s32.totalorder %s174, 0
      %p435 = por %p433, %p434
      %p436 = scmp.ne.s32.totalorder %s428, %s430
      %p437 = scmp.eq.s32.totalorder %s179, 1
      %p438 = por %p436, %p437
      %p439 = scmp.ne.s32.totalorder %s430, %s431
      %p440 = scmp.eq.s32.totalorder %s179, 0
      %p441 = por %p439, %p440
      %p442 = scmp.ne.s32.totalorder %s430, %s431
      %p443 = scmp.eq.s32.totalorder %s180, 1
      %p444 = por %p442, %p443
      %p446 = scmp.ne.s32.totalorder %s431, %s445
      %p447 = scmp.eq.s32.totalorder %s180, 0
      %p448 = por %p446, %p447
      %s450 = sadd.s32 %s449, 1
      %p453 = scmp.eq.s32.totalorder %s174, 1
      %p454 = scmp.ne.s32.totalorder %s449, %s451
      %p455 = scmp.eq.s32.totalorder %s174, 0
      %p456 = por %p454, %p455
      %p457 = scmp.ne.s32.totalorder %s449, %s451
      %p458 = scmp.eq.s32.totalorder %s179, 1
      %p459 = por %p457, %p458
      %p460 = scmp.ne.s32.totalorder %s451, %s452
      %p461 = scmp.eq.s32.totalorder %s179, 0
      %p462 = por %p460, %p461
      %p463 = scmp.ne.s32.totalorder %s451, %s452
      %p464 = scmp.eq.s32.totalorder %s180, 1
      %p465 = por %p463, %p464
      %p467 = scmp.ne.s32.totalorder %s452, %s466
      %p468 = scmp.eq.s32.totalorder %s180, 0
      %p469 = por %p467, %p468
      %s471 = sadd.s32 %s470, 1
      %p474 = scmp.eq.s32.totalorder %s174, 1
      %p475 = scmp.ne.s32.totalorder %s470, %s472
      %p476 = scmp.eq.s32.totalorder %s174, 0
      %p477 = por %p475, %p476
      %p478 = scmp.ne.s32.totalorder %s470, %s472
      %p479 = scmp.eq.s32.totalorder %s179, 1
      %p480 = por %p478, %p479
      %p481 = scmp.ne.s32.totalorder %s472, %s473
      %p482 = scmp.eq.s32.totalorder %s179, 0
      %p483 = por %p481, %p482
      %p484 = scmp.ne.s32.totalorder %s472, %s473
      %p485 = scmp.eq.s32.totalorder %s180, 1
      %p486 = por %p484, %p485
      %p488 = scmp.ne.s32.totalorder %s473, %s487
      %p489 = scmp.eq.s32.totalorder %s180, 0
      %p490 = por %p488, %p489
      %s492 = sadd.s32 %s491, 1
      %p495 = scmp.eq.s32.totalorder %s174, 1
      %p496 = scmp.ne.s32.totalorder %s491, %s493
      %p497 = scmp.eq.s32.totalorder %s174, 0
      %p498 = por %p496, %p497
      %p499 = scmp.ne.s32.totalorder %s491, %s493
      %p500 = scmp.eq.s32.totalorder %s179, 1
      %p501 = por %p499, %p500
      %p502 = scmp.ne.s32.totalorder %s493, %s494
      %p503 = scmp.eq.s32.totalorder %s179, 0
      %p504 = por %p502, %p503
      %p505 = scmp.ne.s32.totalorder %s493, %s494
      %p506 = scmp.eq.s32.totalorder %s180, 1
      %p507 = por %p505, %p506
      %p509 = scmp.ne.s32.totalorder %s494, %s508
      %p510 = scmp.eq.s32.totalorder %s180, 0
      %p511 = por %p509, %p510
      %s513 = sadd.s32 %s512, 1
      %p516 = scmp.eq.s32.totalorder %s174, 1
      %p517 = scmp.ne.s32.totalorder %s512, %s514
      %p518 = scmp.eq.s32.totalorder %s174, 0
      %p519 = por %p517, %p518
      %p520 = scmp.ne.s32.totalorder %s512, %s514
      %p521 = scmp.eq.s32.totalorder %s179, 1
      %p522 = por %p520, %p521
      %p523 = scmp.ne.s32.totalorder %s514, %s515
      %p524 = scmp.eq.s32.totalorder %s179, 0
      %p525 = por %p523, %p524
      %p526 = scmp.ne.s32.totalorder %s514, %s515
      %p527 = scmp.eq.s32.totalorder %s180, 1
      %p528 = por %p526, %p527
      %p530 = scmp.ne.s32.totalorder %s515, %s529
      %p531 = scmp.eq.s32.totalorder %s180, 0
      %p532 = por %p530, %p531
      %s534 = sadd.s32 %s533, 1
      %p537 = scmp.eq.s32.totalorder %s174, 1
      %p538 = scmp.ne.s32.totalorder %s533, %s535
      %p539 = scmp.eq.s32.totalorder %s174, 0
      %p540 = por %p538, %p539
      %p541 = scmp.ne.s32.totalorder %s533, %s535
      %p542 = scmp.eq.s32.totalorder %s179, 1
      %p543 = por %p541, %p542
      %p544 = scmp.ne.s32.totalorder %s535, %s536
      %p545 = scmp.eq.s32.totalorder %s179, 0
      %p546 = por %p544, %p545
      %p547 = scmp.ne.s32.totalorder %s535, %s536
      %p548 = scmp.eq.s32.totalorder %s180, 1
      %p549 = por %p547, %p548
      %p551 = scmp.ne.s32.totalorder %s536, %s550
      %p552 = scmp.eq.s32.totalorder %s180, 0
      %p553 = por %p551, %p552
      %s555 = sadd.s32 %s554, 1
      %p558 = scmp.eq.s32.totalorder %s174, 1
      %p559 = scmp.ne.s32.totalorder %s554, %s556
      %p560 = scmp.eq.s32.totalorder %s174, 0
      %p561 = por %p559, %p560
      %p562 = scmp.ne.s32.totalorder %s554, %s556
      %p563 = scmp.eq.s32.totalorder %s179, 1
      %p564 = por %p562, %p563
      %p565 = scmp.ne.s32.totalorder %s556, %s557
      %p566 = scmp.eq.s32.totalorder %s179, 0
      %p567 = por %p565, %p566
      %p568 = scmp.ne.s32.totalorder %s556, %s557
      %p569 = scmp.eq.s32.totalorder %s180, 1
      %p570 = por %p568, %p569
      %p572 = scmp.ne.s32.totalorder %s557, %s571
      %p573 = scmp.eq.s32.totalorder %s180, 0
      %p574 = por %p572, %p573
      %s576 = sadd.s32 %s575, 1
      %p579 = scmp.eq.s32.totalorder %s174, 1
      %p580 = scmp.ne.s32.totalorder %s575, %s577
      %p581 = scmp.eq.s32.totalorder %s174, 0
      %p582 = por %p580, %p581
      %p583 = scmp.ne.s32.totalorder %s575, %s577
      %p584 = scmp.eq.s32.totalorder %s179, 1
      %p585 = por %p583, %p584
      %p586 = scmp.ne.s32.totalorder %s577, %s578
      %p587 = scmp.eq.s32.totalorder %s179, 0
      %p588 = por %p586, %p587
      %p589 = scmp.ne.s32.totalorder %s577, %s578
      %p590 = scmp.eq.s32.totalorder %s180, 1
      %p591 = por %p589, %p590
      %p593 = scmp.ne.s32.totalorder %s578, %s592
      %p594 = scmp.eq.s32.totalorder %s180, 0
      %p595 = por %p593, %p594
      %s597 = sadd.s32 %s596, 1
      %p600 = scmp.eq.s32.totalorder %s174, 1
      %p601 = scmp.ne.s32.totalorder %s596, %s598
      %p602 = scmp.eq.s32.totalorder %s174, 0
      %p603 = por %p601, %p602
      %p604 = scmp.ne.s32.totalorder %s596, %s598
      %p605 = scmp.eq.s32.totalorder %s179, 1
      %p606 = por %p604, %p605
      %p607 = scmp.ne.s32.totalorder %s598, %s599
      %p608 = scmp.eq.s32.totalorder %s179, 0
      %p609 = por %p607, %p608
      %p610 = scmp.ne.s32.totalorder %s598, %s599
      %p611 = scmp.eq.s32.totalorder %s180, 1
      %p612 = por %p610, %p611
      %p614 = scmp.ne.s32.totalorder %s599, %s613
      %p615 = scmp.eq.s32.totalorder %s180, 0
      %p616 = por %p614, %p615
      %s618 = sadd.s32 %s617, 1
      %p621 = scmp.eq.s32.totalorder %s174, 1
      %p622 = scmp.ne.s32.totalorder %s617, %s619
      %p623 = scmp.eq.s32.totalorder %s174, 0
      %p624 = por %p622, %p623
      %p625 = scmp.ne.s32.totalorder %s617, %s619
      %p626 = scmp.eq.s32.totalorder %s179, 1
      %p627 = por %p625, %p626
      %p628 = scmp.ne.s32.totalorder %s619, %s620
      %p629 = scmp.eq.s32.totalorder %s179, 0
      %p630 = por %p628, %p629
      %p631 = scmp.ne.s32.totalorder %s619, %s620
      %p632 = scmp.eq.s32.totalorder %s180, 1
      %p633 = por %p631, %p632
      %p635 = scmp.ne.s32.totalorder %s620, %s634
      %p636 = scmp.eq.s32.totalorder %s180, 0
      %p637 = por %p635, %p636
      %s639 = sadd.s32 %s638, 1
      %p642 = scmp.eq.s32.totalorder %s174, 1
      %p643 = scmp.ne.s32.totalorder %s638, %s640
      %p644 = scmp.eq.s32.totalorder %s174, 0
      %p645 = por %p643, %p644
      %p646 = scmp.ne.s32.totalorder %s638, %s640
      %p647 = scmp.eq.s32.totalorder %s179, 1
      %p648 = por %p646, %p647
      %p649 = scmp.ne.s32.totalorder %s640, %s641
      %p650 = scmp.eq.s32.totalorder %s179, 0
      %p651 = por %p649, %p650
      %p652 = scmp.ne.s32.totalorder %s640, %s641
      %p653 = scmp.eq.s32.totalorder %s180, 1
      %p654 = por %p652, %p653
      %p656 = scmp.ne.s32.totalorder %s641, %s655
      %p657 = scmp.eq.s32.totalorder %s180, 0
      %p658 = por %p656, %p657
      %s660 = sadd.s32 %s659, 1
      %p663 = scmp.eq.s32.totalorder %s174, 1
      %p664 = scmp.ne.s32.totalorder %s659, %s661
      %p665 = scmp.eq.s32.totalorder %s174, 0
      %p666 = por %p664, %p665
      %p667 = scmp.ne.s32.totalorder %s659, %s661
      %p668 = scmp.eq.s32.totalorder %s179, 1
      %p669 = por %p667, %p668
      %p670 = scmp.ne.s32.totalorder %s661, %s662
      %p671 = scmp.eq.s32.totalorder %s179, 0
      %p672 = por %p670, %p671
      %p673 = scmp.ne.s32.totalorder %s661, %s662
      %p674 = scmp.eq.s32.totalorder %s180, 1
      %p675 = por %p673, %p674
      %p677 = scmp.ne.s32.totalorder %s662, %s676
      %p678 = scmp.eq.s32.totalorder %s180, 0
      %p679 = por %p677, %p678
      %s681 = sadd.s32 %s680, 1
      %p684 = scmp.eq.s32.totalorder %s174, 1
      %p685 = scmp.ne.s32.totalorder %s680, %s682
      %p686 = scmp.eq.s32.totalorder %s174, 0
      %p687 = por %p685, %p686
      %p688 = scmp.ne.s32.totalorder %s680, %s682
      %p689 = scmp.eq.s32.totalorder %s179, 1
      %p690 = por %p688, %p689
      %p691 = scmp.ne.s32.totalorder %s682, %s683
      %p692 = scmp.eq.s32.totalorder %s179, 0
      %p693 = por %p691, %p692
      %p694 = scmp.ne.s32.totalorder %s682, %s683
      %p695 = scmp.eq.s32.totalorder %s180, 1
      %p696 = por %p694, %p695
      %p698 = scmp.ne.s32.totalorder %s683, %s697
      %p699 = scmp.eq.s32.totalorder %s180, 0
      %p700 = por %p698, %p699
      %s702 = sadd.s32 %s701, 1
      %p705 = scmp.eq.s32.totalorder %s174, 1
      %p706 = scmp.ne.s32.totalorder %s701, %s703
      %p707 = scmp.eq.s32.totalorder %s174, 0
      %p708 = por %p706, %p707
      %p709 = scmp.ne.s32.totalorder %s701, %s703
      %p710 = scmp.eq.s32.totalorder %s179, 1
      %p711 = por %p709, %p710
      %p712 = scmp.ne.s32.totalorder %s703, %s704
      %p713 = scmp.eq.s32.totalorder %s179, 0
      %p714 = por %p712, %p713
      %p715 = scmp.ne.s32.totalorder %s703, %s704
      %p716 = scmp.eq.s32.totalorder %s180, 1
      %p717 = por %p715, %p716
      %p719 = scmp.ne.s32.totalorder %s704, %s718
      %p720 = scmp.eq.s32.totalorder %s180, 0
      %p721 = por %p719, %p720
      %s723 = sadd.s32 %s722, 1
      %p726 = scmp.eq.s32.totalorder %s174, 1
      %p727 = scmp.ne.s32.totalorder %s722, %s724
      %p728 = scmp.eq.s32.totalorder %s174, 0
      %p729 = por %p727, %p728
      %p730 = scmp.ne.s32.totalorder %s722, %s724
      %p731 = scmp.eq.s32.totalorder %s179, 1
      %p732 = por %p730, %p731
      %p733 = scmp.ne.s32.totalorder %s724, %s725
      %p734 = scmp.eq.s32.totalorder %s179, 0
      %p735 = por %p733, %p734
      %p736 = scmp.ne.s32.totalorder %s724, %s725
      %p737 = scmp.eq.s32.totalorder %s180, 1
      %p738 = por %p736, %p737
      %p740 = scmp.ne.s32.totalorder %s725, %s739
      %p741 = scmp.eq.s32.totalorder %s180, 0
      %p742 = por %p740, %p741
      %s744 = sadd.s32 %s743, 1
      %p747 = scmp.eq.s32.totalorder %s174, 1
      %p748 = scmp.ne.s32.totalorder %s743, %s745
      %p749 = scmp.eq.s32.totalorder %s174, 0
      %p750 = por %p748, %p749
      %p751 = scmp.ne.s32.totalorder %s743, %s745
      %p752 = scmp.eq.s32.totalorder %s179, 1
      %p753 = por %p751, %p752
      %p754 = scmp.ne.s32.totalorder %s745, %s746
      %p755 = scmp.eq.s32.totalorder %s179, 0
      %p756 = por %p754, %p755
      %p757 = scmp.ne.s32.totalorder %s745, %s746
      %p758 = scmp.eq.s32.totalorder %s180, 1
      %p759 = por %p757, %p758
      %p761 = scmp.ne.s32.totalorder %s746, %s760
      %p762 = scmp.eq.s32.totalorder %s180, 0
      %p763 = por %p761, %p762
      %s765 = sadd.s32 %s764, 1
      %p768 = scmp.eq.s32.totalorder %s174, 1
      %p769 = scmp.ne.s32.totalorder %s764, %s766
      %p770 = scmp.eq.s32.totalorder %s174, 0
      %p771 = por %p769, %p770
      %p772 = scmp.ne.s32.totalorder %s764, %s766
      %p773 = scmp.eq.s32.totalorder %s179, 1
      %p774 = por %p772, %p773
      %p775 = scmp.ne.s32.totalorder %s766, %s767
      %p776 = scmp.eq.s32.totalorder %s179, 0
      %p777 = por %p775, %p776
      %p778 = scmp.ne.s32.totalorder %s766, %s767
      %p779 = scmp.eq.s32.totalorder %s180, 1
      %p780 = por %p778, %p779
      %p782 = scmp.ne.s32.totalorder %s767, %s781
      %p783 = scmp.eq.s32.totalorder %s180, 0
      %p784 = por %p782, %p783
      %s786 = sadd.s32 %s785, 1
      %p789 = scmp.eq.s32.totalorder %s174, 1
      %p790 = scmp.ne.s32.totalorder %s785, %s787
      %p791 = scmp.eq.s32.totalorder %s174, 0
      %p792 = por %p790, %p791
      %p793 = scmp.ne.s32.totalorder %s785, %s787
      %p794 = scmp.eq.s32.totalorder %s179, 1
      %p795 = por %p793, %p794
      %p796 = scmp.ne.s32.totalorder %s787, %s788
      %p797 = scmp.eq.s32.totalorder %s179, 0
      %p798 = por %p796, %p797
      %p799 = scmp.ne.s32.totalorder %s787, %s788
      %p800 = scmp.eq.s32.totalorder %s180, 1
      %p801 = por %p799, %p800
      %p803 = scmp.ne.s32.totalorder %s788, %s802
      %p804 = scmp.eq.s32.totalorder %s180, 0
      %p805 = por %p803, %p804
      %s807 = sadd.s32 %s806, 1
      %p810 = scmp.eq.s32.totalorder %s174, 1
      %p811 = scmp.ne.s32.totalorder %s806, %s808
      %p812 = scmp.eq.s32.totalorder %s174, 0
      %p813 = por %p811, %p812
      %p814 = scmp.ne.s32.totalorder %s806, %s808
      %p815 = scmp.eq.s32.totalorder %s179, 1
      %p816 = por %p814, %p815
      %p817 = scmp.ne.s32.totalorder %s808, %s809
      %p818 = scmp.eq.s32.totalorder %s179, 0
      %p819 = por %p817, %p818
      %p820 = scmp.ne.s32.totalorder %s808, %s809
      %p821 = scmp.eq.s32.totalorder %s180, 1
      %p822 = por %p820, %p821
      %p824 = scmp.ne.s32.totalorder %s809, %s823
      %p825 = scmp.eq.s32.totalorder %s180, 0
      %p826 = por %p824, %p825
      %s828 = sadd.s32 %s827, 1
      %p831 = scmp.eq.s32.totalorder %s174, 1
      %p832 = scmp.ne.s32.totalorder %s827, %s829
      %p833 = scmp.eq.s32.totalorder %s174, 0
      %p834 = por %p832, %p833
      %p835 = scmp.ne.s32.totalorder %s827, %s829
      %p836 = scmp.eq.s32.totalorder %s179, 1
      %p837 = por %p835, %p836
      %p838 = scmp.ne.s32.totalorder %s829, %s830
      %p839 = scmp.eq.s32.totalorder %s179, 0
      %p840 = por %p838, %p839
      %p841 = scmp.ne.s32.totalorder %s829, %s830
      %p842 = scmp.eq.s32.totalorder %s180, 1
      %p843 = por %p841, %p842
      %p845 = scmp.ne.s32.totalorder %s830, %s844
      %p846 = scmp.eq.s32.totalorder %s180, 0
      %p847 = por %p845, %p846
      %s849 = sadd.s32 %s848, 1
      %p852 = scmp.eq.s32.totalorder %s174, 1
      %p853 = scmp.ne.s32.totalorder %s848, %s850
      %p854 = scmp.eq.s32.totalorder %s174, 0
      %p855 = por %p853, %p854
      %p856 = scmp.ne.s32.totalorder %s848, %s850
      %p857 = scmp.eq.s32.totalorder %s179, 1
      %p858 = por %p856, %p857
      %p859 = scmp.ne.s32.totalorder %s850, %s851
      %p860 = scmp.eq.s32.totalorder %s179, 0
      %p861 = por %p859, %p860
      %p862 = scmp.ne.s32.totalorder %s850, %s851
      %p863 = scmp.eq.s32.totalorder %s180, 1
      %p864 = por %p862, %p863
      %p866 = scmp.ne.s32.totalorder %s851, %s865
      %p867 = scmp.eq.s32.totalorder %s180, 0
      %p868 = por %p866, %p867
      %s870 = sadd.s32 %s869, 1
      %p873 = scmp.eq.s32.totalorder %s174, 1
      %p874 = scmp.ne.s32.totalorder %s869, %s871
      %p875 = scmp.eq.s32.totalorder %s174, 0
      %p876 = por %p874, %p875
      %p877 = scmp.ne.s32.totalorder %s869, %s871
      %p878 = scmp.eq.s32.totalorder %s179, 1
      %p879 = por %p877, %p878
      %p880 = scmp.ne.s32.totalorder %s871, %s872
      %p881 = scmp.eq.s32.totalorder %s179, 0
      %p882 = por %p880, %p881
      %p883 = scmp.ne.s32.totalorder %s871, %s872
      %p884 = scmp.eq.s32.totalorder %s180, 1
      %p885 = por %p883, %p884
      %p887 = scmp.ne.s32.totalorder %s872, %s886
      %p888 = scmp.eq.s32.totalorder %s180, 0
      %p889 = por %p887, %p888
      %s891 = sadd.s32 %s890, 1
      %p894 = scmp.eq.s32.totalorder %s174, 1
      %p895 = scmp.ne.s32.totalorder %s890, %s892
      %p896 = scmp.eq.s32.totalorder %s174, 0
      %p897 = por %p895, %p896
      %p898 = scmp.ne.s32.totalorder %s890, %s892
      %p899 = scmp.eq.s32.totalorder %s179, 1
      %p900 = por %p898, %p899
      %p901 = scmp.ne.s32.totalorder %s892, %s893
      %p902 = scmp.eq.s32.totalorder %s179, 0
      %p903 = por %p901, %p902
      %p904 = scmp.ne.s32.totalorder %s892, %s893
      %p905 = scmp.eq.s32.totalorder %s180, 1
      %p906 = por %p904, %p905
      %p908 = scmp.ne.s32.totalorder %s893, %s907
      %p909 = scmp.eq.s32.totalorder %s180, 0
      %p910 = por %p908, %p909
      %s912 = sadd.s32 %s911, 1
      %p915 = scmp.eq.s32.totalorder %s174, 1
      %p916 = scmp.ne.s32.totalorder %s911, %s913
      %p917 = scmp.eq.s32.totalorder %s174, 0
      %p918 = por %p916, %p917
      %p919 = scmp.ne.s32.totalorder %s911, %s913
      %p920 = scmp.eq.s32.totalorder %s179, 1
      %p921 = por %p919, %p920
      %p922 = scmp.ne.s32.totalorder %s913, %s914
      %p923 = scmp.eq.s32.totalorder %s179, 0
      %p924 = por %p922, %p923
      %p925 = scmp.ne.s32.totalorder %s913, %s914
      %p926 = scmp.eq.s32.totalorder %s180, 1
      %p927 = por %p925, %p926
      %p929 = scmp.ne.s32.totalorder %s914, %s928
      %p930 = scmp.eq.s32.totalorder %s180, 0
      %p931 = por %p929, %p930
      %s933 = sadd.s32 %s932, 1
      %p936 = scmp.eq.s32.totalorder %s174, 1
      %p937 = scmp.ne.s32.totalorder %s932, %s934
      %p938 = scmp.eq.s32.totalorder %s174, 0
      %p939 = por %p937, %p938
      %p940 = scmp.ne.s32.totalorder %s932, %s934
      %p941 = scmp.eq.s32.totalorder %s179, 1
      %p942 = por %p940, %p941
      %p943 = scmp.ne.s32.totalorder %s934, %s935
      %p944 = scmp.eq.s32.totalorder %s179, 0
      %p945 = por %p943, %p944
      %p946 = scmp.ne.s32.totalorder %s934, %s935
      %p947 = scmp.eq.s32.totalorder %s180, 1
      %p948 = por %p946, %p947
      %p950 = scmp.ne.s32.totalorder %s935, %s949
      %p951 = scmp.eq.s32.totalorder %s180, 0
      %p952 = por %p950, %p951
      %s954 = sadd.s32 %s953, 1
      %p957 = scmp.eq.s32.totalorder %s174, 1
      %p958 = scmp.ne.s32.totalorder %s953, %s955
      %p959 = scmp.eq.s32.totalorder %s174, 0
      %p960 = por %p958, %p959
      %p961 = scmp.ne.s32.totalorder %s953, %s955
      %p962 = scmp.eq.s32.totalorder %s179, 1
      %p963 = por %p961, %p962
      %p964 = scmp.ne.s32.totalorder %s955, %s956
      %p965 = scmp.eq.s32.totalorder %s179, 0
      %p966 = por %p964, %p965
      %p967 = scmp.ne.s32.totalorder %s955, %s956
      %p968 = scmp.eq.s32.totalorder %s180, 1
      %p969 = por %p967, %p968
      %p971 = scmp.ne.s32.totalorder %s956, %s970
      %p972 = scmp.eq.s32.totalorder %s180, 0
      %p973 = por %p971, %p972
      %s975 = sadd.s32 %s974, 1
      %p978 = scmp.eq.s32.totalorder %s174, 1
      %p979 = scmp.ne.s32.totalorder %s974, %s976
      %p980 = scmp.eq.s32.totalorder %s174, 0
      %p981 = por %p979, %p980
      %p982 = scmp.ne.s32.totalorder %s974, %s976
      %p983 = scmp.eq.s32.totalorder %s179, 1
      %p984 = por %p982, %p983
      %p985 = scmp.ne.s32.totalorder %s976, %s977
      %p986 = scmp.eq.s32.totalorder %s179, 0
      %p987 = por %p985, %p986
      %p988 = scmp.ne.s32.totalorder %s976, %s977
      %p989 = scmp.eq.s32.totalorder %s180, 1
      %p990 = por %p988, %p989
      %p992 = scmp.ne.s32.totalorder %s977, %s991
      %p993 = scmp.eq.s32.totalorder %s180, 0
      %p994 = por %p992, %p993
      %s996 = sadd.s32 %s995, 1
      %p999 = scmp.eq.s32.totalorder %s174, 1
      %p1000 = scmp.ne.s32.totalorder %s995, %s997
      %p1001 = scmp.eq.s32.totalorder %s174, 0
      %p1002 = por %p1000, %p1001
      %p1003 = scmp.ne.s32.totalorder %s995, %s997
      %p1004 = scmp.eq.s32.totalorder %s179, 1
      %p1005 = por %p1003, %p1004
      %p1006 = scmp.ne.s32.totalorder %s997, %s998
      %p1007 = scmp.eq.s32.totalorder %s179, 0
      %p1008 = por %p1006, %p1007
      %p1009 = scmp.ne.s32.totalorder %s997, %s998
      %p1010 = scmp.eq.s32.totalorder %s180, 1
      %p1011 = por %p1009, %p1010
      %p1013 = scmp.ne.s32.totalorder %s998, %s1012
      %p1014 = scmp.eq.s32.totalorder %s180, 0
      %p1015 = por %p1013, %p1014
      %s1017 = sadd.s32 %s1016, 1
      %p1020 = scmp.eq.s32.totalorder %s174, 1
      %p1021 = scmp.ne.s32.totalorder %s1016, %s1018
      %p1022 = scmp.eq.s32.totalorder %s174, 0
      %p1023 = por %p1021, %p1022
      %p1024 = scmp.ne.s32.totalorder %s1016, %s1018
      %p1025 = scmp.eq.s32.totalorder %s179, 1
      %p1026 = por %p1024, %p1025
      %p1027 = scmp.ne.s32.totalorder %s1018, %s1019
      %p1028 = scmp.eq.s32.totalorder %s179, 0
      %p1029 = por %p1027, %p1028
      %p1030 = scmp.ne.s32.totalorder %s1018, %s1019
      %p1031 = scmp.eq.s32.totalorder %s180, 1
      %p1032 = por %p1030, %p1031
      %p1034 = scmp.ne.s32.totalorder %s1019, %s1033
      %p1035 = scmp.eq.s32.totalorder %s180, 0
      %p1036 = por %p1034, %p1035
      %s1038 = sadd.s32 %s1037, 1
      %p1041 = scmp.eq.s32.totalorder %s174, 1
      %p1042 = scmp.ne.s32.totalorder %s1037, %s1039
      %p1043 = scmp.eq.s32.totalorder %s174, 0
      %p1044 = por %p1042, %p1043
      %p1045 = scmp.ne.s32.totalorder %s1037, %s1039
      %p1046 = scmp.eq.s32.totalorder %s179, 1
      %p1047 = por %p1045, %p1046
      %p1048 = scmp.ne.s32.totalorder %s1039, %s1040
      %p1049 = scmp.eq.s32.totalorder %s179, 0
      %p1050 = por %p1048, %p1049
      %p1051 = scmp.ne.s32.totalorder %s1039, %s1040
      %p1052 = scmp.eq.s32.totalorder %s180, 1
      %p1053 = por %p1051, %p1052
      %p1055 = scmp.ne.s32.totalorder %s1040, %s1054
      %p1056 = scmp.eq.s32.totalorder %s180, 0
      %p1057 = por %p1055, %p1056
      %s1059 = sadd.s32 %s1058, 1
      %p1062 = scmp.eq.s32.totalorder %s174, 1
      %p1063 = scmp.ne.s32.totalorder %s1058, %s1060
      %p1064 = scmp.eq.s32.totalorder %s174, 0
      %p1065 = por %p1063, %p1064
      %p1066 = scmp.ne.s32.totalorder %s1058, %s1060
      %p1067 = scmp.eq.s32.totalorder %s179, 1
      %p1068 = por %p1066, %p1067
      %p1069 = scmp.ne.s32.totalorder %s1060, %s1061
      %p1070 = scmp.eq.s32.totalorder %s179, 0
      %p1071 = por %p1069, %p1070
      %p1072 = scmp.ne.s32.totalorder %s1060, %s1061
      %p1073 = scmp.eq.s32.totalorder %s180, 1
      %p1074 = por %p1072, %p1073
      %p1076 = scmp.ne.s32.totalorder %s1061, %s1075
      %p1077 = scmp.eq.s32.totalorder %s180, 0
      %p1078 = por %p1076, %p1077
      %s1080 = sadd.s32 %s1079, 1
      %p1083 = scmp.eq.s32.totalorder %s174, 1
      %p1084 = scmp.ne.s32.totalorder %s1079, %s1081
      %p1085 = scmp.eq.s32.totalorder %s174, 0
      %p1086 = por %p1084, %p1085
      %p1087 = scmp.ne.s32.totalorder %s1079, %s1081
      %p1088 = scmp.eq.s32.totalorder %s179, 1
      %p1089 = por %p1087, %p1088
      %p1090 = scmp.ne.s32.totalorder %s1081, %s1082
      %p1091 = scmp.eq.s32.totalorder %s179, 0
      %p1092 = por %p1090, %p1091
      %p1093 = scmp.ne.s32.totalorder %s1081, %s1082
      %p1094 = scmp.eq.s32.totalorder %s180, 1
      %p1095 = por %p1093, %p1094
      %p1097 = scmp.ne.s32.totalorder %s1082, %s1096
      %p1098 = scmp.eq.s32.totalorder %s180, 0
      %p1099 = por %p1097, %p1098
      %s1101 = sadd.s32 %s1100, 1
      %p1104 = scmp.eq.s32.totalorder %s174, 1
      %p1105 = scmp.ne.s32.totalorder %s1100, %s1102
      %p1106 = scmp.eq.s32.totalorder %s174, 0
      %p1107 = por %p1105, %p1106
      %p1108 = scmp.ne.s32.totalorder %s1100, %s1102
      %p1109 = scmp.eq.s32.totalorder %s179, 1
      %p1110 = por %p1108, %p1109
      %p1111 = scmp.ne.s32.totalorder %s1102, %s1103
      %p1112 = scmp.eq.s32.totalorder %s179, 0
      %p1113 = por %p1111, %p1112
      %p1114 = scmp.ne.s32.totalorder %s1102, %s1103
      %p1115 = scmp.eq.s32.totalorder %s180, 1
      %p1116 = por %p1114, %p1115
      %p1118 = scmp.ne.s32.totalorder %s1103, %s1117
      %p1119 = scmp.eq.s32.totalorder %s180, 0
      %p1120 = por %p1118, %p1119
      %s1122 = sadd.s32 %s1121, 1
      %p1125 = scmp.eq.s32.totalorder %s174, 1
      %p1126 = scmp.ne.s32.totalorder %s1121, %s1123
      %p1127 = scmp.eq.s32.totalorder %s174, 0
      %p1128 = por %p1126, %p1127
      %p1129 = scmp.ne.s32.totalorder %s1121, %s1123
      %p1130 = scmp.eq.s32.totalorder %s179, 1
      %p1131 = por %p1129, %p1130
      %p1132 = scmp.ne.s32.totalorder %s1123, %s1124
      %p1133 = scmp.eq.s32.totalorder %s179, 0
      %p1134 = por %p1132, %p1133
      %p1135 = scmp.ne.s32.totalorder %s1123, %s1124
      %p1136 = scmp.eq.s32.totalorder %s180, 1
      %p1137 = por %p1135, %p1136
      %p1139 = scmp.ne.s32.totalorder %s1124, %s1138
      %p1140 = scmp.eq.s32.totalorder %s180, 0
      %p1141 = por %p1139, %p1140
      %s1143 = sadd.s32 %s1142, 1
      %p1146 = scmp.eq.s32.totalorder %s174, 1
      %p1147 = scmp.ne.s32.totalorder %s1142, %s1144
      %p1148 = scmp.eq.s32.totalorder %s174, 0
      %p1149 = por %p1147, %p1148
      %p1150 = scmp.ne.s32.totalorder %s1142, %s1144
      %p1151 = scmp.eq.s32.totalorder %s179, 1
      %p1152 = por %p1150, %p1151
      %p1153 = scmp.ne.s32.totalorder %s1144, %s1145
      %p1154 = scmp.eq.s32.totalorder %s179, 0
      %p1155 = por %p1153, %p1154
      %p1156 = scmp.ne.s32.totalorder %s1144, %s1145
      %p1157 = scmp.eq.s32.totalorder %s180, 1
      %p1158 = por %p1156, %p1157
      %p1160 = scmp.ne.s32.totalorder %s1145, %s1159
      %p1161 = scmp.eq.s32.totalorder %s180, 0
      %p1162 = por %p1160, %p1161
      %s1164 = sadd.s32 %s1163, 1
      %p1167 = scmp.eq.s32.totalorder %s174, 1
      %p1168 = scmp.ne.s32.totalorder %s1163, %s1165
      %p1169 = scmp.eq.s32.totalorder %s174, 0
      %p1170 = por %p1168, %p1169
      %p1171 = scmp.ne.s32.totalorder %s1163, %s1165
      %p1172 = scmp.eq.s32.totalorder %s179, 1
      %p1173 = por %p1171, %p1172
      %p1174 = scmp.ne.s32.totalorder %s1165, %s1166
      %p1175 = scmp.eq.s32.totalorder %s179, 0
      %p1176 = por %p1174, %p1175
      %p1177 = scmp.ne.s32.totalorder %s1165, %s1166
      %p1178 = scmp.eq.s32.totalorder %s180, 1
      %p1179 = por %p1177, %p1178
      %p1181 = scmp.ne.s32.totalorder %s1166, %s1180
      %p1182 = scmp.eq.s32.totalorder %s180, 0
      %p1183 = por %p1181, %p1182
      %s1185 = sadd.s32 %s1184, 1
      %p1188 = scmp.eq.s32.totalorder %s174, 1
      %p1189 = scmp.ne.s32.totalorder %s1184, %s1186
      %p1190 = scmp.eq.s32.totalorder %s174, 0
      %p1191 = por %p1189, %p1190
      %p1192 = scmp.ne.s32.totalorder %s1184, %s1186
      %p1193 = scmp.eq.s32.totalorder %s179, 1
      %p1194 = por %p1192, %p1193
      %p1195 = scmp.ne.s32.totalorder %s1186, %s1187
      %p1196 = scmp.eq.s32.totalorder %s179, 0
      %p1197 = por %p1195, %p1196
      %p1198 = scmp.ne.s32.totalorder %s1186, %s1187
      %p1199 = scmp.eq.s32.totalorder %s180, 1
      %p1200 = por %p1198, %p1199
      %p1202 = scmp.ne.s32.totalorder %s1187, %s1201
      %p1203 = scmp.eq.s32.totalorder %s180, 0
      %p1204 = por %p1202, %p1203
      %s1206 = sadd.s32 %s1205, 1
      %p1209 = scmp.eq.s32.totalorder %s174, 1
      %p1210 = scmp.ne.s32.totalorder %s1205, %s1207
      %p1211 = scmp.eq.s32.totalorder %s174, 0
      %p1212 = por %p1210, %p1211
      %p1213 = scmp.ne.s32.totalorder %s1205, %s1207
      %p1214 = scmp.eq.s32.totalorder %s179, 1
      %p1215 = por %p1213, %p1214
      %p1216 = scmp.ne.s32.totalorder %s1207, %s1208
      %p1217 = scmp.eq.s32.totalorder %s179, 0
      %p1218 = por %p1216, %p1217
      %p1219 = scmp.ne.s32.totalorder %s1207, %s1208
      %p1220 = scmp.eq.s32.totalorder %s180, 1
      %p1221 = por %p1219, %p1220
      %p1223 = scmp.ne.s32.totalorder %s1208, %s1222
      %p1224 = scmp.eq.s32.totalorder %s180, 0
      %p1225 = por %p1223, %p1224
      %s1227 = sadd.s32 %s1226, 1
      %p1230 = scmp.eq.s32.totalorder %s174, 1
      %p1231 = scmp.ne.s32.totalorder %s1226, %s1228
      %p1232 = scmp.eq.s32.totalorder %s174, 0
      %p1233 = por %p1231, %p1232
      %p1234 = scmp.ne.s32.totalorder %s1226, %s1228
      %p1235 = scmp.eq.s32.totalorder %s179, 1
      %p1236 = por %p1234, %p1235
      %p1237 = scmp.ne.s32.totalorder %s1228, %s1229
      %p1238 = scmp.eq.s32.totalorder %s179, 0
      %p1239 = por %p1237, %p1238
      %p1240 = scmp.ne.s32.totalorder %s1228, %s1229
      %p1241 = scmp.eq.s32.totalorder %s180, 1
      %p1242 = por %p1240, %p1241
      %p1244 = scmp.ne.s32.totalorder %s1229, %s1243
      %p1245 = scmp.eq.s32.totalorder %s180, 0
      %p1246 = por %p1244, %p1245
      %s1248 = sadd.s32 %s1247, 1
      %p1251 = scmp.eq.s32.totalorder %s174, 1
      %p1252 = scmp.ne.s32.totalorder %s1247, %s1249
      %p1253 = scmp.eq.s32.totalorder %s174, 0
      %p1254 = por %p1252, %p1253
      %p1255 = scmp.ne.s32.totalorder %s1247, %s1249
      %p1256 = scmp.eq.s32.totalorder %s179, 1
      %p1257 = por %p1255, %p1256
      %p1258 = scmp.ne.s32.totalorder %s1249, %s1250
      %p1259 = scmp.eq.s32.totalorder %s179, 0
      %p1260 = por %p1258, %p1259
      %p1261 = scmp.ne.s32.totalorder %s1249, %s1250
      %p1262 = scmp.eq.s32.totalorder %s180, 1
      %p1263 = por %p1261, %p1262
      %p1265 = scmp.ne.s32.totalorder %s1250, %s1264
      %p1266 = scmp.eq.s32.totalorder %s180, 0
      %p1267 = por %p1265, %p1266
      %s1269 = sadd.s32 %s1268, 1
      %p1272 = scmp.eq.s32.totalorder %s174, 1
      %p1273 = scmp.ne.s32.totalorder %s1268, %s1270
      %p1274 = scmp.eq.s32.totalorder %s174, 0
      %p1275 = por %p1273, %p1274
      %p1276 = scmp.ne.s32.totalorder %s1268, %s1270
      %p1277 = scmp.eq.s32.totalorder %s179, 1
      %p1278 = por %p1276, %p1277
      %p1279 = scmp.ne.s32.totalorder %s1270, %s1271
      %p1280 = scmp.eq.s32.totalorder %s179, 0
      %p1281 = por %p1279, %p1280
      %p1282 = scmp.ne.s32.totalorder %s1270, %s1271
      %p1283 = scmp.eq.s32.totalorder %s180, 1
      %p1284 = por %p1282, %p1283
      %p1286 = scmp.ne.s32.totalorder %s1271, %s1285
      %p1287 = scmp.eq.s32.totalorder %s180, 0
      %p1288 = por %p1286, %p1287
      %s1290 = sadd.s32 %s1289, 1
      %p1293 = scmp.eq.s32.totalorder %s174, 1
      %p1294 = scmp.ne.s32.totalorder %s1289, %s1291
      %p1295 = scmp.eq.s32.totalorder %s174, 0
      %p1296 = por %p1294, %p1295
      %p1297 = scmp.ne.s32.totalorder %s1289, %s1291
      %p1298 = scmp.eq.s32.totalorder %s179, 1
      %p1299 = por %p1297, %p1298
      %p1300 = scmp.ne.s32.totalorder %s1291, %s1292
      %p1301 = scmp.eq.s32.totalorder %s179, 0
      %p1302 = por %p1300, %p1301
      %p1303 = scmp.ne.s32.totalorder %s1291, %s1292
      %p1304 = scmp.eq.s32.totalorder %s180, 1
      %p1305 = por %p1303, %p1304
      %p1307 = scmp.ne.s32.totalorder %s1292, %s1306
      %p1308 = scmp.eq.s32.totalorder %s180, 0
      %p1309 = por %p1307, %p1308
      %s1311 = sadd.s32 %s1310, 1
      %p1314 = scmp.eq.s32.totalorder %s174, 1
      %p1315 = scmp.ne.s32.totalorder %s1310, %s1312
      %p1316 = scmp.eq.s32.totalorder %s174, 0
      %p1317 = por %p1315, %p1316
      %p1318 = scmp.ne.s32.totalorder %s1310, %s1312
      %p1319 = scmp.eq.s32.totalorder %s179, 1
      %p1320 = por %p1318, %p1319
      %p1321 = scmp.ne.s32.totalorder %s1312, %s1313
      %p1322 = scmp.eq.s32.totalorder %s179, 0
      %p1323 = por %p1321, %p1322
      %p1324 = scmp.ne.s32.totalorder %s1312, %s1313
      %p1325 = scmp.eq.s32.totalorder %s180, 1
      %p1326 = por %p1324, %p1325
      %p1328 = scmp.ne.s32.totalorder %s1313, %s1327
      %p1329 = scmp.eq.s32.totalorder %s180, 0
      %p1330 = por %p1328, %p1329
      %s1332 = sadd.s32 %s1331, 1
      %p1335 = scmp.eq.s32.totalorder %s174, 1
      %p1336 = scmp.ne.s32.totalorder %s1331, %s1333
      %p1337 = scmp.eq.s32.totalorder %s174, 0
      %p1338 = por %p1336, %p1337
      %p1339 = scmp.ne.s32.totalorder %s1331, %s1333
      %p1340 = scmp.eq.s32.totalorder %s179, 1
      %p1341 = por %p1339, %p1340
      %p1342 = scmp.ne.s32.totalorder %s1333, %s1334
      %p1343 = scmp.eq.s32.totalorder %s179, 0
      %p1344 = por %p1342, %p1343
      %p1345 = scmp.ne.s32.totalorder %s1333, %s1334
      %p1346 = scmp.eq.s32.totalorder %s180, 1
      %p1347 = por %p1345, %p1346
      %p1349 = scmp.ne.s32.totalorder %s1334, %s1348
      %p1350 = scmp.eq.s32.totalorder %s180, 0
      %p1351 = por %p1349, %p1350
      %s1353 = sadd.s32 %s1352, 1
      %p1356 = scmp.eq.s32.totalorder %s174, 1
      %p1357 = scmp.ne.s32.totalorder %s1352, %s1354
      %p1358 = scmp.eq.s32.totalorder %s174, 0
      %p1359 = por %p1357, %p1358
      %p1360 = scmp.ne.s32.totalorder %s1352, %s1354
      %p1361 = scmp.eq.s32.totalorder %s179, 1
      %p1362 = por %p1360, %p1361
      %p1363 = scmp.ne.s32.totalorder %s1354, %s1355
      %p1364 = scmp.eq.s32.totalorder %s179, 0
      %p1365 = por %p1363, %p1364
      %p1366 = scmp.ne.s32.totalorder %s1354, %s1355
      %p1367 = scmp.eq.s32.totalorder %s180, 1
      %p1368 = por %p1366, %p1367
      %p1370 = scmp.ne.s32.totalorder %s1355, %s1369
      %p1371 = scmp.eq.s32.totalorder %s180, 0
      %p1372 = por %p1370, %p1371
      %s1374 = sadd.s32 %s1373, 1
      %p1377 = scmp.eq.s32.totalorder %s174, 1
      %p1378 = scmp.ne.s32.totalorder %s1373, %s1375
      %p1379 = scmp.eq.s32.totalorder %s174, 0
      %p1380 = por %p1378, %p1379
      %p1381 = scmp.ne.s32.totalorder %s1373, %s1375
      %p1382 = scmp.eq.s32.totalorder %s179, 1
      %p1383 = por %p1381, %p1382
      %p1384 = scmp.ne.s32.totalorder %s1375, %s1376
      %p1385 = scmp.eq.s32.totalorder %s179, 0
      %p1386 = por %p1384, %p1385
      %p1387 = scmp.ne.s32.totalorder %s1375, %s1376
      %p1388 = scmp.eq.s32.totalorder %s180, 1
      %p1389 = por %p1387, %p1388
      %p1391 = scmp.ne.s32.totalorder %s1376, %s1390
      %p1392 = scmp.eq.s32.totalorder %s180, 0
      %p1393 = por %p1391, %p1392
      %s1395 = sadd.s32 %s1394, 1
      %p1398 = scmp.eq.s32.totalorder %s174, 1
      %p1399 = scmp.ne.s32.totalorder %s1394, %s1396
      %p1400 = scmp.eq.s32.totalorder %s174, 0
      %p1401 = por %p1399, %p1400
      %p1402 = scmp.ne.s32.totalorder %s1394, %s1396
      %p1403 = scmp.eq.s32.totalorder %s179, 1
      %p1404 = por %p1402, %p1403
      %p1405 = scmp.ne.s32.totalorder %s1396, %s1397
      %p1406 = scmp.eq.s32.totalorder %s179, 0
      %p1407 = por %p1405, %p1406
      %p1408 = scmp.ne.s32.totalorder %s1396, %s1397
      %p1409 = scmp.eq.s32.totalorder %s180, 1
      %p1410 = por %p1408, %p1409
      %p1412 = scmp.ne.s32.totalorder %s1397, %s1411
      %p1413 = scmp.eq.s32.totalorder %s180, 0
      %p1414 = por %p1412, %p1413
      %s1416 = sadd.s32 %s1415, 1
      %p1419 = scmp.eq.s32.totalorder %s174, 1
      %p1420 = scmp.ne.s32.totalorder %s1415, %s1417
      %p1421 = scmp.eq.s32.totalorder %s174, 0
      %p1422 = por %p1420, %p1421
      %p1423 = scmp.ne.s32.totalorder %s1415, %s1417
      %p1424 = scmp.eq.s32.totalorder %s179, 1
      %p1425 = por %p1423, %p1424
      %p1426 = scmp.ne.s32.totalorder %s1417, %s1418
      %p1427 = scmp.eq.s32.totalorder %s179, 0
      %p1428 = por %p1426, %p1427
      %p1429 = scmp.ne.s32.totalorder %s1417, %s1418
      %p1430 = scmp.eq.s32.totalorder %s180, 1
      %p1431 = por %p1429, %p1430
      %p1433 = scmp.ne.s32.totalorder %s1418, %s1432
      %p1434 = scmp.eq.s32.totalorder %s180, 0
      %p1435 = por %p1433, %p1434
      %s1437 = sadd.s32 %s1436, 1
      %p1440 = scmp.eq.s32.totalorder %s174, 1
      %p1441 = scmp.ne.s32.totalorder %s1436, %s1438
      %p1442 = scmp.eq.s32.totalorder %s174, 0
      %p1443 = por %p1441, %p1442
      %p1444 = scmp.ne.s32.totalorder %s1436, %s1438
      %p1445 = scmp.eq.s32.totalorder %s179, 1
      %p1446 = por %p1444, %p1445
      %p1447 = scmp.ne.s32.totalorder %s1438, %s1439
      %p1448 = scmp.eq.s32.totalorder %s179, 0
      %p1449 = por %p1447, %p1448
      %p1450 = scmp.ne.s32.totalorder %s1438, %s1439
      %p1451 = scmp.eq.s32.totalorder %s180, 1
      %p1452 = por %p1450, %p1451
      %p1454 = scmp.ne.s32.totalorder %s1439, %s1453
      %p1455 = scmp.eq.s32.totalorder %s180, 0
      %p1456 = por %p1454, %p1455
      %s1458 = sadd.s32 %s1457, 1
      %p1461 = scmp.eq.s32.totalorder %s174, 1
      %p1462 = scmp.ne.s32.totalorder %s1457, %s1459
      %p1463 = scmp.eq.s32.totalorder %s174, 0
      %p1464 = por %p1462, %p1463
      %p1465 = scmp.ne.s32.totalorder %s1457, %s1459
      %p1466 = scmp.eq.s32.totalorder %s179, 1
      %p1467 = por %p1465, %p1466
      %p1468 = scmp.ne.s32.totalorder %s1459, %s1460
      %p1469 = scmp.eq.s32.totalorder %s179, 0
      %p1470 = por %p1468, %p1469
      %p1471 = scmp.ne.s32.totalorder %s1459, %s1460
      %p1472 = scmp.eq.s32.totalorder %s180, 1
      %p1473 = por %p1471, %p1472
      %p1475 = scmp.ne.s32.totalorder %s1460, %s1474
      %p1476 = scmp.eq.s32.totalorder %s180, 0
      %p1477 = por %p1475, %p1476
      %s1479 = sadd.s32 %s1478, 1
      %p1482 = scmp.eq.s32.totalorder %s174, 1
      %p1483 = scmp.ne.s32.totalorder %s1478, %s1480
      %p1484 = scmp.eq.s32.totalorder %s174, 0
      %p1485 = por %p1483, %p1484
      %p1486 = scmp.ne.s32.totalorder %s1478, %s1480
      %p1487 = scmp.eq.s32.totalorder %s179, 1
      %p1488 = por %p1486, %p1487
      %p1489 = scmp.ne.s32.totalorder %s1480, %s1481
      %p1490 = scmp.eq.s32.totalorder %s179, 0
      %p1491 = por %p1489, %p1490
      %p1492 = scmp.ne.s32.totalorder %s1480, %s1481
      %p1493 = scmp.eq.s32.totalorder %s180, 1
      %p1494 = por %p1492, %p1493
      %p1496 = scmp.ne.s32.totalorder %s1481, %s1495
      %p1497 = scmp.eq.s32.totalorder %s180, 0
      %p1498 = por %p1496, %p1497
      %s1500 = sadd.s32 %s1499, 1
      %p1503 = scmp.eq.s32.totalorder %s174, 1
      %p1504 = scmp.ne.s32.totalorder %s1499, %s1501
      %p1505 = scmp.eq.s32.totalorder %s174, 0
      %p1506 = por %p1504, %p1505
      %p1507 = scmp.ne.s32.totalorder %s1499, %s1501
      %p1508 = scmp.eq.s32.totalorder %s179, 1
      %p1509 = por %p1507, %p1508
      %p1510 = scmp.ne.s32.totalorder %s1501, %s1502
      %p1511 = scmp.eq.s32.totalorder %s179, 0
      %p1512 = por %p1510, %p1511
      %p1513 = scmp.ne.s32.totalorder %s1501, %s1502
      %p1514 = scmp.eq.s32.totalorder %s180, 1
      %p1515 = por %p1513, %p1514
      %p1517 = scmp.ne.s32.totalorder %s1502, %s1516
      %p1518 = scmp.eq.s32.totalorder %s180, 0
      %p1519 = por %p1517, %p1518
      %s1521 = sadd.s32 %s1520, 1
      %p1524 = scmp.eq.s32.totalorder %s174, 1
      %p1525 = scmp.ne.s32.totalorder %s1520, %s1522
      %p1526 = scmp.eq.s32.totalorder %s174, 0
      %p1527 = por %p1525, %p1526
      %p1528 = scmp.ne.s32.totalorder %s1520, %s1522
      %p1529 = scmp.eq.s32.totalorder %s179, 1
      %p1530 = por %p1528, %p1529
      %p1531 = scmp.ne.s32.totalorder %s1522, %s1523
      %p1532 = scmp.eq.s32.totalorder %s179, 0
      %p1533 = por %p1531, %p1532
      %p1534 = scmp.ne.s32.totalorder %s1522, %s1523
      %p1535 = scmp.eq.s32.totalorder %s180, 1
      %p1536 = por %p1534, %p1535
      %p1538 = scmp.ne.s32.totalorder %s1523, %s1537
      %p1539 = scmp.eq.s32.totalorder %s180, 0
      %p1540 = por %p1538, %p1539
      %s1542 = sadd.s32 %s1541, 1
      %p1545 = scmp.eq.s32.totalorder %s174, 1
      %p1546 = scmp.ne.s32.totalorder %s1541, %s1543
      %p1547 = scmp.eq.s32.totalorder %s174, 0
      %p1548 = por %p1546, %p1547
      %p1549 = scmp.ne.s32.totalorder %s1541, %s1543
      %p1550 = scmp.eq.s32.totalorder %s179, 1
      %p1551 = por %p1549, %p1550
      %p1552 = scmp.ne.s32.totalorder %s1543, %s1544
      %p1553 = scmp.eq.s32.totalorder %s179, 0
      %p1554 = por %p1552, %p1553
      %p1555 = scmp.ne.s32.totalorder %s1543, %s1544
      %p1556 = scmp.eq.s32.totalorder %s180, 1
      %p1557 = por %p1555, %p1556
      %p1559 = scmp.ne.s32.totalorder %s1544, %s1558
      %p1560 = scmp.eq.s32.totalorder %s180, 0
      %p1561 = por %p1559, %p1560
      %s1563 = sadd.s32 %s1562, 1
      %p1566 = scmp.eq.s32.totalorder %s174, 1
      %p1567 = scmp.ne.s32.totalorder %s1562, %s1564
      %p1568 = scmp.eq.s32.totalorder %s174, 0
      %p1569 = por %p1567, %p1568
      %p1570 = scmp.ne.s32.totalorder %s1562, %s1564
      %p1571 = scmp.eq.s32.totalorder %s179, 1
      %p1572 = por %p1570, %p1571
      %p1573 = scmp.ne.s32.totalorder %s1564, %s1565
      %p1574 = scmp.eq.s32.totalorder %s179, 0
      %p1575 = por %p1573, %p1574
      %p1576 = scmp.ne.s32.totalorder %s1564, %s1565
      %p1577 = scmp.eq.s32.totalorder %s180, 1
      %p1578 = por %p1576, %p1577
      %p1580 = scmp.ne.s32.totalorder %s1565, %s1579
      %p1581 = scmp.eq.s32.totalorder %s180, 0
      %p1582 = por %p1580, %p1581
      %s1583 = ssub.s32 %s174, %s181
      %p1584 = scmp.eq.s32.totalorder %s1583, 0
      %s1586 = sadd.s32 %s1585, 1
      %s1587 = scalar_select %p1584, %s1585, %s1586
      %p1590 = pneg %p1584
      %p1591 = scmp.eq.s32.totalorder %s174, 1
      %p1592 = por %p1590, %p1591
      %p1593 = scmp.ne.s32.totalorder %s1585, %s1588
      %p1594 = scmp.eq.s32.totalorder %s174, 0
      %p1595 = por %p1593, %p1594
      %p1596 = scmp.ne.s32.totalorder %s1585, %s1588
      %p1597 = scmp.eq.s32.totalorder %s179, 1
      %p1598 = por %p1596, %p1597
      %p1599 = scmp.ne.s32.totalorder %s1588, %s1589
      %p1600 = scmp.eq.s32.totalorder %s179, 0
      %p1601 = por %p1599, %p1600
      %p1602 = scmp.ne.s32.totalorder %s1588, %s1589
      %p1603 = scmp.eq.s32.totalorder %s180, 1
      %p1604 = por %p1602, %p1603
      %p1606 = scmp.ne.s32.totalorder %s1589, %s1605
      %p1607 = scmp.eq.s32.totalorder %s180, 0
      %p1608 = por %p1606, %p1607
      %p1609 = scmp.le.s32.totalorder 1, %s174
      %p1610 = scmp.lt.s32.totalorder %s174, 3
      %p1611 = pnand %p1609, %p1610
      %p1612 = pneg %p1611
      // Predicated region
      $region9: #{pose_refine_net_feat.1} parent=5 // pred_check
        _
      $region10: #{pose_refine_net_feat.1} parent=5 // pred_check_branch
        %1614 = sbr.rel (%p1611) target = $region12
      $region11: #{pose_refine_net_feat.1} parent=5 // pred_region
        %s1615 = ssub.s32 %s174, 1
        // Predicated region
        $region13: #{pose_refine_net_feat.1} parent=11 // pred_check
          %p1616 = pneg %p195
        $region14: #{pose_refine_net_feat.1} parent=11 // pred_check_branch
          %1618 = sbr.rel (%p1616) target = $region16
        $region15: #{pose_refine_net_feat.1} parent=11 // pred_region
          %s1620 = ssub.s32 16, 16
          %1621 = vsyncadd [#allocation4], %s1620
          %s1623 = sshll.u32 %s1, 4
          %s1624 = int_to_ptr.vmem [resolvable:$true] %s1623
          %1626 = dma.vmem_to_smem %s1624, 16, [#allocation2], [#allocation4]
        $region16: #{pose_refine_net_feat.1} parent=11 // pred_fallthru
          _
        // Predicated region
        $region17: #{pose_refine_net_feat.1} parent=11 // pred_check
          %p1627 = pneg %p216
        $region18: #{pose_refine_net_feat.1} parent=11 // pred_check_branch
          %1629 = sbr.rel (%p1627) target = $region20
        $region19: #{pose_refine_net_feat.1} parent=11 // pred_region
          %s1631 = ssub.s32 16, 16
          %1632 = vsyncadd [#allocation6], %s1631
          %s1634 = sshll.u32 %s3, 4
          %s1635 = int_to_ptr.vmem [resolvable:$true] %s1634
          %1637 = dma.vmem_to_smem %s1635, 16, [#allocation5], [#allocation6]
        $region20: #{pose_refine_net_feat.1} parent=11 // pred_fallthru
          _
        // Predicated region
        $region21: #{pose_refine_net_feat.1} parent=11 // pred_check
          %p1638 = pneg %p315
        $region22: #{pose_refine_net_feat.1} parent=11 // pred_check_branch
          %1640 = sbr.rel (%p1638) target = $region24
        $region23: #{pose_refine_net_feat.1} parent=11 // pred_region
          %s1642 = ssub.s32 512, 512
          %1643 = vsyncadd [#allocation9], %s1642
          %s1644 = sshll.u32 [#allocation10], 4
          %s1645 = int_to_ptr.vmem [resolvable:$true] %s1644
          %1650 = dma.hbm_to_vmem [thread:$0]  %s11, 512, %s1645, [#allocation9], 128, 128, 8
        $region24: #{pose_refine_net_feat.1} parent=11 // pred_fallthru
          _
        // Predicated region
        $region25: #{pose_refine_net_feat.1} parent=11 // pred_check
          %p1651 = pneg %p336
        $region26: #{pose_refine_net_feat.1} parent=11 // pred_check_branch
          %1653 = sbr.rel (%p1651) target = $region28
        $region27: #{pose_refine_net_feat.1} parent=11 // pred_region
          %s1655 = ssub.s32 16, 16
          %1656 = vsyncadd [#allocation12], %s1655
          %s1658 = sshll.u32 [#allocation11], 4
          %s1659 = int_to_ptr.vmem [resolvable:$true] %s1658
          %1661 = dma.hbm_to_vmem [thread:$0]  %s13, 16, %s1659, [#allocation12]
        $region28: #{pose_refine_net_feat.1} parent=11 // pred_fallthru
          _
        // Predicated region
        $region29: #{pose_refine_net_feat.1} parent=11 // pred_check
          %p1662 = pneg %p357
        $region30: #{pose_refine_net_feat.1} parent=11 // pred_check_branch
          %1664 = sbr.rel (%p1662) target = $region32
        $region31: #{pose_refine_net_feat.1} parent=11 // pred_region
          %s1666 = ssub.s32 384, 384
          %1667 = vsyncadd [#allocation12], %s1666
          %s1668 = sshll.u32 [#allocation13], 4
          %s1669 = int_to_ptr.vmem [resolvable:$true] %s1668
          %1674 = dma.hbm_to_vmem [thread:$0]  %s15, 384, %s1669, [#allocation12], 128, 128, 8
        $region32: #{pose_refine_net_feat.1} parent=11 // pred_fallthru
          _
        // Predicated region
        $region33: #{pose_refine_net_feat.1} parent=11 // pred_check
          %p1675 = pneg %p378
        $region34: #{pose_refine_net_feat.1} parent=11 // pred_check_branch
          %1677 = sbr.rel (%p1675) target = $region36
        $region35: #{pose_refine_net_feat.1} parent=11 // pred_region
          %s1679 = ssub.s32 16, 16
          %1680 = vsyncadd [#allocation15], %s1679
          %s1682 = sshll.u32 [#allocation14], 4
          %s1683 = int_to_ptr.vmem [resolvable:$true] %s1682
          %1685 = dma.hbm_to_vmem [thread:$0]  %s17, 16, %s1683, [#allocation15]
        $region36: #{pose_refine_net_feat.1} parent=11 // pred_fallthru
          _
        // Predicated region
        $region37: #{pose_refine_net_feat.1} parent=11 // pred_check
          %p1686 = pneg %p399
        $region38: #{pose_refine_net_feat.1} parent=11 // pred_check_branch
          %1688 = sbr.rel (%p1686) target = $region40
        $region39: #{pose_refine_net_feat.1} parent=11 // pred_region
          %s1690 = ssub.s32 384, 384
          %1691 = vsyncadd [#allocation15], %s1690
          %s1692 = sshll.u32 [#allocation16], 4
          %s1693 = int_to_ptr.vmem [resolvable:$true] %s1692
          %1698 = dma.hbm_to_vmem [thread:$0]  %s19, 384, %s1693, [#allocation15], 128, 128, 8
        $region40: #{pose_refine_net_feat.1} parent=11 // pred_fallthru
          _
        // Predicated region
        $region41: #{pose_refine_net_feat.1} parent=11 // pred_check
          %p1699 = pneg %p420
        $region42: #{pose_refine_net_feat.1} parent=11 // pred_check_branch
          %1701 = sbr.rel (%p1699) target = $region44
        $region43: #{pose_refine_net_feat.1} parent=11 // pred_region
          %s1703 = ssub.s32 16, 16
          %1704 = vsyncadd [#allocation18], %s1703
          %s1706 = sshll.u32 [#allocation17], 4
          %s1707 = int_to_ptr.vmem [resolvable:$true] %s1706
          %1709 = dma.hbm_to_vmem [thread:$0]  %s21, 16, %s1707, [#allocation18]
        $region44: #{pose_refine_net_feat.1} parent=11 // pred_fallthru
          _
        // Predicated region
        $region45: #{pose_refine_net_feat.1} parent=11 // pred_check
          %p1710 = pneg %p441
        $region46: #{pose_refine_net_feat.1} parent=11 // pred_check_branch
          %1712 = sbr.rel (%p1710) target = $region48
        $region47: #{pose_refine_net_feat.1} parent=11 // pred_region
          %s1714 = ssub.s32 512, 512
          %1715 = vsyncadd [#allocation18], %s1714
          %s1716 = sshll.u32 [#allocation19], 4
          %s1717 = int_to_ptr.vmem [resolvable:$true] %s1716
          %1722 = dma.hbm_to_vmem [thread:$0]  %s23, 512, %s1717, [#allocation18], 128, 128, 8
        $region48: #{pose_refine_net_feat.1} parent=11 // pred_fallthru
          _
        // Predicated region
        $region49: #{pose_refine_net_feat.1} parent=11 // pred_check
          %p1723 = pneg %p462
        $region50: #{pose_refine_net_feat.1} parent=11 // pred_check_branch
          %1725 = sbr.rel (%p1723) target = $region52
        $region51: #{pose_refine_net_feat.1} parent=11 // pred_region
          %s1727 = ssub.s32 16, 16
          %1728 = vsyncadd [#allocation21], %s1727
          %s1730 = sshll.u32 [#allocation20], 4
          %s1731 = int_to_ptr.vmem [resolvable:$true] %s1730
          %1733 = dma.hbm_to_vmem [thread:$0]  %s25, 16, %s1731, [#allocation21]
        $region52: #{pose_refine_net_feat.1} parent=11 // pred_fallthru
          _
        // Predicated region
        $region53: #{pose_refine_net_feat.1} parent=11 // pred_check
          %p1734 = pneg %p483
        $region54: #{pose_refine_net_feat.1} parent=11 // pred_check_branch
          %1736 = sbr.rel (%p1734) target = $region56
        $region55: #{pose_refine_net_feat.1} parent=11 // pred_region
          %s1738 = ssub.s32 1152, 1152
          %1739 = vsyncadd [#allocation21], %s1738
          %s1740 = sshll.u32 [#allocation22], 4
          %s1741 = int_to_ptr.vmem [resolvable:$true] %s1740
          %1746 = dma.hbm_to_vmem [thread:$0]  %s27, 1152, %s1741, [#allocation21], 128, 128, 8
        $region56: #{pose_refine_net_feat.1} parent=11 // pred_fallthru
          _
        // Predicated region
        $region57: #{pose_refine_net_feat.1} parent=11 // pred_check
          %p1747 = pneg %p504
        $region58: #{pose_refine_net_feat.1} parent=11 // pred_check_branch
          %1749 = sbr.rel (%p1747) target = $region60
        $region59: #{pose_refine_net_feat.1} parent=11 // pred_region
          %s1751 = ssub.s32 16, 16
          %1752 = vsyncadd [#allocation24], %s1751
          %s1754 = sshll.u32 [#allocation23], 4
          %s1755 = int_to_ptr.vmem [resolvable:$true] %s1754
          %1757 = dma.hbm_to_vmem [thread:$0]  %s29, 16, %s1755, [#allocation24]
        $region60: #{pose_refine_net_feat.1} parent=11 // pred_fallthru
          _
        // Predicated region
        $region61: #{pose_refine_net_feat.1} parent=11 // pred_check
          %p1758 = pneg %p525
        $region62: #{pose_refine_net_feat.1} parent=11 // pred_check_branch
          %1760 = sbr.rel (%p1758) target = $region64
        $region63: #{pose_refine_net_feat.1} parent=11 // pred_region
          %s1762 = ssub.s32 128, 128
          %1763 = vsyncadd [#allocation24], %s1762
          %s1765 = sshll.u32 [#allocation25], 4
          %s1766 = int_to_ptr.vmem [resolvable:$true] %s1765
          %1768 = dma.hbm_to_vmem [thread:$0]  %s31, 128, %s1766, [#allocation24]
        $region64: #{pose_refine_net_feat.1} parent=11 // pred_fallthru
          _
        // Predicated region
        $region65: #{pose_refine_net_feat.1} parent=11 // pred_check
          %p1769 = pneg %p546
        $region66: #{pose_refine_net_feat.1} parent=11 // pred_check_branch
          %1771 = sbr.rel (%p1769) target = $region68
        $region67: #{pose_refine_net_feat.1} parent=11 // pred_region
          %s1773 = ssub.s32 384, 384
          %1774 = vsyncadd [#allocation27], %s1773
          %s1775 = sshll.u32 [#allocation26], 4
          %s1776 = int_to_ptr.vmem [resolvable:$true] %s1775
          %1781 = dma.hbm_to_vmem [thread:$0]  %s33, 384, %s1776, [#allocation27], 128, 128, 8
        $region68: #{pose_refine_net_feat.1} parent=11 // pred_fallthru
          _
        // Predicated region
        $region69: #{pose_refine_net_feat.1} parent=11 // pred_check
          %p1782 = pneg %p567
        $region70: #{pose_refine_net_feat.1} parent=11 // pred_check_branch
          %1784 = sbr.rel (%p1782) target = $region72
        $region71: #{pose_refine_net_feat.1} parent=11 // pred_region
          %s1786 = ssub.s32 16, 16
          %1787 = vsyncadd [#allocation27], %s1786
          %s1789 = sshll.u32 [#allocation28], 4
          %s1790 = int_to_ptr.vmem [resolvable:$true] %s1789
          %1792 = dma.hbm_to_vmem [thread:$0]  %s35, 16, %s1790, [#allocation27]
        $region72: #{pose_refine_net_feat.1} parent=11 // pred_fallthru
          _
        // Predicated region
        $region73: #{pose_refine_net_feat.1} parent=11 // pred_check
          %p1793 = pneg %p588
        $region74: #{pose_refine_net_feat.1} parent=11 // pred_check_branch
          %1795 = sbr.rel (%p1793) target = $region76
        $region75: #{pose_refine_net_feat.1} parent=11 // pred_region
          %s1797 = ssub.s32 256, 256
          %1798 = vsyncadd [#allocation30], %s1797
          %s1799 = sshll.u32 [#allocation29], 4
          %s1800 = int_to_ptr.vmem [resolvable:$true] %s1799
          %1805 = dma.hbm_to_vmem [thread:$0]  %s37, 256, %s1800, [#allocation30], 128, 128, 8
        $region76: #{pose_refine_net_feat.1} parent=11 // pred_fallthru
          _
        // Predicated region
        $region77: #{pose_refine_net_feat.1} parent=11 // pred_check
          %p1806 = pneg %p609
        $region78: #{pose_refine_net_feat.1} parent=11 // pred_check_branch
          %1808 = sbr.rel (%p1806) target = $region80
        $region79: #{pose_refine_net_feat.1} parent=11 // pred_region
          %s1810 = ssub.s32 16, 16
          %1811 = vsyncadd [#allocation30], %s1810
          %s1813 = sshll.u32 [#allocation31], 4
          %s1814 = int_to_ptr.vmem [resolvable:$true] %s1813
          %1816 = dma.hbm_to_vmem [thread:$0]  %s39, 16, %s1814, [#allocation30]
        $region80: #{pose_refine_net_feat.1} parent=11 // pred_fallthru
          _
        // Predicated region
        $region81: #{pose_refine_net_feat.1} parent=11 // pred_check
          %p1817 = pneg %p630
        $region82: #{pose_refine_net_feat.1} parent=11 // pred_check_branch
          %1819 = sbr.rel (%p1817) target = $region84
        $region83: #{pose_refine_net_feat.1} parent=11 // pred_region
          %s1821 = ssub.s32 256, 256
          %1822 = vsyncadd [#allocation33], %s1821
          %s1823 = sshll.u32 [#allocation32], 4
          %s1824 = int_to_ptr.vmem [resolvable:$true] %s1823
          %1829 = dma.hbm_to_vmem [thread:$0]  %s41, 256, %s1824, [#allocation33], 128, 128, 8
        $region84: #{pose_refine_net_feat.1} parent=11 // pred_fallthru
          _
        // Predicated region
        $region85: #{pose_refine_net_feat.1} parent=11 // pred_check
          %p1830 = pneg %p651
        $region86: #{pose_refine_net_feat.1} parent=11 // pred_check_branch
          %1832 = sbr.rel (%p1830) target = $region88
        $region87: #{pose_refine_net_feat.1} parent=11 // pred_region
          %s1834 = ssub.s32 16, 16
          %1835 = vsyncadd [#allocation33], %s1834
          %s1837 = sshll.u32 [#allocation34], 4
          %s1838 = int_to_ptr.vmem [resolvable:$true] %s1837
          %1840 = dma.hbm_to_vmem [thread:$0]  %s43, 16, %s1838, [#allocation33]
        $region88: #{pose_refine_net_feat.1} parent=11 // pred_fallthru
          _
        // Predicated region
        $region89: #{pose_refine_net_feat.1} parent=11 // pred_check
          %p1841 = pneg %p672
        $region90: #{pose_refine_net_feat.1} parent=11 // pred_check_branch
          %1843 = sbr.rel (%p1841) target = $region92
        $region91: #{pose_refine_net_feat.1} parent=11 // pred_region
          %s1845 = ssub.s32 2048, 2048
          %1846 = vsyncadd [#allocation36], %s1845
          %s1847 = sshll.u32 [#allocation35], 4
          %s1848 = int_to_ptr.vmem [resolvable:$true] %s1847
          %1853 = dma.hbm_to_vmem [thread:$0]  %s45, 2048, %s1848, [#allocation36], 128, 128, 8
        $region92: #{pose_refine_net_feat.1} parent=11 // pred_fallthru
          _
        // Predicated region
        $region93: #{pose_refine_net_feat.1} parent=11 // pred_check
          %p1854 = pneg %p693
        $region94: #{pose_refine_net_feat.1} parent=11 // pred_check_branch
          %1856 = sbr.rel (%p1854) target = $region96
        $region95: #{pose_refine_net_feat.1} parent=11 // pred_region
          %s1858 = ssub.s32 16, 16
          %1859 = vsyncadd [#allocation36], %s1858
          %s1861 = sshll.u32 [#allocation37], 4
          %s1862 = int_to_ptr.vmem [resolvable:$true] %s1861
          %1864 = dma.hbm_to_vmem [thread:$0]  %s47, 16, %s1862, [#allocation36]
        $region96: #{pose_refine_net_feat.1} parent=11 // pred_fallthru
          _
        // Predicated region
        $region97: #{pose_refine_net_feat.1} parent=11 // pred_check
          %p1865 = pneg %p714
        $region98: #{pose_refine_net_feat.1} parent=11 // pred_check_branch
          %1867 = sbr.rel (%p1865) target = $region100
        $region99: #{pose_refine_net_feat.1} parent=11 // pred_region
          %s1869 = ssub.s32 1536, 1536
          %1870 = vsyncadd [#allocation39], %s1869
          %s1871 = sshll.u32 [#allocation38], 4
          %s1872 = int_to_ptr.vmem [resolvable:$true] %s1871
          %1877 = dma.hbm_to_vmem [thread:$0]  %s49, 1536, %s1872, [#allocation39], 128, 128, 8
        $region100: #{pose_refine_net_feat.1} parent=11 // pred_fallthru
          _
        // Predicated region
        $region101: #{pose_refine_net_feat.1} parent=11 // pred_check
          %p1878 = pneg %p735
        $region102: #{pose_refine_net_feat.1} parent=11 // pred_check_branch
          %1880 = sbr.rel (%p1878) target = $region104
        $region103: #{pose_refine_net_feat.1} parent=11 // pred_region
          %s1882 = ssub.s32 16, 16
          %1883 = vsyncadd [#allocation39], %s1882
          %s1885 = sshll.u32 [#allocation40], 4
          %s1886 = int_to_ptr.vmem [resolvable:$true] %s1885
          %1888 = dma.hbm_to_vmem [thread:$0]  %s51, 16, %s1886, [#allocation39]
        $region104: #{pose_refine_net_feat.1} parent=11 // pred_fallthru
          _
        // Predicated region
        $region105: #{pose_refine_net_feat.1} parent=11 // pred_check
          %p1889 = pneg %p756
        $region106: #{pose_refine_net_feat.1} parent=11 // pred_check_branch
          %1891 = sbr.rel (%p1889) target = $region108
        $region107: #{pose_refine_net_feat.1} parent=11 // pred_region
          %s1893 = ssub.s32 1536, 1536
          %1894 = vsyncadd [#allocation42], %s1893
          %s1895 = sshll.u32 [#allocation41], 4
          %s1896 = int_to_ptr.vmem [resolvable:$true] %s1895
          %1901 = dma.hbm_to_vmem [thread:$0]  %s53, 1536, %s1896, [#allocation42], 128, 128, 8
        $region108: #{pose_refine_net_feat.1} parent=11 // pred_fallthru
          _
        // Predicated region
        $region109: #{pose_refine_net_feat.1} parent=11 // pred_check
          %p1902 = pneg %p777
        $region110: #{pose_refine_net_feat.1} parent=11 // pred_check_branch
          %1904 = sbr.rel (%p1902) target = $region112
        $region111: #{pose_refine_net_feat.1} parent=11 // pred_region
          %s1906 = ssub.s32 16, 16
          %1907 = vsyncadd [#allocation42], %s1906
          %s1909 = sshll.u32 [#allocation43], 4
          %s1910 = int_to_ptr.vmem [resolvable:$true] %s1909
          %1912 = dma.hbm_to_vmem [thread:$0]  %s55, 16, %s1910, [#allocation42]
        $region112: #{pose_refine_net_feat.1} parent=11 // pred_fallthru
          _
        // Predicated region
        $region113: #{pose_refine_net_feat.1} parent=11 // pred_check
          %p1913 = pneg %p798
        $region114: #{pose_refine_net_feat.1} parent=11 // pred_check_branch
          %1915 = sbr.rel (%p1913) target = $region116
        $region115: #{pose_refine_net_feat.1} parent=11 // pred_region
          %s1917 = ssub.s32 2048, 2048
          %1918 = vsyncadd [#allocation45], %s1917
          %s1919 = sshll.u32 [#allocation44], 4
          %s1920 = int_to_ptr.vmem [resolvable:$true] %s1919
          %1925 = dma.hbm_to_vmem [thread:$0]  %s57, 2048, %s1920, [#allocation45], 128, 128, 8
        $region116: #{pose_refine_net_feat.1} parent=11 // pred_fallthru
          _
        // Predicated region
        $region117: #{pose_refine_net_feat.1} parent=11 // pred_check
          %p1926 = pneg %p819
        $region118: #{pose_refine_net_feat.1} parent=11 // pred_check_branch
          %1928 = sbr.rel (%p1926) target = $region120
        $region119: #{pose_refine_net_feat.1} parent=11 // pred_region
          %s1930 = ssub.s32 16, 16
          %1931 = vsyncadd [#allocation45], %s1930
          %s1933 = sshll.u32 [#allocation46], 4
          %s1934 = int_to_ptr.vmem [resolvable:$true] %s1933
          %1936 = dma.hbm_to_vmem [thread:$0]  %s59, 16, %s1934, [#allocation45]
        $region120: #{pose_refine_net_feat.1} parent=11 // pred_fallthru
          _
        // Predicated region
        $region121: #{pose_refine_net_feat.1} parent=11 // pred_check
          %p1937 = pneg %p840
        $region122: #{pose_refine_net_feat.1} parent=11 // pred_check_branch
          %1939 = sbr.rel (%p1937) target = $region124
        $region123: #{pose_refine_net_feat.1} parent=11 // pred_region
          _
        $region124: #{pose_refine_net_feat.1} parent=11 // pred_fallthru
          _
        // Predicated region
        $region125: #{pose_refine_net_feat.1} parent=11 // pred_check
          %p1940 = pneg %p861
        $region126: #{pose_refine_net_feat.1} parent=11 // pred_check_branch
          %1942 = sbr.rel (%p1940) target = $region128
        $region127: #{pose_refine_net_feat.1} parent=11 // pred_region
          %s1944 = ssub.s32 16, 16
          %1945 = vsyncadd [#allocation48], %s1944
          %s1947 = sshll.u32 [#allocation47], 4
          %s1948 = int_to_ptr.vmem [resolvable:$true] %s1947
          %1950 = dma.hbm_to_vmem [thread:$0]  %s63, 16, %s1948, [#allocation48]
        $region128: #{pose_refine_net_feat.1} parent=11 // pred_fallthru
          _
        // Predicated region
        $region129: #{pose_refine_net_feat.1} parent=11 // pred_check
          %p1951 = pneg %p882
        $region130: #{pose_refine_net_feat.1} parent=11 // pred_check_branch
          %1953 = sbr.rel (%p1951) target = $region132
        $region131: #{pose_refine_net_feat.1} parent=11 // pred_region
          %s1955 = ssub.s32 512, 512
          %1956 = vsyncadd [#allocation48], %s1955
          %s1957 = sshll.u32 [#allocation49], 4
          %s1958 = int_to_ptr.vmem [resolvable:$true] %s1957
          %1963 = dma.hbm_to_vmem [thread:$0]  %s65, 512, %s1958, [#allocation48], 128, 128, 8
        $region132: #{pose_refine_net_feat.1} parent=11 // pred_fallthru
          _
        // Predicated region
        $region133: #{pose_refine_net_feat.1} parent=11 // pred_check
          %p1964 = pneg %p903
        $region134: #{pose_refine_net_feat.1} parent=11 // pred_check_branch
          %1966 = sbr.rel (%p1964) target = $region136
        $region135: #{pose_refine_net_feat.1} parent=11 // pred_region
          %s1968 = ssub.s32 1536, 1536
          %1969 = vsyncadd [#allocation51], %s1968
          %s1970 = sshll.u32 [#allocation50], 4
          %s1971 = int_to_ptr.vmem [resolvable:$true] %s1970
          %1976 = dma.hbm_to_vmem [thread:$0]  %s67, 1536, %s1971, [#allocation51], 128, 128, 8
        $region136: #{pose_refine_net_feat.1} parent=11 // pred_fallthru
          _
        // Predicated region
        $region137: #{pose_refine_net_feat.1} parent=11 // pred_check
          %p1977 = pneg %p924
        $region138: #{pose_refine_net_feat.1} parent=11 // pred_check_branch
          %1979 = sbr.rel (%p1977) target = $region140
        $region139: #{pose_refine_net_feat.1} parent=11 // pred_region
          %s1981 = ssub.s32 16, 16
          %1982 = vsyncadd [#allocation51], %s1981
          %s1984 = sshll.u32 [#allocation52], 4
          %s1985 = int_to_ptr.vmem [resolvable:$true] %s1984
          %1987 = dma.hbm_to_vmem [thread:$0]  %s69, 16, %s1985, [#allocation51]
        $region140: #{pose_refine_net_feat.1} parent=11 // pred_fallthru
          _
        // Predicated region
        $region141: #{pose_refine_net_feat.1} parent=11 // pred_check
          %p1988 = pneg %p945
        $region142: #{pose_refine_net_feat.1} parent=11 // pred_check_branch
          %1990 = sbr.rel (%p1988) target = $region144
        $region143: #{pose_refine_net_feat.1} parent=11 // pred_region
          %s1992 = ssub.s32 1024, 1024
          %1993 = vsyncadd [#allocation54], %s1992
          %s1994 = sshll.u32 [#allocation53], 4
          %s1995 = int_to_ptr.vmem [resolvable:$true] %s1994
          %2000 = dma.hbm_to_vmem [thread:$0]  %s71, 1024, %s1995, [#allocation54], 128, 128, 8
        $region144: #{pose_refine_net_feat.1} parent=11 // pred_fallthru
          _
        // Predicated region
        $region145: #{pose_refine_net_feat.1} parent=11 // pred_check
          %p2001 = pneg %p966
        $region146: #{pose_refine_net_feat.1} parent=11 // pred_check_branch
          %2003 = sbr.rel (%p2001) target = $region148
        $region147: #{pose_refine_net_feat.1} parent=11 // pred_region
          %s2005 = ssub.s32 16, 16
          %2006 = vsyncadd [#allocation54], %s2005
          %s2008 = sshll.u32 [#allocation55], 4
          %s2009 = int_to_ptr.vmem [resolvable:$true] %s2008
          %2011 = dma.hbm_to_vmem [thread:$0]  %s73, 16, %s2009, [#allocation54]
        $region148: #{pose_refine_net_feat.1} parent=11 // pred_fallthru
          _
        // Predicated region
        $region149: #{pose_refine_net_feat.1} parent=11 // pred_check
          %p2012 = pneg %p987
        $region150: #{pose_refine_net_feat.1} parent=11 // pred_check_branch
          %2014 = sbr.rel (%p2012) target = $region152
        $region151: #{pose_refine_net_feat.1} parent=11 // pred_region
          %s2016 = ssub.s32 1024, 1024
          %2017 = vsyncadd [#allocation57], %s2016
          %s2018 = sshll.u32 [#allocation56], 4
          %s2019 = int_to_ptr.vmem [resolvable:$true] %s2018
          %2024 = dma.hbm_to_vmem [thread:$0]  %s75, 1024, %s2019, [#allocation57], 128, 128, 8
        $region152: #{pose_refine_net_feat.1} parent=11 // pred_fallthru
          _
        // Predicated region
        $region153: #{pose_refine_net_feat.1} parent=11 // pred_check
          %p2025 = pneg %p1008
        $region154: #{pose_refine_net_feat.1} parent=11 // pred_check_branch
          %2027 = sbr.rel (%p2025) target = $region156
        $region155: #{pose_refine_net_feat.1} parent=11 // pred_region
          %s2029 = ssub.s32 16, 16
          %2030 = vsyncadd [#allocation57], %s2029
          %s2032 = sshll.u32 [#allocation58], 4
          %s2033 = int_to_ptr.vmem [resolvable:$true] %s2032
          %2035 = dma.hbm_to_vmem [thread:$0]  %s77, 16, %s2033, [#allocation57]
        $region156: #{pose_refine_net_feat.1} parent=11 // pred_fallthru
          _
        // Predicated region
        $region157: #{pose_refine_net_feat.1} parent=11 // pred_check
          %p2036 = pneg %p1029
        $region158: #{pose_refine_net_feat.1} parent=11 // pred_check_branch
          %2038 = sbr.rel (%p2036) target = $region160
        $region159: #{pose_refine_net_feat.1} parent=11 // pred_region
          %s2040 = ssub.s32 512, 512
          %2041 = vsyncadd [#allocation60], %s2040
          %s2042 = sshll.u32 [#allocation59], 4
          %s2043 = int_to_ptr.vmem [resolvable:$true] %s2042
          %2048 = dma.hbm_to_vmem [thread:$0]  %s79, 512, %s2043, [#allocation60], 128, 128, 8
        $region160: #{pose_refine_net_feat.1} parent=11 // pred_fallthru
          _
        // Predicated region
        $region161: #{pose_refine_net_feat.1} parent=11 // pred_check
          %p2049 = pneg %p1050
        $region162: #{pose_refine_net_feat.1} parent=11 // pred_check_branch
          %2051 = sbr.rel (%p2049) target = $region164
        $region163: #{pose_refine_net_feat.1} parent=11 // pred_region
          %s2053 = ssub.s32 128, 128
          %2054 = vsyncadd [#allocation60], %s2053
          %s2056 = sshll.u32 [#allocation61], 4
          %s2057 = int_to_ptr.vmem [resolvable:$true] %s2056
          %2059 = dma.hbm_to_vmem [thread:$0]  %s81, 128, %s2057, [#allocation60]
        $region164: #{pose_refine_net_feat.1} parent=11 // pred_fallthru
          _
        // Predicated region
        $region165: #{pose_refine_net_feat.1} parent=11 // pred_check
          %p2060 = pneg %p1071
        $region166: #{pose_refine_net_feat.1} parent=11 // pred_check_branch
          %2062 = sbr.rel (%p2060) target = $region168
        $region167: #{pose_refine_net_feat.1} parent=11 // pred_region
          %s2064 = ssub.s32 384, 384
          %2065 = vsyncadd [#allocation63], %s2064
          %s2066 = sshll.u32 [#allocation62], 4
          %s2067 = int_to_ptr.vmem [resolvable:$true] %s2066
          %2072 = dma.hbm_to_vmem [thread:$0]  %s83, 384, %s2067, [#allocation63], 128, 128, 8
        $region168: #{pose_refine_net_feat.1} parent=11 // pred_fallthru
          _
        // Predicated region
        $region169: #{pose_refine_net_feat.1} parent=11 // pred_check
          %p2073 = pneg %p1092
        $region170: #{pose_refine_net_feat.1} parent=11 // pred_check_branch
          %2075 = sbr.rel (%p2073) target = $region172
        $region171: #{pose_refine_net_feat.1} parent=11 // pred_region
          %s2077 = ssub.s32 16, 16
          %2078 = vsyncadd [#allocation63], %s2077
          %s2080 = sshll.u32 [#allocation64], 4
          %s2081 = int_to_ptr.vmem [resolvable:$true] %s2080
          %2083 = dma.hbm_to_vmem [thread:$0]  %s85, 16, %s2081, [#allocation63]
        $region172: #{pose_refine_net_feat.1} parent=11 // pred_fallthru
          _
        // Predicated region
        $region173: #{pose_refine_net_feat.1} parent=11 // pred_check
          %p2084 = pneg %p1113
        $region174: #{pose_refine_net_feat.1} parent=11 // pred_check_branch
          %2086 = sbr.rel (%p2084) target = $region176
        $region175: #{pose_refine_net_feat.1} parent=11 // pred_region
          %s2088 = ssub.s32 2048, 2048
          %2089 = vsyncadd [#allocation66], %s2088
          %s2090 = sshll.u32 [#allocation65], 4
          %s2091 = int_to_ptr.vmem [resolvable:$true] %s2090
          %2096 = dma.hbm_to_vmem [thread:$0]  %s87, 2048, %s2091, [#allocation66], 128, 128, 8
        $region176: #{pose_refine_net_feat.1} parent=11 // pred_fallthru
          _
        // Predicated region
        $region177: #{pose_refine_net_feat.1} parent=11 // pred_check
          %p2097 = pneg %p1134
        $region178: #{pose_refine_net_feat.1} parent=11 // pred_check_branch
          %2099 = sbr.rel (%p2097) target = $region180
        $region179: #{pose_refine_net_feat.1} parent=11 // pred_region
          %s2101 = ssub.s32 512, 512
          %2102 = vsyncadd [#allocation66], %s2101
          %s2103 = sshll.u32 [#allocation67], 4
          %s2104 = int_to_ptr.vmem [resolvable:$true] %s2103
          %2109 = dma.hbm_to_vmem [thread:$0]  %s89, 512, %s2104, [#allocation66], 128, 128, 8
        $region180: #{pose_refine_net_feat.1} parent=11 // pred_fallthru
          _
        // Predicated region
        $region181: #{pose_refine_net_feat.1} parent=11 // pred_check
          %p2110 = pneg %p1155
        $region182: #{pose_refine_net_feat.1} parent=11 // pred_check_branch
          %2112 = sbr.rel (%p2110) target = $region184
        $region183: #{pose_refine_net_feat.1} parent=11 // pred_region
          %s2114 = ssub.s32 1536, 1536
          %2115 = vsyncadd [#allocation69], %s2114
          %s2116 = sshll.u32 [#allocation68], 4
          %s2117 = int_to_ptr.vmem [resolvable:$true] %s2116
          %2122 = dma.hbm_to_vmem [thread:$0]  %s91, 1536, %s2117, [#allocation69], 128, 128, 8
        $region184: #{pose_refine_net_feat.1} parent=11 // pred_fallthru
          _
        // Predicated region
        $region185: #{pose_refine_net_feat.1} parent=11 // pred_check
          %p2123 = pneg %p1176
        $region186: #{pose_refine_net_feat.1} parent=11 // pred_check_branch
          %2125 = sbr.rel (%p2123) target = $region188
        $region187: #{pose_refine_net_feat.1} parent=11 // pred_region
          %s2127 = ssub.s32 16, 16
          %2128 = vsyncadd [#allocation69], %s2127
          %s2130 = sshll.u32 [#allocation70], 4
          %s2131 = int_to_ptr.vmem [resolvable:$true] %s2130
          %2133 = dma.hbm_to_vmem [thread:$0]  %s93, 16, %s2131, [#allocation69]
        $region188: #{pose_refine_net_feat.1} parent=11 // pred_fallthru
          _
        // Predicated region
        $region189: #{pose_refine_net_feat.1} parent=11 // pred_check
          %p2134 = pneg %p1197
        $region190: #{pose_refine_net_feat.1} parent=11 // pred_check_branch
          %2136 = sbr.rel (%p2134) target = $region192
        $region191: #{pose_refine_net_feat.1} parent=11 // pred_region
          %s2138 = ssub.s32 1024, 1024
          %2139 = vsyncadd [#allocation72], %s2138
          %s2140 = sshll.u32 [#allocation71], 4
          %s2141 = int_to_ptr.vmem [resolvable:$true] %s2140
          %2146 = dma.hbm_to_vmem [thread:$0]  %s95, 1024, %s2141, [#allocation72], 128, 128, 8
        $region192: #{pose_refine_net_feat.1} parent=11 // pred_fallthru
          _
        // Predicated region
        $region193: #{pose_refine_net_feat.1} parent=11 // pred_check
          %p2147 = pneg %p1218
        $region194: #{pose_refine_net_feat.1} parent=11 // pred_check_branch
          %2149 = sbr.rel (%p2147) target = $region196
        $region195: #{pose_refine_net_feat.1} parent=11 // pred_region
          %s2151 = ssub.s32 16, 16
          %2152 = vsyncadd [#allocation72], %s2151
          %s2154 = sshll.u32 [#allocation73], 4
          %s2155 = int_to_ptr.vmem [resolvable:$true] %s2154
          %2157 = dma.hbm_to_vmem [thread:$0]  %s97, 16, %s2155, [#allocation72]
        $region196: #{pose_refine_net_feat.1} parent=11 // pred_fallthru
          _
        // Predicated region
        $region197: #{pose_refine_net_feat.1} parent=11 // pred_check
          %p2158 = pneg %p1239
        $region198: #{pose_refine_net_feat.1} parent=11 // pred_check_branch
          %2160 = sbr.rel (%p2158) target = $region200
        $region199: #{pose_refine_net_feat.1} parent=11 // pred_region
          %s2162 = ssub.s32 4096, 4096
          %2163 = vsyncadd [#allocation75], %s2162
          %s2164 = sshll.u32 [#allocation74], 4
          %s2165 = int_to_ptr.vmem [resolvable:$true] %s2164
          %2170 = dma.hbm_to_vmem [thread:$0]  %s99, 4096, %s2165, [#allocation75], 128, 128, 8
        $region200: #{pose_refine_net_feat.1} parent=11 // pred_fallthru
          _
        // Predicated region
        $region201: #{pose_refine_net_feat.1} parent=11 // pred_check
          %p2171 = pneg %p1260
        $region202: #{pose_refine_net_feat.1} parent=11 // pred_check_branch
          %2173 = sbr.rel (%p2171) target = $region204
        $region203: #{pose_refine_net_feat.1} parent=11 // pred_region
          %s2175 = ssub.s32 16, 16
          %2176 = vsyncadd [#allocation75], %s2175
          %s2178 = sshll.u32 [#allocation76], 4
          %s2179 = int_to_ptr.vmem [resolvable:$true] %s2178
          %2181 = dma.hbm_to_vmem [thread:$0]  %s101, 16, %s2179, [#allocation75]
        $region204: #{pose_refine_net_feat.1} parent=11 // pred_fallthru
          _
        // Predicated region
        $region205: #{pose_refine_net_feat.1} parent=11 // pred_check
          %p2182 = pneg %p1281
        $region206: #{pose_refine_net_feat.1} parent=11 // pred_check_branch
          %2184 = sbr.rel (%p2182) target = $region208
        $region207: #{pose_refine_net_feat.1} parent=11 // pred_region
          %s2186 = ssub.s32 1024, 1024
          %2187 = vsyncadd [#allocation78], %s2186
          %s2188 = sshll.u32 [#allocation77], 4
          %s2189 = int_to_ptr.vmem [resolvable:$true] %s2188
          %2194 = dma.hbm_to_vmem [thread:$0]  %s103, 1024, %s2189, [#allocation78], 128, 128, 8
        $region208: #{pose_refine_net_feat.1} parent=11 // pred_fallthru
          _
        // Predicated region
        $region209: #{pose_refine_net_feat.1} parent=11 // pred_check
          %p2195 = pneg %p1302
        $region210: #{pose_refine_net_feat.1} parent=11 // pred_check_branch
          %2197 = sbr.rel (%p2195) target = $region212
        $region211: #{pose_refine_net_feat.1} parent=11 // pred_region
          %s2199 = ssub.s32 16, 16
          %2200 = vsyncadd [#allocation78], %s2199
          %s2202 = sshll.u32 [#allocation79], 4
          %s2203 = int_to_ptr.vmem [resolvable:$true] %s2202
          %2205 = dma.hbm_to_vmem [thread:$0]  %s105, 16, %s2203, [#allocation78]
        $region212: #{pose_refine_net_feat.1} parent=11 // pred_fallthru
          _
        // Predicated region
        $region213: #{pose_refine_net_feat.1} parent=11 // pred_check
          %p2206 = pneg %p1323
        $region214: #{pose_refine_net_feat.1} parent=11 // pred_check_branch
          %2208 = sbr.rel (%p2206) target = $region216
        $region215: #{pose_refine_net_feat.1} parent=11 // pred_region
          %s2210 = ssub.s32 16, 16
          %2211 = vsyncadd [#allocation81], %s2210
          %s2213 = sshll.u32 [#allocation80], 4
          %s2214 = int_to_ptr.vmem [resolvable:$true] %s2213
          %2216 = dma.hbm_to_vmem [thread:$0]  %s107, 16, %s2214, [#allocation81]
        $region216: #{pose_refine_net_feat.1} parent=11 // pred_fallthru
          _
        // Predicated region
        $region217: #{pose_refine_net_feat.1} parent=11 // pred_check
          %p2217 = pneg %p1344
        $region218: #{pose_refine_net_feat.1} parent=11 // pred_check_branch
          %2219 = sbr.rel (%p2217) target = $region220
        $region219: #{pose_refine_net_feat.1} parent=11 // pred_region
          %s2221 = ssub.s32 512, 512
          %2222 = vsyncadd [#allocation81], %s2221
          %s2223 = sshll.u32 [#allocation82], 4
          %s2224 = int_to_ptr.vmem [resolvable:$true] %s2223
          %2229 = dma.hbm_to_vmem [thread:$0]  %s109, 512, %s2224, [#allocation81], 128, 128, 8
        $region220: #{pose_refine_net_feat.1} parent=11 // pred_fallthru
          _
        // Predicated region
        $region221: #{pose_refine_net_feat.1} parent=11 // pred_check
          %p2230 = pneg %p1365
        $region222: #{pose_refine_net_feat.1} parent=11 // pred_check_branch
          %2232 = sbr.rel (%p2230) target = $region224
        $region223: #{pose_refine_net_feat.1} parent=11 // pred_region
          %s2234 = ssub.s32 512, 512
          %2235 = vsyncadd [#allocation84], %s2234
          %s2236 = sshll.u32 [#allocation83], 4
          %s2237 = int_to_ptr.vmem [resolvable:$true] %s2236
          %2242 = dma.hbm_to_vmem [thread:$0]  %s111, 512, %s2237, [#allocation84], 128, 128, 8
        $region224: #{pose_refine_net_feat.1} parent=11 // pred_fallthru
          _
        // Predicated region
        $region225: #{pose_refine_net_feat.1} parent=11 // pred_check
          %p2243 = pneg %p1386
        $region226: #{pose_refine_net_feat.1} parent=11 // pred_check_branch
          %2245 = sbr.rel (%p2243) target = $region228
        $region227: #{pose_refine_net_feat.1} parent=11 // pred_region
          %s2247 = ssub.s32 2048, 2048
          %2248 = vsyncadd [#allocation84], %s2247
          %s2249 = sshll.u32 [#allocation85], 4
          %s2250 = int_to_ptr.vmem [resolvable:$true] %s2249
          %2255 = dma.hbm_to_vmem [thread:$0]  %s113, 2048, %s2250, [#allocation84], 128, 128, 8
        $region228: #{pose_refine_net_feat.1} parent=11 // pred_fallthru
          _
        // Predicated region
        $region229: #{pose_refine_net_feat.1} parent=11 // pred_check
          %p2256 = pneg %p1407
        $region230: #{pose_refine_net_feat.1} parent=11 // pred_check_branch
          %2258 = sbr.rel (%p2256) target = $region232
        $region231: #{pose_refine_net_feat.1} parent=11 // pred_region
          _
        $region232: #{pose_refine_net_feat.1} parent=11 // pred_fallthru
          _
        // Predicated region
        $region233: #{pose_refine_net_feat.1} parent=11 // pred_check
          %p2259 = pneg %p1428
        $region234: #{pose_refine_net_feat.1} parent=11 // pred_check_branch
          %2261 = sbr.rel (%p2259) target = $region236
        $region235: #{pose_refine_net_feat.1} parent=11 // pred_region
          _
        $region236: #{pose_refine_net_feat.1} parent=11 // pred_fallthru
          _
        // Predicated region
        $region237: #{pose_refine_net_feat.1} parent=11 // pred_check
          %p2262 = pneg %p1449
        $region238: #{pose_refine_net_feat.1} parent=11 // pred_check_branch
          %2264 = sbr.rel (%p2262) target = $region240
        $region239: #{pose_refine_net_feat.1} parent=11 // pred_region
          %s2266 = ssub.s32 512, 512
          %2267 = vsyncadd [#allocation87], %s2266
          %s2268 = sshll.u32 [#allocation86], 4
          %s2269 = int_to_ptr.vmem [resolvable:$true] %s2268
          %2274 = dma.hbm_to_vmem [thread:$0]  %s119, 512, %s2269, [#allocation87], 128, 128, 8
        $region240: #{pose_refine_net_feat.1} parent=11 // pred_fallthru
          _
        // Predicated region
        $region241: #{pose_refine_net_feat.1} parent=11 // pred_check
          %p2275 = pneg %p1470
        $region242: #{pose_refine_net_feat.1} parent=11 // pred_check_branch
          %2277 = sbr.rel (%p2275) target = $region244
        $region243: #{pose_refine_net_feat.1} parent=11 // pred_region
          _
        $region244: #{pose_refine_net_feat.1} parent=11 // pred_fallthru
          _
        // Predicated region
        $region245: #{pose_refine_net_feat.1} parent=11 // pred_check
          %p2278 = pneg %p1491
        $region246: #{pose_refine_net_feat.1} parent=11 // pred_check_branch
          %2280 = sbr.rel (%p2278) target = $region248
        $region247: #{pose_refine_net_feat.1} parent=11 // pred_region
          _
        $region248: #{pose_refine_net_feat.1} parent=11 // pred_fallthru
          _
        // Predicated region
        $region249: #{pose_refine_net_feat.1} parent=11 // pred_check
          %p2281 = pneg %p1512
        $region250: #{pose_refine_net_feat.1} parent=11 // pred_check_branch
          %2283 = sbr.rel (%p2281) target = $region252
        $region251: #{pose_refine_net_feat.1} parent=11 // pred_region
          %s2285 = ssub.s32 4096, 4096
          %2286 = vsyncadd [#allocation87], %s2285
          %s2287 = sshll.u32 [#allocation88], 4
          %s2288 = int_to_ptr.vmem [resolvable:$true] %s2287
          %2293 = dma.hbm_to_vmem [thread:$0]  %s125, 4096, %s2288, [#allocation87], 256, 256, 16
        $region252: #{pose_refine_net_feat.1} parent=11 // pred_fallthru
          _
        // Predicated region
        $region253: #{pose_refine_net_feat.1} parent=11 // pred_check
          %p2294 = pneg %p1533
        $region254: #{pose_refine_net_feat.1} parent=11 // pred_check_branch
          %2296 = sbr.rel (%p2294) target = $region256
        $region255: #{pose_refine_net_feat.1} parent=11 // pred_region
          _
        $region256: #{pose_refine_net_feat.1} parent=11 // pred_fallthru
          _
        // Predicated region
        $region257: #{pose_refine_net_feat.1} parent=11 // pred_check
          %p2297 = pneg %p1554
        $region258: #{pose_refine_net_feat.1} parent=11 // pred_check_branch
          %2299 = sbr.rel (%p2297) target = $region260
        $region259: #{pose_refine_net_feat.1} parent=11 // pred_region
          %s2301 = ssub.s32 16384, 16384
          %2302 = vsyncadd [#allocation90], %s2301
          %s2303 = sshll.u32 [#allocation89], 4
          %s2304 = int_to_ptr.vmem [resolvable:$true] %s2303
          %2309 = dma.hbm_to_vmem [thread:$0]  %s129, 16384, %s2304, [#allocation90], 512, 512, 32
        $region260: #{pose_refine_net_feat.1} parent=11 // pred_fallthru
          _
        // Predicated region
        $region261: #{pose_refine_net_feat.1} parent=11 // pred_check
          %p2310 = pneg %p1575
        $region262: #{pose_refine_net_feat.1} parent=11 // pred_check_branch
          %2312 = sbr.rel (%p2310) target = $region264
        $region263: #{pose_refine_net_feat.1} parent=11 // pred_region
          _
        $region264: #{pose_refine_net_feat.1} parent=11 // pred_fallthru
          _
      $region12: #{pose_refine_net_feat.1} parent=5 // pred_fallthru
        _
      %p2313 = scmp.lt.s32.totalorder %s174, 2
      // Predicated region
      $region265: #{pose_refine_net_feat.1} parent=5 // pred_check
        %p2314 = pneg %p2313
      $region266: #{pose_refine_net_feat.1} parent=5 // pred_check_branch
        %2316 = sbr.rel (%p2314) target = $region268
      $region267: #{pose_refine_net_feat.1} parent=5 // pred_region
        // Predicated region
        $region269: #{pose_refine_net_feat.1} parent=267 // pred_check
          %p2317 = pneg %p236
        $region270: #{pose_refine_net_feat.1} parent=267 // pred_check_branch
          %2319 = sbr.rel (%p2317) target = $region272
        $region271: #{pose_refine_net_feat.1} parent=267 // pred_region
          %p2320 = scmp.lt.s32.totalorder %s174, 1
          %s2321 = scalar_select %p2320, %s174, 1
          %s2322 = smul.addr %s2321, 8
          %s2323 = smul.addr %s2322, 8
          %s2324 = scalar_lea.vmem %s5, %s2323
        $region272: #{pose_refine_net_feat.1} parent=267 // pred_fallthru
          _
        // Predicated region
        $region273: #{pose_refine_net_feat.1} parent=267 // pred_check
          %p2325 = pneg %p262
        $region274: #{pose_refine_net_feat.1} parent=267 // pred_check_branch
          %2327 = sbr.rel (%p2325) target = $region276
        $region275: #{pose_refine_net_feat.1} parent=267 // pred_region
          %s2328 = sand.u32 %s252, 1
          %s2329 = scalar_lea.sflag [#allocation3], %s2328
          %s2330 = sand.u32 %s252, 1
          %s2331 = smul.addr %s2330, 64
          %s2332 = scalar_lea.vmem [#allocation7], %s2331
          %s2334 = ssub.s32 1024, 1024
          %2335 = vsyncadd %s2329, %s2334
          %s2336 = smul.addr %s174, 8
          %s2337 = smul.addr %s2336, 128
          %s2338 = scalar_lea.hbm %s7, %s2337
          %s2339 = sshll.u32 %s2332, 4
          %s2340 = int_to_ptr.vmem [resolvable:$true] %s2339
          %2345 = dma.hbm_to_vmem [thread:$0]  %s2338, 1024, %s2340, %s2329, 128, 128, 8
        $region276: #{pose_refine_net_feat.1} parent=267 // pred_fallthru
          _
        // Predicated region
        $region277: #{pose_refine_net_feat.1} parent=267 // pred_check
          %p2346 = pneg %p288
        $region278: #{pose_refine_net_feat.1} parent=267 // pred_check_branch
          %2348 = sbr.rel (%p2346) target = $region280
        $region279: #{pose_refine_net_feat.1} parent=267 // pred_region
          %s2349 = sand.u32 %s174, 1
          %s2350 = scalar_lea.sflag [#allocation9], %s2349
          %s2351 = sand.u32 %s278, 1
          %s2352 = smul.addr %s2351, 128
          %s2353 = scalar_lea.vmem [#allocation8], %s2352
          %s2355 = ssub.s32 2048, 2048
          %2356 = vsyncadd %s2350, %s2355
          %s2357 = smul.addr %s174, 16
          %s2358 = smul.addr %s2357, 128
          %s2359 = scalar_lea.hbm %s9, %s2358
          %s2360 = sshll.u32 %s2353, 4
          %s2361 = int_to_ptr.vmem [resolvable:$true] %s2360
          %2366 = dma.hbm_to_vmem [thread:$0]  %s2359, 2048, %s2361, %s2350, 256, 256, 16
        $region280: #{pose_refine_net_feat.1} parent=267 // pred_fallthru
          _
      $region268: #{pose_refine_net_feat.1} parent=5 // pred_fallthru
        _
      %p2367 = scmp.le.s32.totalorder 1, %s174
      %p2368 = scmp.lt.s32.totalorder %s174, 3
      %p2369 = pnand %p2367, %p2368
      %p2370 = pneg %p2369
      // Predicated region
      $region281: #{pose_refine_net_feat.1} parent=5 // pred_check
        _
      $region282: #{pose_refine_net_feat.1} parent=5 // pred_check_branch
        %2372 = sbr.rel (%p2369) target = $region284
      $region283: #{pose_refine_net_feat.1} parent=5 // pred_region
        %s2373 = ssub.s32 %s174, 1
        // Predicated region
        $region285: #{pose_refine_net_feat.1} parent=283 // pred_check
          %p2374 = pneg %p195
        $region286: #{pose_refine_net_feat.1} parent=283 // pred_check_branch
          %2376 = sbr.rel (%p2374) target = $region288
        $region287: #{pose_refine_net_feat.1} parent=283 // pred_region
          %2377 = dma.done [#allocation4], 16
        $region288: #{pose_refine_net_feat.1} parent=283 // pred_fallthru
          _
        // Predicated region
        $region289: #{pose_refine_net_feat.1} parent=283 // pred_check
          %p2378 = pneg %p216
        $region290: #{pose_refine_net_feat.1} parent=283 // pred_check_branch
          %2380 = sbr.rel (%p2378) target = $region292
        $region291: #{pose_refine_net_feat.1} parent=283 // pred_region
          %2381 = dma.done [#allocation6], 16
        $region292: #{pose_refine_net_feat.1} parent=283 // pred_fallthru
          _
        %s2382 = sand.u32 %s255, 1
        %s2383 = scalar_lea.sflag [#allocation3], %s2382
        %s2384 = sand.u32 %s255, 1
        %s2385 = smul.addr %s2384, 64
        %s2386 = scalar_lea.vmem [#allocation7], %s2385
        // Predicated region
        $region293: #{pose_refine_net_feat.1} parent=283 // pred_check
          %p2387 = pneg %p268
        $region294: #{pose_refine_net_feat.1} parent=283 // pred_check_branch
          %2389 = sbr.rel (%p2387) target = $region296
        $region295: #{pose_refine_net_feat.1} parent=283 // pred_region
          %2390 = dma.done %s2383, 1024
        $region296: #{pose_refine_net_feat.1} parent=283 // pred_fallthru
          _
        %s2391 = sand.u32 %s179, 1
        %s2392 = scalar_lea.sflag [#allocation9], %s2391
        %s2393 = sand.u32 %s281, 1
        %s2394 = smul.addr %s2393, 128
        %s2395 = scalar_lea.vmem [#allocation8], %s2394
        // Predicated region
        $region297: #{pose_refine_net_feat.1} parent=283 // pred_check
          %p2396 = pneg %p294
        $region298: #{pose_refine_net_feat.1} parent=283 // pred_check_branch
          %2398 = sbr.rel (%p2396) target = $region300
        $region299: #{pose_refine_net_feat.1} parent=283 // pred_region
          %2399 = dma.done %s2392, 2048
        $region300: #{pose_refine_net_feat.1} parent=283 // pred_fallthru
          _
        // Predicated region
        $region301: #{pose_refine_net_feat.1} parent=283 // pred_check
          %p2400 = pneg %p315
        $region302: #{pose_refine_net_feat.1} parent=283 // pred_check_branch
          %2402 = sbr.rel (%p2400) target = $region304
        $region303: #{pose_refine_net_feat.1} parent=283 // pred_region
          %2403 = dma.done [#allocation9], 512
        $region304: #{pose_refine_net_feat.1} parent=283 // pred_fallthru
          _
        // Predicated region
        $region305: #{pose_refine_net_feat.1} parent=283 // pred_check
          %p2404 = pneg %p336
        $region306: #{pose_refine_net_feat.1} parent=283 // pred_check_branch
          %2406 = sbr.rel (%p2404) target = $region308
        $region307: #{pose_refine_net_feat.1} parent=283 // pred_region
          %2407 = dma.done [#allocation12], 16
        $region308: #{pose_refine_net_feat.1} parent=283 // pred_fallthru
          _
        // Predicated region
        $region309: #{pose_refine_net_feat.1} parent=283 // pred_check
          %p2408 = pneg %p357
        $region310: #{pose_refine_net_feat.1} parent=283 // pred_check_branch
          %2410 = sbr.rel (%p2408) target = $region312
        $region311: #{pose_refine_net_feat.1} parent=283 // pred_region
          %2411 = dma.done [#allocation12], 384
        $region312: #{pose_refine_net_feat.1} parent=283 // pred_fallthru
          _
        // Predicated region
        $region313: #{pose_refine_net_feat.1} parent=283 // pred_check
          %p2412 = pneg %p378
        $region314: #{pose_refine_net_feat.1} parent=283 // pred_check_branch
          %2414 = sbr.rel (%p2412) target = $region316
        $region315: #{pose_refine_net_feat.1} parent=283 // pred_region
          %2415 = dma.done [#allocation15], 16
        $region316: #{pose_refine_net_feat.1} parent=283 // pred_fallthru
          _
        // Predicated region
        $region317: #{pose_refine_net_feat.1} parent=283 // pred_check
          %p2416 = pneg %p399
        $region318: #{pose_refine_net_feat.1} parent=283 // pred_check_branch
          %2418 = sbr.rel (%p2416) target = $region320
        $region319: #{pose_refine_net_feat.1} parent=283 // pred_region
          %2419 = dma.done [#allocation15], 384
        $region320: #{pose_refine_net_feat.1} parent=283 // pred_fallthru
          _
        // Predicated region
        $region321: #{pose_refine_net_feat.1} parent=283 // pred_check
          %p2420 = pneg %p420
        $region322: #{pose_refine_net_feat.1} parent=283 // pred_check_branch
          %2422 = sbr.rel (%p2420) target = $region324
        $region323: #{pose_refine_net_feat.1} parent=283 // pred_region
          %2423 = dma.done [#allocation18], 16
        $region324: #{pose_refine_net_feat.1} parent=283 // pred_fallthru
          _
        // Predicated region
        $region325: #{pose_refine_net_feat.1} parent=283 // pred_check
          %p2424 = pneg %p441
        $region326: #{pose_refine_net_feat.1} parent=283 // pred_check_branch
          %2426 = sbr.rel (%p2424) target = $region328
        $region327: #{pose_refine_net_feat.1} parent=283 // pred_region
          %2427 = dma.done [#allocation18], 512
        $region328: #{pose_refine_net_feat.1} parent=283 // pred_fallthru
          _
        // Predicated region
        $region329: #{pose_refine_net_feat.1} parent=283 // pred_check
          %p2428 = pneg %p462
        $region330: #{pose_refine_net_feat.1} parent=283 // pred_check_branch
          %2430 = sbr.rel (%p2428) target = $region332
        $region331: #{pose_refine_net_feat.1} parent=283 // pred_region
          %2431 = dma.done [#allocation21], 16
        $region332: #{pose_refine_net_feat.1} parent=283 // pred_fallthru
          _
        // Predicated region
        $region333: #{pose_refine_net_feat.1} parent=283 // pred_check
          %p2432 = pneg %p483
        $region334: #{pose_refine_net_feat.1} parent=283 // pred_check_branch
          %2434 = sbr.rel (%p2432) target = $region336
        $region335: #{pose_refine_net_feat.1} parent=283 // pred_region
          %2435 = dma.done [#allocation21], 1152
        $region336: #{pose_refine_net_feat.1} parent=283 // pred_fallthru
          _
        // Predicated region
        $region337: #{pose_refine_net_feat.1} parent=283 // pred_check
          %p2436 = pneg %p504
        $region338: #{pose_refine_net_feat.1} parent=283 // pred_check_branch
          %2438 = sbr.rel (%p2436) target = $region340
        $region339: #{pose_refine_net_feat.1} parent=283 // pred_region
          %2439 = dma.done [#allocation24], 16
        $region340: #{pose_refine_net_feat.1} parent=283 // pred_fallthru
          _
        // Predicated region
        $region341: #{pose_refine_net_feat.1} parent=283 // pred_check
          %p2440 = pneg %p525
        $region342: #{pose_refine_net_feat.1} parent=283 // pred_check_branch
          %2442 = sbr.rel (%p2440) target = $region344
        $region343: #{pose_refine_net_feat.1} parent=283 // pred_region
          %2443 = dma.done [#allocation24], 128
        $region344: #{pose_refine_net_feat.1} parent=283 // pred_fallthru
          _
        // Predicated region
        $region345: #{pose_refine_net_feat.1} parent=283 // pred_check
          %p2444 = pneg %p546
        $region346: #{pose_refine_net_feat.1} parent=283 // pred_check_branch
          %2446 = sbr.rel (%p2444) target = $region348
        $region347: #{pose_refine_net_feat.1} parent=283 // pred_region
          %2447 = dma.done [#allocation27], 384
        $region348: #{pose_refine_net_feat.1} parent=283 // pred_fallthru
          _
        // Predicated region
        $region349: #{pose_refine_net_feat.1} parent=283 // pred_check
          %p2448 = pneg %p567
        $region350: #{pose_refine_net_feat.1} parent=283 // pred_check_branch
          %2450 = sbr.rel (%p2448) target = $region352
        $region351: #{pose_refine_net_feat.1} parent=283 // pred_region
          %2451 = dma.done [#allocation27], 16
        $region352: #{pose_refine_net_feat.1} parent=283 // pred_fallthru
          _
        // Predicated region
        $region353: #{pose_refine_net_feat.1} parent=283 // pred_check
          %p2452 = pneg %p588
        $region354: #{pose_refine_net_feat.1} parent=283 // pred_check_branch
          %2454 = sbr.rel (%p2452) target = $region356
        $region355: #{pose_refine_net_feat.1} parent=283 // pred_region
          %2455 = dma.done [#allocation30], 256
        $region356: #{pose_refine_net_feat.1} parent=283 // pred_fallthru
          _
        // Predicated region
        $region357: #{pose_refine_net_feat.1} parent=283 // pred_check
          %p2456 = pneg %p609
        $region358: #{pose_refine_net_feat.1} parent=283 // pred_check_branch
          %2458 = sbr.rel (%p2456) target = $region360
        $region359: #{pose_refine_net_feat.1} parent=283 // pred_region
          %2459 = dma.done [#allocation30], 16
        $region360: #{pose_refine_net_feat.1} parent=283 // pred_fallthru
          _
        // Predicated region
        $region361: #{pose_refine_net_feat.1} parent=283 // pred_check
          %p2460 = pneg %p630
        $region362: #{pose_refine_net_feat.1} parent=283 // pred_check_branch
          %2462 = sbr.rel (%p2460) target = $region364
        $region363: #{pose_refine_net_feat.1} parent=283 // pred_region
          %2463 = dma.done [#allocation33], 256
        $region364: #{pose_refine_net_feat.1} parent=283 // pred_fallthru
          _
        // Predicated region
        $region365: #{pose_refine_net_feat.1} parent=283 // pred_check
          %p2464 = pneg %p651
        $region366: #{pose_refine_net_feat.1} parent=283 // pred_check_branch
          %2466 = sbr.rel (%p2464) target = $region368
        $region367: #{pose_refine_net_feat.1} parent=283 // pred_region
          %2467 = dma.done [#allocation33], 16
        $region368: #{pose_refine_net_feat.1} parent=283 // pred_fallthru
          _
        // Predicated region
        $region369: #{pose_refine_net_feat.1} parent=283 // pred_check
          %p2468 = pneg %p672
        $region370: #{pose_refine_net_feat.1} parent=283 // pred_check_branch
          %2470 = sbr.rel (%p2468) target = $region372
        $region371: #{pose_refine_net_feat.1} parent=283 // pred_region
          %2471 = dma.done [#allocation36], 2048
        $region372: #{pose_refine_net_feat.1} parent=283 // pred_fallthru
          _
        // Predicated region
        $region373: #{pose_refine_net_feat.1} parent=283 // pred_check
          %p2472 = pneg %p693
        $region374: #{pose_refine_net_feat.1} parent=283 // pred_check_branch
          %2474 = sbr.rel (%p2472) target = $region376
        $region375: #{pose_refine_net_feat.1} parent=283 // pred_region
          %2475 = dma.done [#allocation36], 16
        $region376: #{pose_refine_net_feat.1} parent=283 // pred_fallthru
          _
        // Predicated region
        $region377: #{pose_refine_net_feat.1} parent=283 // pred_check
          %p2476 = pneg %p714
        $region378: #{pose_refine_net_feat.1} parent=283 // pred_check_branch
          %2478 = sbr.rel (%p2476) target = $region380
        $region379: #{pose_refine_net_feat.1} parent=283 // pred_region
          %2479 = dma.done [#allocation39], 1536
        $region380: #{pose_refine_net_feat.1} parent=283 // pred_fallthru
          _
        // Predicated region
        $region381: #{pose_refine_net_feat.1} parent=283 // pred_check
          %p2480 = pneg %p735
        $region382: #{pose_refine_net_feat.1} parent=283 // pred_check_branch
          %2482 = sbr.rel (%p2480) target = $region384
        $region383: #{pose_refine_net_feat.1} parent=283 // pred_region
          %2483 = dma.done [#allocation39], 16
        $region384: #{pose_refine_net_feat.1} parent=283 // pred_fallthru
          _
        // Predicated region
        $region385: #{pose_refine_net_feat.1} parent=283 // pred_check
          %p2484 = pneg %p756
        $region386: #{pose_refine_net_feat.1} parent=283 // pred_check_branch
          %2486 = sbr.rel (%p2484) target = $region388
        $region387: #{pose_refine_net_feat.1} parent=283 // pred_region
          %2487 = dma.done [#allocation42], 1536
        $region388: #{pose_refine_net_feat.1} parent=283 // pred_fallthru
          _
        // Predicated region
        $region389: #{pose_refine_net_feat.1} parent=283 // pred_check
          %p2488 = pneg %p777
        $region390: #{pose_refine_net_feat.1} parent=283 // pred_check_branch
          %2490 = sbr.rel (%p2488) target = $region392
        $region391: #{pose_refine_net_feat.1} parent=283 // pred_region
          %2491 = dma.done [#allocation42], 16
        $region392: #{pose_refine_net_feat.1} parent=283 // pred_fallthru
          _
        // Predicated region
        $region393: #{pose_refine_net_feat.1} parent=283 // pred_check
          %p2492 = pneg %p798
        $region394: #{pose_refine_net_feat.1} parent=283 // pred_check_branch
          %2494 = sbr.rel (%p2492) target = $region396
        $region395: #{pose_refine_net_feat.1} parent=283 // pred_region
          %2495 = dma.done [#allocation45], 2048
        $region396: #{pose_refine_net_feat.1} parent=283 // pred_fallthru
          _
        // Predicated region
        $region397: #{pose_refine_net_feat.1} parent=283 // pred_check
          %p2496 = pneg %p819
        $region398: #{pose_refine_net_feat.1} parent=283 // pred_check_branch
          %2498 = sbr.rel (%p2496) target = $region400
        $region399: #{pose_refine_net_feat.1} parent=283 // pred_region
          %2499 = dma.done [#allocation45], 16
        $region400: #{pose_refine_net_feat.1} parent=283 // pred_fallthru
          _
        // Predicated region
        $region401: #{pose_refine_net_feat.1} parent=283 // pred_check
          %p2500 = pneg %p861
        $region402: #{pose_refine_net_feat.1} parent=283 // pred_check_branch
          %2502 = sbr.rel (%p2500) target = $region404
        $region403: #{pose_refine_net_feat.1} parent=283 // pred_region
          %2503 = dma.done [#allocation48], 16
        $region404: #{pose_refine_net_feat.1} parent=283 // pred_fallthru
          _
        // Predicated region
        $region405: #{pose_refine_net_feat.1} parent=283 // pred_check
          %p2504 = pneg %p882
        $region406: #{pose_refine_net_feat.1} parent=283 // pred_check_branch
          %2506 = sbr.rel (%p2504) target = $region408
        $region407: #{pose_refine_net_feat.1} parent=283 // pred_region
          %2507 = dma.done [#allocation48], 512
        $region408: #{pose_refine_net_feat.1} parent=283 // pred_fallthru
          _
        // Predicated region
        $region409: #{pose_refine_net_feat.1} parent=283 // pred_check
          %p2508 = pneg %p903
        $region410: #{pose_refine_net_feat.1} parent=283 // pred_check_branch
          %2510 = sbr.rel (%p2508) target = $region412
        $region411: #{pose_refine_net_feat.1} parent=283 // pred_region
          %2511 = dma.done [#allocation51], 1536
        $region412: #{pose_refine_net_feat.1} parent=283 // pred_fallthru
          _
        // Predicated region
        $region413: #{pose_refine_net_feat.1} parent=283 // pred_check
          %p2512 = pneg %p924
        $region414: #{pose_refine_net_feat.1} parent=283 // pred_check_branch
          %2514 = sbr.rel (%p2512) target = $region416
        $region415: #{pose_refine_net_feat.1} parent=283 // pred_region
          %2515 = dma.done [#allocation51], 16
        $region416: #{pose_refine_net_feat.1} parent=283 // pred_fallthru
          _
        // Predicated region
        $region417: #{pose_refine_net_feat.1} parent=283 // pred_check
          %p2516 = pneg %p945
        $region418: #{pose_refine_net_feat.1} parent=283 // pred_check_branch
          %2518 = sbr.rel (%p2516) target = $region420
        $region419: #{pose_refine_net_feat.1} parent=283 // pred_region
          %2519 = dma.done [#allocation54], 1024
        $region420: #{pose_refine_net_feat.1} parent=283 // pred_fallthru
          _
        // Predicated region
        $region421: #{pose_refine_net_feat.1} parent=283 // pred_check
          %p2520 = pneg %p966
        $region422: #{pose_refine_net_feat.1} parent=283 // pred_check_branch
          %2522 = sbr.rel (%p2520) target = $region424
        $region423: #{pose_refine_net_feat.1} parent=283 // pred_region
          %2523 = dma.done [#allocation54], 16
        $region424: #{pose_refine_net_feat.1} parent=283 // pred_fallthru
          _
        // Predicated region
        $region425: #{pose_refine_net_feat.1} parent=283 // pred_check
          %p2524 = pneg %p987
        $region426: #{pose_refine_net_feat.1} parent=283 // pred_check_branch
          %2526 = sbr.rel (%p2524) target = $region428
        $region427: #{pose_refine_net_feat.1} parent=283 // pred_region
          %2527 = dma.done [#allocation57], 1024
        $region428: #{pose_refine_net_feat.1} parent=283 // pred_fallthru
          _
        // Predicated region
        $region429: #{pose_refine_net_feat.1} parent=283 // pred_check
          %p2528 = pneg %p1008
        $region430: #{pose_refine_net_feat.1} parent=283 // pred_check_branch
          %2530 = sbr.rel (%p2528) target = $region432
        $region431: #{pose_refine_net_feat.1} parent=283 // pred_region
          %2531 = dma.done [#allocation57], 16
        $region432: #{pose_refine_net_feat.1} parent=283 // pred_fallthru
          _
        // Predicated region
        $region433: #{pose_refine_net_feat.1} parent=283 // pred_check
          %p2532 = pneg %p1029
        $region434: #{pose_refine_net_feat.1} parent=283 // pred_check_branch
          %2534 = sbr.rel (%p2532) target = $region436
        $region435: #{pose_refine_net_feat.1} parent=283 // pred_region
          %2535 = dma.done [#allocation60], 512
        $region436: #{pose_refine_net_feat.1} parent=283 // pred_fallthru
          _
        // Predicated region
        $region437: #{pose_refine_net_feat.1} parent=283 // pred_check
          %p2536 = pneg %p1050
        $region438: #{pose_refine_net_feat.1} parent=283 // pred_check_branch
          %2538 = sbr.rel (%p2536) target = $region440
        $region439: #{pose_refine_net_feat.1} parent=283 // pred_region
          %2539 = dma.done [#allocation60], 128
        $region440: #{pose_refine_net_feat.1} parent=283 // pred_fallthru
          _
        // Predicated region
        $region441: #{pose_refine_net_feat.1} parent=283 // pred_check
          %p2540 = pneg %p1071
        $region442: #{pose_refine_net_feat.1} parent=283 // pred_check_branch
          %2542 = sbr.rel (%p2540) target = $region444
        $region443: #{pose_refine_net_feat.1} parent=283 // pred_region
          %2543 = dma.done [#allocation63], 384
        $region444: #{pose_refine_net_feat.1} parent=283 // pred_fallthru
          _
        // Predicated region
        $region445: #{pose_refine_net_feat.1} parent=283 // pred_check
          %p2544 = pneg %p1092
        $region446: #{pose_refine_net_feat.1} parent=283 // pred_check_branch
          %2546 = sbr.rel (%p2544) target = $region448
        $region447: #{pose_refine_net_feat.1} parent=283 // pred_region
          %2547 = dma.done [#allocation63], 16
        $region448: #{pose_refine_net_feat.1} parent=283 // pred_fallthru
          _
        // Predicated region
        $region449: #{pose_refine_net_feat.1} parent=283 // pred_check
          %p2548 = pneg %p1113
        $region450: #{pose_refine_net_feat.1} parent=283 // pred_check_branch
          %2550 = sbr.rel (%p2548) target = $region452
        $region451: #{pose_refine_net_feat.1} parent=283 // pred_region
          %2551 = dma.done [#allocation66], 2048
        $region452: #{pose_refine_net_feat.1} parent=283 // pred_fallthru
          _
        // Predicated region
        $region453: #{pose_refine_net_feat.1} parent=283 // pred_check
          %p2552 = pneg %p1134
        $region454: #{pose_refine_net_feat.1} parent=283 // pred_check_branch
          %2554 = sbr.rel (%p2552) target = $region456
        $region455: #{pose_refine_net_feat.1} parent=283 // pred_region
          %2555 = dma.done [#allocation66], 512
        $region456: #{pose_refine_net_feat.1} parent=283 // pred_fallthru
          _
        // Predicated region
        $region457: #{pose_refine_net_feat.1} parent=283 // pred_check
          %p2556 = pneg %p1155
        $region458: #{pose_refine_net_feat.1} parent=283 // pred_check_branch
          %2558 = sbr.rel (%p2556) target = $region460
        $region459: #{pose_refine_net_feat.1} parent=283 // pred_region
          %2559 = dma.done [#allocation69], 1536
        $region460: #{pose_refine_net_feat.1} parent=283 // pred_fallthru
          _
        // Predicated region
        $region461: #{pose_refine_net_feat.1} parent=283 // pred_check
          %p2560 = pneg %p1176
        $region462: #{pose_refine_net_feat.1} parent=283 // pred_check_branch
          %2562 = sbr.rel (%p2560) target = $region464
        $region463: #{pose_refine_net_feat.1} parent=283 // pred_region
          %2563 = dma.done [#allocation69], 16
        $region464: #{pose_refine_net_feat.1} parent=283 // pred_fallthru
          _
        // Predicated region
        $region465: #{pose_refine_net_feat.1} parent=283 // pred_check
          %p2564 = pneg %p1197
        $region466: #{pose_refine_net_feat.1} parent=283 // pred_check_branch
          %2566 = sbr.rel (%p2564) target = $region468
        $region467: #{pose_refine_net_feat.1} parent=283 // pred_region
          %2567 = dma.done [#allocation72], 1024
        $region468: #{pose_refine_net_feat.1} parent=283 // pred_fallthru
          _
        // Predicated region
        $region469: #{pose_refine_net_feat.1} parent=283 // pred_check
          %p2568 = pneg %p1218
        $region470: #{pose_refine_net_feat.1} parent=283 // pred_check_branch
          %2570 = sbr.rel (%p2568) target = $region472
        $region471: #{pose_refine_net_feat.1} parent=283 // pred_region
          %2571 = dma.done [#allocation72], 16
        $region472: #{pose_refine_net_feat.1} parent=283 // pred_fallthru
          _
        // Predicated region
        $region473: #{pose_refine_net_feat.1} parent=283 // pred_check
          %p2572 = pneg %p1239
        $region474: #{pose_refine_net_feat.1} parent=283 // pred_check_branch
          %2574 = sbr.rel (%p2572) target = $region476
        $region475: #{pose_refine_net_feat.1} parent=283 // pred_region
          %2575 = dma.done [#allocation75], 4096
        $region476: #{pose_refine_net_feat.1} parent=283 // pred_fallthru
          _
        // Predicated region
        $region477: #{pose_refine_net_feat.1} parent=283 // pred_check
          %p2576 = pneg %p1260
        $region478: #{pose_refine_net_feat.1} parent=283 // pred_check_branch
          %2578 = sbr.rel (%p2576) target = $region480
        $region479: #{pose_refine_net_feat.1} parent=283 // pred_region
          %2579 = dma.done [#allocation75], 16
        $region480: #{pose_refine_net_feat.1} parent=283 // pred_fallthru
          _
        // Predicated region
        $region481: #{pose_refine_net_feat.1} parent=283 // pred_check
          %p2580 = pneg %p1281
        $region482: #{pose_refine_net_feat.1} parent=283 // pred_check_branch
          %2582 = sbr.rel (%p2580) target = $region484
        $region483: #{pose_refine_net_feat.1} parent=283 // pred_region
          %2583 = dma.done [#allocation78], 1024
        $region484: #{pose_refine_net_feat.1} parent=283 // pred_fallthru
          _
        // Predicated region
        $region485: #{pose_refine_net_feat.1} parent=283 // pred_check
          %p2584 = pneg %p1302
        $region486: #{pose_refine_net_feat.1} parent=283 // pred_check_branch
          %2586 = sbr.rel (%p2584) target = $region488
        $region487: #{pose_refine_net_feat.1} parent=283 // pred_region
          %2587 = dma.done [#allocation78], 16
        $region488: #{pose_refine_net_feat.1} parent=283 // pred_fallthru
          _
        // Predicated region
        $region489: #{pose_refine_net_feat.1} parent=283 // pred_check
          %p2588 = pneg %p1323
        $region490: #{pose_refine_net_feat.1} parent=283 // pred_check_branch
          %2590 = sbr.rel (%p2588) target = $region492
        $region491: #{pose_refine_net_feat.1} parent=283 // pred_region
          %2591 = dma.done [#allocation81], 16
        $region492: #{pose_refine_net_feat.1} parent=283 // pred_fallthru
          _
        // Predicated region
        $region493: #{pose_refine_net_feat.1} parent=283 // pred_check
          %p2592 = pneg %p1344
        $region494: #{pose_refine_net_feat.1} parent=283 // pred_check_branch
          %2594 = sbr.rel (%p2592) target = $region496
        $region495: #{pose_refine_net_feat.1} parent=283 // pred_region
          %2595 = dma.done [#allocation81], 512
        $region496: #{pose_refine_net_feat.1} parent=283 // pred_fallthru
          _
        // Predicated region
        $region497: #{pose_refine_net_feat.1} parent=283 // pred_check
          %p2596 = pneg %p1365
        $region498: #{pose_refine_net_feat.1} parent=283 // pred_check_branch
          %2598 = sbr.rel (%p2596) target = $region500
        $region499: #{pose_refine_net_feat.1} parent=283 // pred_region
          %2599 = dma.done [#allocation84], 512
        $region500: #{pose_refine_net_feat.1} parent=283 // pred_fallthru
          _
        // Predicated region
        $region501: #{pose_refine_net_feat.1} parent=283 // pred_check
          %p2600 = pneg %p1386
        $region502: #{pose_refine_net_feat.1} parent=283 // pred_check_branch
          %2602 = sbr.rel (%p2600) target = $region504
        $region503: #{pose_refine_net_feat.1} parent=283 // pred_region
          %2603 = dma.done [#allocation84], 2048
        $region504: #{pose_refine_net_feat.1} parent=283 // pred_fallthru
          _
        // Predicated region
        $region505: #{pose_refine_net_feat.1} parent=283 // pred_check
          %p2604 = pneg %p1449
        $region506: #{pose_refine_net_feat.1} parent=283 // pred_check_branch
          %2606 = sbr.rel (%p2604) target = $region508
        $region507: #{pose_refine_net_feat.1} parent=283 // pred_region
          %2607 = dma.done [#allocation87], 512
        $region508: #{pose_refine_net_feat.1} parent=283 // pred_fallthru
          _
        // Predicated region
        $region509: #{pose_refine_net_feat.1} parent=283 // pred_check
          %p2608 = pneg %p1512
        $region510: #{pose_refine_net_feat.1} parent=283 // pred_check_branch
          %2610 = sbr.rel (%p2608) target = $region512
        $region511: #{pose_refine_net_feat.1} parent=283 // pred_region
          %2611 = dma.done [#allocation87], 4096
        $region512: #{pose_refine_net_feat.1} parent=283 // pred_fallthru
          _
        // Predicated region
        $region513: #{pose_refine_net_feat.1} parent=283 // pred_check
          %p2612 = pneg %p1554
        $region514: #{pose_refine_net_feat.1} parent=283 // pred_check_branch
          %2614 = sbr.rel (%p2612) target = $region516
        $region515: #{pose_refine_net_feat.1} parent=283 // pred_region
          %2615 = dma.done [#allocation90], 16384
        $region516: #{pose_refine_net_feat.1} parent=283 // pred_fallthru
          _
        %2616 = sfence
        %p2617 = pneg %p195
        %p2618 = pneg %p192
        %p2619 = pneg %p216
        %p2620 = pneg %p213
        %p2621 = scmp.lt.s32.totalorder %s179, 1
        %s2622 = scalar_select %p2621, %s179, 1
        %s2623 = smul.addr %s2622, 8
        %s2624 = smul.addr %s2623, 8
        %s2625 = scalar_lea.vmem %s5, %s2624
        %p2626 = pneg %p242
        %p2627 = pneg %p239
        %s2628 = sand.u32 %s255, 1
        %s2629 = scalar_lea.sflag [#allocation3], %s2628
        %s2630 = sand.u32 %s255, 1
        %s2631 = smul.addr %s2630, 64
        %s2632 = scalar_lea.vmem [#allocation7], %s2631
        %p2633 = pneg %p268
        %p2634 = pneg %p265
        %s2635 = sand.u32 %s179, 1
        %s2636 = scalar_lea.sflag [#allocation9], %s2635
        %s2637 = sand.u32 %s281, 1
        %s2638 = smul.addr %s2637, 128
        %s2639 = scalar_lea.vmem [#allocation8], %s2638
        %p2640 = pneg %p294
        %p2641 = pneg %p291
        %p2642 = pneg %p315
        %p2643 = pneg %p312
        %p2644 = pneg %p336
        %p2645 = pneg %p333
        %p2646 = pneg %p357
        %p2647 = pneg %p354
        %p2648 = pneg %p378
        %p2649 = pneg %p375
        %p2650 = pneg %p399
        %p2651 = pneg %p396
        %p2652 = pneg %p420
        %p2653 = pneg %p417
        %p2654 = pneg %p441
        %p2655 = pneg %p438
        %p2656 = pneg %p462
        %p2657 = pneg %p459
        %p2658 = pneg %p483
        %p2659 = pneg %p480
        %p2660 = pneg %p504
        %p2661 = pneg %p501
        %p2662 = pneg %p525
        %p2663 = pneg %p522
        %p2664 = pneg %p546
        %p2665 = pneg %p543
        %p2666 = pneg %p567
        %p2667 = pneg %p564
        %p2668 = pneg %p588
        %p2669 = pneg %p585
        %p2670 = pneg %p609
        %p2671 = pneg %p606
        %p2672 = pneg %p630
        %p2673 = pneg %p627
        %p2674 = pneg %p651
        %p2675 = pneg %p648
        %p2676 = pneg %p672
        %p2677 = pneg %p669
        %p2678 = pneg %p693
        %p2679 = pneg %p690
        %p2680 = pneg %p714
        %p2681 = pneg %p711
        %p2682 = pneg %p735
        %p2683 = pneg %p732
        %p2684 = pneg %p756
        %p2685 = pneg %p753
        %p2686 = pneg %p777
        %p2687 = pneg %p774
        %p2688 = pneg %p798
        %p2689 = pneg %p795
        %p2690 = pneg %p819
        %p2691 = pneg %p816
        %p2692 = pneg %p840
        %p2693 = pneg %p837
        %p2694 = pneg %p861
        %p2695 = pneg %p858
        %p2696 = pneg %p882
        %p2697 = pneg %p879
        %p2698 = pneg %p903
        %p2699 = pneg %p900
        %p2700 = pneg %p924
        %p2701 = pneg %p921
        %p2702 = pneg %p945
        %p2703 = pneg %p942
        %p2704 = pneg %p966
        %p2705 = pneg %p963
        %p2706 = pneg %p987
        %p2707 = pneg %p984
        %p2708 = pneg %p1008
        %p2709 = pneg %p1005
        %p2710 = pneg %p1029
        %p2711 = pneg %p1026
        %p2712 = pneg %p1050
        %p2713 = pneg %p1047
        %p2714 = pneg %p1071
        %p2715 = pneg %p1068
        %p2716 = pneg %p1092
        %p2717 = pneg %p1089
        %p2718 = pneg %p1113
        %p2719 = pneg %p1110
        %p2720 = pneg %p1134
        %p2721 = pneg %p1131
        %p2722 = pneg %p1155
        %p2723 = pneg %p1152
        %p2724 = pneg %p1176
        %p2725 = pneg %p1173
        %p2726 = pneg %p1197
        %p2727 = pneg %p1194
        %p2728 = pneg %p1218
        %p2729 = pneg %p1215
        %p2730 = pneg %p1239
        %p2731 = pneg %p1236
        %p2732 = pneg %p1260
        %p2733 = pneg %p1257
        %p2734 = pneg %p1281
        %p2735 = pneg %p1278
        %p2736 = pneg %p1302
        %p2737 = pneg %p1299
        %p2738 = pneg %p1323
        %p2739 = pneg %p1320
        %p2740 = pneg %p1344
        %p2741 = pneg %p1341
        %p2742 = pneg %p1365
        %p2743 = pneg %p1362
        %p2744 = pneg %p1386
        %p2745 = pneg %p1383
        %p2746 = pneg %p1407
        %p2747 = pneg %p1404
        %p2748 = pneg %p1428
        %p2749 = pneg %p1425
        %p2750 = pneg %p1449
        %p2751 = pneg %p1446
        %p2752 = pneg %p1470
        %p2753 = pneg %p1467
        %p2754 = pneg %p1491
        %p2755 = pneg %p1488
        %p2756 = pneg %p1512
        %p2757 = pneg %p1509
        %p2758 = pneg %p1533
        %p2759 = pneg %p1530
        %p2760 = pneg %p1554
        %p2761 = pneg %p1551
        %p2762 = pneg %p1575
        %p2763 = pneg %p1572
        %p2764 = pneg %p1601
        %p2765 = pneg %p1598
        %p2766 = scmp.lt.s32.totalorder %s179, 1
        %s2767 = scalar_select %p2766, %s179, 1
        %s2768 = smul.addr %s2767, 4
        %s2769 = scalar_lea.vmem %s133, %s2768
        %p2770 = scmp.lt.s32.totalorder %s179, 1
        %s2771 = scalar_select %p2770, %s179, 1
        %s2772 = smul.addr %s2771, 8
        %s2773 = smul.addr %s2772, 8
        %s2774 = scalar_lea.vmem %s5, %s2773
        %p2775 = scmp.lt.s32.totalorder %s179, 1
        %s2776 = scalar_select %p2775, %s179, 1
        %s2777 = smul.addr %s2776, 4
        %s2778 = scalar_lea.vmem %s133, %s2777
        %v2780 = vlaneseq
        %v2781 = vshrl.u32 %v2780, 7
        %v2782 = vadd.s32 %v2781, 8
        %v2783 = vadd.s32 %v2781, 16
        %v2784 = vadd.s32 %v2781, 24
        %v2785 = vadd.s32 %v2781, 32
        %v2786 = vadd.s32 %v2781, 40
        %v2787 = vadd.s32 %v2781, 48
        %v2788 = vadd.s32 %v2781, 56
        %vm2789 = vcmp.eq.s32.totalorder %v2781, 0
        %vm2790 = vcmp.eq.s32.totalorder %v2782, 0
        %vm2791 = vcmp.eq.s32.totalorder %v2783, 0
        %vm2792 = vcmp.eq.s32.totalorder %v2784, 0
        %vm2793 = vcmp.eq.s32.totalorder %v2785, 0
        %vm2794 = vcmp.eq.s32.totalorder %v2786, 0
        %vm2795 = vcmp.eq.s32.totalorder %v2787, 0
        %vm2796 = vcmp.eq.s32.totalorder %v2788, 0
        %vm2797 = vcmp.eq.s32.totalorder %v2781, 63
        %vm2798 = vcmp.eq.s32.totalorder %v2782, 63
        %vm2799 = vcmp.eq.s32.totalorder %v2783, 63
        %vm2800 = vcmp.eq.s32.totalorder %v2784, 63
        %vm2801 = vcmp.eq.s32.totalorder %v2785, 63
        %vm2802 = vcmp.eq.s32.totalorder %v2786, 63
        %vm2803 = vcmp.eq.s32.totalorder %v2787, 63
        %vm2804 = vcmp.eq.s32.totalorder %v2788, 63
        %v2805 = vld [vmem:[%s2774] sm:$0xff]
        %v2806 = vld [vmem:[%s2774 + $0x8] sm:$0xff]
        %v2807 = vld [vmem:[%s2774 + $0x10] sm:$0xff]
        %v2808 = vld [vmem:[%s2774 + $0x18] sm:$0xff]
        %v2809 = vld [vmem:[%s2774 + $0x20] sm:$0xff]
        %v2810 = vld [vmem:[%s2774 + $0x28] sm:$0xff]
        %v2811 = vld [vmem:[%s2774 + $0x30] sm:$0xff]
        %v2812 = vld [vmem:[%s2774 + $0x38] sm:$0xff]
        %v2813 = vld [vmem:[%s2386] sm:$0xff]
        %v2814 = vld [vmem:[%s2386 + $0x8] sm:$0xff]
        %v2815 = vld [vmem:[%s2386 + $0x10] sm:$0xff]
        %v2816 = vld [vmem:[%s2386 + $0x18] sm:$0xff]
        %v2817 = vld [vmem:[%s2386 + $0x20] sm:$0xff]
        %v2818 = vld [vmem:[%s2386 + $0x28] sm:$0xff]
        %v2819 = vld [vmem:[%s2386 + $0x30] sm:$0xff]
        %v2820 = vld [vmem:[%s2386 + $0x38] sm:$0xff]
        %v2821 = vld [vmem:[%s2395] sm:$0xff]
        %v2822 = vld [vmem:[%s2395 + $0x8] sm:$0xff]
        %v2823 = vld [vmem:[%s2395 + $0x10] sm:$0xff]
        %v2824 = vld [vmem:[%s2395 + $0x18] sm:$0xff]
        %v2825 = vld [vmem:[%s2395 + $0x20] sm:$0xff]
        %v2826 = vld [vmem:[%s2395 + $0x28] sm:$0xff]
        %v2827 = vld [vmem:[%s2395 + $0x30] sm:$0xff]
        %v2828 = vld [vmem:[%s2395 + $0x38] sm:$0xff]
        %v2829 = vld [vmem:[%s2395 + $0x40] sm:$0xff]
        %v2830 = vld [vmem:[%s2395 + $0x48] sm:$0xff]
        %v2831 = vld [vmem:[%s2395 + $0x50] sm:$0xff]
        %v2832 = vld [vmem:[%s2395 + $0x58] sm:$0xff]
        %v2833 = vld [vmem:[%s2395 + $0x60] sm:$0xff]
        %v2834 = vld [vmem:[%s2395 + $0x68] sm:$0xff]
        %v2835 = vld [vmem:[%s2395 + $0x70] sm:$0xff]
        %v2836 = vld [vmem:[%s2395 + $0x78] sm:$0xff]
        %v2837 = vrot.slane %v2805, 7
        %v2838 = vrot.slane %v2806, 7
        %v2839 = vrot.slane %v2807, 7
        %v2840 = vrot.slane %v2808, 7
        %v2841 = vrot.slane %v2809, 7
        %v2842 = vrot.slane %v2810, 7
        %v2843 = vrot.slane %v2811, 7
        %v2844 = vrot.slane %v2812, 7
        %vm2845 = vcmp.lt.s32.totalorder %v2781, 1
        %v2846 = vsel %vm2845, %v2843, %v2844
        %v2847 = vsel %vm2845, %v2842, %v2843
        %v2848 = vsel %vm2845, %v2841, %v2842
        %v2849 = vsel %vm2845, %v2840, %v2841
        %v2850 = vsel %vm2845, %v2839, %v2840
        %v2851 = vsel %vm2845, %v2838, %v2839
        %v2852 = vsel %vm2845, %v2837, %v2838
        %v2853 = vsel %vm2845, %v2844, %v2837
        %v2854 = vsel %vm2789, 1, 0
        %v2855 = vsel %vm2790, 1, 0
        %v2856 = vsel %vm2791, 1, 0
        %v2857 = vsel %vm2792, 1, 0
        %v2858 = vsel %vm2793, 1, 0
        %v2859 = vsel %vm2794, 1, 0
        %v2860 = vsel %vm2795, 1, 0
        %v2861 = vsel %vm2796, 1, 0
        %vm2862 = vcmp.eq.s32.totalorder %v2854, 1
        %vm2863 = vcmp.eq.s32.totalorder %v2855, 1
        %vm2864 = vcmp.eq.s32.totalorder %v2856, 1
        %vm2865 = vcmp.eq.s32.totalorder %v2857, 1
        %vm2866 = vcmp.eq.s32.totalorder %v2858, 1
        %vm2867 = vcmp.eq.s32.totalorder %v2859, 1
        %vm2868 = vcmp.eq.s32.totalorder %v2860, 1
        %vm2869 = vcmp.eq.s32.totalorder %v2861, 1
        %v2870 = vsel %vm2862, -inf, %v2853
        %v2871 = vsel %vm2863, -inf, %v2852
        %v2872 = vsel %vm2864, -inf, %v2851
        %v2873 = vsel %vm2865, -inf, %v2850
        %v2874 = vsel %vm2866, -inf, %v2849
        %v2875 = vsel %vm2867, -inf, %v2848
        %v2876 = vsel %vm2868, -inf, %v2847
        %v2877 = vsel %vm2869, -inf, %v2846
        %v2878 = vrot.slane %v2805, 1
        %v2879 = vrot.slane %v2806, 1
        %v2880 = vrot.slane %v2807, 1
        %v2881 = vrot.slane %v2808, 1
        %v2882 = vrot.slane %v2809, 1
        %v2883 = vrot.slane %v2810, 1
        %v2884 = vrot.slane %v2811, 1
        %v2885 = vrot.slane %v2812, 1
        %vm2886 = vcmp.lt.s32.totalorder %v2781, 7
        %v2887 = vsel %vm2886, %v2884, %v2885
        %v2888 = vsel %vm2886, %v2883, %v2884
        %v2889 = vsel %vm2886, %v2882, %v2883
        %v2890 = vsel %vm2886, %v2881, %v2882
        %v2891 = vsel %vm2886, %v2880, %v2881
        %v2892 = vsel %vm2886, %v2879, %v2880
        %v2893 = vsel %vm2886, %v2878, %v2879
        %v2894 = vsel %vm2886, %v2885, %v2878
        %v2895 = vsel %vm2797, 1, 0
        %v2896 = vsel %vm2798, 1, 0
        %v2897 = vsel %vm2799, 1, 0
        %v2898 = vsel %vm2800, 1, 0
        %v2899 = vsel %vm2801, 1, 0
        %v2900 = vsel %vm2802, 1, 0
        %v2901 = vsel %vm2803, 1, 0
        %v2902 = vsel %vm2804, 1, 0
        %vm2903 = vcmp.eq.s32.totalorder %v2895, 1
        %vm2904 = vcmp.eq.s32.totalorder %v2896, 1
        %vm2905 = vcmp.eq.s32.totalorder %v2897, 1
        %vm2906 = vcmp.eq.s32.totalorder %v2898, 1
        %vm2907 = vcmp.eq.s32.totalorder %v2899, 1
        %vm2908 = vcmp.eq.s32.totalorder %v2900, 1
        %vm2909 = vcmp.eq.s32.totalorder %v2901, 1
        %vm2910 = vcmp.eq.s32.totalorder %v2902, 1
        %v2911 = vsel %vm2903, -inf, %v2893
        %v2912 = vsel %vm2904, -inf, %v2892
        %v2913 = vsel %vm2905, -inf, %v2891
        %v2914 = vsel %vm2906, -inf, %v2890
        %v2915 = vsel %vm2907, -inf, %v2889
        %v2916 = vsel %vm2908, -inf, %v2888
        %v2917 = vsel %vm2909, -inf, %v2887
        %v2918 = vsel %vm2910, -inf, %v2894
        %v2919 = vmax.f32 %v2870, %v2805
        %v2920 = vmax.f32 %v2871, %v2806
        %v2921 = vmax.f32 %v2872, %v2807
        %v2922 = vmax.f32 %v2873, %v2808
        %v2923 = vmax.f32 %v2874, %v2809
        %v2924 = vmax.f32 %v2875, %v2810
        %v2925 = vmax.f32 %v2876, %v2811
        %v2926 = vmax.f32 %v2877, %v2812
        %v2927 = vmax.f32 %v2919, %v2911
        %v2928 = vmax.f32 %v2920, %v2912
        %v2929 = vmax.f32 %v2921, %v2913
        %v2930 = vmax.f32 %v2922, %v2914
        %v2931 = vmax.f32 %v2923, %v2915
        %v2932 = vmax.f32 %v2924, %v2916
        %v2933 = vmax.f32 %v2925, %v2917
        %v2934 = vmax.f32 %v2926, %v2918
        %v2935 = vsel %vm2862, 0.0, %v2853
        %v2936 = vsel %vm2863, 0.0, %v2852
        %v2937 = vsel %vm2864, 0.0, %v2851
        %v2938 = vsel %vm2865, 0.0, %v2850
        %v2939 = vsel %vm2866, 0.0, %v2849
        %v2940 = vsel %vm2867, 0.0, %v2848
        %v2941 = vsel %vm2868, 0.0, %v2847
        %v2942 = vsel %vm2869, 0.0, %v2846
        %v2943 = vsel %vm2903, 0.0, %v2893
        %v2944 = vsel %vm2904, 0.0, %v2892
        %v2945 = vsel %vm2905, 0.0, %v2891
        %v2946 = vsel %vm2906, 0.0, %v2890
        %v2947 = vsel %vm2907, 0.0, %v2889
        %v2948 = vsel %vm2908, 0.0, %v2888
        %v2949 = vsel %vm2909, 0.0, %v2887
        %v2950 = vsel %vm2910, 0.0, %v2894
        %v2951 = vadd.f32 %v2935, %v2805
        %v2952 = vadd.f32 %v2936, %v2806
        %v2953 = vadd.f32 %v2937, %v2807
        %v2954 = vadd.f32 %v2938, %v2808
        %v2955 = vadd.f32 %v2939, %v2809
        %v2956 = vadd.f32 %v2940, %v2810
        %v2957 = vadd.f32 %v2941, %v2811
        %v2958 = vadd.f32 %v2942, %v2812
        %v2959 = vadd.f32 %v2951, %v2943
        %v2960 = vadd.f32 %v2952, %v2944
        %v2961 = vadd.f32 %v2953, %v2945
        %v2962 = vadd.f32 %v2954, %v2946
        %v2963 = vadd.f32 %v2955, %v2947
        %v2964 = vadd.f32 %v2956, %v2948
        %v2965 = vadd.f32 %v2957, %v2949
        %v2966 = vadd.f32 %v2958, %v2950
        %v2967 = vmul.f32 %v2959, 0.33333334
        %v2968 = vmul.f32 %v2960, 0.33333334
        %v2969 = vmul.f32 %v2961, 0.33333334
        %v2970 = vmul.f32 %v2962, 0.33333334
        %v2971 = vmul.f32 %v2963, 0.33333334
        %v2972 = vmul.f32 %v2964, 0.33333334
        %v2973 = vmul.f32 %v2965, 0.33333334
        %v2974 = vmul.f32 %v2966, 0.33333334
        %v2975 = vld [vmem:[#allocation10] sm:$0xff]
        %v2976 = vld [vmem:[#allocation10 + $0x8] sm:$0xff]
        %v2977 = vld [vmem:[#allocation10 + $0x10] sm:$0xff]
        %v2978 = vld [vmem:[#allocation10 + $0x18] sm:$0xff]
        %v2979 = vpack.c.bf16 %v2806, %v2805
        %v2980 = vpack.c.bf16 %v2808, %v2807
        %v2981 = vpack.c.bf16 %v2810, %v2809
        %v2982 = vpack.c.bf16 %v2812, %v2811
        %v2983 = vpack.c.bf16 %v2976, %v2975
        %v2984 = vpack.c.bf16 %v2978, %v2977
        %v2985 = vld [vmem:[#allocation11] sm:$0x1]
        %v2987 = vlaneseq
        %v2988 = vshrl.u32 %v2987, 7
        %v2989 = vsub.s32 0, %v2988
        %v2990 = vrot.slane %v2985, %v2989
        %vm2992 = vcmask 261120
        %v2994 = vsel %vm2992, %v2979, 0
        %v2997 = vsel %vm2992, %v2980, 0
        %v3000 = vsel %vm2992, %v2981, 0
        %v3003 = vsel %vm2992, %v2982, 0
        %3005 = vmatprep.subr.bf16.mxu0 0
        %3006 = vmatpush1.bf16.msra.mxu0 %v2983
        %3007 = vmatprep.subr.bf16.mxu0 0
        %3008 = vmatpush1.bf16.msra.mxu0 %v2984
        %3009 = vmatprep.subr.bf16.mxu0 0
        %3010 = vmatpush1.bf16.msra.mxu0 0
        %3011 = vmatprep.subr.bf16.mxu0 0
        %3012 = vmatpush1.bf16.msra.mxu0 0
        %3013 = vmatprep.subr.bf16.mxu0 0
        %3014 = vmatpush1.bf16.msra.mxu0 0
        %3015 = vmatprep.subr.bf16.mxu0 0
        %3016 = vmatpush1.bf16.msra.mxu0 0
        %3017 = vmatprep.subr.bf16.mxu0 0
        %3018 = vmatpush1.bf16.msra.mxu0 0
        %3019 = vmatprep.subr.bf16.mxu0 0
        %3020 = vmatpush1.bf16.msra.mxu0 0
        %3021 = vmatprep.subr.bf16.mxu0 0
        %3022 = vmatpush1.bf16.msra.mxu0 0
        %3023 = vmatprep.subr.bf16.mxu0 0
        %3024 = vmatpush1.bf16.msra.mxu0 0
        %3025 = vmatprep.subr.bf16.mxu0 0
        %3026 = vmatpush1.bf16.msra.mxu0 0
        %3027 = vmatprep.subr.bf16.mxu0 0
        %3028 = vmatpush1.bf16.msra.mxu0 0
        %3029 = vmatprep.subr.bf16.mxu0 0
        %3030 = vmatpush1.bf16.msra.mxu0 0
        %3031 = vmatprep.subr.bf16.mxu0 0
        %3032 = vmatpush1.bf16.msra.mxu0 0
        %3033 = vmatprep.subr.bf16.mxu0 0
        %3034 = vmatpush1.bf16.msra.mxu0 0
        %3035 = vmatprep.subr.bf16.mxu0 0
        %3036 = vmatpush1.bf16.msra.mxu0 0
        %3037 = vmatprep.mubr.bf16.mxu0 0
        %3038 = vmatmul.mubr.bf16.gmra.mrb[0].mxu0 %v2994
        %v3039 = vpop.f32.mrb[0].mxu0
        %v3040 = vadd.f32 %v2990, %v3039
        %v3041 = vpop.f32.mrb[0].mxu0
        %v3042 = vpop.f32.mrb[0].mxu0
        %v3043 = vadd.f32 %v2990, %v3042
        %v3044 = vpop.f32.mrb[0].mxu0
        %3045 = vmatprep.mubr.bf16.mxu0 0
        %3046 = vmatmul.mubr.bf16.gmra.mrb[0].mxu0 %v2997
        %v3047 = vpop.f32.mrb[0].mxu0
        %v3048 = vadd.f32 %v2990, %v3047
        %v3049 = vpop.f32.mrb[0].mxu0
        %v3050 = vpop.f32.mrb[0].mxu0
        %v3051 = vadd.f32 %v2990, %v3050
        %v3052 = vpop.f32.mrb[0].mxu0
        %3053 = vmatprep.mubr.bf16.mxu0 0
        %3054 = vmatmul.mubr.bf16.gmra.mrb[0].mxu0 %v3000
        %v3055 = vpop.f32.mrb[0].mxu0
        %v3056 = vadd.f32 %v2990, %v3055
        %v3057 = vpop.f32.mrb[0].mxu0
        %v3058 = vpop.f32.mrb[0].mxu0
        %v3059 = vadd.f32 %v2990, %v3058
        %v3060 = vpop.f32.mrb[0].mxu0
        %3061 = vmatprep.mubr.bf16.mxu0 0
        %3062 = vmatmul.mubr.bf16.gmra.mrb[0].mxu0 %v3003
        %v3063 = vpop.f32.mrb[0].mxu0
        %v3064 = vadd.f32 %v2990, %v3063
        %v3065 = vpop.f32.mrb[0].mxu0
        %v3066 = vpop.f32.mrb[0].mxu0
        %v3067 = vadd.f32 %v2990, %v3066
        %v3068 = vpop.f32.mrb[0].mxu0
        %3069 = vdwg.mxu0
        %v3070 = vrot.slane %v3040, 7
        %v3071 = vrot.slane %v3043, 7
        %v3072 = vrot.slane %v3048, 7
        %v3073 = vrot.slane %v3051, 7
        %v3074 = vrot.slane %v3056, 7
        %v3075 = vrot.slane %v3059, 7
        %v3076 = vrot.slane %v3064, 7
        %v3077 = vrot.slane %v3067, 7
        %v3078 = vsel %vm2845, %v3076, %v3077
        %v3079 = vsel %vm2845, %v3075, %v3076
        %v3080 = vsel %vm2845, %v3074, %v3075
        %v3081 = vsel %vm2845, %v3073, %v3074
        %v3082 = vsel %vm2845, %v3072, %v3073
        %v3083 = vsel %vm2845, %v3071, %v3072
        %v3084 = vsel %vm2845, %v3070, %v3071
        %v3085 = vsel %vm2845, %v3077, %v3070
        %v3086 = vsel %vm2862, 0.0, %v3085
        %v3087 = vsel %vm2863, 0.0, %v3084
        %v3088 = vsel %vm2864, 0.0, %v3083
        %v3089 = vsel %vm2865, 0.0, %v3082
        %v3090 = vsel %vm2866, 0.0, %v3081
        %v3091 = vsel %vm2867, 0.0, %v3080
        %v3092 = vsel %vm2868, 0.0, %v3079
        %v3093 = vsel %vm2869, 0.0, %v3078
        %v3094 = vrot.slane %v3040, 1
        %v3095 = vrot.slane %v3043, 1
        %v3096 = vrot.slane %v3048, 1
        %v3097 = vrot.slane %v3051, 1
        %v3098 = vrot.slane %v3056, 1
        %v3099 = vrot.slane %v3059, 1
        %v3100 = vrot.slane %v3064, 1
        %v3101 = vrot.slane %v3067, 1
        %v3102 = vsel %vm2886, %v3100, %v3101
        %v3103 = vsel %vm2886, %v3099, %v3100
        %v3104 = vsel %vm2886, %v3098, %v3099
        %v3105 = vsel %vm2886, %v3097, %v3098
        %v3106 = vsel %vm2886, %v3096, %v3097
        %v3107 = vsel %vm2886, %v3095, %v3096
        %v3108 = vsel %vm2886, %v3094, %v3095
        %v3109 = vsel %vm2886, %v3101, %v3094
        %v3110 = vsel %vm2903, 0.0, %v3108
        %v3111 = vsel %vm2904, 0.0, %v3107
        %v3112 = vsel %vm2905, 0.0, %v3106
        %v3113 = vsel %vm2906, 0.0, %v3105
        %v3114 = vsel %vm2907, 0.0, %v3104
        %v3115 = vsel %vm2908, 0.0, %v3103
        %v3116 = vsel %vm2909, 0.0, %v3102
        %v3117 = vsel %vm2910, 0.0, %v3109
        %v3118 = vld [vmem:[#allocation13] sm:$0xff]
        %v3119 = vld [vmem:[#allocation13 + $0x8] sm:$0xff]
        %v3120 = vld [vmem:[#allocation13 + $0x10] sm:$0xff]
        %v3121 = vpack.c.bf16 %v3087, %v3086
        %v3122 = vpack.c.bf16 %v3089, %v3088
        %v3123 = vpack.c.bf16 %v3091, %v3090
        %v3124 = vpack.c.bf16 %v3093, %v3092
        %v3125 = vpack.c.bf16 %v3118, %v3118
        %v3126 = vpack.c.bf16 %v3043, %v3040
        %v3127 = vpack.c.bf16 %v3051, %v3048
        %v3128 = vpack.c.bf16 %v3059, %v3056
        %v3129 = vpack.c.bf16 %v3067, %v3064
        %v3130 = vpack.c.bf16 %v3119, %v3119
        %vm3131 = vcmask 64512
        %v3133 = vsel %vm3131, %v3126, 0
        %v3136 = vsel %vm3131, %v3127, 0
        %v3139 = vsel %vm3131, %v3128, 0
        %v3142 = vsel %vm3131, %v3129, 0
        %vm3144 = vcmask 1043456
        %v3146 = vsel %vm3144, %v3130, 0
        %3148 = vmatprep.subr.bf16.mxu0 0
        %3149 = vmatpush1.bf16.msra.mxu0 %v3146
        %3150 = vmatprep.subr.bf16.mxu0 0
        %3151 = vmatpush1.bf16.msra.mxu0 0
        %3152 = vmatprep.subr.bf16.mxu0 0
        %3153 = vmatpush1.bf16.msra.mxu0 0
        %3154 = vmatprep.subr.bf16.mxu0 0
        %3155 = vmatpush1.bf16.msra.mxu0 0
        %3156 = vmatprep.subr.bf16.mxu0 0
        %3157 = vmatpush1.bf16.msra.mxu0 0
        %3158 = vmatprep.subr.bf16.mxu0 0
        %3159 = vmatpush1.bf16.msra.mxu0 0
        %3160 = vmatprep.subr.bf16.mxu0 0
        %3161 = vmatpush1.bf16.msra.mxu0 0
        %3162 = vmatprep.subr.bf16.mxu0 0
        %3163 = vmatpush1.bf16.msra.mxu0 0
        %3164 = vmatprep.subr.bf16.mxu0 0
        %3165 = vmatpush1.bf16.msra.mxu0 0
        %3166 = vmatprep.subr.bf16.mxu0 0
        %3167 = vmatpush1.bf16.msra.mxu0 0
        %3168 = vmatprep.subr.bf16.mxu0 0
        %3169 = vmatpush1.bf16.msra.mxu0 0
        %3170 = vmatprep.subr.bf16.mxu0 0
        %3171 = vmatpush1.bf16.msra.mxu0 0
        %3172 = vmatprep.subr.bf16.mxu0 0
        %3173 = vmatpush1.bf16.msra.mxu0 0
        %3174 = vmatprep.subr.bf16.mxu0 0
        %3175 = vmatpush1.bf16.msra.mxu0 0
        %3176 = vmatprep.subr.bf16.mxu0 0
        %3177 = vmatpush1.bf16.msra.mxu0 0
        %3178 = vmatprep.subr.bf16.mxu0 0
        %3179 = vmatpush1.bf16.msra.mxu0 0
        %3180 = vmatprep.mubr.bf16.mxu0 0
        %3181 = vmatmul.mubr.bf16.gmra.mrb[0].mxu0 %v3133
        %v3182 = vpop.f32.mrb[0].mxu0
        %v3183 = vadd.f32 0.0, %v3182
        %v3184 = vpop.f32.mrb[0].mxu0
        %v3185 = vpop.f32.mrb[0].mxu0
        %v3186 = vadd.f32 0.0, %v3185
        %v3187 = vpop.f32.mrb[0].mxu0
        %3188 = vmatprep.mubr.bf16.mxu0 0
        %3189 = vmatmul.mubr.bf16.gmra.mrb[0].mxu0 %v3136
        %v3190 = vpop.f32.mrb[0].mxu0
        %v3191 = vadd.f32 0.0, %v3190
        %v3192 = vpop.f32.mrb[0].mxu0
        %v3193 = vpop.f32.mrb[0].mxu0
        %v3194 = vadd.f32 0.0, %v3193
        %v3195 = vpop.f32.mrb[0].mxu0
        %3196 = vmatprep.mubr.bf16.mxu0 0
        %3197 = vmatmul.mubr.bf16.gmra.mrb[0].mxu0 %v3139
        %v3198 = vpop.f32.mrb[0].mxu0
        %v3199 = vadd.f32 0.0, %v3198
        %v3200 = vpop.f32.mrb[0].mxu0
        %v3201 = vpop.f32.mrb[0].mxu0
        %v3202 = vadd.f32 0.0, %v3201
        %v3203 = vpop.f32.mrb[0].mxu0
        %3204 = vmatprep.mubr.bf16.mxu0 0
        %3205 = vmatmul.mubr.bf16.gmra.mrb[0].mxu0 %v3142
        %v3206 = vpop.f32.mrb[0].mxu0
        %v3207 = vadd.f32 0.0, %v3206
        %v3208 = vpop.f32.mrb[0].mxu0
        %v3209 = vpop.f32.mrb[0].mxu0
        %v3210 = vadd.f32 0.0, %v3209
        %v3211 = vpop.f32.mrb[0].mxu0
        %3212 = vdwg.mxu0
        %v3214 = vsel %vm3131, %v3121, 0
        %v3217 = vsel %vm3131, %v3122, 0
        %v3220 = vsel %vm3131, %v3123, 0
        %v3223 = vsel %vm3131, %v3124, 0
        %v3226 = vsel %vm3144, %v3125, 0
        %3228 = vmatprep.subr.bf16.mxu0 0
        %3229 = vmatpush1.bf16.msra.mxu0 %v3226
        %3230 = vmatprep.subr.bf16.mxu0 0
        %3231 = vmatpush1.bf16.msra.mxu0 0
        %3232 = vmatprep.subr.bf16.mxu0 0
        %3233 = vmatpush1.bf16.msra.mxu0 0
        %3234 = vmatprep.subr.bf16.mxu0 0
        %3235 = vmatpush1.bf16.msra.mxu0 0
        %3236 = vmatprep.subr.bf16.mxu0 0
        %3237 = vmatpush1.bf16.msra.mxu0 0
        %3238 = vmatprep.subr.bf16.mxu0 0
        %3239 = vmatpush1.bf16.msra.mxu0 0
        %3240 = vmatprep.subr.bf16.mxu0 0
        %3241 = vmatpush1.bf16.msra.mxu0 0
        %3242 = vmatprep.subr.bf16.mxu0 0
        %3243 = vmatpush1.bf16.msra.mxu0 0
        %3244 = vmatprep.subr.bf16.mxu0 0
        %3245 = vmatpush1.bf16.msra.mxu0 0
        %3246 = vmatprep.subr.bf16.mxu0 0
        %3247 = vmatpush1.bf16.msra.mxu0 0
        %3248 = vmatprep.subr.bf16.mxu0 0
        %3249 = vmatpush1.bf16.msra.mxu0 0
        %3250 = vmatprep.subr.bf16.mxu0 0
        %3251 = vmatpush1.bf16.msra.mxu0 0
        %3252 = vmatprep.subr.bf16.mxu0 0
        %3253 = vmatpush1.bf16.msra.mxu0 0
        %3254 = vmatprep.subr.bf16.mxu0 0
        %3255 = vmatpush1.bf16.msra.mxu0 0
        %3256 = vmatprep.subr.bf16.mxu0 0
        %3257 = vmatpush1.bf16.msra.mxu0 0
        %3258 = vmatprep.subr.bf16.mxu0 0
        %3259 = vmatpush1.bf16.msra.mxu0 0
        %3260 = vmatprep.mubr.bf16.mxu0 0
        %3261 = vmatmul.mubr.bf16.gmra.mrb[0].mxu0 %v3214
        %v3262 = vpop.f32.mrb[0].mxu0
        %v3263 = vadd.f32 %v3183, %v3262
        %v3264 = vpop.f32.mrb[0].mxu0
        %v3265 = vpop.f32.mrb[0].mxu0
        %v3266 = vadd.f32 %v3186, %v3265
        %v3267 = vpop.f32.mrb[0].mxu0
        %3268 = vmatprep.mubr.bf16.mxu0 0
        %3269 = vmatmul.mubr.bf16.gmra.mrb[0].mxu0 %v3217
        %v3270 = vpop.f32.mrb[0].mxu0
        %v3271 = vadd.f32 %v3191, %v3270
        %v3272 = vpop.f32.mrb[0].mxu0
        %v3273 = vpop.f32.mrb[0].mxu0
        %v3274 = vadd.f32 %v3194, %v3273
        %v3275 = vpop.f32.mrb[0].mxu0
        %3276 = vmatprep.mubr.bf16.mxu0 0
        %3277 = vmatmul.mubr.bf16.gmra.mrb[0].mxu0 %v3220
        %v3278 = vpop.f32.mrb[0].mxu0
        %v3279 = vadd.f32 %v3199, %v3278
        %v3280 = vpop.f32.mrb[0].mxu0
        %v3281 = vpop.f32.mrb[0].mxu0
        %v3282 = vadd.f32 %v3202, %v3281
        %v3283 = vpop.f32.mrb[0].mxu0
        %3284 = vmatprep.mubr.bf16.mxu0 0
        %3285 = vmatmul.mubr.bf16.gmra.mrb[0].mxu0 %v3223
        %v3286 = vpop.f32.mrb[0].mxu0
        %v3287 = vadd.f32 %v3207, %v3286
        %v3288 = vpop.f32.mrb[0].mxu0
        %v3289 = vpop.f32.mrb[0].mxu0
        %v3290 = vadd.f32 %v3210, %v3289
        %v3291 = vpop.f32.mrb[0].mxu0
        %3292 = vdwg.mxu0
        %v3293 = vpack.c.bf16 %v3111, %v3110
        %v3294 = vpack.c.bf16 %v3113, %v3112
        %v3295 = vpack.c.bf16 %v3115, %v3114
        %v3296 = vpack.c.bf16 %v3117, %v3116
        %v3297 = vpack.c.bf16 %v3120, %v3120
        %v3299 = vsel %vm3131, %v3293, 0
        %v3302 = vsel %vm3131, %v3294, 0
        %v3305 = vsel %vm3131, %v3295, 0
        %v3308 = vsel %vm3131, %v3296, 0
        %v3311 = vsel %vm3144, %v3297, 0
        %3313 = vmatprep.subr.bf16.mxu0 0
        %3314 = vmatpush1.bf16.msra.mxu0 %v3311
        %3315 = vmatprep.subr.bf16.mxu0 0
        %3316 = vmatpush1.bf16.msra.mxu0 0
        %3317 = vmatprep.subr.bf16.mxu0 0
        %3318 = vmatpush1.bf16.msra.mxu0 0
        %3319 = vmatprep.subr.bf16.mxu0 0
        %3320 = vmatpush1.bf16.msra.mxu0 0
        %3321 = vmatprep.subr.bf16.mxu0 0
        %3322 = vmatpush1.bf16.msra.mxu0 0
        %3323 = vmatprep.subr.bf16.mxu0 0
        %3324 = vmatpush1.bf16.msra.mxu0 0
        %3325 = vmatprep.subr.bf16.mxu0 0
        %3326 = vmatpush1.bf16.msra.mxu0 0
        %3327 = vmatprep.subr.bf16.mxu0 0
        %3328 = vmatpush1.bf16.msra.mxu0 0
        %3329 = vmatprep.subr.bf16.mxu0 0
        %3330 = vmatpush1.bf16.msra.mxu0 0
        %3331 = vmatprep.subr.bf16.mxu0 0
        %3332 = vmatpush1.bf16.msra.mxu0 0
        %3333 = vmatprep.subr.bf16.mxu0 0
        %3334 = vmatpush1.bf16.msra.mxu0 0
        %3335 = vmatprep.subr.bf16.mxu0 0
        %3336 = vmatpush1.bf16.msra.mxu0 0
        %3337 = vmatprep.subr.bf16.mxu0 0
        %3338 = vmatpush1.bf16.msra.mxu0 0
        %3339 = vmatprep.subr.bf16.mxu0 0
        %3340 = vmatpush1.bf16.msra.mxu0 0
        %3341 = vmatprep.subr.bf16.mxu0 0
        %3342 = vmatpush1.bf16.msra.mxu0 0
        %3343 = vmatprep.subr.bf16.mxu0 0
        %3344 = vmatpush1.bf16.msra.mxu0 0
        %3345 = vmatprep.mubr.bf16.mxu0 0
        %3346 = vmatmul.mubr.bf16.gmra.mrb[0].mxu0 %v3299
        %v3347 = vpop.f32.mrb[0].mxu0
        %v3348 = vadd.f32 0.0, %v3347
        %v3349 = vpop.f32.mrb[0].mxu0
        %v3350 = vpop.f32.mrb[0].mxu0
        %v3351 = vadd.f32 0.0, %v3350
        %v3352 = vpop.f32.mrb[0].mxu0
        %3353 = vmatprep.mubr.bf16.mxu0 0
        %3354 = vmatmul.mubr.bf16.gmra.mrb[0].mxu0 %v3302
        %v3355 = vpop.f32.mrb[0].mxu0
        %v3356 = vadd.f32 0.0, %v3355
        %v3357 = vpop.f32.mrb[0].mxu0
        %v3358 = vpop.f32.mrb[0].mxu0
        %v3359 = vadd.f32 0.0, %v3358
        %v3360 = vpop.f32.mrb[0].mxu0
        %3361 = vmatprep.mubr.bf16.mxu0 0
        %3362 = vmatmul.mubr.bf16.gmra.mrb[0].mxu0 %v3305
        %v3363 = vpop.f32.mrb[0].mxu0
        %v3364 = vadd.f32 0.0, %v3363
        %v3365 = vpop.f32.mrb[0].mxu0
        %v3366 = vpop.f32.mrb[0].mxu0
        %v3367 = vadd.f32 0.0, %v3366
        %v3368 = vpop.f32.mrb[0].mxu0
        %3369 = vmatprep.mubr.bf16.mxu0 0
        %3370 = vmatmul.mubr.bf16.gmra.mrb[0].mxu0 %v3308
        %v3371 = vpop.f32.mrb[0].mxu0
        %v3372 = vadd.f32 0.0, %v3371
        %v3373 = vpop.f32.mrb[0].mxu0
        %v3374 = vpop.f32.mrb[0].mxu0
        %v3375 = vadd.f32 0.0, %v3374
        %v3376 = vpop.f32.mrb[0].mxu0
        %3377 = vdwg.mxu0
        %v3378 = vadd.f32 %v3263, %v3348
        %v3379 = vadd.f32 %v3266, %v3351
        %v3380 = vadd.f32 %v3271, %v3356
        %v3381 = vadd.f32 %v3274, %v3359
        %v3382 = vadd.f32 %v3279, %v3364
        %v3383 = vadd.f32 %v3282, %v3367
        %v3384 = vadd.f32 %v3287, %v3372
        %v3385 = vadd.f32 %v3290, %v3375
        %v3386 = vld [vmem:[#allocation14] sm:$0x1]
        %v3388 = vlaneseq
        %v3389 = vshrl.u32 %v3388, 7
        %v3390 = vsub.s32 0, %v3389
        %v3391 = vrot.slane %v3386, %v3390
        %v3393 = vadd.f32 %v3378, %v3391
        %v3394 = vadd.f32 %v3379, %v3391
        %v3395 = vadd.f32 %v3380, %v3391
        %v3396 = vadd.f32 %v3381, %v3391
        %v3397 = vadd.f32 %v3382, %v3391
        %v3398 = vadd.f32 %v3383, %v3391
        %v3399 = vadd.f32 %v3384, %v3391
        %v3400 = vadd.f32 %v3385, %v3391
        %v3401 = vrot.slane %v3393, 7
        %v3402 = vrot.slane %v3394, 7
        %v3403 = vrot.slane %v3395, 7
        %v3404 = vrot.slane %v3396, 7
        %v3405 = vrot.slane %v3397, 7
        %v3406 = vrot.slane %v3398, 7
        %v3407 = vrot.slane %v3399, 7
        %v3408 = vrot.slane %v3400, 7
        %v3409 = vsel %vm2845, %v3407, %v3408
        %v3410 = vsel %vm2845, %v3406, %v3407
        %v3411 = vsel %vm2845, %v3405, %v3406
        %v3412 = vsel %vm2845, %v3404, %v3405
        %v3413 = vsel %vm2845, %v3403, %v3404
        %v3414 = vsel %vm2845, %v3402, %v3403
        %v3415 = vsel %vm2845, %v3401, %v3402
        %v3416 = vsel %vm2845, %v3408, %v3401
        %v3417 = vsel %vm2862, 0.0, %v3416
        %v3418 = vsel %vm2863, 0.0, %v3415
        %v3419 = vsel %vm2864, 0.0, %v3414
        %v3420 = vsel %vm2865, 0.0, %v3413
        %v3421 = vsel %vm2866, 0.0, %v3412
        %v3422 = vsel %vm2867, 0.0, %v3411
        %v3423 = vsel %vm2868, 0.0, %v3410
        %v3424 = vsel %vm2869, 0.0, %v3409
        %v3425 = vrot.slane %v3393, 1
        %v3426 = vrot.slane %v3394, 1
        %v3427 = vrot.slane %v3395, 1
        %v3428 = vrot.slane %v3396, 1
        %v3429 = vrot.slane %v3397, 1
        %v3430 = vrot.slane %v3398, 1
        %v3431 = vrot.slane %v3399, 1
        %v3432 = vrot.slane %v3400, 1
        %v3433 = vsel %vm2886, %v3431, %v3432
        %v3434 = vsel %vm2886, %v3430, %v3431
        %v3435 = vsel %vm2886, %v3429, %v3430
        %v3436 = vsel %vm2886, %v3428, %v3429
        %v3437 = vsel %vm2886, %v3427, %v3428
        %v3438 = vsel %vm2886, %v3426, %v3427
        %v3439 = vsel %vm2886, %v3425, %v3426
        %v3440 = vsel %vm2886, %v3432, %v3425
        %v3441 = vsel %vm2903, 0.0, %v3439
        %v3442 = vsel %vm2904, 0.0, %v3438
        %v3443 = vsel %vm2905, 0.0, %v3437
        %v3444 = vsel %vm2906, 0.0, %v3436
        %v3445 = vsel %vm2907, 0.0, %v3435
        %v3446 = vsel %vm2908, 0.0, %v3434
        %v3447 = vsel %vm2909, 0.0, %v3433
        %v3448 = vsel %vm2910, 0.0, %v3440
        %v3449 = vld [vmem:[#allocation16] sm:$0xff]
        %v3450 = vld [vmem:[#allocation16 + $0x8] sm:$0xff]
        %v3451 = vld [vmem:[#allocation16 + $0x10] sm:$0xff]
        %v3452 = vpack.c.bf16 %v3418, %v3417
        %v3453 = vpack.c.bf16 %v3420, %v3419
        %v3454 = vpack.c.bf16 %v3422, %v3421
        %v3455 = vpack.c.bf16 %v3424, %v3423
        %v3456 = vpack.c.bf16 %v3449, %v3449
        %v3457 = vpack.c.bf16 %v3394, %v3393
        %v3458 = vpack.c.bf16 %v3396, %v3395
        %v3459 = vpack.c.bf16 %v3398, %v3397
        %v3460 = vpack.c.bf16 %v3400, %v3399
        %v3461 = vpack.c.bf16 %v3450, %v3450
        %v3463 = vsel %vm3131, %v3457, 0
        %v3466 = vsel %vm3131, %v3458, 0
        %v3469 = vsel %vm3131, %v3459, 0
        %v3472 = vsel %vm3131, %v3460, 0
        %v3475 = vsel %vm3144, %v3461, 0
        %3477 = vmatprep.subr.bf16.mxu0 0
        %3478 = vmatpush1.bf16.msra.mxu0 %v3475
        %3479 = vmatprep.subr.bf16.mxu0 0
        %3480 = vmatpush1.bf16.msra.mxu0 0
        %3481 = vmatprep.subr.bf16.mxu0 0
        %3482 = vmatpush1.bf16.msra.mxu0 0
        %3483 = vmatprep.subr.bf16.mxu0 0
        %3484 = vmatpush1.bf16.msra.mxu0 0
        %3485 = vmatprep.subr.bf16.mxu0 0
        %3486 = vmatpush1.bf16.msra.mxu0 0
        %3487 = vmatprep.subr.bf16.mxu0 0
        %3488 = vmatpush1.bf16.msra.mxu0 0
        %3489 = vmatprep.subr.bf16.mxu0 0
        %3490 = vmatpush1.bf16.msra.mxu0 0
        %3491 = vmatprep.subr.bf16.mxu0 0
        %3492 = vmatpush1.bf16.msra.mxu0 0
        %3493 = vmatprep.subr.bf16.mxu0 0
        %3494 = vmatpush1.bf16.msra.mxu0 0
        %3495 = vmatprep.subr.bf16.mxu0 0
        %3496 = vmatpush1.bf16.msra.mxu0 0
        %3497 = vmatprep.subr.bf16.mxu0 0
        %3498 = vmatpush1.bf16.msra.mxu0 0
        %3499 = vmatprep.subr.bf16.mxu0 0
        %3500 = vmatpush1.bf16.msra.mxu0 0
        %3501 = vmatprep.subr.bf16.mxu0 0
        %3502 = vmatpush1.bf16.msra.mxu0 0
        %3503 = vmatprep.subr.bf16.mxu0 0
        %3504 = vmatpush1.bf16.msra.mxu0 0
        %3505 = vmatprep.subr.bf16.mxu0 0
        %3506 = vmatpush1.bf16.msra.mxu0 0
        %3507 = vmatprep.subr.bf16.mxu0 0
        %3508 = vmatpush1.bf16.msra.mxu0 0
        %3509 = vmatprep.mubr.bf16.mxu0 0
        %3510 = vmatmul.mubr.bf16.gmra.mrb[0].mxu0 %v3463
        %v3511 = vpop.f32.mrb[0].mxu0
        %v3512 = vadd.f32 0.0, %v3511
        %v3513 = vpop.f32.mrb[0].mxu0
        %v3514 = vpop.f32.mrb[0].mxu0
        %v3515 = vadd.f32 0.0, %v3514
        %v3516 = vpop.f32.mrb[0].mxu0
        %3517 = vmatprep.mubr.bf16.mxu0 0
        %3518 = vmatmul.mubr.bf16.gmra.mrb[0].mxu0 %v3466
        %v3519 = vpop.f32.mrb[0].mxu0
        %v3520 = vadd.f32 0.0, %v3519
        %v3521 = vpop.f32.mrb[0].mxu0
        %v3522 = vpop.f32.mrb[0].mxu0
        %v3523 = vadd.f32 0.0, %v3522
        %v3524 = vpop.f32.mrb[0].mxu0
        %3525 = vmatprep.mubr.bf16.mxu0 0
        %3526 = vmatmul.mubr.bf16.gmra.mrb[0].mxu0 %v3469
        %v3527 = vpop.f32.mrb[0].mxu0
        %v3528 = vadd.f32 0.0, %v3527
        %v3529 = vpop.f32.mrb[0].mxu0
        %v3530 = vpop.f32.mrb[0].mxu0
        %v3531 = vadd.f32 0.0, %v3530
        %v3532 = vpop.f32.mrb[0].mxu0
        %3533 = vmatprep.mubr.bf16.mxu0 0
        %3534 = vmatmul.mubr.bf16.gmra.mrb[0].mxu0 %v3472
        %v3535 = vpop.f32.mrb[0].mxu0
        %v3536 = vadd.f32 0.0, %v3535
        %v3537 = vpop.f32.mrb[0].mxu0
        %v3538 = vpop.f32.mrb[0].mxu0
        %v3539 = vadd.f32 0.0, %v3538
        %v3540 = vpop.f32.mrb[0].mxu0
        %3541 = vdwg.mxu0
        %v3543 = vsel %vm3131, %v3452, 0
        %v3546 = vsel %vm3131, %v3453, 0
        %v3549 = vsel %vm3131, %v3454, 0
        %v3552 = vsel %vm3131, %v3455, 0
        %v3555 = vsel %vm3144, %v3456, 0
        %3557 = vmatprep.subr.bf16.mxu0 0
        %3558 = vmatpush1.bf16.msra.mxu0 %v3555
        %3559 = vmatprep.subr.bf16.mxu0 0
        %3560 = vmatpush1.bf16.msra.mxu0 0
        %3561 = vmatprep.subr.bf16.mxu0 0
        %3562 = vmatpush1.bf16.msra.mxu0 0
        %3563 = vmatprep.subr.bf16.mxu0 0
        %3564 = vmatpush1.bf16.msra.mxu0 0
        %3565 = vmatprep.subr.bf16.mxu0 0
        %3566 = vmatpush1.bf16.msra.mxu0 0
        %3567 = vmatprep.subr.bf16.mxu0 0
        %3568 = vmatpush1.bf16.msra.mxu0 0
        %3569 = vmatprep.subr.bf16.mxu0 0
        %3570 = vmatpush1.bf16.msra.mxu0 0
        %3571 = vmatprep.subr.bf16.mxu0 0
        %3572 = vmatpush1.bf16.msra.mxu0 0
        %3573 = vmatprep.subr.bf16.mxu0 0
        %3574 = vmatpush1.bf16.msra.mxu0 0
        %3575 = vmatprep.subr.bf16.mxu0 0
        %3576 = vmatpush1.bf16.msra.mxu0 0
        %3577 = vmatprep.subr.bf16.mxu0 0
        %3578 = vmatpush1.bf16.msra.mxu0 0
        %3579 = vmatprep.subr.bf16.mxu0 0
        %3580 = vmatpush1.bf16.msra.mxu0 0
        %3581 = vmatprep.subr.bf16.mxu0 0
        %3582 = vmatpush1.bf16.msra.mxu0 0
        %3583 = vmatprep.subr.bf16.mxu0 0
        %3584 = vmatpush1.bf16.msra.mxu0 0
        %3585 = vmatprep.subr.bf16.mxu0 0
        %3586 = vmatpush1.bf16.msra.mxu0 0
        %3587 = vmatprep.subr.bf16.mxu0 0
        %3588 = vmatpush1.bf16.msra.mxu0 0
        %3589 = vmatprep.mubr.bf16.mxu0 0
        %3590 = vmatmul.mubr.bf16.gmra.mrb[0].mxu0 %v3543
        %v3591 = vpop.f32.mrb[0].mxu0
        %v3592 = vadd.f32 %v3512, %v3591
        %v3593 = vpop.f32.mrb[0].mxu0
        %v3594 = vpop.f32.mrb[0].mxu0
        %v3595 = vadd.f32 %v3515, %v3594
        %v3596 = vpop.f32.mrb[0].mxu0
        %3597 = vmatprep.mubr.bf16.mxu0 0
        %3598 = vmatmul.mubr.bf16.gmra.mrb[0].mxu0 %v3546
        %v3599 = vpop.f32.mrb[0].mxu0
        %v3600 = vadd.f32 %v3520, %v3599
        %v3601 = vpop.f32.mrb[0].mxu0
        %v3602 = vpop.f32.mrb[0].mxu0
        %v3603 = vadd.f32 %v3523, %v3602
        %v3604 = vpop.f32.mrb[0].mxu0
        %3605 = vmatprep.mubr.bf16.mxu0 0
        %3606 = vmatmul.mubr.bf16.gmra.mrb[0].mxu0 %v3549
        %v3607 = vpop.f32.mrb[0].mxu0
        %v3608 = vadd.f32 %v3528, %v3607
        %v3609 = vpop.f32.mrb[0].mxu0
        %v3610 = vpop.f32.mrb[0].mxu0
        %v3611 = vadd.f32 %v3531, %v3610
        %v3612 = vpop.f32.mrb[0].mxu0
        %3613 = vmatprep.mubr.bf16.mxu0 0
        %3614 = vmatmul.mubr.bf16.gmra.mrb[0].mxu0 %v3552
        %v3615 = vpop.f32.mrb[0].mxu0
        %v3616 = vadd.f32 %v3536, %v3615
        %v3617 = vpop.f32.mrb[0].mxu0
        %v3618 = vpop.f32.mrb[0].mxu0
        %v3619 = vadd.f32 %v3539, %v3618
        %v3620 = vpop.f32.mrb[0].mxu0
        %3621 = vdwg.mxu0
        %v3622 = vpack.c.bf16 %v3442, %v3441
        %v3623 = vpack.c.bf16 %v3444, %v3443
        %v3624 = vpack.c.bf16 %v3446, %v3445
        %v3625 = vpack.c.bf16 %v3448, %v3447
        %v3626 = vpack.c.bf16 %v3451, %v3451
        %v3628 = vsel %vm3131, %v3622, 0
        %v3631 = vsel %vm3131, %v3623, 0
        %v3634 = vsel %vm3131, %v3624, 0
        %v3637 = vsel %vm3131, %v3625, 0
        %v3640 = vsel %vm3144, %v3626, 0
        %3642 = vmatprep.subr.bf16.mxu0 0
        %3643 = vmatpush1.bf16.msra.mxu0 %v3640
        %3644 = vmatprep.subr.bf16.mxu0 0
        %3645 = vmatpush1.bf16.msra.mxu0 0
        %3646 = vmatprep.subr.bf16.mxu0 0
        %3647 = vmatpush1.bf16.msra.mxu0 0
        %3648 = vmatprep.subr.bf16.mxu0 0
        %3649 = vmatpush1.bf16.msra.mxu0 0
        %3650 = vmatprep.subr.bf16.mxu0 0
        %3651 = vmatpush1.bf16.msra.mxu0 0
        %3652 = vmatprep.subr.bf16.mxu0 0
        %3653 = vmatpush1.bf16.msra.mxu0 0
        %3654 = vmatprep.subr.bf16.mxu0 0
        %3655 = vmatpush1.bf16.msra.mxu0 0
        %3656 = vmatprep.subr.bf16.mxu0 0
        %3657 = vmatpush1.bf16.msra.mxu0 0
        %3658 = vmatprep.subr.bf16.mxu0 0
        %3659 = vmatpush1.bf16.msra.mxu0 0
        %3660 = vmatprep.subr.bf16.mxu0 0
        %3661 = vmatpush1.bf16.msra.mxu0 0
        %3662 = vmatprep.subr.bf16.mxu0 0
        %3663 = vmatpush1.bf16.msra.mxu0 0
        %3664 = vmatprep.subr.bf16.mxu0 0
        %3665 = vmatpush1.bf16.msra.mxu0 0
        %3666 = vmatprep.subr.bf16.mxu0 0
        %3667 = vmatpush1.bf16.msra.mxu0 0
        %3668 = vmatprep.subr.bf16.mxu0 0
        %3669 = vmatpush1.bf16.msra.mxu0 0
        %3670 = vmatprep.subr.bf16.mxu0 0
        %3671 = vmatpush1.bf16.msra.mxu0 0
        %3672 = vmatprep.subr.bf16.mxu0 0
        %3673 = vmatpush1.bf16.msra.mxu0 0
        %3674 = vmatprep.mubr.bf16.mxu0 0
        %3675 = vmatmul.mubr.bf16.gmra.mrb[0].mxu0 %v3628
        %v3676 = vpop.f32.mrb[0].mxu0
        %v3677 = vadd.f32 0.0, %v3676
        %v3678 = vpop.f32.mrb[0].mxu0
        %v3679 = vpop.f32.mrb[0].mxu0
        %v3680 = vadd.f32 0.0, %v3679
        %v3681 = vpop.f32.mrb[0].mxu0
        %3682 = vmatprep.mubr.bf16.mxu0 0
        %3683 = vmatmul.mubr.bf16.gmra.mrb[0].mxu0 %v3631
        %v3684 = vpop.f32.mrb[0].mxu0
        %v3685 = vadd.f32 0.0, %v3684
        %v3686 = vpop.f32.mrb[0].mxu0
        %v3687 = vpop.f32.mrb[0].mxu0
        %v3688 = vadd.f32 0.0, %v3687
        %v3689 = vpop.f32.mrb[0].mxu0
        %3690 = vmatprep.mubr.bf16.mxu0 0
        %3691 = vmatmul.mubr.bf16.gmra.mrb[0].mxu0 %v3634
        %v3692 = vpop.f32.mrb[0].mxu0
        %v3693 = vadd.f32 0.0, %v3692
        %v3694 = vpop.f32.mrb[0].mxu0
        %v3695 = vpop.f32.mrb[0].mxu0
        %v3696 = vadd.f32 0.0, %v3695
        %v3697 = vpop.f32.mrb[0].mxu0
        %3698 = vmatprep.mubr.bf16.mxu0 0
        %3699 = vmatmul.mubr.bf16.gmra.mrb[0].mxu0 %v3637
        %v3700 = vpop.f32.mrb[0].mxu0
        %v3701 = vadd.f32 0.0, %v3700
        %v3702 = vpop.f32.mrb[0].mxu0
        %v3703 = vpop.f32.mrb[0].mxu0
        %v3704 = vadd.f32 0.0, %v3703
        %v3705 = vpop.f32.mrb[0].mxu0
        %3706 = vdwg.mxu0
        %v3707 = vadd.f32 %v3592, %v3677
        %v3708 = vadd.f32 %v3595, %v3680
        %v3709 = vadd.f32 %v3600, %v3685
        %v3710 = vadd.f32 %v3603, %v3688
        %v3711 = vadd.f32 %v3608, %v3693
        %v3712 = vadd.f32 %v3611, %v3696
        %v3713 = vadd.f32 %v3616, %v3701
        %v3714 = vadd.f32 %v3619, %v3704
        %v3715 = vld [vmem:[#allocation17] sm:$0x1]
        %v3717 = vlaneseq
        %v3718 = vshrl.u32 %v3717, 7
        %v3719 = vsub.s32 0, %v3718
        %v3720 = vrot.slane %v3715, %v3719
        %v3722 = vadd.f32 %v3707, %v3720
        %v3723 = vadd.f32 %v3708, %v3720
        %v3724 = vadd.f32 %v3709, %v3720
        %v3725 = vadd.f32 %v3710, %v3720
        %v3726 = vadd.f32 %v3711, %v3720
        %v3727 = vadd.f32 %v3712, %v3720
        %v3728 = vadd.f32 %v3713, %v3720
        %v3729 = vadd.f32 %v3714, %v3720
        %v3730 = vld [vmem:[#allocation19] sm:$0xff]
        %v3731 = vld [vmem:[#allocation19 + $0x8] sm:$0xff]
        %v3732 = vld [vmem:[#allocation19 + $0x10] sm:$0xff]
        %v3733 = vld [vmem:[#allocation19 + $0x18] sm:$0xff]
        %v3734 = vpack.c.bf16 %v3731, %v3730
        %v3735 = vpack.c.bf16 %v3733, %v3732
        %v3736 = vld [vmem:[#allocation20] sm:$0x1]
        %v3738 = vlaneseq
        %v3739 = vshrl.u32 %v3738, 7
        %v3740 = vsub.s32 0, %v3739
        %v3741 = vrot.slane %v3736, %v3740
        %3743 = vmatprep.subr.bf16.mxu0 0
        %3744 = vmatpush1.bf16.msra.mxu0 %v3734
        %3745 = vmatprep.subr.bf16.mxu0 0
        %3746 = vmatpush1.bf16.msra.mxu0 %v3735
        %3747 = vmatprep.subr.bf16.mxu0 0
        %3748 = vmatpush1.bf16.msra.mxu0 0
        %3749 = vmatprep.subr.bf16.mxu0 0
        %3750 = vmatpush1.bf16.msra.mxu0 0
        %3751 = vmatprep.subr.bf16.mxu0 0
        %3752 = vmatpush1.bf16.msra.mxu0 0
        %3753 = vmatprep.subr.bf16.mxu0 0
        %3754 = vmatpush1.bf16.msra.mxu0 0
        %3755 = vmatprep.subr.bf16.mxu0 0
        %3756 = vmatpush1.bf16.msra.mxu0 0
        %3757 = vmatprep.subr.bf16.mxu0 0
        %3758 = vmatpush1.bf16.msra.mxu0 0
        %3759 = vmatprep.subr.bf16.mxu0 0
        %3760 = vmatpush1.bf16.msra.mxu0 0
        %3761 = vmatprep.subr.bf16.mxu0 0
        %3762 = vmatpush1.bf16.msra.mxu0 0
        %3763 = vmatprep.subr.bf16.mxu0 0
        %3764 = vmatpush1.bf16.msra.mxu0 0
        %3765 = vmatprep.subr.bf16.mxu0 0
        %3766 = vmatpush1.bf16.msra.mxu0 0
        %3767 = vmatprep.subr.bf16.mxu0 0
        %3768 = vmatpush1.bf16.msra.mxu0 0
        %3769 = vmatprep.subr.bf16.mxu0 0
        %3770 = vmatpush1.bf16.msra.mxu0 0
        %3771 = vmatprep.subr.bf16.mxu0 0
        %3772 = vmatpush1.bf16.msra.mxu0 0
        %3773 = vmatprep.subr.bf16.mxu0 0
        %3774 = vmatpush1.bf16.msra.mxu0 0
        %3775 = vmatprep.mubr.bf16.mxu0 0
        %3776 = vmatmul.mubr.bf16.gmra.mrb[0].mxu0 %v2994
        %v3777 = vpop.f32.mrb[0].mxu0
        %v3778 = vadd.f32 %v3741, %v3777
        %v3779 = vpop.f32.mrb[0].mxu0
        %v3780 = vpop.f32.mrb[0].mxu0
        %v3781 = vadd.f32 %v3741, %v3780
        %v3782 = vpop.f32.mrb[0].mxu0
        %3783 = vmatprep.mubr.bf16.mxu0 0
        %3784 = vmatmul.mubr.bf16.gmra.mrb[0].mxu0 %v2997
        %v3785 = vpop.f32.mrb[0].mxu0
        %v3786 = vadd.f32 %v3741, %v3785
        %v3787 = vpop.f32.mrb[0].mxu0
        %v3788 = vpop.f32.mrb[0].mxu0
        %v3789 = vadd.f32 %v3741, %v3788
        %v3790 = vpop.f32.mrb[0].mxu0
        %3791 = vmatprep.mubr.bf16.mxu0 0
        %3792 = vmatmul.mubr.bf16.gmra.mrb[0].mxu0 %v3000
        %v3793 = vpop.f32.mrb[0].mxu0
        %v3794 = vadd.f32 %v3741, %v3793
        %v3795 = vpop.f32.mrb[0].mxu0
        %v3796 = vpop.f32.mrb[0].mxu0
        %v3797 = vadd.f32 %v3741, %v3796
        %v3798 = vpop.f32.mrb[0].mxu0
        %3799 = vmatprep.mubr.bf16.mxu0 0
        %3800 = vmatmul.mubr.bf16.gmra.mrb[0].mxu0 %v3003
        %v3801 = vpop.f32.mrb[0].mxu0
        %v3802 = vadd.f32 %v3741, %v3801
        %v3803 = vpop.f32.mrb[0].mxu0
        %v3804 = vpop.f32.mrb[0].mxu0
        %v3805 = vadd.f32 %v3741, %v3804
        %v3806 = vpop.f32.mrb[0].mxu0
        %3807 = vdwg.mxu0
        %v3808 = vrot.slane %v3778, 7
        %v3809 = vrot.slane %v3781, 7
        %v3810 = vrot.slane %v3786, 7
        %v3811 = vrot.slane %v3789, 7
        %v3812 = vrot.slane %v3794, 7
        %v3813 = vrot.slane %v3797, 7
        %v3814 = vrot.slane %v3802, 7
        %v3815 = vrot.slane %v3805, 7
        %v3816 = vsel %vm2845, %v3814, %v3815
        %v3817 = vsel %vm2845, %v3813, %v3814
        %v3818 = vsel %vm2845, %v3812, %v3813
        %v3819 = vsel %vm2845, %v3811, %v3812
        %v3820 = vsel %vm2845, %v3810, %v3811
        %v3821 = vsel %vm2845, %v3809, %v3810
        %v3822 = vsel %vm2845, %v3808, %v3809
        %v3823 = vsel %vm2845, %v3815, %v3808
        %v3824 = vsel %vm2862, 0.0, %v3823
        %v3825 = vsel %vm2863, 0.0, %v3822
        %v3826 = vsel %vm2864, 0.0, %v3821
        %v3827 = vsel %vm2865, 0.0, %v3820
        %v3828 = vsel %vm2866, 0.0, %v3819
        %v3829 = vsel %vm2867, 0.0, %v3818
        %v3830 = vsel %vm2868, 0.0, %v3817
        %v3831 = vsel %vm2869, 0.0, %v3816
        %v3832 = vrot.slane %v3778, 1
        %v3833 = vrot.slane %v3781, 1
        %v3834 = vrot.slane %v3786, 1
        %v3835 = vrot.slane %v3789, 1
        %v3836 = vrot.slane %v3794, 1
        %v3837 = vrot.slane %v3797, 1
        %v3838 = vrot.slane %v3802, 1
        %v3839 = vrot.slane %v3805, 1
        %v3840 = vsel %vm2886, %v3838, %v3839
        %v3841 = vsel %vm2886, %v3837, %v3838
        %v3842 = vsel %vm2886, %v3836, %v3837
        %v3843 = vsel %vm2886, %v3835, %v3836
        %v3844 = vsel %vm2886, %v3834, %v3835
        %v3845 = vsel %vm2886, %v3833, %v3834
        %v3846 = vsel %vm2886, %v3832, %v3833
        %v3847 = vsel %vm2886, %v3839, %v3832
        %v3848 = vsel %vm2903, 0.0, %v3846
        %v3849 = vsel %vm2904, 0.0, %v3845
        %v3850 = vsel %vm2905, 0.0, %v3844
        %v3851 = vsel %vm2906, 0.0, %v3843
        %v3852 = vsel %vm2907, 0.0, %v3842
        %v3853 = vsel %vm2908, 0.0, %v3841
        %v3854 = vsel %vm2909, 0.0, %v3840
        %v3855 = vsel %vm2910, 0.0, %v3847
        %v3856 = vld [vmem:[#allocation22] sm:$0xff]
        %v3857 = vld [vmem:[#allocation22 + $0x8] sm:$0xff]
        %v3858 = vld [vmem:[#allocation22 + $0x10] sm:$0xff]
        %v3859 = vld [vmem:[#allocation22 + $0x18] sm:$0xff]
        %v3860 = vld [vmem:[#allocation22 + $0x20] sm:$0xff]
        %v3861 = vld [vmem:[#allocation22 + $0x28] sm:$0xff]
        %v3862 = vld [vmem:[#allocation22 + $0x30] sm:$0xff]
        %v3863 = vld [vmem:[#allocation22 + $0x38] sm:$0xff]
        %v3864 = vld [vmem:[#allocation22 + $0x40] sm:$0xff]
        %v3865 = vpack.c.bf16 %v3825, %v3824
        %v3866 = vpack.c.bf16 %v3827, %v3826
        %v3867 = vpack.c.bf16 %v3829, %v3828
        %v3868 = vpack.c.bf16 %v3831, %v3830
        %v3869 = vpack.c.bf16 %v3857, %v3856
        %v3870 = vpack.c.bf16 %v3858, %v3858
        %v3871 = vpack.c.bf16 %v3781, %v3778
        %v3872 = vpack.c.bf16 %v3789, %v3786
        %v3873 = vpack.c.bf16 %v3797, %v3794
        %v3874 = vpack.c.bf16 %v3805, %v3802
        %v3875 = vpack.c.bf16 %v3860, %v3859
        %v3876 = vpack.c.bf16 %v3861, %v3861
        %vm3877 = vcmask 195584
        %v3879 = vsel %vm3877, %v3871, 0
        %v3882 = vsel %vm3877, %v3872, 0
        %v3885 = vsel %vm3877, %v3873, 0
        %v3888 = vsel %vm3877, %v3874, 0
        %v3891 = vsel %vm3144, %v3876, 0
        %3893 = vmatprep.subr.bf16.mxu0 0
        %3894 = vmatpush1.bf16.msra.mxu0 %v3875
        %3895 = vmatprep.subr.bf16.mxu0 0
        %3896 = vmatpush1.bf16.msra.mxu0 %v3891
        %3897 = vmatprep.subr.bf16.mxu0 0
        %3898 = vmatpush1.bf16.msra.mxu0 0
        %3899 = vmatprep.subr.bf16.mxu0 0
        %3900 = vmatpush1.bf16.msra.mxu0 0
        %3901 = vmatprep.subr.bf16.mxu0 0
        %3902 = vmatpush1.bf16.msra.mxu0 0
        %3903 = vmatprep.subr.bf16.mxu0 0
        %3904 = vmatpush1.bf16.msra.mxu0 0
        %3905 = vmatprep.subr.bf16.mxu0 0
        %3906 = vmatpush1.bf16.msra.mxu0 0
        %3907 = vmatprep.subr.bf16.mxu0 0
        %3908 = vmatpush1.bf16.msra.mxu0 0
        %3909 = vmatprep.subr.bf16.mxu0 0
        %3910 = vmatpush1.bf16.msra.mxu0 0
        %3911 = vmatprep.subr.bf16.mxu0 0
        %3912 = vmatpush1.bf16.msra.mxu0 0
        %3913 = vmatprep.subr.bf16.mxu0 0
        %3914 = vmatpush1.bf16.msra.mxu0 0
        %3915 = vmatprep.subr.bf16.mxu0 0
        %3916 = vmatpush1.bf16.msra.mxu0 0
        %3917 = vmatprep.subr.bf16.mxu0 0
        %3918 = vmatpush1.bf16.msra.mxu0 0
        %3919 = vmatprep.subr.bf16.mxu0 0
        %3920 = vmatpush1.bf16.msra.mxu0 0
        %3921 = vmatprep.subr.bf16.mxu0 0
        %3922 = vmatpush1.bf16.msra.mxu0 0
        %3923 = vmatprep.subr.bf16.mxu0 0
        %3924 = vmatpush1.bf16.msra.mxu0 0
        %3925 = vmatprep.mubr.bf16.mxu0 0
        %3926 = vmatmul.mubr.bf16.gmra.mrb[0].mxu0 %v3879
        %v3927 = vpop.f32.mrb[0].mxu0
        %v3928 = vadd.f32 0.0, %v3927
        %v3929 = vpop.f32.mrb[0].mxu0
        %v3930 = vpop.f32.mrb[0].mxu0
        %v3931 = vadd.f32 0.0, %v3930
        %v3932 = vpop.f32.mrb[0].mxu0
        %3933 = vmatprep.mubr.bf16.mxu0 0
        %3934 = vmatmul.mubr.bf16.gmra.mrb[0].mxu0 %v3882
        %v3935 = vpop.f32.mrb[0].mxu0
        %v3936 = vadd.f32 0.0, %v3935
        %v3937 = vpop.f32.mrb[0].mxu0
        %v3938 = vpop.f32.mrb[0].mxu0
        %v3939 = vadd.f32 0.0, %v3938
        %v3940 = vpop.f32.mrb[0].mxu0
        %3941 = vmatprep.mubr.bf16.mxu0 0
        %3942 = vmatmul.mubr.bf16.gmra.mrb[0].mxu0 %v3885
        %v3943 = vpop.f32.mrb[0].mxu0
        %v3944 = vadd.f32 0.0, %v3943
        %v3945 = vpop.f32.mrb[0].mxu0
        %v3946 = vpop.f32.mrb[0].mxu0
        %v3947 = vadd.f32 0.0, %v3946
        %v3948 = vpop.f32.mrb[0].mxu0
        %3949 = vmatprep.mubr.bf16.mxu0 0
        %3950 = vmatmul.mubr.bf16.gmra.mrb[0].mxu0 %v3888
        %v3951 = vpop.f32.mrb[0].mxu0
        %v3952 = vadd.f32 0.0, %v3951
        %v3953 = vpop.f32.mrb[0].mxu0
        %v3954 = vpop.f32.mrb[0].mxu0
        %v3955 = vadd.f32 0.0, %v3954
        %v3956 = vpop.f32.mrb[0].mxu0
        %3957 = vdwg.mxu0
        %v3959 = vsel %vm3877, %v3865, 0
        %v3962 = vsel %vm3877, %v3866, 0
        %v3965 = vsel %vm3877, %v3867, 0
        %v3968 = vsel %vm3877, %v3868, 0
        %v3971 = vsel %vm3144, %v3870, 0
        %3973 = vmatprep.subr.bf16.mxu0 0
        %3974 = vmatpush1.bf16.msra.mxu0 %v3869
        %3975 = vmatprep.subr.bf16.mxu0 0
        %3976 = vmatpush1.bf16.msra.mxu0 %v3971
        %3977 = vmatprep.subr.bf16.mxu0 0
        %3978 = vmatpush1.bf16.msra.mxu0 0
        %3979 = vmatprep.subr.bf16.mxu0 0
        %3980 = vmatpush1.bf16.msra.mxu0 0
        %3981 = vmatprep.subr.bf16.mxu0 0
        %3982 = vmatpush1.bf16.msra.mxu0 0
        %3983 = vmatprep.subr.bf16.mxu0 0
        %3984 = vmatpush1.bf16.msra.mxu0 0
        %3985 = vmatprep.subr.bf16.mxu0 0
        %3986 = vmatpush1.bf16.msra.mxu0 0
        %3987 = vmatprep.subr.bf16.mxu0 0
        %3988 = vmatpush1.bf16.msra.mxu0 0
        %3989 = vmatprep.subr.bf16.mxu0 0
        %3990 = vmatpush1.bf16.msra.mxu0 0
        %3991 = vmatprep.subr.bf16.mxu0 0
        %3992 = vmatpush1.bf16.msra.mxu0 0
        %3993 = vmatprep.subr.bf16.mxu0 0
        %3994 = vmatpush1.bf16.msra.mxu0 0
        %3995 = vmatprep.subr.bf16.mxu0 0
        %3996 = vmatpush1.bf16.msra.mxu0 0
        %3997 = vmatprep.subr.bf16.mxu0 0
        %3998 = vmatpush1.bf16.msra.mxu0 0
        %3999 = vmatprep.subr.bf16.mxu0 0
        %4000 = vmatpush1.bf16.msra.mxu0 0
        %4001 = vmatprep.subr.bf16.mxu0 0
        %4002 = vmatpush1.bf16.msra.mxu0 0
        %4003 = vmatprep.subr.bf16.mxu0 0
        %4004 = vmatpush1.bf16.msra.mxu0 0
        %4005 = vmatprep.mubr.bf16.mxu0 0
        %4006 = vmatmul.mubr.bf16.gmra.mrb[0].mxu0 %v3959
        %v4007 = vpop.f32.mrb[0].mxu0
        %v4008 = vadd.f32 %v3928, %v4007
        %v4009 = vpop.f32.mrb[0].mxu0
        %v4010 = vpop.f32.mrb[0].mxu0
        %v4011 = vadd.f32 %v3931, %v4010
        %v4012 = vpop.f32.mrb[0].mxu0
        %4013 = vmatprep.mubr.bf16.mxu0 0
        %4014 = vmatmul.mubr.bf16.gmra.mrb[0].mxu0 %v3962
        %v4015 = vpop.f32.mrb[0].mxu0
        %v4016 = vadd.f32 %v3936, %v4015
        %v4017 = vpop.f32.mrb[0].mxu0
        %v4018 = vpop.f32.mrb[0].mxu0
        %v4019 = vadd.f32 %v3939, %v4018
        %v4020 = vpop.f32.mrb[0].mxu0
        %4021 = vmatprep.mubr.bf16.mxu0 0
        %4022 = vmatmul.mubr.bf16.gmra.mrb[0].mxu0 %v3965
        %v4023 = vpop.f32.mrb[0].mxu0
        %v4024 = vadd.f32 %v3944, %v4023
        %v4025 = vpop.f32.mrb[0].mxu0
        %v4026 = vpop.f32.mrb[0].mxu0
        %v4027 = vadd.f32 %v3947, %v4026
        %v4028 = vpop.f32.mrb[0].mxu0
        %4029 = vmatprep.mubr.bf16.mxu0 0
        %4030 = vmatmul.mubr.bf16.gmra.mrb[0].mxu0 %v3968
        %v4031 = vpop.f32.mrb[0].mxu0
        %v4032 = vadd.f32 %v3952, %v4031
        %v4033 = vpop.f32.mrb[0].mxu0
        %v4034 = vpop.f32.mrb[0].mxu0
        %v4035 = vadd.f32 %v3955, %v4034
        %v4036 = vpop.f32.mrb[0].mxu0
        %4037 = vdwg.mxu0
        %v4038 = vpack.c.bf16 %v3849, %v3848
        %v4039 = vpack.c.bf16 %v3851, %v3850
        %v4040 = vpack.c.bf16 %v3853, %v3852
        %v4041 = vpack.c.bf16 %v3855, %v3854
        %v4042 = vpack.c.bf16 %v3863, %v3862
        %v4043 = vpack.c.bf16 %v3864, %v3864
        %v4045 = vsel %vm3877, %v4038, 0
        %v4048 = vsel %vm3877, %v4039, 0
        %v4051 = vsel %vm3877, %v4040, 0
        %v4054 = vsel %vm3877, %v4041, 0
        %v4057 = vsel %vm3144, %v4043, 0
        %4059 = vmatprep.subr.bf16.mxu0 0
        %4060 = vmatpush1.bf16.msra.mxu0 %v4042
        %4061 = vmatprep.subr.bf16.mxu0 0
        %4062 = vmatpush1.bf16.msra.mxu0 %v4057
        %4063 = vmatprep.subr.bf16.mxu0 0
        %4064 = vmatpush1.bf16.msra.mxu0 0
        %4065 = vmatprep.subr.bf16.mxu0 0
        %4066 = vmatpush1.bf16.msra.mxu0 0
        %4067 = vmatprep.subr.bf16.mxu0 0
        %4068 = vmatpush1.bf16.msra.mxu0 0
        %4069 = vmatprep.subr.bf16.mxu0 0
        %4070 = vmatpush1.bf16.msra.mxu0 0
        %4071 = vmatprep.subr.bf16.mxu0 0
        %4072 = vmatpush1.bf16.msra.mxu0 0
        %4073 = vmatprep.subr.bf16.mxu0 0
        %4074 = vmatpush1.bf16.msra.mxu0 0
        %4075 = vmatprep.subr.bf16.mxu0 0
        %4076 = vmatpush1.bf16.msra.mxu0 0
        %4077 = vmatprep.subr.bf16.mxu0 0
        %4078 = vmatpush1.bf16.msra.mxu0 0
        %4079 = vmatprep.subr.bf16.mxu0 0
        %4080 = vmatpush1.bf16.msra.mxu0 0
        %4081 = vmatprep.subr.bf16.mxu0 0
        %4082 = vmatpush1.bf16.msra.mxu0 0
        %4083 = vmatprep.subr.bf16.mxu0 0
        %4084 = vmatpush1.bf16.msra.mxu0 0
        %4085 = vmatprep.subr.bf16.mxu0 0
        %4086 = vmatpush1.bf16.msra.mxu0 0
        %4087 = vmatprep.subr.bf16.mxu0 0
        %4088 = vmatpush1.bf16.msra.mxu0 0
        %4089 = vmatprep.subr.bf16.mxu0 0
        %4090 = vmatpush1.bf16.msra.mxu0 0
        %4091 = vmatprep.mubr.bf16.mxu0 0
        %4092 = vmatmul.mubr.bf16.gmra.mrb[0].mxu0 %v4045
        %v4093 = vpop.f32.mrb[0].mxu0
        %v4094 = vadd.f32 0.0, %v4093
        %v4095 = vpop.f32.mrb[0].mxu0
        %v4096 = vpop.f32.mrb[0].mxu0
        %v4097 = vadd.f32 0.0, %v4096
        %v4098 = vpop.f32.mrb[0].mxu0
        %4099 = vmatprep.mubr.bf16.mxu0 0
        %4100 = vmatmul.mubr.bf16.gmra.mrb[0].mxu0 %v4048
        %v4101 = vpop.f32.mrb[0].mxu0
        %v4102 = vadd.f32 0.0, %v4101
        %v4103 = vpop.f32.mrb[0].mxu0
        %v4104 = vpop.f32.mrb[0].mxu0
        %v4105 = vadd.f32 0.0, %v4104
        %v4106 = vpop.f32.mrb[0].mxu0
        %4107 = vmatprep.mubr.bf16.mxu0 0
        %4108 = vmatmul.mubr.bf16.gmra.mrb[0].mxu0 %v4051
        %v4109 = vpop.f32.mrb[0].mxu0
        %v4110 = vadd.f32 0.0, %v4109
        %v4111 = vpop.f32.mrb[0].mxu0
        %v4112 = vpop.f32.mrb[0].mxu0
        %v4113 = vadd.f32 0.0, %v4112
        %v4114 = vpop.f32.mrb[0].mxu0
        %4115 = vmatprep.mubr.bf16.mxu0 0
        %4116 = vmatmul.mubr.bf16.gmra.mrb[0].mxu0 %v4054
        %v4117 = vpop.f32.mrb[0].mxu0
        %v4118 = vadd.f32 0.0, %v4117
        %v4119 = vpop.f32.mrb[0].mxu0
        %v4120 = vpop.f32.mrb[0].mxu0
        %v4121 = vadd.f32 0.0, %v4120
        %v4122 = vpop.f32.mrb[0].mxu0
        %4123 = vdwg.mxu0
        %v4124 = vadd.f32 %v4008, %v4094
        %v4125 = vadd.f32 %v4011, %v4097
        %v4126 = vadd.f32 %v4016, %v4102
        %v4127 = vadd.f32 %v4019, %v4105
        %v4128 = vadd.f32 %v4024, %v4110
        %v4129 = vadd.f32 %v4027, %v4113
        %v4130 = vadd.f32 %v4032, %v4118
        %v4131 = vadd.f32 %v4035, %v4121
        %v4132 = vld [vmem:[#allocation23] sm:$0x1]
        %v4134 = vlaneseq
        %v4135 = vshrl.u32 %v4134, 7
        %v4136 = vsub.s32 0, %v4135
        %v4137 = vrot.slane %v4132, %v4136
        %v4139 = vadd.f32 %v4124, %v4137
        %v4140 = vadd.f32 %v4125, %v4137
        %v4141 = vadd.f32 %v4126, %v4137
        %v4142 = vadd.f32 %v4127, %v4137
        %v4143 = vadd.f32 %v4128, %v4137
        %v4144 = vadd.f32 %v4129, %v4137
        %v4145 = vadd.f32 %v4130, %v4137
        %v4146 = vadd.f32 %v4131, %v4137
        %v4147 = vsel %vm3131, %v3722, 0.0
        %v4148 = vsel %vm3131, %v3723, 0.0
        %v4149 = vadd.f32 %v4147, %v4148
        %v4150 = vsel %vm3131, %v3724, 0.0
        %v4151 = vadd.f32 %v4149, %v4150
        %v4152 = vsel %vm3131, %v3725, 0.0
        %v4153 = vadd.f32 %v4151, %v4152
        %v4154 = vsel %vm3131, %v3726, 0.0
        %v4155 = vadd.f32 %v4153, %v4154
        %v4156 = vsel %vm3131, %v3727, 0.0
        %v4157 = vadd.f32 %v4155, %v4156
        %v4158 = vsel %vm3131, %v3728, 0.0
        %v4159 = vadd.f32 %v4157, %v4158
        %v4160 = vsel %vm3131, %v3729, 0.0
        %v4161 = vadd.f32 %v4159, %v4160
        %v4162 = vrot.slane %v4161, 4
        %v4163 = vadd.f32 %v4161, %v4162
        %v4164 = vrot.slane %v4163, 2
        %v4165 = vadd.f32 %v4163, %v4164
        %v4166 = vrot.slane %v4165, 1
        %v4167 = vadd.f32 %v4165, %v4166
        %v4168 = vrcp.pop 64.0
        %v4169 = vmul.f32 %v4167, %v4168
        %v4170 = vsel %vm3877, %v4139, 0.0
        %v4171 = vsel %vm3877, %v4140, 0.0
        %v4172 = vadd.f32 %v4170, %v4171
        %v4173 = vsel %vm3877, %v4141, 0.0
        %v4174 = vadd.f32 %v4172, %v4173
        %v4175 = vsel %vm3877, %v4142, 0.0
        %v4176 = vadd.f32 %v4174, %v4175
        %v4177 = vsel %vm3877, %v4143, 0.0
        %v4178 = vadd.f32 %v4176, %v4177
        %v4179 = vsel %vm3877, %v4144, 0.0
        %v4180 = vadd.f32 %v4178, %v4179
        %v4181 = vsel %vm3877, %v4145, 0.0
        %v4182 = vadd.f32 %v4180, %v4181
        %v4183 = vsel %vm3877, %v4146, 0.0
        %v4184 = vadd.f32 %v4182, %v4183
        %v4185 = vrot.slane %v4184, 4
        %v4186 = vadd.f32 %v4184, %v4185
        %v4187 = vrot.slane %v4186, 2
        %v4188 = vadd.f32 %v4186, %v4187
        %v4189 = vrot.slane %v4188, 1
        %v4190 = vadd.f32 %v4188, %v4189
        %v4191 = vmul.f32 %v4190, %v4168
        %v4192 = vld [vmem:[#allocation25] sm:$0xff]
        %v4193 = vpack.c.bf16 %v4169, %v4169
        %v4194 = vpack.c.bf16 %v4192, %v4192
        %v4195 = vld [vmem:[#allocation26] sm:$0xff]
        %v4196 = vld [vmem:[#allocation26 + $0x8] sm:$0xff]
        %v4197 = vld [vmem:[#allocation26 + $0x10] sm:$0xff]
        %v4198 = vpack.c.bf16 %v4191, %v4191
        %v4199 = vpack.c.bf16 %v4196, %v4195
        %v4200 = vpack.c.bf16 %v4197, %v4197
        %v4202 = vsel %vm3877, %v4198, 0
        %v4205 = vsel %vm3144, %v4200, 0
        %4207 = vmatprep.subr.bf16.mxu0 0
        %4208 = vmatpush1.bf16.msra.mxu0 %v4199
        %4209 = vmatprep.subr.bf16.mxu0 0
        %4210 = vmatpush1.bf16.msra.mxu0 %v4205
        %4211 = vmatprep.subr.bf16.mxu0 0
        %4212 = vmatpush1.bf16.msra.mxu0 0
        %4213 = vmatprep.subr.bf16.mxu0 0
        %4214 = vmatpush1.bf16.msra.mxu0 0
        %4215 = vmatprep.subr.bf16.mxu0 0
        %4216 = vmatpush1.bf16.msra.mxu0 0
        %4217 = vmatprep.subr.bf16.mxu0 0
        %4218 = vmatpush1.bf16.msra.mxu0 0
        %4219 = vmatprep.subr.bf16.mxu0 0
        %4220 = vmatpush1.bf16.msra.mxu0 0
        %4221 = vmatprep.subr.bf16.mxu0 0
        %4222 = vmatpush1.bf16.msra.mxu0 0
        %4223 = vmatprep.subr.bf16.mxu0 0
        %4224 = vmatpush1.bf16.msra.mxu0 0
        %4225 = vmatprep.subr.bf16.mxu0 0
        %4226 = vmatpush1.bf16.msra.mxu0 0
        %4227 = vmatprep.subr.bf16.mxu0 0
        %4228 = vmatpush1.bf16.msra.mxu0 0
        %4229 = vmatprep.subr.bf16.mxu0 0
        %4230 = vmatpush1.bf16.msra.mxu0 0
        %4231 = vmatprep.subr.bf16.mxu0 0
        %4232 = vmatpush1.bf16.msra.mxu0 0
        %4233 = vmatprep.subr.bf16.mxu0 0
        %4234 = vmatpush1.bf16.msra.mxu0 0
        %4235 = vmatprep.subr.bf16.mxu0 0
        %4236 = vmatpush1.bf16.msra.mxu0 0
        %4237 = vmatprep.subr.bf16.mxu0 0
        %4238 = vmatpush1.bf16.msra.mxu0 0
        %4239 = vmatprep.mubr.bf16.mxu0 0
        %4240 = vmatmul.mubr.bf16.gmra.mrb[0].mxu0 %v4202
        %v4241 = vpop.f32.mrb[0].mxu0
        %v4242 = vadd.f32 0.0, %v4241
        %v4243 = vpop.f32.mrb[0].mxu0
        %v4244 = vpop.f32.mrb[0].mxu0
        %v4245 = vpop.f32.mrb[0].mxu0
        %4246 = vdwg.mxu0
        %v4248 = vsel %vm3131, %v4193, 0
        %v4251 = vsel %vm3144, %v4194, 0
        %4253 = vmatprep.subr.bf16.mxu0 0
        %4254 = vmatpush1.bf16.msra.mxu0 %v4251
        %4255 = vmatprep.subr.bf16.mxu0 0
        %4256 = vmatpush1.bf16.msra.mxu0 0
        %4257 = vmatprep.subr.bf16.mxu0 0
        %4258 = vmatpush1.bf16.msra.mxu0 0
        %4259 = vmatprep.subr.bf16.mxu0 0
        %4260 = vmatpush1.bf16.msra.mxu0 0
        %4261 = vmatprep.subr.bf16.mxu0 0
        %4262 = vmatpush1.bf16.msra.mxu0 0
        %4263 = vmatprep.subr.bf16.mxu0 0
        %4264 = vmatpush1.bf16.msra.mxu0 0
        %4265 = vmatprep.subr.bf16.mxu0 0
        %4266 = vmatpush1.bf16.msra.mxu0 0
        %4267 = vmatprep.subr.bf16.mxu0 0
        %4268 = vmatpush1.bf16.msra.mxu0 0
        %4269 = vmatprep.subr.bf16.mxu0 0
        %4270 = vmatpush1.bf16.msra.mxu0 0
        %4271 = vmatprep.subr.bf16.mxu0 0
        %4272 = vmatpush1.bf16.msra.mxu0 0
        %4273 = vmatprep.subr.bf16.mxu0 0
        %4274 = vmatpush1.bf16.msra.mxu0 0
        %4275 = vmatprep.subr.bf16.mxu0 0
        %4276 = vmatpush1.bf16.msra.mxu0 0
        %4277 = vmatprep.subr.bf16.mxu0 0
        %4278 = vmatpush1.bf16.msra.mxu0 0
        %4279 = vmatprep.subr.bf16.mxu0 0
        %4280 = vmatpush1.bf16.msra.mxu0 0
        %4281 = vmatprep.subr.bf16.mxu0 0
        %4282 = vmatpush1.bf16.msra.mxu0 0
        %4283 = vmatprep.subr.bf16.mxu0 0
        %4284 = vmatpush1.bf16.msra.mxu0 0
        %4285 = vmatprep.mubr.bf16.mxu0 0
        %4286 = vmatmul.mubr.bf16.gmra.mrb[0].mxu0 %v4248
        %v4287 = vpop.f32.mrb[0].mxu0
        %v4288 = vadd.f32 %v4242, %v4287
        %v4289 = vpop.f32.mrb[0].mxu0
        %v4290 = vpop.f32.mrb[0].mxu0
        %v4291 = vpop.f32.mrb[0].mxu0
        %4292 = vdwg.mxu0
        %v4293 = vld [vmem:[#allocation28] sm:$0x1]
        %v4294 = vadd.f32 %v4288, %v4293
        %v4295 = vmax.f32 %v4294, 0.0
        %v4296 = vld [vmem:[#allocation29] sm:$0xff]
        %v4297 = vld [vmem:[#allocation29 + $0x8] sm:$0xff]
        %v4298 = vpack.c.bf16 %v4295, %v4295
        %v4299 = vpack.c.bf16 %v4297, %v4296
        %v4300 = vld [vmem:[#allocation31] sm:$0x1]
        %vm4301 = vcmask 130048
        %v4303 = vsel %vm4301, %v4298, 0
        %4305 = vmatprep.subr.bf16.mxu0 0
        %4306 = vmatpush1.bf16.msra.mxu0 %v4299
        %4307 = vmatprep.subr.bf16.mxu0 0
        %4308 = vmatpush1.bf16.msra.mxu0 0
        %4309 = vmatprep.subr.bf16.mxu0 0
        %4310 = vmatpush1.bf16.msra.mxu0 0
        %4311 = vmatprep.subr.bf16.mxu0 0
        %4312 = vmatpush1.bf16.msra.mxu0 0
        %4313 = vmatprep.subr.bf16.mxu0 0
        %4314 = vmatpush1.bf16.msra.mxu0 0
        %4315 = vmatprep.subr.bf16.mxu0 0
        %4316 = vmatpush1.bf16.msra.mxu0 0
        %4317 = vmatprep.subr.bf16.mxu0 0
        %4318 = vmatpush1.bf16.msra.mxu0 0
        %4319 = vmatprep.subr.bf16.mxu0 0
        %4320 = vmatpush1.bf16.msra.mxu0 0
        %4321 = vmatprep.subr.bf16.mxu0 0
        %4322 = vmatpush1.bf16.msra.mxu0 0
        %4323 = vmatprep.subr.bf16.mxu0 0
        %4324 = vmatpush1.bf16.msra.mxu0 0
        %4325 = vmatprep.subr.bf16.mxu0 0
        %4326 = vmatpush1.bf16.msra.mxu0 0
        %4327 = vmatprep.subr.bf16.mxu0 0
        %4328 = vmatpush1.bf16.msra.mxu0 0
        %4329 = vmatprep.subr.bf16.mxu0 0
        %4330 = vmatpush1.bf16.msra.mxu0 0
        %4331 = vmatprep.subr.bf16.mxu0 0
        %4332 = vmatpush1.bf16.msra.mxu0 0
        %4333 = vmatprep.subr.bf16.mxu0 0
        %4334 = vmatpush1.bf16.msra.mxu0 0
        %4335 = vmatprep.subr.bf16.mxu0 0
        %4336 = vmatpush1.bf16.msra.mxu0 0
        %4337 = vmatprep.mubr.bf16.mxu0 0
        %4338 = vmatmul.mubr.bf16.gmra.mrb[0].mxu0 %v4303
        %v4339 = vpop.f32.mrb[0].mxu0
        %v4340 = vadd.f32 %v4300, %v4339
        %v4341 = vpop.f32.mrb[0].mxu0
        %v4342 = vpop.f32.mrb[0].mxu0
        %v4343 = vpop.f32.mrb[0].mxu0
        %4344 = vdwg.mxu0
        %v4345 = vxor.u32 %v4340, 2147483648
        %v4346 = vmul.f32 %v4345, 1.442695
        %v4347 = vpow.pop %v4346
        %v4348 = vadd.f32 %v4347, 1.0
        %v4349 = vrcp.pop %v4348
        %v4350 = vmul.f32 1.0, %v4349
        %v4351 = vld [vmem:[#allocation32] sm:$0xff]
        %v4352 = vld [vmem:[#allocation32 + $0x8] sm:$0xff]
        %v4353 = vpack.c.bf16 %v4352, %v4351
        %v4354 = vld [vmem:[#allocation34] sm:$0x1]
        %4355 = vmatprep.subr.bf16.mxu0 0
        %4356 = vmatpush1.bf16.msra.mxu0 %v4353
        %4357 = vmatprep.subr.bf16.mxu0 0
        %4358 = vmatpush1.bf16.msra.mxu0 0
        %4359 = vmatprep.subr.bf16.mxu0 0
        %4360 = vmatpush1.bf16.msra.mxu0 0
        %4361 = vmatprep.subr.bf16.mxu0 0
        %4362 = vmatpush1.bf16.msra.mxu0 0
        %4363 = vmatprep.subr.bf16.mxu0 0
        %4364 = vmatpush1.bf16.msra.mxu0 0
        %4365 = vmatprep.subr.bf16.mxu0 0
        %4366 = vmatpush1.bf16.msra.mxu0 0
        %4367 = vmatprep.subr.bf16.mxu0 0
        %4368 = vmatpush1.bf16.msra.mxu0 0
        %4369 = vmatprep.subr.bf16.mxu0 0
        %4370 = vmatpush1.bf16.msra.mxu0 0
        %4371 = vmatprep.subr.bf16.mxu0 0
        %4372 = vmatpush1.bf16.msra.mxu0 0
        %4373 = vmatprep.subr.bf16.mxu0 0
        %4374 = vmatpush1.bf16.msra.mxu0 0
        %4375 = vmatprep.subr.bf16.mxu0 0
        %4376 = vmatpush1.bf16.msra.mxu0 0
        %4377 = vmatprep.subr.bf16.mxu0 0
        %4378 = vmatpush1.bf16.msra.mxu0 0
        %4379 = vmatprep.subr.bf16.mxu0 0
        %4380 = vmatpush1.bf16.msra.mxu0 0
        %4381 = vmatprep.subr.bf16.mxu0 0
        %4382 = vmatpush1.bf16.msra.mxu0 0
        %4383 = vmatprep.subr.bf16.mxu0 0
        %4384 = vmatpush1.bf16.msra.mxu0 0
        %4385 = vmatprep.subr.bf16.mxu0 0
        %4386 = vmatpush1.bf16.msra.mxu0 0
        %4387 = vmatprep.mubr.bf16.mxu0 0
        %4388 = vmatmul.mubr.bf16.gmra.mrb[0].mxu0 %v4303
        %v4389 = vpop.f32.mrb[0].mxu0
        %v4390 = vadd.f32 %v4354, %v4389
        %v4391 = vpop.f32.mrb[0].mxu0
        %v4392 = vpop.f32.mrb[0].mxu0
        %v4393 = vpop.f32.mrb[0].mxu0
        %4394 = vdwg.mxu0
        %v4395 = vxor.u32 %v4390, 2147483648
        %v4396 = vmul.f32 %v4395, 1.442695
        %v4397 = vpow.pop %v4396
        %v4398 = vadd.f32 %v4397, 1.0
        %v4399 = vrcp.pop %v4398
        %v4400 = vmul.f32 1.0, %v4399
        %s4401 = sld [smem:[#allocation2]]
        %s4402 = sld [smem:[#allocation2 + $0x1]]
        %s4403 = sld [smem:[#allocation2 + $0x2]]
        %s4404 = sld [smem:[#allocation2 + $0x3]]
        %v4405 = vstv %s4401
        %v4406 = vmul.f32 %v2927, %v4405
        %v4407 = vmul.f32 %v2928, %v4405
        %v4408 = vmul.f32 %v2929, %v4405
        %v4409 = vmul.f32 %v2930, %v4405
        %v4410 = vmul.f32 %v2931, %v4405
        %v4411 = vmul.f32 %v2932, %v4405
        %v4412 = vmul.f32 %v2933, %v4405
        %v4413 = vmul.f32 %v2934, %v4405
        %v4414 = vstv %s4402
        %v4415 = vmul.f32 %v2967, %v4414
        %v4416 = vmul.f32 %v2968, %v4414
        %v4417 = vmul.f32 %v2969, %v4414
        %v4418 = vmul.f32 %v2970, %v4414
        %v4419 = vmul.f32 %v2971, %v4414
        %v4420 = vmul.f32 %v2972, %v4414
        %v4421 = vmul.f32 %v2973, %v4414
        %v4422 = vmul.f32 %v2974, %v4414
        %v4423 = vadd.f32 %v4406, %v4415
        %v4424 = vadd.f32 %v4407, %v4416
        %v4425 = vadd.f32 %v4408, %v4417
        %v4426 = vadd.f32 %v4409, %v4418
        %v4427 = vadd.f32 %v4410, %v4419
        %v4428 = vadd.f32 %v4411, %v4420
        %v4429 = vadd.f32 %v4412, %v4421
        %v4430 = vadd.f32 %v4413, %v4422
        %v4431 = vstv %s4404
        %v4432 = vmul.f32 %v2805, %v4431
        %v4433 = vmul.f32 %v2806, %v4431
        %v4434 = vmul.f32 %v2807, %v4431
        %v4435 = vmul.f32 %v2808, %v4431
        %v4436 = vmul.f32 %v2809, %v4431
        %v4437 = vmul.f32 %v2810, %v4431
        %v4438 = vmul.f32 %v2811, %v4431
        %v4439 = vmul.f32 %v2812, %v4431
        %v4440 = vadd.f32 %v4423, %v4432
        %v4441 = vadd.f32 %v4424, %v4433
        %v4442 = vadd.f32 %v4425, %v4434
        %v4443 = vadd.f32 %v4426, %v4435
        %v4444 = vadd.f32 %v4427, %v4436
        %v4445 = vadd.f32 %v4428, %v4437
        %v4446 = vadd.f32 %v4429, %v4438
        %v4447 = vadd.f32 %v4430, %v4439
        %v4448 = vstv %s4403
        %v4449 = vmul.f32 %v4350, %v4448
        %v4450 = vlaneseq
        %v4451 = vshrl.u32 %v4450, 7
        %v4452 = vsub.s32 0, %v4451
        %v4453 = vrot.slane %v4449, %v4452
        %v4454 = vmul.f32 %v4453, %v3722
        %v4455 = vmul.f32 %v4453, %v3723
        %v4456 = vmul.f32 %v4453, %v3724
        %v4457 = vmul.f32 %v4453, %v3725
        %v4458 = vmul.f32 %v4453, %v3726
        %v4459 = vmul.f32 %v4453, %v3727
        %v4460 = vmul.f32 %v4453, %v3728
        %v4461 = vmul.f32 %v4453, %v3729
        %v4462 = vmul.f32 %v4400, %v4448
        %v4463 = vlaneseq
        %v4464 = vshrl.u32 %v4463, 7
        %v4465 = vsub.s32 0, %v4464
        %v4466 = vrot.slane %v4462, %v4465
        %v4467 = vmul.f32 %v4466, %v4139
        %v4468 = vmul.f32 %v4466, %v4140
        %v4469 = vmul.f32 %v4466, %v4141
        %v4470 = vmul.f32 %v4466, %v4142
        %v4471 = vmul.f32 %v4466, %v4143
        %v4472 = vmul.f32 %v4466, %v4144
        %v4473 = vmul.f32 %v4466, %v4145
        %v4474 = vmul.f32 %v4466, %v4146
        %v4475 = vld [vmem:[#allocation59] sm:$0xff]
        %v4476 = vld [vmem:[#allocation59 + $0x8] sm:$0xff]
        %v4477 = vld [vmem:[#allocation59 + $0x10] sm:$0xff]
        %v4478 = vld [vmem:[#allocation59 + $0x18] sm:$0xff]
        %v4479 = vpack.c.bf16 %v4441, %v4440
        %v4480 = vpack.c.bf16 %v4443, %v4442
        %v4481 = vpack.c.bf16 %v4445, %v4444
        %v4482 = vpack.c.bf16 %v4447, %v4446
        %v4483 = vpack.c.bf16 %v4476, %v4475
        %v4484 = vpack.c.bf16 %v4478, %v4477
        %v4485 = vld [vmem:[#allocation61] sm:$0xff]
        %v4486 = vpack.c.bf16 %v4455, %v4454
        %v4487 = vpack.c.bf16 %v4457, %v4456
        %v4488 = vpack.c.bf16 %v4459, %v4458
        %v4489 = vpack.c.bf16 %v4461, %v4460
        %v4490 = vpack.c.bf16 %v4485, %v4485
        %v4492 = vsel %vm3131, %v4486, 0
        %v4495 = vsel %vm3131, %v4487, 0
        %v4498 = vsel %vm3131, %v4488, 0
        %v4501 = vsel %vm3131, %v4489, 0
        %v4504 = vsel %vm3144, %v4490, 0
        %4506 = vmatprep.subr.bf16.mxu0 0
        %4507 = vmatpush1.bf16.msra.mxu0 %v4504
        %4508 = vmatprep.subr.bf16.mxu0 0
        %4509 = vmatpush1.bf16.msra.mxu0 0
        %4510 = vmatprep.subr.bf16.mxu0 0
        %4511 = vmatpush1.bf16.msra.mxu0 0
        %4512 = vmatprep.subr.bf16.mxu0 0
        %4513 = vmatpush1.bf16.msra.mxu0 0
        %4514 = vmatprep.subr.bf16.mxu0 0
        %4515 = vmatpush1.bf16.msra.mxu0 0
        %4516 = vmatprep.subr.bf16.mxu0 0
        %4517 = vmatpush1.bf16.msra.mxu0 0
        %4518 = vmatprep.subr.bf16.mxu0 0
        %4519 = vmatpush1.bf16.msra.mxu0 0
        %4520 = vmatprep.subr.bf16.mxu0 0
        %4521 = vmatpush1.bf16.msra.mxu0 0
        %4522 = vmatprep.subr.bf16.mxu0 0
        %4523 = vmatpush1.bf16.msra.mxu0 0
        %4524 = vmatprep.subr.bf16.mxu0 0
        %4525 = vmatpush1.bf16.msra.mxu0 0
        %4526 = vmatprep.subr.bf16.mxu0 0
        %4527 = vmatpush1.bf16.msra.mxu0 0
        %4528 = vmatprep.subr.bf16.mxu0 0
        %4529 = vmatpush1.bf16.msra.mxu0 0
        %4530 = vmatprep.subr.bf16.mxu0 0
        %4531 = vmatpush1.bf16.msra.mxu0 0
        %4532 = vmatprep.subr.bf16.mxu0 0
        %4533 = vmatpush1.bf16.msra.mxu0 0
        %4534 = vmatprep.subr.bf16.mxu0 0
        %4535 = vmatpush1.bf16.msra.mxu0 0
        %4536 = vmatprep.subr.bf16.mxu0 0
        %4537 = vmatpush1.bf16.msra.mxu0 0
        %4538 = vmatprep.mubr.bf16.mxu0 0
        %4539 = vmatmul.mubr.bf16.gmra.mrb[0].mxu0 %v4492
        %v4540 = vpop.f32.mrb[0].mxu0
        %v4541 = vadd.f32 0.0, %v4540
        %v4542 = vpop.f32.mrb[0].mxu0
        %v4543 = vpop.f32.mrb[0].mxu0
        %v4544 = vadd.f32 0.0, %v4543
        %v4545 = vpop.f32.mrb[0].mxu0
        %4546 = vmatprep.mubr.bf16.mxu0 0
        %4547 = vmatmul.mubr.bf16.gmra.mrb[0].mxu0 %v4495
        %v4548 = vpop.f32.mrb[0].mxu0
        %v4549 = vadd.f32 0.0, %v4548
        %v4550 = vpop.f32.mrb[0].mxu0
        %v4551 = vpop.f32.mrb[0].mxu0
        %v4552 = vadd.f32 0.0, %v4551
        %v4553 = vpop.f32.mrb[0].mxu0
        %4554 = vmatprep.mubr.bf16.mxu0 0
        %4555 = vmatmul.mubr.bf16.gmra.mrb[0].mxu0 %v4498
        %v4556 = vpop.f32.mrb[0].mxu0
        %v4557 = vadd.f32 0.0, %v4556
        %v4558 = vpop.f32.mrb[0].mxu0
        %v4559 = vpop.f32.mrb[0].mxu0
        %v4560 = vadd.f32 0.0, %v4559
        %v4561 = vpop.f32.mrb[0].mxu0
        %4562 = vmatprep.mubr.bf16.mxu0 0
        %4563 = vmatmul.mubr.bf16.gmra.mrb[0].mxu0 %v4501
        %v4564 = vpop.f32.mrb[0].mxu0
        %v4565 = vadd.f32 0.0, %v4564
        %v4566 = vpop.f32.mrb[0].mxu0
        %v4567 = vpop.f32.mrb[0].mxu0
        %v4568 = vadd.f32 0.0, %v4567
        %v4569 = vpop.f32.mrb[0].mxu0
        %4570 = vdwg.mxu0
        %v4572 = vsel %vm2992, %v4479, 0
        %v4575 = vsel %vm2992, %v4480, 0
        %v4578 = vsel %vm2992, %v4481, 0
        %v4581 = vsel %vm2992, %v4482, 0
        %4583 = vmatprep.subr.bf16.mxu0 0
        %4584 = vmatpush1.bf16.msra.mxu0 %v4483
        %4585 = vmatprep.subr.bf16.mxu0 0
        %4586 = vmatpush1.bf16.msra.mxu0 %v4484
        %4587 = vmatprep.subr.bf16.mxu0 0
        %4588 = vmatpush1.bf16.msra.mxu0 0
        %4589 = vmatprep.subr.bf16.mxu0 0
        %4590 = vmatpush1.bf16.msra.mxu0 0
        %4591 = vmatprep.subr.bf16.mxu0 0
        %4592 = vmatpush1.bf16.msra.mxu0 0
        %4593 = vmatprep.subr.bf16.mxu0 0
        %4594 = vmatpush1.bf16.msra.mxu0 0
        %4595 = vmatprep.subr.bf16.mxu0 0
        %4596 = vmatpush1.bf16.msra.mxu0 0
        %4597 = vmatprep.subr.bf16.mxu0 0
        %4598 = vmatpush1.bf16.msra.mxu0 0
        %4599 = vmatprep.subr.bf16.mxu0 0
        %4600 = vmatpush1.bf16.msra.mxu0 0
        %4601 = vmatprep.subr.bf16.mxu0 0
        %4602 = vmatpush1.bf16.msra.mxu0 0
        %4603 = vmatprep.subr.bf16.mxu0 0
        %4604 = vmatpush1.bf16.msra.mxu0 0
        %4605 = vmatprep.subr.bf16.mxu0 0
        %4606 = vmatpush1.bf16.msra.mxu0 0
        %4607 = vmatprep.subr.bf16.mxu0 0
        %4608 = vmatpush1.bf16.msra.mxu0 0
        %4609 = vmatprep.subr.bf16.mxu0 0
        %4610 = vmatpush1.bf16.msra.mxu0 0
        %4611 = vmatprep.subr.bf16.mxu0 0
        %4612 = vmatpush1.bf16.msra.mxu0 0
        %4613 = vmatprep.subr.bf16.mxu0 0
        %4614 = vmatpush1.bf16.msra.mxu0 0
        %4615 = vmatprep.mubr.bf16.mxu0 0
        %4616 = vmatmul.mubr.bf16.gmra.mrb[0].mxu0 %v4572
        %v4617 = vpop.f32.mrb[0].mxu0
        %v4618 = vadd.f32 %v4541, %v4617
        %v4619 = vpop.f32.mrb[0].mxu0
        %v4620 = vpop.f32.mrb[0].mxu0
        %v4621 = vadd.f32 %v4544, %v4620
        %v4622 = vpop.f32.mrb[0].mxu0
        %4623 = vmatprep.mubr.bf16.mxu0 0
        %4624 = vmatmul.mubr.bf16.gmra.mrb[0].mxu0 %v4575
        %v4625 = vpop.f32.mrb[0].mxu0
        %v4626 = vadd.f32 %v4549, %v4625
        %v4627 = vpop.f32.mrb[0].mxu0
        %v4628 = vpop.f32.mrb[0].mxu0
        %v4629 = vadd.f32 %v4552, %v4628
        %v4630 = vpop.f32.mrb[0].mxu0
        %4631 = vmatprep.mubr.bf16.mxu0 0
        %4632 = vmatmul.mubr.bf16.gmra.mrb[0].mxu0 %v4578
        %v4633 = vpop.f32.mrb[0].mxu0
        %v4634 = vadd.f32 %v4557, %v4633
        %v4635 = vpop.f32.mrb[0].mxu0
        %v4636 = vpop.f32.mrb[0].mxu0
        %v4637 = vadd.f32 %v4560, %v4636
        %v4638 = vpop.f32.mrb[0].mxu0
        %4639 = vmatprep.mubr.bf16.mxu0 0
        %4640 = vmatmul.mubr.bf16.gmra.mrb[0].mxu0 %v4581
        %v4641 = vpop.f32.mrb[0].mxu0
        %v4642 = vadd.f32 %v4565, %v4641
        %v4643 = vpop.f32.mrb[0].mxu0
        %v4644 = vpop.f32.mrb[0].mxu0
        %v4645 = vadd.f32 %v4568, %v4644
        %v4646 = vpop.f32.mrb[0].mxu0
        %4647 = vdwg.mxu0
        %v4648 = vld [vmem:[#allocation62] sm:$0xff]
        %v4649 = vld [vmem:[#allocation62 + $0x8] sm:$0xff]
        %v4650 = vld [vmem:[#allocation62 + $0x10] sm:$0xff]
        %v4651 = vpack.c.bf16 %v4468, %v4467
        %v4652 = vpack.c.bf16 %v4470, %v4469
        %v4653 = vpack.c.bf16 %v4472, %v4471
        %v4654 = vpack.c.bf16 %v4474, %v4473
        %v4655 = vpack.c.bf16 %v4649, %v4648
        %v4656 = vpack.c.bf16 %v4650, %v4650
        %v4658 = vsel %vm3877, %v4651, 0
        %v4661 = vsel %vm3877, %v4652, 0
        %v4664 = vsel %vm3877, %v4653, 0
        %v4667 = vsel %vm3877, %v4654, 0
        %v4670 = vsel %vm3144, %v4656, 0
        %4672 = vmatprep.subr.bf16.mxu0 0
        %4673 = vmatpush1.bf16.msra.mxu0 %v4655
        %4674 = vmatprep.subr.bf16.mxu0 0
        %4675 = vmatpush1.bf16.msra.mxu0 %v4670
        %4676 = vmatprep.subr.bf16.mxu0 0
        %4677 = vmatpush1.bf16.msra.mxu0 0
        %4678 = vmatprep.subr.bf16.mxu0 0
        %4679 = vmatpush1.bf16.msra.mxu0 0
        %4680 = vmatprep.subr.bf16.mxu0 0
        %4681 = vmatpush1.bf16.msra.mxu0 0
        %4682 = vmatprep.subr.bf16.mxu0 0
        %4683 = vmatpush1.bf16.msra.mxu0 0
        %4684 = vmatprep.subr.bf16.mxu0 0
        %4685 = vmatpush1.bf16.msra.mxu0 0
        %4686 = vmatprep.subr.bf16.mxu0 0
        %4687 = vmatpush1.bf16.msra.mxu0 0
        %4688 = vmatprep.subr.bf16.mxu0 0
        %4689 = vmatpush1.bf16.msra.mxu0 0
        %4690 = vmatprep.subr.bf16.mxu0 0
        %4691 = vmatpush1.bf16.msra.mxu0 0
        %4692 = vmatprep.subr.bf16.mxu0 0
        %4693 = vmatpush1.bf16.msra.mxu0 0
        %4694 = vmatprep.subr.bf16.mxu0 0
        %4695 = vmatpush1.bf16.msra.mxu0 0
        %4696 = vmatprep.subr.bf16.mxu0 0
        %4697 = vmatpush1.bf16.msra.mxu0 0
        %4698 = vmatprep.subr.bf16.mxu0 0
        %4699 = vmatpush1.bf16.msra.mxu0 0
        %4700 = vmatprep.subr.bf16.mxu0 0
        %4701 = vmatpush1.bf16.msra.mxu0 0
        %4702 = vmatprep.subr.bf16.mxu0 0
        %4703 = vmatpush1.bf16.msra.mxu0 0
        %4704 = vmatprep.mubr.bf16.mxu0 0
        %4705 = vmatmul.mubr.bf16.gmra.mrb[0].mxu0 %v4658
        %v4706 = vpop.f32.mrb[0].mxu0
        %v4707 = vadd.f32 0.0, %v4706
        %v4708 = vpop.f32.mrb[0].mxu0
        %v4709 = vpop.f32.mrb[0].mxu0
        %v4710 = vadd.f32 0.0, %v4709
        %v4711 = vpop.f32.mrb[0].mxu0
        %4712 = vmatprep.mubr.bf16.mxu0 0
        %4713 = vmatmul.mubr.bf16.gmra.mrb[0].mxu0 %v4661
        %v4714 = vpop.f32.mrb[0].mxu0
        %v4715 = vadd.f32 0.0, %v4714
        %v4716 = vpop.f32.mrb[0].mxu0
        %v4717 = vpop.f32.mrb[0].mxu0
        %v4718 = vadd.f32 0.0, %v4717
        %v4719 = vpop.f32.mrb[0].mxu0
        %4720 = vmatprep.mubr.bf16.mxu0 0
        %4721 = vmatmul.mubr.bf16.gmra.mrb[0].mxu0 %v4664
        %v4722 = vpop.f32.mrb[0].mxu0
        %v4723 = vadd.f32 0.0, %v4722
        %v4724 = vpop.f32.mrb[0].mxu0
        %v4725 = vpop.f32.mrb[0].mxu0
        %v4726 = vadd.f32 0.0, %v4725
        %v4727 = vpop.f32.mrb[0].mxu0
        %4728 = vmatprep.mubr.bf16.mxu0 0
        %4729 = vmatmul.mubr.bf16.gmra.mrb[0].mxu0 %v4667
        %v4730 = vpop.f32.mrb[0].mxu0
        %v4731 = vadd.f32 0.0, %v4730
        %v4732 = vpop.f32.mrb[0].mxu0
        %v4733 = vpop.f32.mrb[0].mxu0
        %v4734 = vadd.f32 0.0, %v4733
        %v4735 = vpop.f32.mrb[0].mxu0
        %4736 = vdwg.mxu0
        %v4737 = vadd.f32 %v4618, %v4707
        %v4738 = vadd.f32 %v4621, %v4710
        %v4739 = vadd.f32 %v4626, %v4715
        %v4740 = vadd.f32 %v4629, %v4718
        %v4741 = vadd.f32 %v4634, %v4723
        %v4742 = vadd.f32 %v4637, %v4726
        %v4743 = vadd.f32 %v4642, %v4731
        %v4744 = vadd.f32 %v4645, %v4734
        %v4745 = vld [vmem:[#allocation64] sm:$0x1]
        %v4747 = vlaneseq
        %v4748 = vshrl.u32 %v4747, 7
        %v4749 = vsub.s32 0, %v4748
        %v4750 = vrot.slane %v4745, %v4749
        %v4752 = vadd.f32 %v4737, %v4750
        %v4753 = vadd.f32 %v4738, %v4750
        %v4754 = vadd.f32 %v4739, %v4750
        %v4755 = vadd.f32 %v4740, %v4750
        %v4756 = vadd.f32 %v4741, %v4750
        %v4757 = vadd.f32 %v4742, %v4750
        %v4758 = vadd.f32 %v4743, %v4750
        %v4759 = vadd.f32 %v4744, %v4750
        %v4760 = vmax.f32 %v4752, 0.0
        %v4761 = vmax.f32 %v4753, 0.0
        %v4762 = vmax.f32 %v4754, 0.0
        %v4763 = vmax.f32 %v4755, 0.0
        %v4764 = vmax.f32 %v4756, 0.0
        %v4765 = vmax.f32 %v4757, 0.0
        %v4766 = vmax.f32 %v4758, 0.0
        %v4767 = vmax.f32 %v4759, 0.0
        %v4768 = vrot.slane %v2813, 7
        %v4769 = vrot.slane %v2814, 7
        %v4770 = vrot.slane %v2815, 7
        %v4771 = vrot.slane %v2816, 7
        %v4772 = vrot.slane %v2817, 7
        %v4773 = vrot.slane %v2818, 7
        %v4774 = vrot.slane %v2819, 7
        %v4775 = vrot.slane %v2820, 7
        %v4776 = vsel %vm2845, %v4774, %v4775
        %v4777 = vsel %vm2845, %v4773, %v4774
        %v4778 = vsel %vm2845, %v4772, %v4773
        %v4779 = vsel %vm2845, %v4771, %v4772
        %v4780 = vsel %vm2845, %v4770, %v4771
        %v4781 = vsel %vm2845, %v4769, %v4770
        %v4782 = vsel %vm2845, %v4768, %v4769
        %v4783 = vsel %vm2845, %v4775, %v4768
        %v4784 = vsel %vm2862, -inf, %v4783
        %v4785 = vsel %vm2863, -inf, %v4782
        %v4786 = vsel %vm2864, -inf, %v4781
        %v4787 = vsel %vm2865, -inf, %v4780
        %v4788 = vsel %vm2866, -inf, %v4779
        %v4789 = vsel %vm2867, -inf, %v4778
        %v4790 = vsel %vm2868, -inf, %v4777
        %v4791 = vsel %vm2869, -inf, %v4776
        %v4792 = vrot.slane %v2813, 1
        %v4793 = vrot.slane %v2814, 1
        %v4794 = vrot.slane %v2815, 1
        %v4795 = vrot.slane %v2816, 1
        %v4796 = vrot.slane %v2817, 1
        %v4797 = vrot.slane %v2818, 1
        %v4798 = vrot.slane %v2819, 1
        %v4799 = vrot.slane %v2820, 1
        %v4800 = vsel %vm2886, %v4798, %v4799
        %v4801 = vsel %vm2886, %v4797, %v4798
        %v4802 = vsel %vm2886, %v4796, %v4797
        %v4803 = vsel %vm2886, %v4795, %v4796
        %v4804 = vsel %vm2886, %v4794, %v4795
        %v4805 = vsel %vm2886, %v4793, %v4794
        %v4806 = vsel %vm2886, %v4792, %v4793
        %v4807 = vsel %vm2886, %v4799, %v4792
        %v4808 = vsel %vm2903, -inf, %v4806
        %v4809 = vsel %vm2904, -inf, %v4805
        %v4810 = vsel %vm2905, -inf, %v4804
        %v4811 = vsel %vm2906, -inf, %v4803
        %v4812 = vsel %vm2907, -inf, %v4802
        %v4813 = vsel %vm2908, -inf, %v4801
        %v4814 = vsel %vm2909, -inf, %v4800
        %v4815 = vsel %vm2910, -inf, %v4807
        %v4816 = vmax.f32 %v4784, %v2813
        %v4817 = vmax.f32 %v4785, %v2814
        %v4818 = vmax.f32 %v4786, %v2815
        %v4819 = vmax.f32 %v4787, %v2816
        %v4820 = vmax.f32 %v4788, %v2817
        %v4821 = vmax.f32 %v4789, %v2818
        %v4822 = vmax.f32 %v4790, %v2819
        %v4823 = vmax.f32 %v4791, %v2820
        %v4824 = vmax.f32 %v4816, %v4808
        %v4825 = vmax.f32 %v4817, %v4809
        %v4826 = vmax.f32 %v4818, %v4810
        %v4827 = vmax.f32 %v4819, %v4811
        %v4828 = vmax.f32 %v4820, %v4812
        %v4829 = vmax.f32 %v4821, %v4813
        %v4830 = vmax.f32 %v4822, %v4814
        %v4831 = vmax.f32 %v4823, %v4815
        %v4832 = vsel %vm2862, 0.0, %v4783
        %v4833 = vsel %vm2863, 0.0, %v4782
        %v4834 = vsel %vm2864, 0.0, %v4781
        %v4835 = vsel %vm2865, 0.0, %v4780
        %v4836 = vsel %vm2866, 0.0, %v4779
        %v4837 = vsel %vm2867, 0.0, %v4778
        %v4838 = vsel %vm2868, 0.0, %v4777
        %v4839 = vsel %vm2869, 0.0, %v4776
        %v4840 = vsel %vm2903, 0.0, %v4806
        %v4841 = vsel %vm2904, 0.0, %v4805
        %v4842 = vsel %vm2905, 0.0, %v4804
        %v4843 = vsel %vm2906, 0.0, %v4803
        %v4844 = vsel %vm2907, 0.0, %v4802
        %v4845 = vsel %vm2908, 0.0, %v4801
        %v4846 = vsel %vm2909, 0.0, %v4800
        %v4847 = vsel %vm2910, 0.0, %v4807
        %v4848 = vadd.f32 %v4832, %v2813
        %v4849 = vadd.f32 %v4833, %v2814
        %v4850 = vadd.f32 %v4834, %v2815
        %v4851 = vadd.f32 %v4835, %v2816
        %v4852 = vadd.f32 %v4836, %v2817
        %v4853 = vadd.f32 %v4837, %v2818
        %v4854 = vadd.f32 %v4838, %v2819
        %v4855 = vadd.f32 %v4839, %v2820
        %v4856 = vadd.f32 %v4848, %v4840
        %v4857 = vadd.f32 %v4849, %v4841
        %v4858 = vadd.f32 %v4850, %v4842
        %v4859 = vadd.f32 %v4851, %v4843
        %v4860 = vadd.f32 %v4852, %v4844
        %v4861 = vadd.f32 %v4853, %v4845
        %v4862 = vadd.f32 %v4854, %v4846
        %v4863 = vadd.f32 %v4855, %v4847
        %v4864 = vmul.f32 %v4856, 0.33333334
        %v4865 = vmul.f32 %v4857, 0.33333334
        %v4866 = vmul.f32 %v4858, 0.33333334
        %v4867 = vmul.f32 %v4859, 0.33333334
        %v4868 = vmul.f32 %v4860, 0.33333334
        %v4869 = vmul.f32 %v4861, 0.33333334
        %v4870 = vmul.f32 %v4862, 0.33333334
        %v4871 = vmul.f32 %v4863, 0.33333334
        %v4872 = vld [vmem:[#allocation35] sm:$0xff]
        %v4873 = vld [vmem:[#allocation35 + $0x8] sm:$0xff]
        %v4874 = vld [vmem:[#allocation35 + $0x10] sm:$0xff]
        %v4875 = vld [vmem:[#allocation35 + $0x18] sm:$0xff]
        %v4876 = vld [vmem:[#allocation35 + $0x20] sm:$0xff]
        %v4877 = vld [vmem:[#allocation35 + $0x28] sm:$0xff]
        %v4878 = vld [vmem:[#allocation35 + $0x30] sm:$0xff]
        %v4879 = vld [vmem:[#allocation35 + $0x38] sm:$0xff]
        %v4880 = vld [vmem:[#allocation35 + $0x40] sm:$0xff]
        %v4881 = vld [vmem:[#allocation35 + $0x48] sm:$0xff]
        %v4882 = vld [vmem:[#allocation35 + $0x50] sm:$0xff]
        %v4883 = vld [vmem:[#allocation35 + $0x58] sm:$0xff]
        %v4884 = vld [vmem:[#allocation35 + $0x60] sm:$0xff]
        %v4885 = vld [vmem:[#allocation35 + $0x68] sm:$0xff]
        %v4886 = vld [vmem:[#allocation35 + $0x70] sm:$0xff]
        %v4887 = vld [vmem:[#allocation35 + $0x78] sm:$0xff]
        %v4888 = vpack.c.bf16 %v2814, %v2813
        %v4889 = vpack.c.bf16 %v2816, %v2815
        %v4890 = vpack.c.bf16 %v2818, %v2817
        %v4891 = vpack.c.bf16 %v2820, %v2819
        %v4892 = vpack.c.bf16 %v4873, %v4872
        %v4893 = vpack.c.bf16 %v4875, %v4874
        %v4894 = vpack.c.bf16 %v4877, %v4876
        %v4895 = vpack.c.bf16 %v4879, %v4878
        %v4896 = vpack.c.bf16 %v4881, %v4880
        %v4897 = vpack.c.bf16 %v4883, %v4882
        %v4898 = vpack.c.bf16 %v4885, %v4884
        %v4899 = vpack.c.bf16 %v4887, %v4886
        %v4900 = vld [vmem:[#allocation37] sm:$0x1]
        %v4902 = vlaneseq
        %v4903 = vshrl.u32 %v4902, 7
        %v4904 = vsub.s32 0, %v4903
        %v4905 = vrot.slane %v4900, %v4904
        %4907 = vmatprep.subr.bf16.mxu0 0
        %4908 = vmatpush1.bf16.msra.mxu0 %v4892
        %4909 = vmatprep.subr.bf16.mxu0 0
        %4910 = vmatpush1.bf16.msra.mxu0 %v4893
        %4911 = vmatprep.subr.bf16.mxu0 0
        %4912 = vmatpush1.bf16.msra.mxu0 %v4894
        %4913 = vmatprep.subr.bf16.mxu0 0
        %4914 = vmatpush1.bf16.msra.mxu0 %v4895
        %4915 = vmatprep.subr.bf16.mxu0 0
        %4916 = vmatpush1.bf16.msra.mxu0 %v4896
        %4917 = vmatprep.subr.bf16.mxu0 0
        %4918 = vmatpush1.bf16.msra.mxu0 %v4897
        %4919 = vmatprep.subr.bf16.mxu0 0
        %4920 = vmatpush1.bf16.msra.mxu0 %v4898
        %4921 = vmatprep.subr.bf16.mxu0 0
        %4922 = vmatpush1.bf16.msra.mxu0 %v4899
        %4923 = vmatprep.subr.bf16.mxu0 0
        %4924 = vmatpush1.bf16.msra.mxu0 0
        %4925 = vmatprep.subr.bf16.mxu0 0
        %4926 = vmatpush1.bf16.msra.mxu0 0
        %4927 = vmatprep.subr.bf16.mxu0 0
        %4928 = vmatpush1.bf16.msra.mxu0 0
        %4929 = vmatprep.subr.bf16.mxu0 0
        %4930 = vmatpush1.bf16.msra.mxu0 0
        %4931 = vmatprep.subr.bf16.mxu0 0
        %4932 = vmatpush1.bf16.msra.mxu0 0
        %4933 = vmatprep.subr.bf16.mxu0 0
        %4934 = vmatpush1.bf16.msra.mxu0 0
        %4935 = vmatprep.subr.bf16.mxu0 0
        %4936 = vmatpush1.bf16.msra.mxu0 0
        %4937 = vmatprep.subr.bf16.mxu0 0
        %4938 = vmatpush1.bf16.msra.mxu0 0
        %4939 = vmatprep.mubr.bf16.mxu0 0
        %4940 = vmatmul.mubr.bf16.gmra.mrb[0].mxu0 %v4888
        %v4941 = vpop.f32.mrb[0].mxu0
        %v4942 = vadd.f32 %v4905, %v4941
        %v4943 = vpop.f32.mrb[0].mxu0
        %v4944 = vpop.f32.mrb[0].mxu0
        %v4945 = vadd.f32 %v4905, %v4944
        %v4946 = vpop.f32.mrb[0].mxu0
        %4947 = vmatprep.mubr.bf16.mxu0 0
        %4948 = vmatmul.mubr.bf16.gmra.mrb[0].mxu0 %v4889
        %v4949 = vpop.f32.mrb[0].mxu0
        %v4950 = vadd.f32 %v4905, %v4949
        %v4951 = vpop.f32.mrb[0].mxu0
        %v4952 = vpop.f32.mrb[0].mxu0
        %v4953 = vadd.f32 %v4905, %v4952
        %v4954 = vpop.f32.mrb[0].mxu0
        %4955 = vmatprep.mubr.bf16.mxu0 0
        %4956 = vmatmul.mubr.bf16.gmra.mrb[0].mxu0 %v4890
        %v4957 = vpop.f32.mrb[0].mxu0
        %v4958 = vadd.f32 %v4905, %v4957
        %v4959 = vpop.f32.mrb[0].mxu0
        %v4960 = vpop.f32.mrb[0].mxu0
        %v4961 = vadd.f32 %v4905, %v4960
        %v4962 = vpop.f32.mrb[0].mxu0
        %4963 = vmatprep.mubr.bf16.mxu0 0
        %4964 = vmatmul.mubr.bf16.gmra.mrb[0].mxu0 %v4891
        %v4965 = vpop.f32.mrb[0].mxu0
        %v4966 = vadd.f32 %v4905, %v4965
        %v4967 = vpop.f32.mrb[0].mxu0
        %v4968 = vpop.f32.mrb[0].mxu0
        %v4969 = vadd.f32 %v4905, %v4968
        %v4970 = vpop.f32.mrb[0].mxu0
        %4971 = vdwg.mxu0
        %v4972 = vrot.slane %v4942, 7
        %v4973 = vrot.slane %v4945, 7
        %v4974 = vrot.slane %v4950, 7
        %v4975 = vrot.slane %v4953, 7
        %v4976 = vrot.slane %v4958, 7
        %v4977 = vrot.slane %v4961, 7
        %v4978 = vrot.slane %v4966, 7
        %v4979 = vrot.slane %v4969, 7
        %v4980 = vsel %vm2845, %v4978, %v4979
        %v4981 = vsel %vm2845, %v4977, %v4978
        %v4982 = vsel %vm2845, %v4976, %v4977
        %v4983 = vsel %vm2845, %v4975, %v4976
        %v4984 = vsel %vm2845, %v4974, %v4975
        %v4985 = vsel %vm2845, %v4973, %v4974
        %v4986 = vsel %vm2845, %v4972, %v4973
        %v4987 = vsel %vm2845, %v4979, %v4972
        %v4988 = vsel %vm2862, 0.0, %v4987
        %v4989 = vsel %vm2863, 0.0, %v4986
        %v4990 = vsel %vm2864, 0.0, %v4985
        %v4991 = vsel %vm2865, 0.0, %v4984
        %v4992 = vsel %vm2866, 0.0, %v4983
        %v4993 = vsel %vm2867, 0.0, %v4982
        %v4994 = vsel %vm2868, 0.0, %v4981
        %v4995 = vsel %vm2869, 0.0, %v4980
        %v4996 = vrot.slane %v4942, 1
        %v4997 = vrot.slane %v4945, 1
        %v4998 = vrot.slane %v4950, 1
        %v4999 = vrot.slane %v4953, 1
        %v5000 = vrot.slane %v4958, 1
        %v5001 = vrot.slane %v4961, 1
        %v5002 = vrot.slane %v4966, 1
        %v5003 = vrot.slane %v4969, 1
        %v5004 = vsel %vm2886, %v5002, %v5003
        %v5005 = vsel %vm2886, %v5001, %v5002
        %v5006 = vsel %vm2886, %v5000, %v5001
        %v5007 = vsel %vm2886, %v4999, %v5000
        %v5008 = vsel %vm2886, %v4998, %v4999
        %v5009 = vsel %vm2886, %v4997, %v4998
        %v5010 = vsel %vm2886, %v4996, %v4997
        %v5011 = vsel %vm2886, %v5003, %v4996
        %v5012 = vsel %vm2903, 0.0, %v5010
        %v5013 = vsel %vm2904, 0.0, %v5009
        %v5014 = vsel %vm2905, 0.0, %v5008
        %v5015 = vsel %vm2906, 0.0, %v5007
        %v5016 = vsel %vm2907, 0.0, %v5006
        %v5017 = vsel %vm2908, 0.0, %v5005
        %v5018 = vsel %vm2909, 0.0, %v5004
        %v5019 = vsel %vm2910, 0.0, %v5011
        %v5020 = vld [vmem:[#allocation38] sm:$0xff]
        %v5021 = vld [vmem:[#allocation38 + $0x8] sm:$0xff]
        %v5022 = vld [vmem:[#allocation38 + $0x10] sm:$0xff]
        %v5023 = vld [vmem:[#allocation38 + $0x18] sm:$0xff]
        %v5024 = vld [vmem:[#allocation38 + $0x20] sm:$0xff]
        %v5025 = vld [vmem:[#allocation38 + $0x28] sm:$0xff]
        %v5026 = vld [vmem:[#allocation38 + $0x30] sm:$0xff]
        %v5027 = vld [vmem:[#allocation38 + $0x38] sm:$0xff]
        %v5028 = vld [vmem:[#allocation38 + $0x40] sm:$0xff]
        %v5029 = vld [vmem:[#allocation38 + $0x48] sm:$0xff]
        %v5030 = vld [vmem:[#allocation38 + $0x50] sm:$0xff]
        %v5031 = vld [vmem:[#allocation38 + $0x58] sm:$0xff]
        %v5032 = vpack.c.bf16 %v4989, %v4988
        %v5033 = vpack.c.bf16 %v4991, %v4990
        %v5034 = vpack.c.bf16 %v4993, %v4992
        %v5035 = vpack.c.bf16 %v4995, %v4994
        %v5036 = vpack.c.bf16 %v5021, %v5020
        %v5037 = vpack.c.bf16 %v5023, %v5022
        %v5038 = vpack.c.bf16 %v4945, %v4942
        %v5039 = vpack.c.bf16 %v4953, %v4950
        %v5040 = vpack.c.bf16 %v4961, %v4958
        %v5041 = vpack.c.bf16 %v4969, %v4966
        %v5042 = vpack.c.bf16 %v5025, %v5024
        %v5043 = vpack.c.bf16 %v5027, %v5026
        %v5045 = vsel %vm2992, %v5038, 0
        %v5048 = vsel %vm2992, %v5039, 0
        %v5051 = vsel %vm2992, %v5040, 0
        %v5054 = vsel %vm2992, %v5041, 0
        %5056 = vmatprep.subr.bf16.mxu0 0
        %5057 = vmatpush1.bf16.msra.mxu0 %v5042
        %5058 = vmatprep.subr.bf16.mxu0 0
        %5059 = vmatpush1.bf16.msra.mxu0 %v5043
        %5060 = vmatprep.subr.bf16.mxu0 0
        %5061 = vmatpush1.bf16.msra.mxu0 0
        %5062 = vmatprep.subr.bf16.mxu0 0
        %5063 = vmatpush1.bf16.msra.mxu0 0
        %5064 = vmatprep.subr.bf16.mxu0 0
        %5065 = vmatpush1.bf16.msra.mxu0 0
        %5066 = vmatprep.subr.bf16.mxu0 0
        %5067 = vmatpush1.bf16.msra.mxu0 0
        %5068 = vmatprep.subr.bf16.mxu0 0
        %5069 = vmatpush1.bf16.msra.mxu0 0
        %5070 = vmatprep.subr.bf16.mxu0 0
        %5071 = vmatpush1.bf16.msra.mxu0 0
        %5072 = vmatprep.subr.bf16.mxu0 0
        %5073 = vmatpush1.bf16.msra.mxu0 0
        %5074 = vmatprep.subr.bf16.mxu0 0
        %5075 = vmatpush1.bf16.msra.mxu0 0
        %5076 = vmatprep.subr.bf16.mxu0 0
        %5077 = vmatpush1.bf16.msra.mxu0 0
        %5078 = vmatprep.subr.bf16.mxu0 0
        %5079 = vmatpush1.bf16.msra.mxu0 0
        %5080 = vmatprep.subr.bf16.mxu0 0
        %5081 = vmatpush1.bf16.msra.mxu0 0
        %5082 = vmatprep.subr.bf16.mxu0 0
        %5083 = vmatpush1.bf16.msra.mxu0 0
        %5084 = vmatprep.subr.bf16.mxu0 0
        %5085 = vmatpush1.bf16.msra.mxu0 0
        %5086 = vmatprep.subr.bf16.mxu0 0
        %5087 = vmatpush1.bf16.msra.mxu0 0
        %5088 = vmatprep.mubr.bf16.mxu0 0
        %5089 = vmatmul.mubr.bf16.gmra.mrb[0].mxu0 %v5045
        %v5090 = vpop.f32.mrb[0].mxu0
        %v5091 = vadd.f32 0.0, %v5090
        %v5092 = vpop.f32.mrb[0].mxu0
        %v5093 = vpop.f32.mrb[0].mxu0
        %v5094 = vadd.f32 0.0, %v5093
        %v5095 = vpop.f32.mrb[0].mxu0
        %5096 = vmatprep.mubr.bf16.mxu0 0
        %5097 = vmatmul.mubr.bf16.gmra.mrb[0].mxu0 %v5048
        %v5098 = vpop.f32.mrb[0].mxu0
        %v5099 = vadd.f32 0.0, %v5098
        %v5100 = vpop.f32.mrb[0].mxu0
        %v5101 = vpop.f32.mrb[0].mxu0
        %v5102 = vadd.f32 0.0, %v5101
        %v5103 = vpop.f32.mrb[0].mxu0
        %5104 = vmatprep.mubr.bf16.mxu0 0
        %5105 = vmatmul.mubr.bf16.gmra.mrb[0].mxu0 %v5051
        %v5106 = vpop.f32.mrb[0].mxu0
        %v5107 = vadd.f32 0.0, %v5106
        %v5108 = vpop.f32.mrb[0].mxu0
        %v5109 = vpop.f32.mrb[0].mxu0
        %v5110 = vadd.f32 0.0, %v5109
        %v5111 = vpop.f32.mrb[0].mxu0
        %5112 = vmatprep.mubr.bf16.mxu0 0
        %5113 = vmatmul.mubr.bf16.gmra.mrb[0].mxu0 %v5054
        %v5114 = vpop.f32.mrb[0].mxu0
        %v5115 = vadd.f32 0.0, %v5114
        %v5116 = vpop.f32.mrb[0].mxu0
        %v5117 = vpop.f32.mrb[0].mxu0
        %v5118 = vadd.f32 0.0, %v5117
        %v5119 = vpop.f32.mrb[0].mxu0
        %5120 = vdwg.mxu0
        %v5122 = vsel %vm2992, %v5032, 0
        %v5125 = vsel %vm2992, %v5033, 0
        %v5128 = vsel %vm2992, %v5034, 0
        %v5131 = vsel %vm2992, %v5035, 0
        %5133 = vmatprep.subr.bf16.mxu0 0
        %5134 = vmatpush1.bf16.msra.mxu0 %v5036
        %5135 = vmatprep.subr.bf16.mxu0 0
        %5136 = vmatpush1.bf16.msra.mxu0 %v5037
        %5137 = vmatprep.subr.bf16.mxu0 0
        %5138 = vmatpush1.bf16.msra.mxu0 0
        %5139 = vmatprep.subr.bf16.mxu0 0
        %5140 = vmatpush1.bf16.msra.mxu0 0
        %5141 = vmatprep.subr.bf16.mxu0 0
        %5142 = vmatpush1.bf16.msra.mxu0 0
        %5143 = vmatprep.subr.bf16.mxu0 0
        %5144 = vmatpush1.bf16.msra.mxu0 0
        %5145 = vmatprep.subr.bf16.mxu0 0
        %5146 = vmatpush1.bf16.msra.mxu0 0
        %5147 = vmatprep.subr.bf16.mxu0 0
        %5148 = vmatpush1.bf16.msra.mxu0 0
        %5149 = vmatprep.subr.bf16.mxu0 0
        %5150 = vmatpush1.bf16.msra.mxu0 0
        %5151 = vmatprep.subr.bf16.mxu0 0
        %5152 = vmatpush1.bf16.msra.mxu0 0
        %5153 = vmatprep.subr.bf16.mxu0 0
        %5154 = vmatpush1.bf16.msra.mxu0 0
        %5155 = vmatprep.subr.bf16.mxu0 0
        %5156 = vmatpush1.bf16.msra.mxu0 0
        %5157 = vmatprep.subr.bf16.mxu0 0
        %5158 = vmatpush1.bf16.msra.mxu0 0
        %5159 = vmatprep.subr.bf16.mxu0 0
        %5160 = vmatpush1.bf16.msra.mxu0 0
        %5161 = vmatprep.subr.bf16.mxu0 0
        %5162 = vmatpush1.bf16.msra.mxu0 0
        %5163 = vmatprep.subr.bf16.mxu0 0
        %5164 = vmatpush1.bf16.msra.mxu0 0
        %5165 = vmatprep.mubr.bf16.mxu0 0
        %5166 = vmatmul.mubr.bf16.gmra.mrb[0].mxu0 %v5122
        %v5167 = vpop.f32.mrb[0].mxu0
        %v5168 = vadd.f32 %v5091, %v5167
        %v5169 = vpop.f32.mrb[0].mxu0
        %v5170 = vpop.f32.mrb[0].mxu0
        %v5171 = vadd.f32 %v5094, %v5170
        %v5172 = vpop.f32.mrb[0].mxu0
        %5173 = vmatprep.mubr.bf16.mxu0 0
        %5174 = vmatmul.mubr.bf16.gmra.mrb[0].mxu0 %v5125
        %v5175 = vpop.f32.mrb[0].mxu0
        %v5176 = vadd.f32 %v5099, %v5175
        %v5177 = vpop.f32.mrb[0].mxu0
        %v5178 = vpop.f32.mrb[0].mxu0
        %v5179 = vadd.f32 %v5102, %v5178
        %v5180 = vpop.f32.mrb[0].mxu0
        %5181 = vmatprep.mubr.bf16.mxu0 0
        %5182 = vmatmul.mubr.bf16.gmra.mrb[0].mxu0 %v5128
        %v5183 = vpop.f32.mrb[0].mxu0
        %v5184 = vadd.f32 %v5107, %v5183
        %v5185 = vpop.f32.mrb[0].mxu0
        %v5186 = vpop.f32.mrb[0].mxu0
        %v5187 = vadd.f32 %v5110, %v5186
        %v5188 = vpop.f32.mrb[0].mxu0
        %5189 = vmatprep.mubr.bf16.mxu0 0
        %5190 = vmatmul.mubr.bf16.gmra.mrb[0].mxu0 %v5131
        %v5191 = vpop.f32.mrb[0].mxu0
        %v5192 = vadd.f32 %v5115, %v5191
        %v5193 = vpop.f32.mrb[0].mxu0
        %v5194 = vpop.f32.mrb[0].mxu0
        %v5195 = vadd.f32 %v5118, %v5194
        %v5196 = vpop.f32.mrb[0].mxu0
        %5197 = vdwg.mxu0
        %v5198 = vpack.c.bf16 %v5013, %v5012
        %v5199 = vpack.c.bf16 %v5015, %v5014
        %v5200 = vpack.c.bf16 %v5017, %v5016
        %v5201 = vpack.c.bf16 %v5019, %v5018
        %v5202 = vpack.c.bf16 %v5029, %v5028
        %v5203 = vpack.c.bf16 %v5031, %v5030
        %v5205 = vsel %vm2992, %v5198, 0
        %v5208 = vsel %vm2992, %v5199, 0
        %v5211 = vsel %vm2992, %v5200, 0
        %v5214 = vsel %vm2992, %v5201, 0
        %5216 = vmatprep.subr.bf16.mxu0 0
        %5217 = vmatpush1.bf16.msra.mxu0 %v5202
        %5218 = vmatprep.subr.bf16.mxu0 0
        %5219 = vmatpush1.bf16.msra.mxu0 %v5203
        %5220 = vmatprep.subr.bf16.mxu0 0
        %5221 = vmatpush1.bf16.msra.mxu0 0
        %5222 = vmatprep.subr.bf16.mxu0 0
        %5223 = vmatpush1.bf16.msra.mxu0 0
        %5224 = vmatprep.subr.bf16.mxu0 0
        %5225 = vmatpush1.bf16.msra.mxu0 0
        %5226 = vmatprep.subr.bf16.mxu0 0
        %5227 = vmatpush1.bf16.msra.mxu0 0
        %5228 = vmatprep.subr.bf16.mxu0 0
        %5229 = vmatpush1.bf16.msra.mxu0 0
        %5230 = vmatprep.subr.bf16.mxu0 0
        %5231 = vmatpush1.bf16.msra.mxu0 0
        %5232 = vmatprep.subr.bf16.mxu0 0
        %5233 = vmatpush1.bf16.msra.mxu0 0
        %5234 = vmatprep.subr.bf16.mxu0 0
        %5235 = vmatpush1.bf16.msra.mxu0 0
        %5236 = vmatprep.subr.bf16.mxu0 0
        %5237 = vmatpush1.bf16.msra.mxu0 0
        %5238 = vmatprep.subr.bf16.mxu0 0
        %5239 = vmatpush1.bf16.msra.mxu0 0
        %5240 = vmatprep.subr.bf16.mxu0 0
        %5241 = vmatpush1.bf16.msra.mxu0 0
        %5242 = vmatprep.subr.bf16.mxu0 0
        %5243 = vmatpush1.bf16.msra.mxu0 0
        %5244 = vmatprep.subr.bf16.mxu0 0
        %5245 = vmatpush1.bf16.msra.mxu0 0
        %5246 = vmatprep.subr.bf16.mxu0 0
        %5247 = vmatpush1.bf16.msra.mxu0 0
        %5248 = vmatprep.mubr.bf16.mxu0 0
        %5249 = vmatmul.mubr.bf16.gmra.mrb[0].mxu0 %v5205
        %v5250 = vpop.f32.mrb[0].mxu0
        %v5251 = vadd.f32 0.0, %v5250
        %v5252 = vpop.f32.mrb[0].mxu0
        %v5253 = vpop.f32.mrb[0].mxu0
        %v5254 = vadd.f32 0.0, %v5253
        %v5255 = vpop.f32.mrb[0].mxu0
        %5256 = vmatprep.mubr.bf16.mxu0 0
        %5257 = vmatmul.mubr.bf16.gmra.mrb[0].mxu0 %v5208
        %v5258 = vpop.f32.mrb[0].mxu0
        %v5259 = vadd.f32 0.0, %v5258
        %v5260 = vpop.f32.mrb[0].mxu0
        %v5261 = vpop.f32.mrb[0].mxu0
        %v5262 = vadd.f32 0.0, %v5261
        %v5263 = vpop.f32.mrb[0].mxu0
        %5264 = vmatprep.mubr.bf16.mxu0 0
        %5265 = vmatmul.mubr.bf16.gmra.mrb[0].mxu0 %v5211
        %v5266 = vpop.f32.mrb[0].mxu0
        %v5267 = vadd.f32 0.0, %v5266
        %v5268 = vpop.f32.mrb[0].mxu0
        %v5269 = vpop.f32.mrb[0].mxu0
        %v5270 = vadd.f32 0.0, %v5269
        %v5271 = vpop.f32.mrb[0].mxu0
        %5272 = vmatprep.mubr.bf16.mxu0 0
        %5273 = vmatmul.mubr.bf16.gmra.mrb[0].mxu0 %v5214
        %v5274 = vpop.f32.mrb[0].mxu0
        %v5275 = vadd.f32 0.0, %v5274
        %v5276 = vpop.f32.mrb[0].mxu0
        %v5277 = vpop.f32.mrb[0].mxu0
        %v5278 = vadd.f32 0.0, %v5277
        %v5279 = vpop.f32.mrb[0].mxu0
        %5280 = vdwg.mxu0
        %v5281 = vadd.f32 %v5168, %v5251
        %v5282 = vadd.f32 %v5171, %v5254
        %v5283 = vadd.f32 %v5176, %v5259
        %v5284 = vadd.f32 %v5179, %v5262
        %v5285 = vadd.f32 %v5184, %v5267
        %v5286 = vadd.f32 %v5187, %v5270
        %v5287 = vadd.f32 %v5192, %v5275
        %v5288 = vadd.f32 %v5195, %v5278
        %v5289 = vld [vmem:[#allocation40] sm:$0x1]
        %v5291 = vlaneseq
        %v5292 = vshrl.u32 %v5291, 7
        %v5293 = vsub.s32 0, %v5292
        %v5294 = vrot.slane %v5289, %v5293
        %v5296 = vadd.f32 %v5281, %v5294
        %v5297 = vadd.f32 %v5282, %v5294
        %v5298 = vadd.f32 %v5283, %v5294
        %v5299 = vadd.f32 %v5284, %v5294
        %v5300 = vadd.f32 %v5285, %v5294
        %v5301 = vadd.f32 %v5286, %v5294
        %v5302 = vadd.f32 %v5287, %v5294
        %v5303 = vadd.f32 %v5288, %v5294
        %v5304 = vrot.slane %v5296, 7
        %v5305 = vrot.slane %v5297, 7
        %v5306 = vrot.slane %v5298, 7
        %v5307 = vrot.slane %v5299, 7
        %v5308 = vrot.slane %v5300, 7
        %v5309 = vrot.slane %v5301, 7
        %v5310 = vrot.slane %v5302, 7
        %v5311 = vrot.slane %v5303, 7
        %v5312 = vsel %vm2845, %v5310, %v5311
        %v5313 = vsel %vm2845, %v5309, %v5310
        %v5314 = vsel %vm2845, %v5308, %v5309
        %v5315 = vsel %vm2845, %v5307, %v5308
        %v5316 = vsel %vm2845, %v5306, %v5307
        %v5317 = vsel %vm2845, %v5305, %v5306
        %v5318 = vsel %vm2845, %v5304, %v5305
        %v5319 = vsel %vm2845, %v5311, %v5304
        %v5320 = vsel %vm2862, 0.0, %v5319
        %v5321 = vsel %vm2863, 0.0, %v5318
        %v5322 = vsel %vm2864, 0.0, %v5317
        %v5323 = vsel %vm2865, 0.0, %v5316
        %v5324 = vsel %vm2866, 0.0, %v5315
        %v5325 = vsel %vm2867, 0.0, %v5314
        %v5326 = vsel %vm2868, 0.0, %v5313
        %v5327 = vsel %vm2869, 0.0, %v5312
        %v5328 = vrot.slane %v5296, 1
        %v5329 = vrot.slane %v5297, 1
        %v5330 = vrot.slane %v5298, 1
        %v5331 = vrot.slane %v5299, 1
        %v5332 = vrot.slane %v5300, 1
        %v5333 = vrot.slane %v5301, 1
        %v5334 = vrot.slane %v5302, 1
        %v5335 = vrot.slane %v5303, 1
        %v5336 = vsel %vm2886, %v5334, %v5335
        %v5337 = vsel %vm2886, %v5333, %v5334
        %v5338 = vsel %vm2886, %v5332, %v5333
        %v5339 = vsel %vm2886, %v5331, %v5332
        %v5340 = vsel %vm2886, %v5330, %v5331
        %v5341 = vsel %vm2886, %v5329, %v5330
        %v5342 = vsel %vm2886, %v5328, %v5329
        %v5343 = vsel %vm2886, %v5335, %v5328
        %v5344 = vsel %vm2903, 0.0, %v5342
        %v5345 = vsel %vm2904, 0.0, %v5341
        %v5346 = vsel %vm2905, 0.0, %v5340
        %v5347 = vsel %vm2906, 0.0, %v5339
        %v5348 = vsel %vm2907, 0.0, %v5338
        %v5349 = vsel %vm2908, 0.0, %v5337
        %v5350 = vsel %vm2909, 0.0, %v5336
        %v5351 = vsel %vm2910, 0.0, %v5343
        %v5352 = vld [vmem:[#allocation41] sm:$0xff]
        %v5353 = vld [vmem:[#allocation41 + $0x8] sm:$0xff]
        %v5354 = vld [vmem:[#allocation41 + $0x10] sm:$0xff]
        %v5355 = vld [vmem:[#allocation41 + $0x18] sm:$0xff]
        %v5356 = vld [vmem:[#allocation41 + $0x20] sm:$0xff]
        %v5357 = vld [vmem:[#allocation41 + $0x28] sm:$0xff]
        %v5358 = vld [vmem:[#allocation41 + $0x30] sm:$0xff]
        %v5359 = vld [vmem:[#allocation41 + $0x38] sm:$0xff]
        %v5360 = vld [vmem:[#allocation41 + $0x40] sm:$0xff]
        %v5361 = vld [vmem:[#allocation41 + $0x48] sm:$0xff]
        %v5362 = vld [vmem:[#allocation41 + $0x50] sm:$0xff]
        %v5363 = vld [vmem:[#allocation41 + $0x58] sm:$0xff]
        %v5364 = vpack.c.bf16 %v5321, %v5320
        %v5365 = vpack.c.bf16 %v5323, %v5322
        %v5366 = vpack.c.bf16 %v5325, %v5324
        %v5367 = vpack.c.bf16 %v5327, %v5326
        %v5368 = vpack.c.bf16 %v5353, %v5352
        %v5369 = vpack.c.bf16 %v5355, %v5354
        %v5370 = vpack.c.bf16 %v5297, %v5296
        %v5371 = vpack.c.bf16 %v5299, %v5298
        %v5372 = vpack.c.bf16 %v5301, %v5300
        %v5373 = vpack.c.bf16 %v5303, %v5302
        %v5374 = vpack.c.bf16 %v5357, %v5356
        %v5375 = vpack.c.bf16 %v5359, %v5358
        %v5377 = vsel %vm2992, %v5370, 0
        %v5380 = vsel %vm2992, %v5371, 0
        %v5383 = vsel %vm2992, %v5372, 0
        %v5386 = vsel %vm2992, %v5373, 0
        %5388 = vmatprep.subr.bf16.mxu0 0
        %5389 = vmatpush1.bf16.msra.mxu0 %v5374
        %5390 = vmatprep.subr.bf16.mxu0 0
        %5391 = vmatpush1.bf16.msra.mxu0 %v5375
        %5392 = vmatprep.subr.bf16.mxu0 0
        %5393 = vmatpush1.bf16.msra.mxu0 0
        %5394 = vmatprep.subr.bf16.mxu0 0
        %5395 = vmatpush1.bf16.msra.mxu0 0
        %5396 = vmatprep.subr.bf16.mxu0 0
        %5397 = vmatpush1.bf16.msra.mxu0 0
        %5398 = vmatprep.subr.bf16.mxu0 0
        %5399 = vmatpush1.bf16.msra.mxu0 0
        %5400 = vmatprep.subr.bf16.mxu0 0
        %5401 = vmatpush1.bf16.msra.mxu0 0
        %5402 = vmatprep.subr.bf16.mxu0 0
        %5403 = vmatpush1.bf16.msra.mxu0 0
        %5404 = vmatprep.subr.bf16.mxu0 0
        %5405 = vmatpush1.bf16.msra.mxu0 0
        %5406 = vmatprep.subr.bf16.mxu0 0
        %5407 = vmatpush1.bf16.msra.mxu0 0
        %5408 = vmatprep.subr.bf16.mxu0 0
        %5409 = vmatpush1.bf16.msra.mxu0 0
        %5410 = vmatprep.subr.bf16.mxu0 0
        %5411 = vmatpush1.bf16.msra.mxu0 0
        %5412 = vmatprep.subr.bf16.mxu0 0
        %5413 = vmatpush1.bf16.msra.mxu0 0
        %5414 = vmatprep.subr.bf16.mxu0 0
        %5415 = vmatpush1.bf16.msra.mxu0 0
        %5416 = vmatprep.subr.bf16.mxu0 0
        %5417 = vmatpush1.bf16.msra.mxu0 0
        %5418 = vmatprep.subr.bf16.mxu0 0
        %5419 = vmatpush1.bf16.msra.mxu0 0
        %5420 = vmatprep.mubr.bf16.mxu0 0
        %5421 = vmatmul.mubr.bf16.gmra.mrb[0].mxu0 %v5377
        %v5422 = vpop.f32.mrb[0].mxu0
        %v5423 = vadd.f32 0.0, %v5422
        %v5424 = vpop.f32.mrb[0].mxu0
        %v5425 = vpop.f32.mrb[0].mxu0
        %v5426 = vadd.f32 0.0, %v5425
        %v5427 = vpop.f32.mrb[0].mxu0
        %5428 = vmatprep.mubr.bf16.mxu0 0
        %5429 = vmatmul.mubr.bf16.gmra.mrb[0].mxu0 %v5380
        %v5430 = vpop.f32.mrb[0].mxu0
        %v5431 = vadd.f32 0.0, %v5430
        %v5432 = vpop.f32.mrb[0].mxu0
        %v5433 = vpop.f32.mrb[0].mxu0
        %v5434 = vadd.f32 0.0, %v5433
        %v5435 = vpop.f32.mrb[0].mxu0
        %5436 = vmatprep.mubr.bf16.mxu0 0
        %5437 = vmatmul.mubr.bf16.gmra.mrb[0].mxu0 %v5383
        %v5438 = vpop.f32.mrb[0].mxu0
        %v5439 = vadd.f32 0.0, %v5438
        %v5440 = vpop.f32.mrb[0].mxu0
        %v5441 = vpop.f32.mrb[0].mxu0
        %v5442 = vadd.f32 0.0, %v5441
        %v5443 = vpop.f32.mrb[0].mxu0
        %5444 = vmatprep.mubr.bf16.mxu0 0
        %5445 = vmatmul.mubr.bf16.gmra.mrb[0].mxu0 %v5386
        %v5446 = vpop.f32.mrb[0].mxu0
        %v5447 = vadd.f32 0.0, %v5446
        %v5448 = vpop.f32.mrb[0].mxu0
        %v5449 = vpop.f32.mrb[0].mxu0
        %v5450 = vadd.f32 0.0, %v5449
        %v5451 = vpop.f32.mrb[0].mxu0
        %5452 = vdwg.mxu0
        %v5454 = vsel %vm2992, %v5364, 0
        %v5457 = vsel %vm2992, %v5365, 0
        %v5460 = vsel %vm2992, %v5366, 0
        %v5463 = vsel %vm2992, %v5367, 0
        %5465 = vmatprep.subr.bf16.mxu0 0
        %5466 = vmatpush1.bf16.msra.mxu0 %v5368
        %5467 = vmatprep.subr.bf16.mxu0 0
        %5468 = vmatpush1.bf16.msra.mxu0 %v5369
        %5469 = vmatprep.subr.bf16.mxu0 0
        %5470 = vmatpush1.bf16.msra.mxu0 0
        %5471 = vmatprep.subr.bf16.mxu0 0
        %5472 = vmatpush1.bf16.msra.mxu0 0
        %5473 = vmatprep.subr.bf16.mxu0 0
        %5474 = vmatpush1.bf16.msra.mxu0 0
        %5475 = vmatprep.subr.bf16.mxu0 0
        %5476 = vmatpush1.bf16.msra.mxu0 0
        %5477 = vmatprep.subr.bf16.mxu0 0
        %5478 = vmatpush1.bf16.msra.mxu0 0
        %5479 = vmatprep.subr.bf16.mxu0 0
        %5480 = vmatpush1.bf16.msra.mxu0 0
        %5481 = vmatprep.subr.bf16.mxu0 0
        %5482 = vmatpush1.bf16.msra.mxu0 0
        %5483 = vmatprep.subr.bf16.mxu0 0
        %5484 = vmatpush1.bf16.msra.mxu0 0
        %5485 = vmatprep.subr.bf16.mxu0 0
        %5486 = vmatpush1.bf16.msra.mxu0 0
        %5487 = vmatprep.subr.bf16.mxu0 0
        %5488 = vmatpush1.bf16.msra.mxu0 0
        %5489 = vmatprep.subr.bf16.mxu0 0
        %5490 = vmatpush1.bf16.msra.mxu0 0
        %5491 = vmatprep.subr.bf16.mxu0 0
        %5492 = vmatpush1.bf16.msra.mxu0 0
        %5493 = vmatprep.subr.bf16.mxu0 0
        %5494 = vmatpush1.bf16.msra.mxu0 0
        %5495 = vmatprep.subr.bf16.mxu0 0
        %5496 = vmatpush1.bf16.msra.mxu0 0
        %5497 = vmatprep.mubr.bf16.mxu0 0
        %5498 = vmatmul.mubr.bf16.gmra.mrb[0].mxu0 %v5454
        %v5499 = vpop.f32.mrb[0].mxu0
        %v5500 = vadd.f32 %v5423, %v5499
        %v5501 = vpop.f32.mrb[0].mxu0
        %v5502 = vpop.f32.mrb[0].mxu0
        %v5503 = vadd.f32 %v5426, %v5502
        %v5504 = vpop.f32.mrb[0].mxu0
        %5505 = vmatprep.mubr.bf16.mxu0 0
        %5506 = vmatmul.mubr.bf16.gmra.mrb[0].mxu0 %v5457
        %v5507 = vpop.f32.mrb[0].mxu0
        %v5508 = vadd.f32 %v5431, %v5507
        %v5509 = vpop.f32.mrb[0].mxu0
        %v5510 = vpop.f32.mrb[0].mxu0
        %v5511 = vadd.f32 %v5434, %v5510
        %v5512 = vpop.f32.mrb[0].mxu0
        %5513 = vmatprep.mubr.bf16.mxu0 0
        %5514 = vmatmul.mubr.bf16.gmra.mrb[0].mxu0 %v5460
        %v5515 = vpop.f32.mrb[0].mxu0
        %v5516 = vadd.f32 %v5439, %v5515
        %v5517 = vpop.f32.mrb[0].mxu0
        %v5518 = vpop.f32.mrb[0].mxu0
        %v5519 = vadd.f32 %v5442, %v5518
        %v5520 = vpop.f32.mrb[0].mxu0
        %5521 = vmatprep.mubr.bf16.mxu0 0
        %5522 = vmatmul.mubr.bf16.gmra.mrb[0].mxu0 %v5463
        %v5523 = vpop.f32.mrb[0].mxu0
        %v5524 = vadd.f32 %v5447, %v5523
        %v5525 = vpop.f32.mrb[0].mxu0
        %v5526 = vpop.f32.mrb[0].mxu0
        %v5527 = vadd.f32 %v5450, %v5526
        %v5528 = vpop.f32.mrb[0].mxu0
        %5529 = vdwg.mxu0
        %v5530 = vpack.c.bf16 %v5345, %v5344
        %v5531 = vpack.c.bf16 %v5347, %v5346
        %v5532 = vpack.c.bf16 %v5349, %v5348
        %v5533 = vpack.c.bf16 %v5351, %v5350
        %v5534 = vpack.c.bf16 %v5361, %v5360
        %v5535 = vpack.c.bf16 %v5363, %v5362
        %v5537 = vsel %vm2992, %v5530, 0
        %v5540 = vsel %vm2992, %v5531, 0
        %v5543 = vsel %vm2992, %v5532, 0
        %v5546 = vsel %vm2992, %v5533, 0
        %5548 = vmatprep.subr.bf16.mxu0 0
        %5549 = vmatpush1.bf16.msra.mxu0 %v5534
        %5550 = vmatprep.subr.bf16.mxu0 0
        %5551 = vmatpush1.bf16.msra.mxu0 %v5535
        %5552 = vmatprep.subr.bf16.mxu0 0
        %5553 = vmatpush1.bf16.msra.mxu0 0
        %5554 = vmatprep.subr.bf16.mxu0 0
        %5555 = vmatpush1.bf16.msra.mxu0 0
        %5556 = vmatprep.subr.bf16.mxu0 0
        %5557 = vmatpush1.bf16.msra.mxu0 0
        %5558 = vmatprep.subr.bf16.mxu0 0
        %5559 = vmatpush1.bf16.msra.mxu0 0
        %5560 = vmatprep.subr.bf16.mxu0 0
        %5561 = vmatpush1.bf16.msra.mxu0 0
        %5562 = vmatprep.subr.bf16.mxu0 0
        %5563 = vmatpush1.bf16.msra.mxu0 0
        %5564 = vmatprep.subr.bf16.mxu0 0
        %5565 = vmatpush1.bf16.msra.mxu0 0
        %5566 = vmatprep.subr.bf16.mxu0 0
        %5567 = vmatpush1.bf16.msra.mxu0 0
        %5568 = vmatprep.subr.bf16.mxu0 0
        %5569 = vmatpush1.bf16.msra.mxu0 0
        %5570 = vmatprep.subr.bf16.mxu0 0
        %5571 = vmatpush1.bf16.msra.mxu0 0
        %5572 = vmatprep.subr.bf16.mxu0 0
        %5573 = vmatpush1.bf16.msra.mxu0 0
        %5574 = vmatprep.subr.bf16.mxu0 0
        %5575 = vmatpush1.bf16.msra.mxu0 0
        %5576 = vmatprep.subr.bf16.mxu0 0
        %5577 = vmatpush1.bf16.msra.mxu0 0
        %5578 = vmatprep.subr.bf16.mxu0 0
        %5579 = vmatpush1.bf16.msra.mxu0 0
        %5580 = vmatprep.mubr.bf16.mxu0 0
        %5581 = vmatmul.mubr.bf16.gmra.mrb[0].mxu0 %v5537
        %v5582 = vpop.f32.mrb[0].mxu0
        %v5583 = vadd.f32 0.0, %v5582
        %v5584 = vpop.f32.mrb[0].mxu0
        %v5585 = vpop.f32.mrb[0].mxu0
        %v5586 = vadd.f32 0.0, %v5585
        %v5587 = vpop.f32.mrb[0].mxu0
        %5588 = vmatprep.mubr.bf16.mxu0 0
        %5589 = vmatmul.mubr.bf16.gmra.mrb[0].mxu0 %v5540
        %v5590 = vpop.f32.mrb[0].mxu0
        %v5591 = vadd.f32 0.0, %v5590
        %v5592 = vpop.f32.mrb[0].mxu0
        %v5593 = vpop.f32.mrb[0].mxu0
        %v5594 = vadd.f32 0.0, %v5593
        %v5595 = vpop.f32.mrb[0].mxu0
        %5596 = vmatprep.mubr.bf16.mxu0 0
        %5597 = vmatmul.mubr.bf16.gmra.mrb[0].mxu0 %v5543
        %v5598 = vpop.f32.mrb[0].mxu0
        %v5599 = vadd.f32 0.0, %v5598
        %v5600 = vpop.f32.mrb[0].mxu0
        %v5601 = vpop.f32.mrb[0].mxu0
        %v5602 = vadd.f32 0.0, %v5601
        %v5603 = vpop.f32.mrb[0].mxu0
        %5604 = vmatprep.mubr.bf16.mxu0 0
        %5605 = vmatmul.mubr.bf16.gmra.mrb[0].mxu0 %v5546
        %v5606 = vpop.f32.mrb[0].mxu0
        %v5607 = vadd.f32 0.0, %v5606
        %v5608 = vpop.f32.mrb[0].mxu0
        %v5609 = vpop.f32.mrb[0].mxu0
        %v5610 = vadd.f32 0.0, %v5609
        %v5611 = vpop.f32.mrb[0].mxu0
        %5612 = vdwg.mxu0
        %v5613 = vadd.f32 %v5500, %v5583
        %v5614 = vadd.f32 %v5503, %v5586
        %v5615 = vadd.f32 %v5508, %v5591
        %v5616 = vadd.f32 %v5511, %v5594
        %v5617 = vadd.f32 %v5516, %v5599
        %v5618 = vadd.f32 %v5519, %v5602
        %v5619 = vadd.f32 %v5524, %v5607
        %v5620 = vadd.f32 %v5527, %v5610
        %v5621 = vld [vmem:[#allocation43] sm:$0x1]
        %v5623 = vlaneseq
        %v5624 = vshrl.u32 %v5623, 7
        %v5625 = vsub.s32 0, %v5624
        %v5626 = vrot.slane %v5621, %v5625
        %v5628 = vadd.f32 %v5613, %v5626
        %v5629 = vadd.f32 %v5614, %v5626
        %v5630 = vadd.f32 %v5615, %v5626
        %v5631 = vadd.f32 %v5616, %v5626
        %v5632 = vadd.f32 %v5617, %v5626
        %v5633 = vadd.f32 %v5618, %v5626
        %v5634 = vadd.f32 %v5619, %v5626
        %v5635 = vadd.f32 %v5620, %v5626
        %v5636 = vld [vmem:[#allocation44] sm:$0xff]
        %v5637 = vld [vmem:[#allocation44 + $0x8] sm:$0xff]
        %v5638 = vld [vmem:[#allocation44 + $0x10] sm:$0xff]
        %v5639 = vld [vmem:[#allocation44 + $0x18] sm:$0xff]
        %v5640 = vld [vmem:[#allocation44 + $0x20] sm:$0xff]
        %v5641 = vld [vmem:[#allocation44 + $0x28] sm:$0xff]
        %v5642 = vld [vmem:[#allocation44 + $0x30] sm:$0xff]
        %v5643 = vld [vmem:[#allocation44 + $0x38] sm:$0xff]
        %v5644 = vld [vmem:[#allocation44 + $0x40] sm:$0xff]
        %v5645 = vld [vmem:[#allocation44 + $0x48] sm:$0xff]
        %v5646 = vld [vmem:[#allocation44 + $0x50] sm:$0xff]
        %v5647 = vld [vmem:[#allocation44 + $0x58] sm:$0xff]
        %v5648 = vld [vmem:[#allocation44 + $0x60] sm:$0xff]
        %v5649 = vld [vmem:[#allocation44 + $0x68] sm:$0xff]
        %v5650 = vld [vmem:[#allocation44 + $0x70] sm:$0xff]
        %v5651 = vld [vmem:[#allocation44 + $0x78] sm:$0xff]
        %v5652 = vpack.c.bf16 %v5637, %v5636
        %v5653 = vpack.c.bf16 %v5639, %v5638
        %v5654 = vpack.c.bf16 %v5641, %v5640
        %v5655 = vpack.c.bf16 %v5643, %v5642
        %v5656 = vpack.c.bf16 %v5645, %v5644
        %v5657 = vpack.c.bf16 %v5647, %v5646
        %v5658 = vpack.c.bf16 %v5649, %v5648
        %v5659 = vpack.c.bf16 %v5651, %v5650
        %v5660 = vld [vmem:[#allocation46] sm:$0x1]
        %v5662 = vlaneseq
        %v5663 = vshrl.u32 %v5662, 7
        %v5664 = vsub.s32 0, %v5663
        %v5665 = vrot.slane %v5660, %v5664
        %5667 = vmatprep.subr.bf16.mxu0 0
        %5668 = vmatpush1.bf16.msra.mxu0 %v5652
        %5669 = vmatprep.subr.bf16.mxu0 0
        %5670 = vmatpush1.bf16.msra.mxu0 %v5653
        %5671 = vmatprep.subr.bf16.mxu0 0
        %5672 = vmatpush1.bf16.msra.mxu0 %v5654
        %5673 = vmatprep.subr.bf16.mxu0 0
        %5674 = vmatpush1.bf16.msra.mxu0 %v5655
        %5675 = vmatprep.subr.bf16.mxu0 0
        %5676 = vmatpush1.bf16.msra.mxu0 %v5656
        %5677 = vmatprep.subr.bf16.mxu0 0
        %5678 = vmatpush1.bf16.msra.mxu0 %v5657
        %5679 = vmatprep.subr.bf16.mxu0 0
        %5680 = vmatpush1.bf16.msra.mxu0 %v5658
        %5681 = vmatprep.subr.bf16.mxu0 0
        %5682 = vmatpush1.bf16.msra.mxu0 %v5659
        %5683 = vmatprep.subr.bf16.mxu0 0
        %5684 = vmatpush1.bf16.msra.mxu0 0
        %5685 = vmatprep.subr.bf16.mxu0 0
        %5686 = vmatpush1.bf16.msra.mxu0 0
        %5687 = vmatprep.subr.bf16.mxu0 0
        %5688 = vmatpush1.bf16.msra.mxu0 0
        %5689 = vmatprep.subr.bf16.mxu0 0
        %5690 = vmatpush1.bf16.msra.mxu0 0
        %5691 = vmatprep.subr.bf16.mxu0 0
        %5692 = vmatpush1.bf16.msra.mxu0 0
        %5693 = vmatprep.subr.bf16.mxu0 0
        %5694 = vmatpush1.bf16.msra.mxu0 0
        %5695 = vmatprep.subr.bf16.mxu0 0
        %5696 = vmatpush1.bf16.msra.mxu0 0
        %5697 = vmatprep.subr.bf16.mxu0 0
        %5698 = vmatpush1.bf16.msra.mxu0 0
        %5699 = vmatprep.mubr.bf16.mxu0 0
        %5700 = vmatmul.mubr.bf16.gmra.mrb[0].mxu0 %v4888
        %v5701 = vpop.f32.mrb[0].mxu0
        %v5702 = vadd.f32 %v5665, %v5701
        %v5703 = vpop.f32.mrb[0].mxu0
        %v5704 = vpop.f32.mrb[0].mxu0
        %v5705 = vadd.f32 %v5665, %v5704
        %v5706 = vpop.f32.mrb[0].mxu0
        %5707 = vmatprep.mubr.bf16.mxu0 0
        %5708 = vmatmul.mubr.bf16.gmra.mrb[0].mxu0 %v4889
        %v5709 = vpop.f32.mrb[0].mxu0
        %v5710 = vadd.f32 %v5665, %v5709
        %v5711 = vpop.f32.mrb[0].mxu0
        %v5712 = vpop.f32.mrb[0].mxu0
        %v5713 = vadd.f32 %v5665, %v5712
        %v5714 = vpop.f32.mrb[0].mxu0
        %5715 = vmatprep.mubr.bf16.mxu0 0
        %5716 = vmatmul.mubr.bf16.gmra.mrb[0].mxu0 %v4890
        %v5717 = vpop.f32.mrb[0].mxu0
        %v5718 = vadd.f32 %v5665, %v5717
        %v5719 = vpop.f32.mrb[0].mxu0
        %v5720 = vpop.f32.mrb[0].mxu0
        %v5721 = vadd.f32 %v5665, %v5720
        %v5722 = vpop.f32.mrb[0].mxu0
        %5723 = vmatprep.mubr.bf16.mxu0 0
        %5724 = vmatmul.mubr.bf16.gmra.mrb[0].mxu0 %v4891
        %v5725 = vpop.f32.mrb[0].mxu0
        %v5726 = vadd.f32 %v5665, %v5725
        %v5727 = vpop.f32.mrb[0].mxu0
        %v5728 = vpop.f32.mrb[0].mxu0
        %v5729 = vadd.f32 %v5665, %v5728
        %v5730 = vpop.f32.mrb[0].mxu0
        %5731 = vdwg.mxu0
        %v5732 = vrot.slane %v5702, 7
        %v5733 = vrot.slane %v5705, 7
        %v5734 = vrot.slane %v5710, 7
        %v5735 = vrot.slane %v5713, 7
        %v5736 = vrot.slane %v5718, 7
        %v5737 = vrot.slane %v5721, 7
        %v5738 = vrot.slane %v5726, 7
        %v5739 = vrot.slane %v5729, 7
        %v5740 = vsel %vm2845, %v5738, %v5739
        %v5741 = vsel %vm2845, %v5737, %v5738
        %v5742 = vsel %vm2845, %v5736, %v5737
        %v5743 = vsel %vm2845, %v5735, %v5736
        %v5744 = vsel %vm2845, %v5734, %v5735
        %v5745 = vsel %vm2845, %v5733, %v5734
        %v5746 = vsel %vm2845, %v5732, %v5733
        %v5747 = vsel %vm2845, %v5739, %v5732
        %v5748 = vsel %vm2862, 0.0, %v5747
        %v5749 = vsel %vm2863, 0.0, %v5746
        %v5750 = vsel %vm2864, 0.0, %v5745
        %v5751 = vsel %vm2865, 0.0, %v5744
        %v5752 = vsel %vm2866, 0.0, %v5743
        %v5753 = vsel %vm2867, 0.0, %v5742
        %v5754 = vsel %vm2868, 0.0, %v5741
        %v5755 = vsel %vm2869, 0.0, %v5740
        %v5756 = vrot.slane %v5702, 1
        %v5757 = vrot.slane %v5705, 1
        %v5758 = vrot.slane %v5710, 1
        %v5759 = vrot.slane %v5713, 1
        %v5760 = vrot.slane %v5718, 1
        %v5761 = vrot.slane %v5721, 1
        %v5762 = vrot.slane %v5726, 1
        %v5763 = vrot.slane %v5729, 1
        %v5764 = vsel %vm2886, %v5762, %v5763
        %v5765 = vsel %vm2886, %v5761, %v5762
        %v5766 = vsel %vm2886, %v5760, %v5761
        %v5767 = vsel %vm2886, %v5759, %v5760
        %v5768 = vsel %vm2886, %v5758, %v5759
        %v5769 = vsel %vm2886, %v5757, %v5758
        %v5770 = vsel %vm2886, %v5756, %v5757
        %v5771 = vsel %vm2886, %v5763, %v5756
        %v5772 = vsel %vm2903, 0.0, %v5770
        %v5773 = vsel %vm2904, 0.0, %v5769
        %v5774 = vsel %vm2905, 0.0, %v5768
        %v5775 = vsel %vm2906, 0.0, %v5767
        %v5776 = vsel %vm2907, 0.0, %v5766
        %v5777 = vsel %vm2908, 0.0, %v5765
        %v5778 = vsel %vm2909, 0.0, %v5764
        %v5779 = vsel %vm2910, 0.0, %v5771
        %v5780 = vld [vmem:[%s61] sm:$0xff]
        %v5781 = vld [vmem:[%s61 + $0x8] sm:$0xff]
        %v5782 = vld [vmem:[%s61 + $0x10] sm:$0xff]
        %v5783 = vld [vmem:[%s61 + $0x18] sm:$0xff]
        %v5784 = vld [vmem:[%s61 + $0x20] sm:$0xff]
        %v5785 = vld [vmem:[%s61 + $0x28] sm:$0xff]
        %v5786 = vld [vmem:[%s61 + $0x30] sm:$0xff]
        %v5787 = vld [vmem:[%s61 + $0x38] sm:$0xff]
        %v5788 = vld [vmem:[%s61 + $0x40] sm:$0xff]
        %v5789 = vld [vmem:[%s61 + $0x48] sm:$0xff]
        %v5790 = vld [vmem:[%s61 + $0x50] sm:$0xff]
        %v5791 = vld [vmem:[%s61 + $0x58] sm:$0xff]
        %v5792 = vld [vmem:[%s61 + $0x60] sm:$0xff]
        %v5793 = vld [vmem:[%s61 + $0x68] sm:$0xff]
        %v5794 = vld [vmem:[%s61 + $0x70] sm:$0xff]
        %v5795 = vld [vmem:[%s61 + $0x78] sm:$0xff]
        %v5796 = vld [vmem:[%s61 + $0x80] sm:$0xff]
        %v5797 = vld [vmem:[%s61 + $0x88] sm:$0xff]
        %v5798 = vld [vmem:[%s61 + $0x90] sm:$0xff]
        %v5799 = vld [vmem:[%s61 + $0x98] sm:$0xff]
        %v5800 = vld [vmem:[%s61 + $0xa0] sm:$0xff]
        %v5801 = vld [vmem:[%s61 + $0xa8] sm:$0xff]
        %v5802 = vld [vmem:[%s61 + $0xb0] sm:$0xff]
        %v5803 = vld [vmem:[%s61 + $0xb8] sm:$0xff]
        %v5804 = vld [vmem:[%s61 + $0xc0] sm:$0xff]
        %v5805 = vld [vmem:[%s61 + $0xc8] sm:$0xff]
        %v5806 = vld [vmem:[%s61 + $0xd0] sm:$0xff]
        %v5807 = vld [vmem:[%s61 + $0xd8] sm:$0xff]
        %v5808 = vld [vmem:[%s61 + $0xe0] sm:$0xff]
        %v5809 = vld [vmem:[%s61 + $0xe8] sm:$0xff]
        %v5810 = vld [vmem:[%s61 + $0xf0] sm:$0xff]
        %v5811 = vld [vmem:[%s61 + $0xf8] sm:$0xff]
        %v5812 = vld [vmem:[%s61 + $0x100] sm:$0xff]
        %v5813 = vld [vmem:[%s61 + $0x108] sm:$0xff]
        %v5814 = vld [vmem:[%s61 + $0x110] sm:$0xff]
        %v5815 = vld [vmem:[%s61 + $0x118] sm:$0xff]
        %v5816 = vpack.c.bf16 %v5749, %v5748
        %v5817 = vpack.c.bf16 %v5751, %v5750
        %v5818 = vpack.c.bf16 %v5753, %v5752
        %v5819 = vpack.c.bf16 %v5755, %v5754
        %v5820 = vpack.c.bf16 %v5781, %v5780
        %v5821 = vpack.c.bf16 %v5783, %v5782
        %v5822 = vpack.c.bf16 %v5785, %v5784
        %v5823 = vpack.c.bf16 %v5787, %v5786
        %v5824 = vpack.c.bf16 %v5789, %v5788
        %v5825 = vpack.c.bf16 %v5791, %v5790
        %v5826 = vpack.c.bf16 %v5705, %v5702
        %v5827 = vpack.c.bf16 %v5713, %v5710
        %v5828 = vpack.c.bf16 %v5721, %v5718
        %v5829 = vpack.c.bf16 %v5729, %v5726
        %v5830 = vpack.c.bf16 %v5793, %v5792
        %v5831 = vpack.c.bf16 %v5795, %v5794
        %v5832 = vpack.c.bf16 %v5797, %v5796
        %v5833 = vpack.c.bf16 %v5799, %v5798
        %v5834 = vpack.c.bf16 %v5801, %v5800
        %v5835 = vpack.c.bf16 %v5803, %v5802
        %vm5836 = vcmask 785408
        %v5838 = vsel %vm5836, %v5826, 0
        %v5841 = vsel %vm5836, %v5827, 0
        %v5844 = vsel %vm5836, %v5828, 0
        %v5847 = vsel %vm5836, %v5829, 0
        %5849 = vmatprep.subr.bf16.mxu0 0
        %5850 = vmatpush1.bf16.msra.mxu0 %v5830
        %5851 = vmatprep.subr.bf16.mxu0 0
        %5852 = vmatpush1.bf16.msra.mxu0 %v5831
        %5853 = vmatprep.subr.bf16.mxu0 0
        %5854 = vmatpush1.bf16.msra.mxu0 %v5832
        %5855 = vmatprep.subr.bf16.mxu0 0
        %5856 = vmatpush1.bf16.msra.mxu0 %v5833
        %5857 = vmatprep.subr.bf16.mxu0 0
        %5858 = vmatpush1.bf16.msra.mxu0 %v5834
        %5859 = vmatprep.subr.bf16.mxu0 0
        %5860 = vmatpush1.bf16.msra.mxu0 %v5835
        %5861 = vmatprep.subr.bf16.mxu0 0
        %5862 = vmatpush1.bf16.msra.mxu0 0
        %5863 = vmatprep.subr.bf16.mxu0 0
        %5864 = vmatpush1.bf16.msra.mxu0 0
        %5865 = vmatprep.subr.bf16.mxu0 0
        %5866 = vmatpush1.bf16.msra.mxu0 0
        %5867 = vmatprep.subr.bf16.mxu0 0
        %5868 = vmatpush1.bf16.msra.mxu0 0
        %5869 = vmatprep.subr.bf16.mxu0 0
        %5870 = vmatpush1.bf16.msra.mxu0 0
        %5871 = vmatprep.subr.bf16.mxu0 0
        %5872 = vmatpush1.bf16.msra.mxu0 0
        %5873 = vmatprep.subr.bf16.mxu0 0
        %5874 = vmatpush1.bf16.msra.mxu0 0
        %5875 = vmatprep.subr.bf16.mxu0 0
        %5876 = vmatpush1.bf16.msra.mxu0 0
        %5877 = vmatprep.subr.bf16.mxu0 0
        %5878 = vmatpush1.bf16.msra.mxu0 0
        %5879 = vmatprep.subr.bf16.mxu0 0
        %5880 = vmatpush1.bf16.msra.mxu0 0
        %5881 = vmatprep.mubr.bf16.mxu0 0
        %5882 = vmatmul.mubr.bf16.gmra.mrb[0].mxu0 %v5838
        %v5883 = vpop.f32.mrb[0].mxu0
        %v5884 = vadd.f32 0.0, %v5883
        %v5885 = vpop.f32.mrb[0].mxu0
        %v5886 = vpop.f32.mrb[0].mxu0
        %v5887 = vadd.f32 0.0, %v5886
        %v5888 = vpop.f32.mrb[0].mxu0
        %5889 = vmatprep.mubr.bf16.mxu0 0
        %5890 = vmatmul.mubr.bf16.gmra.mrb[0].mxu0 %v5841
        %v5891 = vpop.f32.mrb[0].mxu0
        %v5892 = vadd.f32 0.0, %v5891
        %v5893 = vpop.f32.mrb[0].mxu0
        %v5894 = vpop.f32.mrb[0].mxu0
        %v5895 = vadd.f32 0.0, %v5894
        %v5896 = vpop.f32.mrb[0].mxu0
        %5897 = vmatprep.mubr.bf16.mxu0 0
        %5898 = vmatmul.mubr.bf16.gmra.mrb[0].mxu0 %v5844
        %v5899 = vpop.f32.mrb[0].mxu0
        %v5900 = vadd.f32 0.0, %v5899
        %v5901 = vpop.f32.mrb[0].mxu0
        %v5902 = vpop.f32.mrb[0].mxu0
        %v5903 = vadd.f32 0.0, %v5902
        %v5904 = vpop.f32.mrb[0].mxu0
        %5905 = vmatprep.mubr.bf16.mxu0 0
        %5906 = vmatmul.mubr.bf16.gmra.mrb[0].mxu0 %v5847
        %v5907 = vpop.f32.mrb[0].mxu0
        %v5908 = vadd.f32 0.0, %v5907
        %v5909 = vpop.f32.mrb[0].mxu0
        %v5910 = vpop.f32.mrb[0].mxu0
        %v5911 = vadd.f32 0.0, %v5910
        %v5912 = vpop.f32.mrb[0].mxu0
        %5913 = vdwg.mxu0
        %v5915 = vsel %vm5836, %v5816, 0
        %v5918 = vsel %vm5836, %v5817, 0
        %v5921 = vsel %vm5836, %v5818, 0
        %v5924 = vsel %vm5836, %v5819, 0
        %5926 = vmatprep.subr.bf16.mxu0 0
        %5927 = vmatpush1.bf16.msra.mxu0 %v5820
        %5928 = vmatprep.subr.bf16.mxu0 0
        %5929 = vmatpush1.bf16.msra.mxu0 %v5821
        %5930 = vmatprep.subr.bf16.mxu0 0
        %5931 = vmatpush1.bf16.msra.mxu0 %v5822
        %5932 = vmatprep.subr.bf16.mxu0 0
        %5933 = vmatpush1.bf16.msra.mxu0 %v5823
        %5934 = vmatprep.subr.bf16.mxu0 0
        %5935 = vmatpush1.bf16.msra.mxu0 %v5824
        %5936 = vmatprep.subr.bf16.mxu0 0
        %5937 = vmatpush1.bf16.msra.mxu0 %v5825
        %5938 = vmatprep.subr.bf16.mxu0 0
        %5939 = vmatpush1.bf16.msra.mxu0 0
        %5940 = vmatprep.subr.bf16.mxu0 0
        %5941 = vmatpush1.bf16.msra.mxu0 0
        %5942 = vmatprep.subr.bf16.mxu0 0
        %5943 = vmatpush1.bf16.msra.mxu0 0
        %5944 = vmatprep.subr.bf16.mxu0 0
        %5945 = vmatpush1.bf16.msra.mxu0 0
        %5946 = vmatprep.subr.bf16.mxu0 0
        %5947 = vmatpush1.bf16.msra.mxu0 0
        %5948 = vmatprep.subr.bf16.mxu0 0
        %5949 = vmatpush1.bf16.msra.mxu0 0
        %5950 = vmatprep.subr.bf16.mxu0 0
        %5951 = vmatpush1.bf16.msra.mxu0 0
        %5952 = vmatprep.subr.bf16.mxu0 0
        %5953 = vmatpush1.bf16.msra.mxu0 0
        %5954 = vmatprep.subr.bf16.mxu0 0
        %5955 = vmatpush1.bf16.msra.mxu0 0
        %5956 = vmatprep.subr.bf16.mxu0 0
        %5957 = vmatpush1.bf16.msra.mxu0 0
        %5958 = vmatprep.mubr.bf16.mxu0 0
        %5959 = vmatmul.mubr.bf16.gmra.mrb[0].mxu0 %v5915
        %v5960 = vpop.f32.mrb[0].mxu0
        %v5961 = vadd.f32 %v5884, %v5960
        %v5962 = vpop.f32.mrb[0].mxu0
        %v5963 = vpop.f32.mrb[0].mxu0
        %v5964 = vadd.f32 %v5887, %v5963
        %v5965 = vpop.f32.mrb[0].mxu0
        %5966 = vmatprep.mubr.bf16.mxu0 0
        %5967 = vmatmul.mubr.bf16.gmra.mrb[0].mxu0 %v5918
        %v5968 = vpop.f32.mrb[0].mxu0
        %v5969 = vadd.f32 %v5892, %v5968
        %v5970 = vpop.f32.mrb[0].mxu0
        %v5971 = vpop.f32.mrb[0].mxu0
        %v5972 = vadd.f32 %v5895, %v5971
        %v5973 = vpop.f32.mrb[0].mxu0
        %5974 = vmatprep.mubr.bf16.mxu0 0
        %5975 = vmatmul.mubr.bf16.gmra.mrb[0].mxu0 %v5921
        %v5976 = vpop.f32.mrb[0].mxu0
        %v5977 = vadd.f32 %v5900, %v5976
        %v5978 = vpop.f32.mrb[0].mxu0
        %v5979 = vpop.f32.mrb[0].mxu0
        %v5980 = vadd.f32 %v5903, %v5979
        %v5981 = vpop.f32.mrb[0].mxu0
        %5982 = vmatprep.mubr.bf16.mxu0 0
        %5983 = vmatmul.mubr.bf16.gmra.mrb[0].mxu0 %v5924
        %v5984 = vpop.f32.mrb[0].mxu0
        %v5985 = vadd.f32 %v5908, %v5984
        %v5986 = vpop.f32.mrb[0].mxu0
        %v5987 = vpop.f32.mrb[0].mxu0
        %v5988 = vadd.f32 %v5911, %v5987
        %v5989 = vpop.f32.mrb[0].mxu0
        %5990 = vdwg.mxu0
        %v5991 = vpack.c.bf16 %v5773, %v5772
        %v5992 = vpack.c.bf16 %v5775, %v5774
        %v5993 = vpack.c.bf16 %v5777, %v5776
        %v5994 = vpack.c.bf16 %v5779, %v5778
        %v5995 = vpack.c.bf16 %v5805, %v5804
        %v5996 = vpack.c.bf16 %v5807, %v5806
        %v5997 = vpack.c.bf16 %v5809, %v5808
        %v5998 = vpack.c.bf16 %v5811, %v5810
        %v5999 = vpack.c.bf16 %v5813, %v5812
        %v6000 = vpack.c.bf16 %v5815, %v5814
        %v6002 = vsel %vm5836, %v5991, 0
        %v6005 = vsel %vm5836, %v5992, 0
        %v6008 = vsel %vm5836, %v5993, 0
        %v6011 = vsel %vm5836, %v5994, 0
        %6013 = vmatprep.subr.bf16.mxu0 0
        %6014 = vmatpush1.bf16.msra.mxu0 %v5995
        %6015 = vmatprep.subr.bf16.mxu0 0
        %6016 = vmatpush1.bf16.msra.mxu0 %v5996
        %6017 = vmatprep.subr.bf16.mxu0 0
        %6018 = vmatpush1.bf16.msra.mxu0 %v5997
        %6019 = vmatprep.subr.bf16.mxu0 0
        %6020 = vmatpush1.bf16.msra.mxu0 %v5998
        %6021 = vmatprep.subr.bf16.mxu0 0
        %6022 = vmatpush1.bf16.msra.mxu0 %v5999
        %6023 = vmatprep.subr.bf16.mxu0 0
        %6024 = vmatpush1.bf16.msra.mxu0 %v6000
        %6025 = vmatprep.subr.bf16.mxu0 0
        %6026 = vmatpush1.bf16.msra.mxu0 0
        %6027 = vmatprep.subr.bf16.mxu0 0
        %6028 = vmatpush1.bf16.msra.mxu0 0
        %6029 = vmatprep.subr.bf16.mxu0 0
        %6030 = vmatpush1.bf16.msra.mxu0 0
        %6031 = vmatprep.subr.bf16.mxu0 0
        %6032 = vmatpush1.bf16.msra.mxu0 0
        %6033 = vmatprep.subr.bf16.mxu0 0
        %6034 = vmatpush1.bf16.msra.mxu0 0
        %6035 = vmatprep.subr.bf16.mxu0 0
        %6036 = vmatpush1.bf16.msra.mxu0 0
        %6037 = vmatprep.subr.bf16.mxu0 0
        %6038 = vmatpush1.bf16.msra.mxu0 0
        %6039 = vmatprep.subr.bf16.mxu0 0
        %6040 = vmatpush1.bf16.msra.mxu0 0
        %6041 = vmatprep.subr.bf16.mxu0 0
        %6042 = vmatpush1.bf16.msra.mxu0 0
        %6043 = vmatprep.subr.bf16.mxu0 0
        %6044 = vmatpush1.bf16.msra.mxu0 0
        %6045 = vmatprep.mubr.bf16.mxu0 0
        %6046 = vmatmul.mubr.bf16.gmra.mrb[0].mxu0 %v6002
        %v6047 = vpop.f32.mrb[0].mxu0
        %v6048 = vadd.f32 0.0, %v6047
        %v6049 = vpop.f32.mrb[0].mxu0
        %v6050 = vpop.f32.mrb[0].mxu0
        %v6051 = vadd.f32 0.0, %v6050
        %v6052 = vpop.f32.mrb[0].mxu0
        %6053 = vmatprep.mubr.bf16.mxu0 0
        %6054 = vmatmul.mubr.bf16.gmra.mrb[0].mxu0 %v6005
        %v6055 = vpop.f32.mrb[0].mxu0
        %v6056 = vadd.f32 0.0, %v6055
        %v6057 = vpop.f32.mrb[0].mxu0
        %v6058 = vpop.f32.mrb[0].mxu0
        %v6059 = vadd.f32 0.0, %v6058
        %v6060 = vpop.f32.mrb[0].mxu0
        %6061 = vmatprep.mubr.bf16.mxu0 0
        %6062 = vmatmul.mubr.bf16.gmra.mrb[0].mxu0 %v6008
        %v6063 = vpop.f32.mrb[0].mxu0
        %v6064 = vadd.f32 0.0, %v6063
        %v6065 = vpop.f32.mrb[0].mxu0
        %v6066 = vpop.f32.mrb[0].mxu0
        %v6067 = vadd.f32 0.0, %v6066
        %v6068 = vpop.f32.mrb[0].mxu0
        %6069 = vmatprep.mubr.bf16.mxu0 0
        %6070 = vmatmul.mubr.bf16.gmra.mrb[0].mxu0 %v6011
        %v6071 = vpop.f32.mrb[0].mxu0
        %v6072 = vadd.f32 0.0, %v6071
        %v6073 = vpop.f32.mrb[0].mxu0
        %v6074 = vpop.f32.mrb[0].mxu0
        %v6075 = vadd.f32 0.0, %v6074
        %v6076 = vpop.f32.mrb[0].mxu0
        %6077 = vdwg.mxu0
        %v6078 = vadd.f32 %v5961, %v6048
        %v6079 = vadd.f32 %v5964, %v6051
        %v6080 = vadd.f32 %v5969, %v6056
        %v6081 = vadd.f32 %v5972, %v6059
        %v6082 = vadd.f32 %v5977, %v6064
        %v6083 = vadd.f32 %v5980, %v6067
        %v6084 = vadd.f32 %v5985, %v6072
        %v6085 = vadd.f32 %v5988, %v6075
        %v6086 = vld [vmem:[#allocation47] sm:$0x1]
        %v6088 = vlaneseq
        %v6089 = vshrl.u32 %v6088, 7
        %v6090 = vsub.s32 0, %v6089
        %v6091 = vrot.slane %v6086, %v6090
        %v6093 = vadd.f32 %v6078, %v6091
        %v6094 = vadd.f32 %v6079, %v6091
        %v6095 = vadd.f32 %v6080, %v6091
        %v6096 = vadd.f32 %v6081, %v6091
        %v6097 = vadd.f32 %v6082, %v6091
        %v6098 = vadd.f32 %v6083, %v6091
        %v6099 = vadd.f32 %v6084, %v6091
        %v6100 = vadd.f32 %v6085, %v6091
        %v6101 = vsel %vm2992, %v5628, 0.0
        %v6102 = vsel %vm2992, %v5629, 0.0
        %v6103 = vadd.f32 %v6101, %v6102
        %v6104 = vsel %vm2992, %v5630, 0.0
        %v6105 = vadd.f32 %v6103, %v6104
        %v6106 = vsel %vm2992, %v5631, 0.0
        %v6107 = vadd.f32 %v6105, %v6106
        %v6108 = vsel %vm2992, %v5632, 0.0
        %v6109 = vadd.f32 %v6107, %v6108
        %v6110 = vsel %vm2992, %v5633, 0.0
        %v6111 = vadd.f32 %v6109, %v6110
        %v6112 = vsel %vm2992, %v5634, 0.0
        %v6113 = vadd.f32 %v6111, %v6112
        %v6114 = vsel %vm2992, %v5635, 0.0
        %v6115 = vadd.f32 %v6113, %v6114
        %v6116 = vrot.slane %v6115, 4
        %v6117 = vadd.f32 %v6115, %v6116
        %v6118 = vrot.slane %v6117, 2
        %v6119 = vadd.f32 %v6117, %v6118
        %v6120 = vrot.slane %v6119, 1
        %v6121 = vadd.f32 %v6119, %v6120
        %v6122 = vmul.f32 %v6121, %v4168
        %v6123 = vsel %vm5836, %v6093, 0.0
        %v6124 = vsel %vm5836, %v6094, 0.0
        %v6125 = vadd.f32 %v6123, %v6124
        %v6126 = vsel %vm5836, %v6095, 0.0
        %v6127 = vadd.f32 %v6125, %v6126
        %v6128 = vsel %vm5836, %v6096, 0.0
        %v6129 = vadd.f32 %v6127, %v6128
        %v6130 = vsel %vm5836, %v6097, 0.0
        %v6131 = vadd.f32 %v6129, %v6130
        %v6132 = vsel %vm5836, %v6098, 0.0
        %v6133 = vadd.f32 %v6131, %v6132
        %v6134 = vsel %vm5836, %v6099, 0.0
        %v6135 = vadd.f32 %v6133, %v6134
        %v6136 = vsel %vm5836, %v6100, 0.0
        %v6137 = vadd.f32 %v6135, %v6136
        %v6138 = vrot.slane %v6137, 4
        %v6139 = vadd.f32 %v6137, %v6138
        %v6140 = vrot.slane %v6139, 2
        %v6141 = vadd.f32 %v6139, %v6140
        %v6142 = vrot.slane %v6141, 1
        %v6143 = vadd.f32 %v6141, %v6142
        %v6144 = vmul.f32 %v6143, %v4168
        %v6145 = vld [vmem:[#allocation49] sm:$0xff]
        %v6146 = vld [vmem:[#allocation49 + $0x8] sm:$0xff]
        %v6147 = vld [vmem:[#allocation49 + $0x10] sm:$0xff]
        %v6148 = vld [vmem:[#allocation49 + $0x18] sm:$0xff]
        %v6149 = vpack.c.bf16 %v6122, %v6122
        %v6150 = vpack.c.bf16 %v6146, %v6145
        %v6151 = vpack.c.bf16 %v6148, %v6147
        %v6152 = vld [vmem:[#allocation50] sm:$0xff]
        %v6153 = vld [vmem:[#allocation50 + $0x8] sm:$0xff]
        %v6154 = vld [vmem:[#allocation50 + $0x10] sm:$0xff]
        %v6155 = vld [vmem:[#allocation50 + $0x18] sm:$0xff]
        %v6156 = vld [vmem:[#allocation50 + $0x20] sm:$0xff]
        %v6157 = vld [vmem:[#allocation50 + $0x28] sm:$0xff]
        %v6158 = vld [vmem:[#allocation50 + $0x30] sm:$0xff]
        %v6159 = vld [vmem:[#allocation50 + $0x38] sm:$0xff]
        %v6160 = vld [vmem:[#allocation50 + $0x40] sm:$0xff]
        %v6161 = vld [vmem:[#allocation50 + $0x48] sm:$0xff]
        %v6162 = vld [vmem:[#allocation50 + $0x50] sm:$0xff]
        %v6163 = vld [vmem:[#allocation50 + $0x58] sm:$0xff]
        %v6164 = vpack.c.bf16 %v6144, %v6144
        %v6165 = vpack.c.bf16 %v6153, %v6152
        %v6166 = vpack.c.bf16 %v6155, %v6154
        %v6167 = vpack.c.bf16 %v6157, %v6156
        %v6168 = vpack.c.bf16 %v6159, %v6158
        %v6169 = vpack.c.bf16 %v6161, %v6160
        %v6170 = vpack.c.bf16 %v6163, %v6162
        %v6172 = vsel %vm5836, %v6164, 0
        %6174 = vmatprep.subr.bf16.mxu0 0
        %6175 = vmatpush1.bf16.msra.mxu0 %v6165
        %6176 = vmatprep.subr.bf16.mxu0 0
        %6177 = vmatpush1.bf16.msra.mxu0 %v6166
        %6178 = vmatprep.subr.bf16.mxu0 0
        %6179 = vmatpush1.bf16.msra.mxu0 %v6167
        %6180 = vmatprep.subr.bf16.mxu0 0
        %6181 = vmatpush1.bf16.msra.mxu0 %v6168
        %6182 = vmatprep.subr.bf16.mxu0 0
        %6183 = vmatpush1.bf16.msra.mxu0 %v6169
        %6184 = vmatprep.subr.bf16.mxu0 0
        %6185 = vmatpush1.bf16.msra.mxu0 %v6170
        %6186 = vmatprep.subr.bf16.mxu0 0
        %6187 = vmatpush1.bf16.msra.mxu0 0
        %6188 = vmatprep.subr.bf16.mxu0 0
        %6189 = vmatpush1.bf16.msra.mxu0 0
        %6190 = vmatprep.subr.bf16.mxu0 0
        %6191 = vmatpush1.bf16.msra.mxu0 0
        %6192 = vmatprep.subr.bf16.mxu0 0
        %6193 = vmatpush1.bf16.msra.mxu0 0
        %6194 = vmatprep.subr.bf16.mxu0 0
        %6195 = vmatpush1.bf16.msra.mxu0 0
        %6196 = vmatprep.subr.bf16.mxu0 0
        %6197 = vmatpush1.bf16.msra.mxu0 0
        %6198 = vmatprep.subr.bf16.mxu0 0
        %6199 = vmatpush1.bf16.msra.mxu0 0
        %6200 = vmatprep.subr.bf16.mxu0 0
        %6201 = vmatpush1.bf16.msra.mxu0 0
        %6202 = vmatprep.subr.bf16.mxu0 0
        %6203 = vmatpush1.bf16.msra.mxu0 0
        %6204 = vmatprep.subr.bf16.mxu0 0
        %6205 = vmatpush1.bf16.msra.mxu0 0
        %6206 = vmatprep.mubr.bf16.mxu0 0
        %6207 = vmatmul.mubr.bf16.gmra.mrb[0].mxu0 %v6172
        %v6208 = vpop.f32.mrb[0].mxu0
        %v6209 = vadd.f32 0.0, %v6208
        %v6210 = vpop.f32.mrb[0].mxu0
        %v6211 = vpop.f32.mrb[0].mxu0
        %v6212 = vpop.f32.mrb[0].mxu0
        %6213 = vdwg.mxu0
        %v6215 = vsel %vm2992, %v6149, 0
        %6217 = vmatprep.subr.bf16.mxu0 0
        %6218 = vmatpush1.bf16.msra.mxu0 %v6150
        %6219 = vmatprep.subr.bf16.mxu0 0
        %6220 = vmatpush1.bf16.msra.mxu0 %v6151
        %6221 = vmatprep.subr.bf16.mxu0 0
        %6222 = vmatpush1.bf16.msra.mxu0 0
        %6223 = vmatprep.subr.bf16.mxu0 0
        %6224 = vmatpush1.bf16.msra.mxu0 0
        %6225 = vmatprep.subr.bf16.mxu0 0
        %6226 = vmatpush1.bf16.msra.mxu0 0
        %6227 = vmatprep.subr.bf16.mxu0 0
        %6228 = vmatpush1.bf16.msra.mxu0 0
        %6229 = vmatprep.subr.bf16.mxu0 0
        %6230 = vmatpush1.bf16.msra.mxu0 0
        %6231 = vmatprep.subr.bf16.mxu0 0
        %6232 = vmatpush1.bf16.msra.mxu0 0
        %6233 = vmatprep.subr.bf16.mxu0 0
        %6234 = vmatpush1.bf16.msra.mxu0 0
        %6235 = vmatprep.subr.bf16.mxu0 0
        %6236 = vmatpush1.bf16.msra.mxu0 0
        %6237 = vmatprep.subr.bf16.mxu0 0
        %6238 = vmatpush1.bf16.msra.mxu0 0
        %6239 = vmatprep.subr.bf16.mxu0 0
        %6240 = vmatpush1.bf16.msra.mxu0 0
        %6241 = vmatprep.subr.bf16.mxu0 0
        %6242 = vmatpush1.bf16.msra.mxu0 0
        %6243 = vmatprep.subr.bf16.mxu0 0
        %6244 = vmatpush1.bf16.msra.mxu0 0
        %6245 = vmatprep.subr.bf16.mxu0 0
        %6246 = vmatpush1.bf16.msra.mxu0 0
        %6247 = vmatprep.subr.bf16.mxu0 0
        %6248 = vmatpush1.bf16.msra.mxu0 0
        %6249 = vmatprep.mubr.bf16.mxu0 0
        %6250 = vmatmul.mubr.bf16.gmra.mrb[0].mxu0 %v6215
        %v6251 = vpop.f32.mrb[0].mxu0
        %v6252 = vadd.f32 %v6209, %v6251
        %v6253 = vpop.f32.mrb[0].mxu0
        %v6254 = vpop.f32.mrb[0].mxu0
        %v6255 = vpop.f32.mrb[0].mxu0
        %6256 = vdwg.mxu0
        %v6257 = vld [vmem:[#allocation52] sm:$0x1]
        %v6258 = vadd.f32 %v6252, %v6257
        %v6259 = vmax.f32 %v6258, 0.0
        %v6260 = vld [vmem:[#allocation53] sm:$0xff]
        %v6261 = vld [vmem:[#allocation53 + $0x8] sm:$0xff]
        %v6262 = vld [vmem:[#allocation53 + $0x10] sm:$0xff]
        %v6263 = vld [vmem:[#allocation53 + $0x18] sm:$0xff]
        %v6264 = vld [vmem:[#allocation53 + $0x20] sm:$0xff]
        %v6265 = vld [vmem:[#allocation53 + $0x28] sm:$0xff]
        %v6266 = vld [vmem:[#allocation53 + $0x30] sm:$0xff]
        %v6267 = vld [vmem:[#allocation53 + $0x38] sm:$0xff]
        %v6268 = vpack.c.bf16 %v6259, %v6259
        %v6269 = vpack.c.bf16 %v6261, %v6260
        %v6270 = vpack.c.bf16 %v6263, %v6262
        %v6271 = vpack.c.bf16 %v6265, %v6264
        %v6272 = vpack.c.bf16 %v6267, %v6266
        %v6273 = vld [vmem:[#allocation55] sm:$0x1]
        %vm6274 = vcmask 523264
        %v6276 = vsel %vm6274, %v6268, 0
        %6278 = vmatprep.subr.bf16.mxu0 0
        %6279 = vmatpush1.bf16.msra.mxu0 %v6269
        %6280 = vmatprep.subr.bf16.mxu0 0
        %6281 = vmatpush1.bf16.msra.mxu0 %v6270
        %6282 = vmatprep.subr.bf16.mxu0 0
        %6283 = vmatpush1.bf16.msra.mxu0 %v6271
        %6284 = vmatprep.subr.bf16.mxu0 0
        %6285 = vmatpush1.bf16.msra.mxu0 %v6272
        %6286 = vmatprep.subr.bf16.mxu0 0
        %6287 = vmatpush1.bf16.msra.mxu0 0
        %6288 = vmatprep.subr.bf16.mxu0 0
        %6289 = vmatpush1.bf16.msra.mxu0 0
        %6290 = vmatprep.subr.bf16.mxu0 0
        %6291 = vmatpush1.bf16.msra.mxu0 0
        %6292 = vmatprep.subr.bf16.mxu0 0
        %6293 = vmatpush1.bf16.msra.mxu0 0
        %6294 = vmatprep.subr.bf16.mxu0 0
        %6295 = vmatpush1.bf16.msra.mxu0 0
        %6296 = vmatprep.subr.bf16.mxu0 0
        %6297 = vmatpush1.bf16.msra.mxu0 0
        %6298 = vmatprep.subr.bf16.mxu0 0
        %6299 = vmatpush1.bf16.msra.mxu0 0
        %6300 = vmatprep.subr.bf16.mxu0 0
        %6301 = vmatpush1.bf16.msra.mxu0 0
        %6302 = vmatprep.subr.bf16.mxu0 0
        %6303 = vmatpush1.bf16.msra.mxu0 0
        %6304 = vmatprep.subr.bf16.mxu0 0
        %6305 = vmatpush1.bf16.msra.mxu0 0
        %6306 = vmatprep.subr.bf16.mxu0 0
        %6307 = vmatpush1.bf16.msra.mxu0 0
        %6308 = vmatprep.subr.bf16.mxu0 0
        %6309 = vmatpush1.bf16.msra.mxu0 0
        %6310 = vmatprep.mubr.bf16.mxu0 0
        %6311 = vmatmul.mubr.bf16.gmra.mrb[0].mxu0 %v6276
        %v6312 = vpop.f32.mrb[0].mxu0
        %v6313 = vadd.f32 %v6273, %v6312
        %v6314 = vpop.f32.mrb[0].mxu0
        %v6315 = vpop.f32.mrb[0].mxu0
        %v6316 = vpop.f32.mrb[0].mxu0
        %6317 = vdwg.mxu0
        %v6318 = vxor.u32 %v6313, 2147483648
        %v6319 = vmul.f32 %v6318, 1.442695
        %v6320 = vpow.pop %v6319
        %v6321 = vadd.f32 %v6320, 1.0
        %v6322 = vrcp.pop %v6321
        %v6323 = vmul.f32 1.0, %v6322
        %v6324 = vld [vmem:[#allocation56] sm:$0xff]
        %v6325 = vld [vmem:[#allocation56 + $0x8] sm:$0xff]
        %v6326 = vld [vmem:[#allocation56 + $0x10] sm:$0xff]
        %v6327 = vld [vmem:[#allocation56 + $0x18] sm:$0xff]
        %v6328 = vld [vmem:[#allocation56 + $0x20] sm:$0xff]
        %v6329 = vld [vmem:[#allocation56 + $0x28] sm:$0xff]
        %v6330 = vld [vmem:[#allocation56 + $0x30] sm:$0xff]
        %v6331 = vld [vmem:[#allocation56 + $0x38] sm:$0xff]
        %v6332 = vpack.c.bf16 %v6325, %v6324
        %v6333 = vpack.c.bf16 %v6327, %v6326
        %v6334 = vpack.c.bf16 %v6329, %v6328
        %v6335 = vpack.c.bf16 %v6331, %v6330
        %v6336 = vld [vmem:[#allocation58] sm:$0x1]
        %6337 = vmatprep.subr.bf16.mxu0 0
        %6338 = vmatpush1.bf16.msra.mxu0 %v6332
        %6339 = vmatprep.subr.bf16.mxu0 0
        %6340 = vmatpush1.bf16.msra.mxu0 %v6333
        %6341 = vmatprep.subr.bf16.mxu0 0
        %6342 = vmatpush1.bf16.msra.mxu0 %v6334
        %6343 = vmatprep.subr.bf16.mxu0 0
        %6344 = vmatpush1.bf16.msra.mxu0 %v6335
        %6345 = vmatprep.subr.bf16.mxu0 0
        %6346 = vmatpush1.bf16.msra.mxu0 0
        %6347 = vmatprep.subr.bf16.mxu0 0
        %6348 = vmatpush1.bf16.msra.mxu0 0
        %6349 = vmatprep.subr.bf16.mxu0 0
        %6350 = vmatpush1.bf16.msra.mxu0 0
        %6351 = vmatprep.subr.bf16.mxu0 0
        %6352 = vmatpush1.bf16.msra.mxu0 0
        %6353 = vmatprep.subr.bf16.mxu0 0
        %6354 = vmatpush1.bf16.msra.mxu0 0
        %6355 = vmatprep.subr.bf16.mxu0 0
        %6356 = vmatpush1.bf16.msra.mxu0 0
        %6357 = vmatprep.subr.bf16.mxu0 0
        %6358 = vmatpush1.bf16.msra.mxu0 0
        %6359 = vmatprep.subr.bf16.mxu0 0
        %6360 = vmatpush1.bf16.msra.mxu0 0
        %6361 = vmatprep.subr.bf16.mxu0 0
        %6362 = vmatpush1.bf16.msra.mxu0 0
        %6363 = vmatprep.subr.bf16.mxu0 0
        %6364 = vmatpush1.bf16.msra.mxu0 0
        %6365 = vmatprep.subr.bf16.mxu0 0
        %6366 = vmatpush1.bf16.msra.mxu0 0
        %6367 = vmatprep.subr.bf16.mxu0 0
        %6368 = vmatpush1.bf16.msra.mxu0 0
        %6369 = vmatprep.mubr.bf16.mxu0 0
        %6370 = vmatmul.mubr.bf16.gmra.mrb[0].mxu0 %v6276
        %v6371 = vpop.f32.mrb[0].mxu0
        %v6372 = vadd.f32 %v6336, %v6371
        %v6373 = vpop.f32.mrb[0].mxu0
        %v6374 = vpop.f32.mrb[0].mxu0
        %v6375 = vpop.f32.mrb[0].mxu0
        %6376 = vdwg.mxu0
        %v6377 = vxor.u32 %v6372, 2147483648
        %v6378 = vmul.f32 %v6377, 1.442695
        %v6379 = vpow.pop %v6378
        %v6380 = vadd.f32 %v6379, 1.0
        %v6381 = vrcp.pop %v6380
        %v6382 = vmul.f32 1.0, %v6381
        %s6383 = sld [smem:[#allocation5]]
        %s6384 = sld [smem:[#allocation5 + $0x1]]
        %s6385 = sld [smem:[#allocation5 + $0x2]]
        %s6386 = sld [smem:[#allocation5 + $0x3]]
        %v6387 = vstv %s6383
        %v6388 = vmul.f32 %v4824, %v6387
        %v6389 = vmul.f32 %v4825, %v6387
        %v6390 = vmul.f32 %v4826, %v6387
        %v6391 = vmul.f32 %v4827, %v6387
        %v6392 = vmul.f32 %v4828, %v6387
        %v6393 = vmul.f32 %v4829, %v6387
        %v6394 = vmul.f32 %v4830, %v6387
        %v6395 = vmul.f32 %v4831, %v6387
        %v6396 = vstv %s6384
        %v6397 = vmul.f32 %v4864, %v6396
        %v6398 = vmul.f32 %v4865, %v6396
        %v6399 = vmul.f32 %v4866, %v6396
        %v6400 = vmul.f32 %v4867, %v6396
        %v6401 = vmul.f32 %v4868, %v6396
        %v6402 = vmul.f32 %v4869, %v6396
        %v6403 = vmul.f32 %v4870, %v6396
        %v6404 = vmul.f32 %v4871, %v6396
        %v6405 = vadd.f32 %v6388, %v6397
        %v6406 = vadd.f32 %v6389, %v6398
        %v6407 = vadd.f32 %v6390, %v6399
        %v6408 = vadd.f32 %v6391, %v6400
        %v6409 = vadd.f32 %v6392, %v6401
        %v6410 = vadd.f32 %v6393, %v6402
        %v6411 = vadd.f32 %v6394, %v6403
        %v6412 = vadd.f32 %v6395, %v6404
        %v6413 = vstv %s6386
        %v6414 = vmul.f32 %v2813, %v6413
        %v6415 = vmul.f32 %v2814, %v6413
        %v6416 = vmul.f32 %v2815, %v6413
        %v6417 = vmul.f32 %v2816, %v6413
        %v6418 = vmul.f32 %v2817, %v6413
        %v6419 = vmul.f32 %v2818, %v6413
        %v6420 = vmul.f32 %v2819, %v6413
        %v6421 = vmul.f32 %v2820, %v6413
        %v6422 = vadd.f32 %v6405, %v6414
        %v6423 = vadd.f32 %v6406, %v6415
        %v6424 = vadd.f32 %v6407, %v6416
        %v6425 = vadd.f32 %v6408, %v6417
        %v6426 = vadd.f32 %v6409, %v6418
        %v6427 = vadd.f32 %v6410, %v6419
        %v6428 = vadd.f32 %v6411, %v6420
        %v6429 = vadd.f32 %v6412, %v6421
        %v6430 = vstv %s6385
        %v6431 = vmul.f32 %v6323, %v6430
        %v6432 = vlaneseq
        %v6433 = vshrl.u32 %v6432, 7
        %v6434 = vsub.s32 0, %v6433
        %v6435 = vrot.slane %v6431, %v6434
        %v6436 = vmul.f32 %v6435, %v5628
        %v6437 = vmul.f32 %v6435, %v5629
        %v6438 = vmul.f32 %v6435, %v5630
        %v6439 = vmul.f32 %v6435, %v5631
        %v6440 = vmul.f32 %v6435, %v5632
        %v6441 = vmul.f32 %v6435, %v5633
        %v6442 = vmul.f32 %v6435, %v5634
        %v6443 = vmul.f32 %v6435, %v5635
        %v6444 = vmul.f32 %v6382, %v6430
        %v6445 = vlaneseq
        %v6446 = vshrl.u32 %v6445, 7
        %v6447 = vsub.s32 0, %v6446
        %v6448 = vrot.slane %v6444, %v6447
        %v6449 = vmul.f32 %v6448, %v6093
        %v6450 = vmul.f32 %v6448, %v6094
        %v6451 = vmul.f32 %v6448, %v6095
        %v6452 = vmul.f32 %v6448, %v6096
        %v6453 = vmul.f32 %v6448, %v6097
        %v6454 = vmul.f32 %v6448, %v6098
        %v6455 = vmul.f32 %v6448, %v6099
        %v6456 = vmul.f32 %v6448, %v6100
        %v6457 = vld [vmem:[#allocation65] sm:$0xff]
        %v6458 = vld [vmem:[#allocation65 + $0x8] sm:$0xff]
        %v6459 = vld [vmem:[#allocation65 + $0x10] sm:$0xff]
        %v6460 = vld [vmem:[#allocation65 + $0x18] sm:$0xff]
        %v6461 = vld [vmem:[#allocation65 + $0x20] sm:$0xff]
        %v6462 = vld [vmem:[#allocation65 + $0x28] sm:$0xff]
        %v6463 = vld [vmem:[#allocation65 + $0x30] sm:$0xff]
        %v6464 = vld [vmem:[#allocation65 + $0x38] sm:$0xff]
        %v6465 = vld [vmem:[#allocation65 + $0x40] sm:$0xff]
        %v6466 = vld [vmem:[#allocation65 + $0x48] sm:$0xff]
        %v6467 = vld [vmem:[#allocation65 + $0x50] sm:$0xff]
        %v6468 = vld [vmem:[#allocation65 + $0x58] sm:$0xff]
        %v6469 = vld [vmem:[#allocation65 + $0x60] sm:$0xff]
        %v6470 = vld [vmem:[#allocation65 + $0x68] sm:$0xff]
        %v6471 = vld [vmem:[#allocation65 + $0x70] sm:$0xff]
        %v6472 = vld [vmem:[#allocation65 + $0x78] sm:$0xff]
        %v6473 = vpack.c.bf16 %v6423, %v6422
        %v6474 = vpack.c.bf16 %v6425, %v6424
        %v6475 = vpack.c.bf16 %v6427, %v6426
        %v6476 = vpack.c.bf16 %v6429, %v6428
        %v6477 = vpack.c.bf16 %v6458, %v6457
        %v6478 = vpack.c.bf16 %v6460, %v6459
        %v6479 = vpack.c.bf16 %v6462, %v6461
        %v6480 = vpack.c.bf16 %v6464, %v6463
        %v6481 = vpack.c.bf16 %v6466, %v6465
        %v6482 = vpack.c.bf16 %v6468, %v6467
        %v6483 = vpack.c.bf16 %v6470, %v6469
        %v6484 = vpack.c.bf16 %v6472, %v6471
        %v6485 = vld [vmem:[#allocation67] sm:$0xff]
        %v6486 = vld [vmem:[#allocation67 + $0x8] sm:$0xff]
        %v6487 = vld [vmem:[#allocation67 + $0x10] sm:$0xff]
        %v6488 = vld [vmem:[#allocation67 + $0x18] sm:$0xff]
        %v6489 = vpack.c.bf16 %v6437, %v6436
        %v6490 = vpack.c.bf16 %v6439, %v6438
        %v6491 = vpack.c.bf16 %v6441, %v6440
        %v6492 = vpack.c.bf16 %v6443, %v6442
        %v6493 = vpack.c.bf16 %v6486, %v6485
        %v6494 = vpack.c.bf16 %v6488, %v6487
        %v6496 = vsel %vm2992, %v6489, 0
        %v6499 = vsel %vm2992, %v6490, 0
        %v6502 = vsel %vm2992, %v6491, 0
        %v6505 = vsel %vm2992, %v6492, 0
        %6507 = vmatprep.subr.bf16.mxu0 0
        %6508 = vmatpush1.bf16.msra.mxu0 %v6493
        %6509 = vmatprep.subr.bf16.mxu0 0
        %6510 = vmatpush1.bf16.msra.mxu0 %v6494
        %6511 = vmatprep.subr.bf16.mxu0 0
        %6512 = vmatpush1.bf16.msra.mxu0 0
        %6513 = vmatprep.subr.bf16.mxu0 0
        %6514 = vmatpush1.bf16.msra.mxu0 0
        %6515 = vmatprep.subr.bf16.mxu0 0
        %6516 = vmatpush1.bf16.msra.mxu0 0
        %6517 = vmatprep.subr.bf16.mxu0 0
        %6518 = vmatpush1.bf16.msra.mxu0 0
        %6519 = vmatprep.subr.bf16.mxu0 0
        %6520 = vmatpush1.bf16.msra.mxu0 0
        %6521 = vmatprep.subr.bf16.mxu0 0
        %6522 = vmatpush1.bf16.msra.mxu0 0
        %6523 = vmatprep.subr.bf16.mxu0 0
        %6524 = vmatpush1.bf16.msra.mxu0 0
        %6525 = vmatprep.subr.bf16.mxu0 0
        %6526 = vmatpush1.bf16.msra.mxu0 0
        %6527 = vmatprep.subr.bf16.mxu0 0
        %6528 = vmatpush1.bf16.msra.mxu0 0
        %6529 = vmatprep.subr.bf16.mxu0 0
        %6530 = vmatpush1.bf16.msra.mxu0 0
        %6531 = vmatprep.subr.bf16.mxu0 0
        %6532 = vmatpush1.bf16.msra.mxu0 0
        %6533 = vmatprep.subr.bf16.mxu0 0
        %6534 = vmatpush1.bf16.msra.mxu0 0
        %6535 = vmatprep.subr.bf16.mxu0 0
        %6536 = vmatpush1.bf16.msra.mxu0 0
        %6537 = vmatprep.subr.bf16.mxu0 0
        %6538 = vmatpush1.bf16.msra.mxu0 0
        %6539 = vmatprep.mubr.bf16.mxu0 0
        %6540 = vmatmul.mubr.bf16.gmra.mrb[0].mxu0 %v6496
        %v6541 = vpop.f32.mrb[0].mxu0
        %v6542 = vadd.f32 0.0, %v6541
        %v6543 = vpop.f32.mrb[0].mxu0
        %v6544 = vpop.f32.mrb[0].mxu0
        %v6545 = vadd.f32 0.0, %v6544
        %v6546 = vpop.f32.mrb[0].mxu0
        %6547 = vmatprep.mubr.bf16.mxu0 0
        %6548 = vmatmul.mubr.bf16.gmra.mrb[0].mxu0 %v6499
        %v6549 = vpop.f32.mrb[0].mxu0
        %v6550 = vadd.f32 0.0, %v6549
        %v6551 = vpop.f32.mrb[0].mxu0
        %v6552 = vpop.f32.mrb[0].mxu0
        %v6553 = vadd.f32 0.0, %v6552
        %v6554 = vpop.f32.mrb[0].mxu0
        %6555 = vmatprep.mubr.bf16.mxu0 0
        %6556 = vmatmul.mubr.bf16.gmra.mrb[0].mxu0 %v6502
        %v6557 = vpop.f32.mrb[0].mxu0
        %v6558 = vadd.f32 0.0, %v6557
        %v6559 = vpop.f32.mrb[0].mxu0
        %v6560 = vpop.f32.mrb[0].mxu0
        %v6561 = vadd.f32 0.0, %v6560
        %v6562 = vpop.f32.mrb[0].mxu0
        %6563 = vmatprep.mubr.bf16.mxu0 0
        %6564 = vmatmul.mubr.bf16.gmra.mrb[0].mxu0 %v6505
        %v6565 = vpop.f32.mrb[0].mxu0
        %v6566 = vadd.f32 0.0, %v6565
        %v6567 = vpop.f32.mrb[0].mxu0
        %v6568 = vpop.f32.mrb[0].mxu0
        %v6569 = vadd.f32 0.0, %v6568
        %v6570 = vpop.f32.mrb[0].mxu0
        %6571 = vdwg.mxu0
        %6572 = vmatprep.subr.bf16.mxu0 0
        %6573 = vmatpush1.bf16.msra.mxu0 %v6477
        %6574 = vmatprep.subr.bf16.mxu0 0
        %6575 = vmatpush1.bf16.msra.mxu0 %v6478
        %6576 = vmatprep.subr.bf16.mxu0 0
        %6577 = vmatpush1.bf16.msra.mxu0 %v6479
        %6578 = vmatprep.subr.bf16.mxu0 0
        %6579 = vmatpush1.bf16.msra.mxu0 %v6480
        %6580 = vmatprep.subr.bf16.mxu0 0
        %6581 = vmatpush1.bf16.msra.mxu0 %v6481
        %6582 = vmatprep.subr.bf16.mxu0 0
        %6583 = vmatpush1.bf16.msra.mxu0 %v6482
        %6584 = vmatprep.subr.bf16.mxu0 0
        %6585 = vmatpush1.bf16.msra.mxu0 %v6483
        %6586 = vmatprep.subr.bf16.mxu0 0
        %6587 = vmatpush1.bf16.msra.mxu0 %v6484
        %6588 = vmatprep.subr.bf16.mxu0 0
        %6589 = vmatpush1.bf16.msra.mxu0 0
        %6590 = vmatprep.subr.bf16.mxu0 0
        %6591 = vmatpush1.bf16.msra.mxu0 0
        %6592 = vmatprep.subr.bf16.mxu0 0
        %6593 = vmatpush1.bf16.msra.mxu0 0
        %6594 = vmatprep.subr.bf16.mxu0 0
        %6595 = vmatpush1.bf16.msra.mxu0 0
        %6596 = vmatprep.subr.bf16.mxu0 0
        %6597 = vmatpush1.bf16.msra.mxu0 0
        %6598 = vmatprep.subr.bf16.mxu0 0
        %6599 = vmatpush1.bf16.msra.mxu0 0
        %6600 = vmatprep.subr.bf16.mxu0 0
        %6601 = vmatpush1.bf16.msra.mxu0 0
        %6602 = vmatprep.subr.bf16.mxu0 0
        %6603 = vmatpush1.bf16.msra.mxu0 0
        %6604 = vmatprep.mubr.bf16.mxu0 0
        %6605 = vmatmul.mubr.bf16.gmra.mrb[0].mxu0 %v6473
        %v6606 = vpop.f32.mrb[0].mxu0
        %v6607 = vadd.f32 %v6542, %v6606
        %v6608 = vpop.f32.mrb[0].mxu0
        %v6609 = vpop.f32.mrb[0].mxu0
        %v6610 = vadd.f32 %v6545, %v6609
        %v6611 = vpop.f32.mrb[0].mxu0
        %6612 = vmatprep.mubr.bf16.mxu0 0
        %6613 = vmatmul.mubr.bf16.gmra.mrb[0].mxu0 %v6474
        %v6614 = vpop.f32.mrb[0].mxu0
        %v6615 = vadd.f32 %v6550, %v6614
        %v6616 = vpop.f32.mrb[0].mxu0
        %v6617 = vpop.f32.mrb[0].mxu0
        %v6618 = vadd.f32 %v6553, %v6617
        %v6619 = vpop.f32.mrb[0].mxu0
        %6620 = vmatprep.mubr.bf16.mxu0 0
        %6621 = vmatmul.mubr.bf16.gmra.mrb[0].mxu0 %v6475
        %v6622 = vpop.f32.mrb[0].mxu0
        %v6623 = vadd.f32 %v6558, %v6622
        %v6624 = vpop.f32.mrb[0].mxu0
        %v6625 = vpop.f32.mrb[0].mxu0
        %v6626 = vadd.f32 %v6561, %v6625
        %v6627 = vpop.f32.mrb[0].mxu0
        %6628 = vmatprep.mubr.bf16.mxu0 0
        %6629 = vmatmul.mubr.bf16.gmra.mrb[0].mxu0 %v6476
        %v6630 = vpop.f32.mrb[0].mxu0
        %v6631 = vadd.f32 %v6566, %v6630
        %v6632 = vpop.f32.mrb[0].mxu0
        %v6633 = vpop.f32.mrb[0].mxu0
        %v6634 = vadd.f32 %v6569, %v6633
        %v6635 = vpop.f32.mrb[0].mxu0
        %6636 = vdwg.mxu0
        %v6637 = vld [vmem:[#allocation68] sm:$0xff]
        %v6638 = vld [vmem:[#allocation68 + $0x8] sm:$0xff]
        %v6639 = vld [vmem:[#allocation68 + $0x10] sm:$0xff]
        %v6640 = vld [vmem:[#allocation68 + $0x18] sm:$0xff]
        %v6641 = vld [vmem:[#allocation68 + $0x20] sm:$0xff]
        %v6642 = vld [vmem:[#allocation68 + $0x28] sm:$0xff]
        %v6643 = vld [vmem:[#allocation68 + $0x30] sm:$0xff]
        %v6644 = vld [vmem:[#allocation68 + $0x38] sm:$0xff]
        %v6645 = vld [vmem:[#allocation68 + $0x40] sm:$0xff]
        %v6646 = vld [vmem:[#allocation68 + $0x48] sm:$0xff]
        %v6647 = vld [vmem:[#allocation68 + $0x50] sm:$0xff]
        %v6648 = vld [vmem:[#allocation68 + $0x58] sm:$0xff]
        %v6649 = vpack.c.bf16 %v6450, %v6449
        %v6650 = vpack.c.bf16 %v6452, %v6451
        %v6651 = vpack.c.bf16 %v6454, %v6453
        %v6652 = vpack.c.bf16 %v6456, %v6455
        %v6653 = vpack.c.bf16 %v6638, %v6637
        %v6654 = vpack.c.bf16 %v6640, %v6639
        %v6655 = vpack.c.bf16 %v6642, %v6641
        %v6656 = vpack.c.bf16 %v6644, %v6643
        %v6657 = vpack.c.bf16 %v6646, %v6645
        %v6658 = vpack.c.bf16 %v6648, %v6647
        %v6660 = vsel %vm5836, %v6649, 0
        %v6663 = vsel %vm5836, %v6650, 0
        %v6666 = vsel %vm5836, %v6651, 0
        %v6669 = vsel %vm5836, %v6652, 0
        %6671 = vmatprep.subr.bf16.mxu0 0
        %6672 = vmatpush1.bf16.msra.mxu0 %v6653
        %6673 = vmatprep.subr.bf16.mxu0 0
        %6674 = vmatpush1.bf16.msra.mxu0 %v6654
        %6675 = vmatprep.subr.bf16.mxu0 0
        %6676 = vmatpush1.bf16.msra.mxu0 %v6655
        %6677 = vmatprep.subr.bf16.mxu0 0
        %6678 = vmatpush1.bf16.msra.mxu0 %v6656
        %6679 = vmatprep.subr.bf16.mxu0 0
        %6680 = vmatpush1.bf16.msra.mxu0 %v6657
        %6681 = vmatprep.subr.bf16.mxu0 0
        %6682 = vmatpush1.bf16.msra.mxu0 %v6658
        %6683 = vmatprep.subr.bf16.mxu0 0
        %6684 = vmatpush1.bf16.msra.mxu0 0
        %6685 = vmatprep.subr.bf16.mxu0 0
        %6686 = vmatpush1.bf16.msra.mxu0 0
        %6687 = vmatprep.subr.bf16.mxu0 0
        %6688 = vmatpush1.bf16.msra.mxu0 0
        %6689 = vmatprep.subr.bf16.mxu0 0
        %6690 = vmatpush1.bf16.msra.mxu0 0
        %6691 = vmatprep.subr.bf16.mxu0 0
        %6692 = vmatpush1.bf16.msra.mxu0 0
        %6693 = vmatprep.subr.bf16.mxu0 0
        %6694 = vmatpush1.bf16.msra.mxu0 0
        %6695 = vmatprep.subr.bf16.mxu0 0
        %6696 = vmatpush1.bf16.msra.mxu0 0
        %6697 = vmatprep.subr.bf16.mxu0 0
        %6698 = vmatpush1.bf16.msra.mxu0 0
        %6699 = vmatprep.subr.bf16.mxu0 0
        %6700 = vmatpush1.bf16.msra.mxu0 0
        %6701 = vmatprep.subr.bf16.mxu0 0
        %6702 = vmatpush1.bf16.msra.mxu0 0
        %6703 = vmatprep.mubr.bf16.mxu0 0
        %6704 = vmatmul.mubr.bf16.gmra.mrb[0].mxu0 %v6660
        %v6705 = vpop.f32.mrb[0].mxu0
        %v6706 = vadd.f32 0.0, %v6705
        %v6707 = vpop.f32.mrb[0].mxu0
        %v6708 = vpop.f32.mrb[0].mxu0
        %v6709 = vadd.f32 0.0, %v6708
        %v6710 = vpop.f32.mrb[0].mxu0
        %6711 = vmatprep.mubr.bf16.mxu0 0
        %6712 = vmatmul.mubr.bf16.gmra.mrb[0].mxu0 %v6663
        %v6713 = vpop.f32.mrb[0].mxu0
        %v6714 = vadd.f32 0.0, %v6713
        %v6715 = vpop.f32.mrb[0].mxu0
        %v6716 = vpop.f32.mrb[0].mxu0
        %v6717 = vadd.f32 0.0, %v6716
        %v6718 = vpop.f32.mrb[0].mxu0
        %6719 = vmatprep.mubr.bf16.mxu0 0
        %6720 = vmatmul.mubr.bf16.gmra.mrb[0].mxu0 %v6666
        %v6721 = vpop.f32.mrb[0].mxu0
        %v6722 = vadd.f32 0.0, %v6721
        %v6723 = vpop.f32.mrb[0].mxu0
        %v6724 = vpop.f32.mrb[0].mxu0
        %v6725 = vadd.f32 0.0, %v6724
        %v6726 = vpop.f32.mrb[0].mxu0
        %6727 = vmatprep.mubr.bf16.mxu0 0
        %6728 = vmatmul.mubr.bf16.gmra.mrb[0].mxu0 %v6669
        %v6729 = vpop.f32.mrb[0].mxu0
        %v6730 = vadd.f32 0.0, %v6729
        %v6731 = vpop.f32.mrb[0].mxu0
        %v6732 = vpop.f32.mrb[0].mxu0
        %v6733 = vadd.f32 0.0, %v6732
        %v6734 = vpop.f32.mrb[0].mxu0
        %6735 = vdwg.mxu0
        %v6736 = vadd.f32 %v6607, %v6706
        %v6737 = vadd.f32 %v6610, %v6709
        %v6738 = vadd.f32 %v6615, %v6714
        %v6739 = vadd.f32 %v6618, %v6717
        %v6740 = vadd.f32 %v6623, %v6722
        %v6741 = vadd.f32 %v6626, %v6725
        %v6742 = vadd.f32 %v6631, %v6730
        %v6743 = vadd.f32 %v6634, %v6733
        %v6744 = vld [vmem:[#allocation70] sm:$0x1]
        %v6746 = vlaneseq
        %v6747 = vshrl.u32 %v6746, 7
        %v6748 = vsub.s32 0, %v6747
        %v6749 = vrot.slane %v6744, %v6748
        %v6751 = vadd.f32 %v6736, %v6749
        %v6752 = vadd.f32 %v6737, %v6749
        %v6753 = vadd.f32 %v6738, %v6749
        %v6754 = vadd.f32 %v6739, %v6749
        %v6755 = vadd.f32 %v6740, %v6749
        %v6756 = vadd.f32 %v6741, %v6749
        %v6757 = vadd.f32 %v6742, %v6749
        %v6758 = vadd.f32 %v6743, %v6749
        %v6759 = vmax.f32 %v6751, 0.0
        %v6760 = vmax.f32 %v6752, 0.0
        %v6761 = vmax.f32 %v6753, 0.0
        %v6762 = vmax.f32 %v6754, 0.0
        %v6763 = vmax.f32 %v6755, 0.0
        %v6764 = vmax.f32 %v6756, 0.0
        %v6765 = vmax.f32 %v6757, 0.0
        %v6766 = vmax.f32 %v6758, 0.0
        %v6767 = vadd.f32 %v4760, %v6759
        %v6768 = vadd.f32 %v4761, %v6760
        %v6769 = vadd.f32 %v4762, %v6761
        %v6770 = vadd.f32 %v4763, %v6762
        %v6771 = vadd.f32 %v4764, %v6763
        %v6772 = vadd.f32 %v4765, %v6764
        %v6773 = vadd.f32 %v4766, %v6765
        %v6774 = vadd.f32 %v4767, %v6766
        %v6775 = vsel %vm6274, %v6767, 0.0
        %v6776 = vsel %vm6274, %v6768, 0.0
        %v6777 = vadd.f32 %v6775, %v6776
        %v6778 = vsel %vm6274, %v6769, 0.0
        %v6779 = vadd.f32 %v6777, %v6778
        %v6780 = vsel %vm6274, %v6770, 0.0
        %v6781 = vadd.f32 %v6779, %v6780
        %v6782 = vsel %vm6274, %v6771, 0.0
        %v6783 = vadd.f32 %v6781, %v6782
        %v6784 = vsel %vm6274, %v6772, 0.0
        %v6785 = vadd.f32 %v6783, %v6784
        %v6786 = vsel %vm6274, %v6773, 0.0
        %v6787 = vadd.f32 %v6785, %v6786
        %v6788 = vsel %vm6274, %v6774, 0.0
        %v6789 = vadd.f32 %v6787, %v6788
        %v6790 = vrot.slane %v6789, 4
        %v6791 = vadd.f32 %v6789, %v6790
        %v6792 = vrot.slane %v6791, 2
        %v6793 = vadd.f32 %v6791, %v6792
        %v6794 = vrot.slane %v6793, 1
        %v6795 = vadd.f32 %v6793, %v6794
        %v6796 = vmul.f32 %v6795, %v4168
        %v6797 = vld [vmem:[#allocation77] sm:$0xff]
        %v6798 = vld [vmem:[#allocation77 + $0x8] sm:$0xff]
        %v6799 = vld [vmem:[#allocation77 + $0x10] sm:$0xff]
        %v6800 = vld [vmem:[#allocation77 + $0x18] sm:$0xff]
        %v6801 = vld [vmem:[#allocation77 + $0x20] sm:$0xff]
        %v6802 = vld [vmem:[#allocation77 + $0x28] sm:$0xff]
        %v6803 = vld [vmem:[#allocation77 + $0x30] sm:$0xff]
        %v6804 = vld [vmem:[#allocation77 + $0x38] sm:$0xff]
        %v6805 = vpack.c.bf16 %v6796, %v6796
        %v6806 = vpack.c.bf16 %v6798, %v6797
        %v6807 = vpack.c.bf16 %v6800, %v6799
        %v6808 = vpack.c.bf16 %v6802, %v6801
        %v6809 = vpack.c.bf16 %v6804, %v6803
        %v6811 = vsel %vm6274, %v6805, 0
        %6813 = vmatprep.subr.bf16.mxu0 0
        %6814 = vmatpush1.bf16.msra.mxu0 %v6806
        %6815 = vmatprep.subr.bf16.mxu0 0
        %6816 = vmatpush1.bf16.msra.mxu0 %v6807
        %6817 = vmatprep.subr.bf16.mxu0 0
        %6818 = vmatpush1.bf16.msra.mxu0 %v6808
        %6819 = vmatprep.subr.bf16.mxu0 0
        %6820 = vmatpush1.bf16.msra.mxu0 %v6809
        %6821 = vmatprep.subr.bf16.mxu0 0
        %6822 = vmatpush1.bf16.msra.mxu0 0
        %6823 = vmatprep.subr.bf16.mxu0 0
        %6824 = vmatpush1.bf16.msra.mxu0 0
        %6825 = vmatprep.subr.bf16.mxu0 0
        %6826 = vmatpush1.bf16.msra.mxu0 0
        %6827 = vmatprep.subr.bf16.mxu0 0
        %6828 = vmatpush1.bf16.msra.mxu0 0
        %6829 = vmatprep.subr.bf16.mxu0 0
        %6830 = vmatpush1.bf16.msra.mxu0 0
        %6831 = vmatprep.subr.bf16.mxu0 0
        %6832 = vmatpush1.bf16.msra.mxu0 0
        %6833 = vmatprep.subr.bf16.mxu0 0
        %6834 = vmatpush1.bf16.msra.mxu0 0
        %6835 = vmatprep.subr.bf16.mxu0 0
        %6836 = vmatpush1.bf16.msra.mxu0 0
        %6837 = vmatprep.subr.bf16.mxu0 0
        %6838 = vmatpush1.bf16.msra.mxu0 0
        %6839 = vmatprep.subr.bf16.mxu0 0
        %6840 = vmatpush1.bf16.msra.mxu0 0
        %6841 = vmatprep.subr.bf16.mxu0 0
        %6842 = vmatpush1.bf16.msra.mxu0 0
        %6843 = vmatprep.subr.bf16.mxu0 0
        %6844 = vmatpush1.bf16.msra.mxu0 0
        %6845 = vmatprep.mubr.bf16.mxu0 0
        %6846 = vmatmul.mubr.bf16.gmra.mrb[0].mxu0 %v6811
        %v6847 = vpop.f32.mrb[0].mxu0
        %v6848 = vadd.f32 0.0, %v6847
        %v6849 = vpop.f32.mrb[0].mxu0
        %v6850 = vpop.f32.mrb[0].mxu0
        %v6851 = vpop.f32.mrb[0].mxu0
        %6852 = vdwg.mxu0
        %v6853 = vld [vmem:[#allocation79] sm:$0x1]
        %v6854 = vmul.f32 %v6848, %v6853
        %v6855 = vld [vmem:[#allocation80] sm:$0x1]
        %v6856 = vadd.f32 %v6854, %v6855
        %v6857 = vmax.f32 %v6856, 0.0
        %v6858 = vld [vmem:[#allocation82] sm:$0xff]
        %v6859 = vld [vmem:[#allocation82 + $0x8] sm:$0xff]
        %v6860 = vld [vmem:[#allocation82 + $0x10] sm:$0xff]
        %v6861 = vld [vmem:[#allocation82 + $0x18] sm:$0xff]
        %v6862 = vpack.c.bf16 %v6857, %v6857
        %v6863 = vpack.c.bf16 %v6859, %v6858
        %v6864 = vpack.c.bf16 %v6861, %v6860
        %v6866 = vsel %vm2992, %v6862, 0
        %6868 = vmatprep.subr.bf16.mxu0 0
        %6869 = vmatpush1.bf16.msra.mxu0 %v6863
        %6870 = vmatprep.subr.bf16.mxu0 0
        %6871 = vmatpush1.bf16.msra.mxu0 %v6864
        %6872 = vmatprep.subr.bf16.mxu0 0
        %6873 = vmatpush1.bf16.msra.mxu0 0
        %6874 = vmatprep.subr.bf16.mxu0 0
        %6875 = vmatpush1.bf16.msra.mxu0 0
        %6876 = vmatprep.subr.bf16.mxu0 0
        %6877 = vmatpush1.bf16.msra.mxu0 0
        %6878 = vmatprep.subr.bf16.mxu0 0
        %6879 = vmatpush1.bf16.msra.mxu0 0
        %6880 = vmatprep.subr.bf16.mxu0 0
        %6881 = vmatpush1.bf16.msra.mxu0 0
        %6882 = vmatprep.subr.bf16.mxu0 0
        %6883 = vmatpush1.bf16.msra.mxu0 0
        %6884 = vmatprep.subr.bf16.mxu0 0
        %6885 = vmatpush1.bf16.msra.mxu0 0
        %6886 = vmatprep.subr.bf16.mxu0 0
        %6887 = vmatpush1.bf16.msra.mxu0 0
        %6888 = vmatprep.subr.bf16.mxu0 0
        %6889 = vmatpush1.bf16.msra.mxu0 0
        %6890 = vmatprep.subr.bf16.mxu0 0
        %6891 = vmatpush1.bf16.msra.mxu0 0
        %6892 = vmatprep.subr.bf16.mxu0 0
        %6893 = vmatpush1.bf16.msra.mxu0 0
        %6894 = vmatprep.subr.bf16.mxu0 0
        %6895 = vmatpush1.bf16.msra.mxu0 0
        %6896 = vmatprep.subr.bf16.mxu0 0
        %6897 = vmatpush1.bf16.msra.mxu0 0
        %6898 = vmatprep.subr.bf16.mxu0 0
        %6899 = vmatpush1.bf16.msra.mxu0 0
        %6900 = vmatprep.mubr.bf16.mxu0 0
        %6901 = vmatmul.mubr.bf16.gmra.mrb[0].mxu0 %v6866
        %v6902 = vpop.f32.mrb[0].mxu0
        %v6903 = vadd.f32 0.0, %v6902
        %v6904 = vpop.f32.mrb[0].mxu0
        %v6905 = vpop.f32.mrb[0].mxu0
        %v6906 = vpop.f32.mrb[0].mxu0
        %6907 = vdwg.mxu0
        %v6908 = vld [vmem:[#allocation83] sm:$0xff]
        %v6909 = vld [vmem:[#allocation83 + $0x8] sm:$0xff]
        %v6910 = vld [vmem:[#allocation83 + $0x10] sm:$0xff]
        %v6911 = vld [vmem:[#allocation83 + $0x18] sm:$0xff]
        %v6912 = vpack.c.bf16 %v6909, %v6908
        %v6913 = vpack.c.bf16 %v6911, %v6910
        %6914 = vmatprep.subr.bf16.mxu0 0
        %6915 = vmatpush1.bf16.msra.mxu0 %v6912
        %6916 = vmatprep.subr.bf16.mxu0 0
        %6917 = vmatpush1.bf16.msra.mxu0 %v6913
        %6918 = vmatprep.subr.bf16.mxu0 0
        %6919 = vmatpush1.bf16.msra.mxu0 0
        %6920 = vmatprep.subr.bf16.mxu0 0
        %6921 = vmatpush1.bf16.msra.mxu0 0
        %6922 = vmatprep.subr.bf16.mxu0 0
        %6923 = vmatpush1.bf16.msra.mxu0 0
        %6924 = vmatprep.subr.bf16.mxu0 0
        %6925 = vmatpush1.bf16.msra.mxu0 0
        %6926 = vmatprep.subr.bf16.mxu0 0
        %6927 = vmatpush1.bf16.msra.mxu0 0
        %6928 = vmatprep.subr.bf16.mxu0 0
        %6929 = vmatpush1.bf16.msra.mxu0 0
        %6930 = vmatprep.subr.bf16.mxu0 0
        %6931 = vmatpush1.bf16.msra.mxu0 0
        %6932 = vmatprep.subr.bf16.mxu0 0
        %6933 = vmatpush1.bf16.msra.mxu0 0
        %6934 = vmatprep.subr.bf16.mxu0 0
        %6935 = vmatpush1.bf16.msra.mxu0 0
        %6936 = vmatprep.subr.bf16.mxu0 0
        %6937 = vmatpush1.bf16.msra.mxu0 0
        %6938 = vmatprep.subr.bf16.mxu0 0
        %6939 = vmatpush1.bf16.msra.mxu0 0
        %6940 = vmatprep.subr.bf16.mxu0 0
        %6941 = vmatpush1.bf16.msra.mxu0 0
        %6942 = vmatprep.subr.bf16.mxu0 0
        %6943 = vmatpush1.bf16.msra.mxu0 0
        %6944 = vmatprep.subr.bf16.mxu0 0
        %6945 = vmatpush1.bf16.msra.mxu0 0
        %6946 = vmatprep.mubr.bf16.mxu0 0
        %6947 = vmatmul.mubr.bf16.gmra.mrb[0].mxu0 %v6866
        %v6948 = vpop.f32.mrb[0].mxu0
        %v6949 = vadd.f32 0.0, %v6948
        %v6950 = vpop.f32.mrb[0].mxu0
        %v6951 = vpop.f32.mrb[0].mxu0
        %v6952 = vpop.f32.mrb[0].mxu0
        %6953 = vdwg.mxu0
        %v6954 = vmax.f32 %v6903, %v6949
        %v6955 = vsub.f32 %v6903, %v6954
        %v6956 = vmul.f32 %v6955, 1.442695
        %v6957 = vpow.pop %v6956
        %v6958 = vsub.f32 %v6949, %v6954
        %v6959 = vmul.f32 %v6958, 1.442695
        %v6960 = vpow.pop %v6959
        %v6961 = vadd.f32 %v6957, %v6960
        %v6962 = vrcp.pop %v6961
        %v6963 = vmul.f32 1.0, %v6962
        %v6964 = vmul.f32 %v6957, %v6963
        %v6965 = vlaneseq
        %v6966 = vshrl.u32 %v6965, 7
        %v6967 = vsub.s32 0, %v6966
        %v6968 = vrot.slane %v6964, %v6967
        %v6969 = vmul.f32 %v4760, %v6968
        %v6970 = vmul.f32 %v4761, %v6968
        %v6971 = vmul.f32 %v4762, %v6968
        %v6972 = vmul.f32 %v4763, %v6968
        %v6973 = vmul.f32 %v4764, %v6968
        %v6974 = vmul.f32 %v4765, %v6968
        %v6975 = vmul.f32 %v4766, %v6968
        %v6976 = vmul.f32 %v4767, %v6968
        %v6977 = vmul.f32 %v6960, %v6963
        %v6978 = vlaneseq
        %v6979 = vshrl.u32 %v6978, 7
        %v6980 = vsub.s32 0, %v6979
        %v6981 = vrot.slane %v6977, %v6980
        %v6982 = vmul.f32 %v6759, %v6981
        %v6983 = vmul.f32 %v6760, %v6981
        %v6984 = vmul.f32 %v6761, %v6981
        %v6985 = vmul.f32 %v6762, %v6981
        %v6986 = vmul.f32 %v6763, %v6981
        %v6987 = vmul.f32 %v6764, %v6981
        %v6988 = vmul.f32 %v6765, %v6981
        %v6989 = vmul.f32 %v6766, %v6981
        %v6990 = vadd.f32 %v6969, %v6982
        %v6991 = vadd.f32 %v6970, %v6983
        %v6992 = vadd.f32 %v6971, %v6984
        %v6993 = vadd.f32 %v6972, %v6985
        %v6994 = vadd.f32 %v6973, %v6986
        %v6995 = vadd.f32 %v6974, %v6987
        %v6996 = vadd.f32 %v6975, %v6988
        %v6997 = vadd.f32 %v6976, %v6989
        %v6998 = vld [vmem:[#allocation71] sm:$0xff]
        %v6999 = vld [vmem:[#allocation71 + $0x8] sm:$0xff]
        %v7000 = vld [vmem:[#allocation71 + $0x10] sm:$0xff]
        %v7001 = vld [vmem:[#allocation71 + $0x18] sm:$0xff]
        %v7002 = vld [vmem:[#allocation71 + $0x20] sm:$0xff]
        %v7003 = vld [vmem:[#allocation71 + $0x28] sm:$0xff]
        %v7004 = vld [vmem:[#allocation71 + $0x30] sm:$0xff]
        %v7005 = vld [vmem:[#allocation71 + $0x38] sm:$0xff]
        %v7006 = vpack.c.bf16 %v4761, %v4760
        %v7007 = vpack.c.bf16 %v4763, %v4762
        %v7008 = vpack.c.bf16 %v4765, %v4764
        %v7009 = vpack.c.bf16 %v4767, %v4766
        %v7010 = vpack.c.bf16 %v6999, %v6998
        %v7011 = vpack.c.bf16 %v7001, %v7000
        %v7012 = vpack.c.bf16 %v7003, %v7002
        %v7013 = vpack.c.bf16 %v7005, %v7004
        %v7014 = vld [vmem:[#allocation73] sm:$0x1]
        %v7016 = vlaneseq
        %v7017 = vshrl.u32 %v7016, 7
        %v7018 = vsub.s32 0, %v7017
        %v7019 = vrot.slane %v7014, %v7018
        %v7022 = vsel %vm6274, %v7006, 0
        %v7025 = vsel %vm6274, %v7007, 0
        %v7028 = vsel %vm6274, %v7008, 0
        %v7031 = vsel %vm6274, %v7009, 0
        %7033 = vmatprep.subr.bf16.mxu0 0
        %7034 = vmatpush1.bf16.msra.mxu0 %v7010
        %7035 = vmatprep.subr.bf16.mxu0 0
        %7036 = vmatpush1.bf16.msra.mxu0 %v7011
        %7037 = vmatprep.subr.bf16.mxu0 0
        %7038 = vmatpush1.bf16.msra.mxu0 %v7012
        %7039 = vmatprep.subr.bf16.mxu0 0
        %7040 = vmatpush1.bf16.msra.mxu0 %v7013
        %7041 = vmatprep.subr.bf16.mxu0 0
        %7042 = vmatpush1.bf16.msra.mxu0 0
        %7043 = vmatprep.subr.bf16.mxu0 0
        %7044 = vmatpush1.bf16.msra.mxu0 0
        %7045 = vmatprep.subr.bf16.mxu0 0
        %7046 = vmatpush1.bf16.msra.mxu0 0
        %7047 = vmatprep.subr.bf16.mxu0 0
        %7048 = vmatpush1.bf16.msra.mxu0 0
        %7049 = vmatprep.subr.bf16.mxu0 0
        %7050 = vmatpush1.bf16.msra.mxu0 0
        %7051 = vmatprep.subr.bf16.mxu0 0
        %7052 = vmatpush1.bf16.msra.mxu0 0
        %7053 = vmatprep.subr.bf16.mxu0 0
        %7054 = vmatpush1.bf16.msra.mxu0 0
        %7055 = vmatprep.subr.bf16.mxu0 0
        %7056 = vmatpush1.bf16.msra.mxu0 0
        %7057 = vmatprep.subr.bf16.mxu0 0
        %7058 = vmatpush1.bf16.msra.mxu0 0
        %7059 = vmatprep.subr.bf16.mxu0 0
        %7060 = vmatpush1.bf16.msra.mxu0 0
        %7061 = vmatprep.subr.bf16.mxu0 0
        %7062 = vmatpush1.bf16.msra.mxu0 0
        %7063 = vmatprep.subr.bf16.mxu0 0
        %7064 = vmatpush1.bf16.msra.mxu0 0
        %7065 = vmatprep.mubr.bf16.mxu0 0
        %7066 = vmatmul.mubr.bf16.gmra.mrb[0].mxu0 %v7022
        %v7067 = vpop.f32.mrb[0].mxu0
        %v7068 = vadd.f32 %v7019, %v7067
        %v7069 = vpop.f32.mrb[0].mxu0
        %v7070 = vpop.f32.mrb[0].mxu0
        %v7071 = vadd.f32 %v7019, %v7070
        %v7072 = vpop.f32.mrb[0].mxu0
        %7073 = vmatprep.mubr.bf16.mxu0 0
        %7074 = vmatmul.mubr.bf16.gmra.mrb[0].mxu0 %v7025
        %v7075 = vpop.f32.mrb[0].mxu0
        %v7076 = vadd.f32 %v7019, %v7075
        %v7077 = vpop.f32.mrb[0].mxu0
        %v7078 = vpop.f32.mrb[0].mxu0
        %v7079 = vadd.f32 %v7019, %v7078
        %v7080 = vpop.f32.mrb[0].mxu0
        %7081 = vmatprep.mubr.bf16.mxu0 0
        %7082 = vmatmul.mubr.bf16.gmra.mrb[0].mxu0 %v7028
        %v7083 = vpop.f32.mrb[0].mxu0
        %v7084 = vadd.f32 %v7019, %v7083
        %v7085 = vpop.f32.mrb[0].mxu0
        %v7086 = vpop.f32.mrb[0].mxu0
        %v7087 = vadd.f32 %v7019, %v7086
        %v7088 = vpop.f32.mrb[0].mxu0
        %7089 = vmatprep.mubr.bf16.mxu0 0
        %7090 = vmatmul.mubr.bf16.gmra.mrb[0].mxu0 %v7031
        %v7091 = vpop.f32.mrb[0].mxu0
        %v7092 = vadd.f32 %v7019, %v7091
        %v7093 = vpop.f32.mrb[0].mxu0
        %v7094 = vpop.f32.mrb[0].mxu0
        %v7095 = vadd.f32 %v7019, %v7094
        %v7096 = vpop.f32.mrb[0].mxu0
        %7097 = vdwg.mxu0
        %v7098 = vmax.f32 %v7068, 0.0
        %v7099 = vmax.f32 %v7071, 0.0
        %v7100 = vmax.f32 %v7076, 0.0
        %v7101 = vmax.f32 %v7079, 0.0
        %v7102 = vmax.f32 %v7084, 0.0
        %v7103 = vmax.f32 %v7087, 0.0
        %v7104 = vmax.f32 %v7092, 0.0
        %v7105 = vmax.f32 %v7095, 0.0
        %v7106 = vld [vmem:[#allocation74] sm:$0xff]
        %v7107 = vld [vmem:[#allocation74 + $0x8] sm:$0xff]
        %v7108 = vld [vmem:[#allocation74 + $0x10] sm:$0xff]
        %v7109 = vld [vmem:[#allocation74 + $0x18] sm:$0xff]
        %v7110 = vld [vmem:[#allocation74 + $0x20] sm:$0xff]
        %v7111 = vld [vmem:[#allocation74 + $0x28] sm:$0xff]
        %v7112 = vld [vmem:[#allocation74 + $0x30] sm:$0xff]
        %v7113 = vld [vmem:[#allocation74 + $0x38] sm:$0xff]
        %v7114 = vld [vmem:[#allocation74 + $0x40] sm:$0xff]
        %v7115 = vld [vmem:[#allocation74 + $0x48] sm:$0xff]
        %v7116 = vld [vmem:[#allocation74 + $0x50] sm:$0xff]
        %v7117 = vld [vmem:[#allocation74 + $0x58] sm:$0xff]
        %v7118 = vld [vmem:[#allocation74 + $0x60] sm:$0xff]
        %v7119 = vld [vmem:[#allocation74 + $0x68] sm:$0xff]
        %v7120 = vld [vmem:[#allocation74 + $0x70] sm:$0xff]
        %v7121 = vld [vmem:[#allocation74 + $0x78] sm:$0xff]
        %v7122 = vld [vmem:[#allocation74 + $0x80] sm:$0xff]
        %v7123 = vld [vmem:[#allocation74 + $0x88] sm:$0xff]
        %v7124 = vld [vmem:[#allocation74 + $0x90] sm:$0xff]
        %v7125 = vld [vmem:[#allocation74 + $0x98] sm:$0xff]
        %v7126 = vld [vmem:[#allocation74 + $0xa0] sm:$0xff]
        %v7127 = vld [vmem:[#allocation74 + $0xa8] sm:$0xff]
        %v7128 = vld [vmem:[#allocation74 + $0xb0] sm:$0xff]
        %v7129 = vld [vmem:[#allocation74 + $0xb8] sm:$0xff]
        %v7130 = vld [vmem:[#allocation74 + $0xc0] sm:$0xff]
        %v7131 = vld [vmem:[#allocation74 + $0xc8] sm:$0xff]
        %v7132 = vld [vmem:[#allocation74 + $0xd0] sm:$0xff]
        %v7133 = vld [vmem:[#allocation74 + $0xd8] sm:$0xff]
        %v7134 = vld [vmem:[#allocation74 + $0xe0] sm:$0xff]
        %v7135 = vld [vmem:[#allocation74 + $0xe8] sm:$0xff]
        %v7136 = vld [vmem:[#allocation74 + $0xf0] sm:$0xff]
        %v7137 = vld [vmem:[#allocation74 + $0xf8] sm:$0xff]
        %v7138 = vpack.c.bf16 %v2823, %v2821
        %v7139 = vpack.c.bf16 %v2824, %v2822
        %v7140 = vpack.c.bf16 %v2827, %v2825
        %v7141 = vpack.c.bf16 %v2828, %v2826
        %v7142 = vpack.c.bf16 %v2831, %v2829
        %v7143 = vpack.c.bf16 %v2832, %v2830
        %v7144 = vpack.c.bf16 %v2835, %v2833
        %v7145 = vpack.c.bf16 %v2836, %v2834
        %v7146 = vpack.c.bf16 %v7107, %v7106
        %v7147 = vpack.c.bf16 %v7109, %v7108
        %v7148 = vpack.c.bf16 %v7111, %v7110
        %v7149 = vpack.c.bf16 %v7113, %v7112
        %v7150 = vpack.c.bf16 %v7115, %v7114
        %v7151 = vpack.c.bf16 %v7117, %v7116
        %v7152 = vpack.c.bf16 %v7119, %v7118
        %v7153 = vpack.c.bf16 %v7121, %v7120
        %v7154 = vpack.c.bf16 %v7123, %v7122
        %v7155 = vpack.c.bf16 %v7125, %v7124
        %v7156 = vpack.c.bf16 %v7127, %v7126
        %v7157 = vpack.c.bf16 %v7129, %v7128
        %v7158 = vpack.c.bf16 %v7131, %v7130
        %v7159 = vpack.c.bf16 %v7133, %v7132
        %v7160 = vpack.c.bf16 %v7135, %v7134
        %v7161 = vpack.c.bf16 %v7137, %v7136
        %v7162 = vld [vmem:[#allocation76] sm:$0x1]
        %v7164 = vlaneseq
        %v7165 = vshrl.u32 %v7164, 7
        %v7166 = vsub.s32 0, %v7165
        %v7167 = vrot.slane %v7162, %v7166
        %7169 = vmatprep.subr.bf16.mxu0 0
        %7170 = vmatpush1.bf16.msra.mxu0 %v7146
        %7171 = vmatprep.subr.bf16.mxu0 0
        %7172 = vmatpush1.bf16.msra.mxu0 %v7147
        %7173 = vmatprep.subr.bf16.mxu0 0
        %7174 = vmatpush1.bf16.msra.mxu0 %v7148
        %7175 = vmatprep.subr.bf16.mxu0 0
        %7176 = vmatpush1.bf16.msra.mxu0 %v7149
        %7177 = vmatprep.subr.bf16.mxu0 0
        %7178 = vmatpush1.bf16.msra.mxu0 %v7150
        %7179 = vmatprep.subr.bf16.mxu0 0
        %7180 = vmatpush1.bf16.msra.mxu0 %v7151
        %7181 = vmatprep.subr.bf16.mxu0 0
        %7182 = vmatpush1.bf16.msra.mxu0 %v7152
        %7183 = vmatprep.subr.bf16.mxu0 0
        %7184 = vmatpush1.bf16.msra.mxu0 %v7153
        %7185 = vmatprep.subr.bf16.mxu0 0
        %7186 = vmatpush1.bf16.msra.mxu0 %v7154
        %7187 = vmatprep.subr.bf16.mxu0 0
        %7188 = vmatpush1.bf16.msra.mxu0 %v7155
        %7189 = vmatprep.subr.bf16.mxu0 0
        %7190 = vmatpush1.bf16.msra.mxu0 %v7156
        %7191 = vmatprep.subr.bf16.mxu0 0
        %7192 = vmatpush1.bf16.msra.mxu0 %v7157
        %7193 = vmatprep.subr.bf16.mxu0 0
        %7194 = vmatpush1.bf16.msra.mxu0 %v7158
        %7195 = vmatprep.subr.bf16.mxu0 0
        %7196 = vmatpush1.bf16.msra.mxu0 %v7159
        %7197 = vmatprep.subr.bf16.mxu0 0
        %7198 = vmatpush1.bf16.msra.mxu0 %v7160
        %7199 = vmatprep.subr.bf16.mxu0 0
        %7200 = vmatpush1.bf16.msra.mxu0 %v7161
        %7201 = vmatprep.mubr.bf16.mxu0 %v7139
        %7202 = vmatmul.mubr.bf16.gmra.mrb[0].mxu0 %v7138
        %v7203 = vpop.f32.mrb[0].mxu0
        %v7204 = vadd.f32 %v7167, %v7203
        %v7205 = vpop.f32.mrb[0].mxu0
        %v7206 = vpop.f32.mrb[0].mxu0
        %v7207 = vadd.f32 %v7167, %v7206
        %v7208 = vpop.f32.mrb[0].mxu0
        %7209 = vmatprep.mubr.bf16.mxu0 %v7141
        %7210 = vmatmul.mubr.bf16.gmra.mrb[0].mxu0 %v7140
        %v7211 = vpop.f32.mrb[0].mxu0
        %v7212 = vadd.f32 %v7167, %v7211
        %v7213 = vpop.f32.mrb[0].mxu0
        %v7214 = vpop.f32.mrb[0].mxu0
        %v7215 = vadd.f32 %v7167, %v7214
        %v7216 = vpop.f32.mrb[0].mxu0
        %7217 = vmatprep.mubr.bf16.mxu0 %v7143
        %7218 = vmatmul.mubr.bf16.gmra.mrb[0].mxu0 %v7142
        %v7219 = vpop.f32.mrb[0].mxu0
        %v7220 = vadd.f32 %v7167, %v7219
        %v7221 = vpop.f32.mrb[0].mxu0
        %v7222 = vpop.f32.mrb[0].mxu0
        %v7223 = vadd.f32 %v7167, %v7222
        %v7224 = vpop.f32.mrb[0].mxu0
        %7225 = vmatprep.mubr.bf16.mxu0 %v7145
        %7226 = vmatmul.mubr.bf16.gmra.mrb[0].mxu0 %v7144
        %v7227 = vpop.f32.mrb[0].mxu0
        %v7228 = vadd.f32 %v7167, %v7227
        %v7229 = vpop.f32.mrb[0].mxu0
        %v7230 = vpop.f32.mrb[0].mxu0
        %v7231 = vadd.f32 %v7167, %v7230
        %v7232 = vpop.f32.mrb[0].mxu0
        %7233 = vdwg.mxu0
        %v7234 = vmax.f32 %v7204, 0.0
        %v7235 = vmax.f32 %v7207, 0.0
        %v7236 = vmax.f32 %v7212, 0.0
        %v7237 = vmax.f32 %v7215, 0.0
        %v7238 = vmax.f32 %v7220, 0.0
        %v7239 = vmax.f32 %v7223, 0.0
        %v7240 = vmax.f32 %v7228, 0.0
        %v7241 = vmax.f32 %v7231, 0.0
        %v7242 = vadd.f32 %v7098, %v7234
        %v7243 = vadd.f32 %v7099, %v7235
        %v7244 = vadd.f32 %v7100, %v7236
        %v7245 = vadd.f32 %v7101, %v7237
        %v7246 = vadd.f32 %v7102, %v7238
        %v7247 = vadd.f32 %v7103, %v7239
        %v7248 = vadd.f32 %v7104, %v7240
        %v7249 = vadd.f32 %v7105, %v7241
        %v7250 = vadd.f32 %v7242, %v7243
        %v7251 = vadd.f32 %v7250, %v7244
        %v7252 = vadd.f32 %v7251, %v7245
        %v7253 = vadd.f32 %v7252, %v7246
        %v7254 = vadd.f32 %v7253, %v7247
        %v7255 = vadd.f32 %v7254, %v7248
        %v7256 = vadd.f32 %v7255, %v7249
        %v7257 = vrot.slane %v7256, 4
        %v7258 = vadd.f32 %v7256, %v7257
        %v7259 = vrot.slane %v7258, 2
        %v7260 = vadd.f32 %v7258, %v7259
        %v7261 = vrot.slane %v7260, 1
        %v7262 = vadd.f32 %v7260, %v7261
        %v7263 = vmul.f32 %v7262, %v4168
        %v7264 = vld [vmem:[#allocation85] sm:$0xff]
        %v7265 = vld [vmem:[#allocation85 + $0x8] sm:$0xff]
        %v7266 = vld [vmem:[#allocation85 + $0x10] sm:$0xff]
        %v7267 = vld [vmem:[#allocation85 + $0x18] sm:$0xff]
        %v7268 = vld [vmem:[#allocation85 + $0x20] sm:$0xff]
        %v7269 = vld [vmem:[#allocation85 + $0x28] sm:$0xff]
        %v7270 = vld [vmem:[#allocation85 + $0x30] sm:$0xff]
        %v7271 = vld [vmem:[#allocation85 + $0x38] sm:$0xff]
        %v7272 = vld [vmem:[#allocation85 + $0x40] sm:$0xff]
        %v7273 = vld [vmem:[#allocation85 + $0x48] sm:$0xff]
        %v7274 = vld [vmem:[#allocation85 + $0x50] sm:$0xff]
        %v7275 = vld [vmem:[#allocation85 + $0x58] sm:$0xff]
        %v7276 = vld [vmem:[#allocation85 + $0x60] sm:$0xff]
        %v7277 = vld [vmem:[#allocation85 + $0x68] sm:$0xff]
        %v7278 = vld [vmem:[#allocation85 + $0x70] sm:$0xff]
        %v7279 = vld [vmem:[#allocation85 + $0x78] sm:$0xff]
        %v7280 = vpack.c.bf16 %v7263, %v7263
        %v7281 = vpack.c.bf16 %v7265, %v7264
        %v7282 = vpack.c.bf16 %v7267, %v7266
        %v7283 = vpack.c.bf16 %v7269, %v7268
        %v7284 = vpack.c.bf16 %v7271, %v7270
        %v7285 = vpack.c.bf16 %v7273, %v7272
        %v7286 = vpack.c.bf16 %v7275, %v7274
        %v7287 = vpack.c.bf16 %v7277, %v7276
        %v7288 = vpack.c.bf16 %v7279, %v7278
        %7289 = vmatprep.subr.bf16.mxu0 0
        %7290 = vmatpush1.bf16.msra.mxu0 %v7281
        %7291 = vmatprep.subr.bf16.mxu0 0
        %7292 = vmatpush1.bf16.msra.mxu0 %v7282
        %7293 = vmatprep.subr.bf16.mxu0 0
        %7294 = vmatpush1.bf16.msra.mxu0 %v7283
        %7295 = vmatprep.subr.bf16.mxu0 0
        %7296 = vmatpush1.bf16.msra.mxu0 %v7284
        %7297 = vmatprep.subr.bf16.mxu0 0
        %7298 = vmatpush1.bf16.msra.mxu0 %v7285
        %7299 = vmatprep.subr.bf16.mxu0 0
        %7300 = vmatpush1.bf16.msra.mxu0 %v7286
        %7301 = vmatprep.subr.bf16.mxu0 0
        %7302 = vmatpush1.bf16.msra.mxu0 %v7287
        %7303 = vmatprep.subr.bf16.mxu0 0
        %7304 = vmatpush1.bf16.msra.mxu0 %v7288
        %7305 = vmatprep.subr.bf16.mxu0 0
        %7306 = vmatpush1.bf16.msra.mxu0 0
        %7307 = vmatprep.subr.bf16.mxu0 0
        %7308 = vmatpush1.bf16.msra.mxu0 0
        %7309 = vmatprep.subr.bf16.mxu0 0
        %7310 = vmatpush1.bf16.msra.mxu0 0
        %7311 = vmatprep.subr.bf16.mxu0 0
        %7312 = vmatpush1.bf16.msra.mxu0 0
        %7313 = vmatprep.subr.bf16.mxu0 0
        %7314 = vmatpush1.bf16.msra.mxu0 0
        %7315 = vmatprep.subr.bf16.mxu0 0
        %7316 = vmatpush1.bf16.msra.mxu0 0
        %7317 = vmatprep.subr.bf16.mxu0 0
        %7318 = vmatpush1.bf16.msra.mxu0 0
        %7319 = vmatprep.subr.bf16.mxu0 0
        %7320 = vmatpush1.bf16.msra.mxu0 0
        %7321 = vmatprep.mubr.bf16.mxu0 0
        %7322 = vmatmul.mubr.bf16.gmra.mrb[0].mxu0 %v7280
        %v7323 = vpop.f32.mrb[0].mxu0
        %v7324 = vadd.f32 0.0, %v7323
        %v7325 = vpop.f32.mrb[0].mxu0
        %v7326 = vpop.f32.mrb[0].mxu0
        %v7327 = vpop.f32.mrb[0].mxu0
        %7328 = vdwg.mxu0
        %v7329 = vld [vmem:[%s115] sm:$0x1]
        %v7330 = vmul.f32 %v7324, %v7329
        %v7331 = vld [vmem:[%s117] sm:$0x1]
        %v7332 = vadd.f32 %v7330, %v7331
        %v7333 = vmax.f32 %v7332, 0.0
        %v7334 = vld [vmem:[#allocation86] sm:$0xff]
        %v7335 = vld [vmem:[#allocation86 + $0x8] sm:$0xff]
        %v7336 = vld [vmem:[#allocation86 + $0x10] sm:$0xff]
        %v7337 = vld [vmem:[#allocation86 + $0x18] sm:$0xff]
        %v7338 = vpack.c.bf16 %v7333, %v7333
        %v7339 = vpack.c.bf16 %v7335, %v7334
        %v7340 = vpack.c.bf16 %v7337, %v7336
        %v7342 = vsel %vm2992, %v7338, 0
        %7344 = vmatprep.subr.bf16.mxu0 0
        %7345 = vmatpush1.bf16.msra.mxu0 %v7339
        %7346 = vmatprep.subr.bf16.mxu0 0
        %7347 = vmatpush1.bf16.msra.mxu0 %v7340
        %7348 = vmatprep.subr.bf16.mxu0 0
        %7349 = vmatpush1.bf16.msra.mxu0 0
        %7350 = vmatprep.subr.bf16.mxu0 0
        %7351 = vmatpush1.bf16.msra.mxu0 0
        %7352 = vmatprep.subr.bf16.mxu0 0
        %7353 = vmatpush1.bf16.msra.mxu0 0
        %7354 = vmatprep.subr.bf16.mxu0 0
        %7355 = vmatpush1.bf16.msra.mxu0 0
        %7356 = vmatprep.subr.bf16.mxu0 0
        %7357 = vmatpush1.bf16.msra.mxu0 0
        %7358 = vmatprep.subr.bf16.mxu0 0
        %7359 = vmatpush1.bf16.msra.mxu0 0
        %7360 = vmatprep.subr.bf16.mxu0 0
        %7361 = vmatpush1.bf16.msra.mxu0 0
        %7362 = vmatprep.subr.bf16.mxu0 0
        %7363 = vmatpush1.bf16.msra.mxu0 0
        %7364 = vmatprep.subr.bf16.mxu0 0
        %7365 = vmatpush1.bf16.msra.mxu0 0
        %7366 = vmatprep.subr.bf16.mxu0 0
        %7367 = vmatpush1.bf16.msra.mxu0 0
        %7368 = vmatprep.subr.bf16.mxu0 0
        %7369 = vmatpush1.bf16.msra.mxu0 0
        %7370 = vmatprep.subr.bf16.mxu0 0
        %7371 = vmatpush1.bf16.msra.mxu0 0
        %7372 = vmatprep.subr.bf16.mxu0 0
        %7373 = vmatpush1.bf16.msra.mxu0 0
        %7374 = vmatprep.subr.bf16.mxu0 0
        %7375 = vmatpush1.bf16.msra.mxu0 0
        %7376 = vmatprep.mubr.bf16.mxu0 0
        %7377 = vmatmul.mubr.bf16.gmra.mrb[0].mxu0 %v7342
        %v7378 = vpop.f32.mrb[0].mxu0
        %v7379 = vadd.f32 0.0, %v7378
        %v7380 = vpop.f32.mrb[0].mxu0
        %v7381 = vpop.f32.mrb[0].mxu0
        %v7382 = vpop.f32.mrb[0].mxu0
        %7383 = vdwg.mxu0
        %v7384 = vld [vmem:[%s121] sm:$0xff]
        %v7385 = vld [vmem:[%s121 + $0x8] sm:$0xff]
        %v7386 = vld [vmem:[%s121 + $0x10] sm:$0xff]
        %v7387 = vld [vmem:[%s121 + $0x18] sm:$0xff]
        %v7388 = vpack.c.bf16 %v7385, %v7384
        %v7389 = vpack.c.bf16 %v7387, %v7386
        %7390 = vmatprep.subr.bf16.mxu0 0
        %7391 = vmatpush1.bf16.msra.mxu0 %v7388
        %7392 = vmatprep.subr.bf16.mxu0 0
        %7393 = vmatpush1.bf16.msra.mxu0 %v7389
        %7394 = vmatprep.subr.bf16.mxu0 0
        %7395 = vmatpush1.bf16.msra.mxu0 0
        %7396 = vmatprep.subr.bf16.mxu0 0
        %7397 = vmatpush1.bf16.msra.mxu0 0
        %7398 = vmatprep.subr.bf16.mxu0 0
        %7399 = vmatpush1.bf16.msra.mxu0 0
        %7400 = vmatprep.subr.bf16.mxu0 0
        %7401 = vmatpush1.bf16.msra.mxu0 0
        %7402 = vmatprep.subr.bf16.mxu0 0
        %7403 = vmatpush1.bf16.msra.mxu0 0
        %7404 = vmatprep.subr.bf16.mxu0 0
        %7405 = vmatpush1.bf16.msra.mxu0 0
        %7406 = vmatprep.subr.bf16.mxu0 0
        %7407 = vmatpush1.bf16.msra.mxu0 0
        %7408 = vmatprep.subr.bf16.mxu0 0
        %7409 = vmatpush1.bf16.msra.mxu0 0
        %7410 = vmatprep.subr.bf16.mxu0 0
        %7411 = vmatpush1.bf16.msra.mxu0 0
        %7412 = vmatprep.subr.bf16.mxu0 0
        %7413 = vmatpush1.bf16.msra.mxu0 0
        %7414 = vmatprep.subr.bf16.mxu0 0
        %7415 = vmatpush1.bf16.msra.mxu0 0
        %7416 = vmatprep.subr.bf16.mxu0 0
        %7417 = vmatpush1.bf16.msra.mxu0 0
        %7418 = vmatprep.subr.bf16.mxu0 0
        %7419 = vmatpush1.bf16.msra.mxu0 0
        %7420 = vmatprep.subr.bf16.mxu0 0
        %7421 = vmatpush1.bf16.msra.mxu0 0
        %7422 = vmatprep.mubr.bf16.mxu0 0
        %7423 = vmatmul.mubr.bf16.gmra.mrb[0].mxu0 %v7342
        %v7424 = vpop.f32.mrb[0].mxu0
        %v7425 = vadd.f32 0.0, %v7424
        %v7426 = vpop.f32.mrb[0].mxu0
        %v7427 = vpop.f32.mrb[0].mxu0
        %v7428 = vpop.f32.mrb[0].mxu0
        %7429 = vdwg.mxu0
        %v7430 = vmax.f32 %v7379, %v7425
        %v7431 = vsub.f32 %v7379, %v7430
        %v7432 = vmul.f32 %v7431, 1.442695
        %v7433 = vpow.pop %v7432
        %v7434 = vsub.f32 %v7425, %v7430
        %v7435 = vmul.f32 %v7434, 1.442695
        %v7436 = vpow.pop %v7435
        %v7437 = vadd.f32 %v7433, %v7436
        %v7438 = vrcp.pop %v7437
        %v7439 = vmul.f32 1.0, %v7438
        %v7440 = vmul.f32 %v7433, %v7439
        %v7441 = vlaneseq
        %v7442 = vshrl.u32 %v7441, 7
        %v7443 = vsub.s32 0, %v7442
        %v7444 = vrot.slane %v7440, %v7443
        %v7445 = vmul.f32 %v7098, %v7444
        %v7446 = vmul.f32 %v7099, %v7444
        %v7447 = vmul.f32 %v7100, %v7444
        %v7448 = vmul.f32 %v7101, %v7444
        %v7449 = vmul.f32 %v7102, %v7444
        %v7450 = vmul.f32 %v7103, %v7444
        %v7451 = vmul.f32 %v7104, %v7444
        %v7452 = vmul.f32 %v7105, %v7444
        %v7453 = vmul.f32 %v7436, %v7439
        %v7454 = vlaneseq
        %v7455 = vshrl.u32 %v7454, 7
        %v7456 = vsub.s32 0, %v7455
        %v7457 = vrot.slane %v7453, %v7456
        %v7458 = vmul.f32 %v7234, %v7457
        %v7459 = vmul.f32 %v7235, %v7457
        %v7460 = vmul.f32 %v7236, %v7457
        %v7461 = vmul.f32 %v7237, %v7457
        %v7462 = vmul.f32 %v7238, %v7457
        %v7463 = vmul.f32 %v7239, %v7457
        %v7464 = vmul.f32 %v7240, %v7457
        %v7465 = vmul.f32 %v7241, %v7457
        %v7466 = vadd.f32 %v7445, %v7458
        %v7467 = vadd.f32 %v7446, %v7459
        %v7468 = vadd.f32 %v7447, %v7460
        %v7469 = vadd.f32 %v7448, %v7461
        %v7470 = vadd.f32 %v7449, %v7462
        %v7471 = vadd.f32 %v7450, %v7463
        %v7472 = vadd.f32 %v7451, %v7464
        %v7473 = vadd.f32 %v7452, %v7465
        %v7474 = vld [vmem:[%s123] sm:$0xff]
        %v7475 = vld [vmem:[%s123 + $0x8] sm:$0xff]
        %v7476 = vld [vmem:[%s123 + $0x10] sm:$0xff]
        %v7477 = vld [vmem:[%s123 + $0x18] sm:$0xff]
        %v7478 = vld [vmem:[%s123 + $0x20] sm:$0xff]
        %v7479 = vld [vmem:[%s123 + $0x28] sm:$0xff]
        %v7480 = vld [vmem:[%s123 + $0x30] sm:$0xff]
        %v7481 = vld [vmem:[%s123 + $0x38] sm:$0xff]
        %v7482 = vld [vmem:[%s123 + $0x40] sm:$0xff]
        %v7483 = vld [vmem:[%s123 + $0x48] sm:$0xff]
        %v7484 = vld [vmem:[%s123 + $0x50] sm:$0xff]
        %v7485 = vld [vmem:[%s123 + $0x58] sm:$0xff]
        %v7486 = vld [vmem:[%s123 + $0x60] sm:$0xff]
        %v7487 = vld [vmem:[%s123 + $0x68] sm:$0xff]
        %v7488 = vld [vmem:[%s123 + $0x70] sm:$0xff]
        %v7489 = vld [vmem:[%s123 + $0x78] sm:$0xff]
        %v7490 = vpack.c.bf16 %v6991, %v6990
        %v7491 = vpack.c.bf16 %v6993, %v6992
        %v7492 = vpack.c.bf16 %v6995, %v6994
        %v7493 = vpack.c.bf16 %v6997, %v6996
        %v7494 = vpack.c.bf16 %v7476, %v7474
        %v7495 = vpack.c.bf16 %v7477, %v7475
        %v7496 = vpack.c.bf16 %v7480, %v7478
        %v7497 = vpack.c.bf16 %v7481, %v7479
        %v7498 = vpack.c.bf16 %v7484, %v7482
        %v7499 = vpack.c.bf16 %v7485, %v7483
        %v7500 = vpack.c.bf16 %v7488, %v7486
        %v7501 = vpack.c.bf16 %v7489, %v7487
        %v7502 = vld [vmem:[#allocation88] sm:$0xff]
        %v7503 = vld [vmem:[#allocation88 + $0x8] sm:$0xff]
        %v7504 = vld [vmem:[#allocation88 + $0x10] sm:$0xff]
        %v7505 = vld [vmem:[#allocation88 + $0x18] sm:$0xff]
        %v7506 = vld [vmem:[#allocation88 + $0x20] sm:$0xff]
        %v7507 = vld [vmem:[#allocation88 + $0x28] sm:$0xff]
        %v7508 = vld [vmem:[#allocation88 + $0x30] sm:$0xff]
        %v7509 = vld [vmem:[#allocation88 + $0x38] sm:$0xff]
        %v7510 = vld [vmem:[#allocation88 + $0x40] sm:$0xff]
        %v7511 = vld [vmem:[#allocation88 + $0x48] sm:$0xff]
        %v7512 = vld [vmem:[#allocation88 + $0x50] sm:$0xff]
        %v7513 = vld [vmem:[#allocation88 + $0x58] sm:$0xff]
        %v7514 = vld [vmem:[#allocation88 + $0x60] sm:$0xff]
        %v7515 = vld [vmem:[#allocation88 + $0x68] sm:$0xff]
        %v7516 = vld [vmem:[#allocation88 + $0x70] sm:$0xff]
        %v7517 = vld [vmem:[#allocation88 + $0x78] sm:$0xff]
        %v7518 = vld [vmem:[#allocation88 + $0x80] sm:$0xff]
        %v7519 = vld [vmem:[#allocation88 + $0x88] sm:$0xff]
        %v7520 = vld [vmem:[#allocation88 + $0x90] sm:$0xff]
        %v7521 = vld [vmem:[#allocation88 + $0x98] sm:$0xff]
        %v7522 = vld [vmem:[#allocation88 + $0xa0] sm:$0xff]
        %v7523 = vld [vmem:[#allocation88 + $0xa8] sm:$0xff]
        %v7524 = vld [vmem:[#allocation88 + $0xb0] sm:$0xff]
        %v7525 = vld [vmem:[#allocation88 + $0xb8] sm:$0xff]
        %v7526 = vld [vmem:[#allocation88 + $0xc0] sm:$0xff]
        %v7527 = vld [vmem:[#allocation88 + $0xc8] sm:$0xff]
        %v7528 = vld [vmem:[#allocation88 + $0xd0] sm:$0xff]
        %v7529 = vld [vmem:[#allocation88 + $0xd8] sm:$0xff]
        %v7530 = vld [vmem:[#allocation88 + $0xe0] sm:$0xff]
        %v7531 = vld [vmem:[#allocation88 + $0xe8] sm:$0xff]
        %v7532 = vld [vmem:[#allocation88 + $0xf0] sm:$0xff]
        %v7533 = vld [vmem:[#allocation88 + $0xf8] sm:$0xff]
        %v7534 = vpack.c.bf16 %v7467, %v7466
        %v7535 = vpack.c.bf16 %v7469, %v7468
        %v7536 = vpack.c.bf16 %v7471, %v7470
        %v7537 = vpack.c.bf16 %v7473, %v7472
        %v7538 = vpack.c.bf16 %v7504, %v7502
        %v7539 = vpack.c.bf16 %v7505, %v7503
        %v7540 = vpack.c.bf16 %v7508, %v7506
        %v7541 = vpack.c.bf16 %v7509, %v7507
        %v7542 = vpack.c.bf16 %v7512, %v7510
        %v7543 = vpack.c.bf16 %v7513, %v7511
        %v7544 = vpack.c.bf16 %v7516, %v7514
        %v7545 = vpack.c.bf16 %v7517, %v7515
        %v7546 = vpack.c.bf16 %v7520, %v7518
        %v7547 = vpack.c.bf16 %v7521, %v7519
        %v7548 = vpack.c.bf16 %v7524, %v7522
        %v7549 = vpack.c.bf16 %v7525, %v7523
        %v7550 = vpack.c.bf16 %v7528, %v7526
        %v7551 = vpack.c.bf16 %v7529, %v7527
        %v7552 = vpack.c.bf16 %v7532, %v7530
        %v7553 = vpack.c.bf16 %v7533, %v7531
        %7554 = vmatprep.subr.bf16.mxu0 %v7539
        %7555 = vmatpush1.bf16.msra.mxu0 %v7538
        %7556 = vmatprep.subr.bf16.mxu0 %v7541
        %7557 = vmatpush1.bf16.msra.mxu0 %v7540
        %7558 = vmatprep.subr.bf16.mxu0 %v7543
        %7559 = vmatpush1.bf16.msra.mxu0 %v7542
        %7560 = vmatprep.subr.bf16.mxu0 %v7545
        %7561 = vmatpush1.bf16.msra.mxu0 %v7544
        %7562 = vmatprep.subr.bf16.mxu0 %v7547
        %7563 = vmatpush1.bf16.msra.mxu0 %v7546
        %7564 = vmatprep.subr.bf16.mxu0 %v7549
        %7565 = vmatpush1.bf16.msra.mxu0 %v7548
        %7566 = vmatprep.subr.bf16.mxu0 %v7551
        %7567 = vmatpush1.bf16.msra.mxu0 %v7550
        %7568 = vmatprep.subr.bf16.mxu0 %v7553
        %7569 = vmatpush1.bf16.msra.mxu0 %v7552
        %7570 = vmatprep.subr.bf16.mxu0 0
        %7571 = vmatpush1.bf16.msra.mxu0 0
        %7572 = vmatprep.subr.bf16.mxu0 0
        %7573 = vmatpush1.bf16.msra.mxu0 0
        %7574 = vmatprep.subr.bf16.mxu0 0
        %7575 = vmatpush1.bf16.msra.mxu0 0
        %7576 = vmatprep.subr.bf16.mxu0 0
        %7577 = vmatpush1.bf16.msra.mxu0 0
        %7578 = vmatprep.subr.bf16.mxu0 0
        %7579 = vmatpush1.bf16.msra.mxu0 0
        %7580 = vmatprep.subr.bf16.mxu0 0
        %7581 = vmatpush1.bf16.msra.mxu0 0
        %7582 = vmatprep.subr.bf16.mxu0 0
        %7583 = vmatpush1.bf16.msra.mxu0 0
        %7584 = vmatprep.subr.bf16.mxu0 0
        %7585 = vmatpush1.bf16.msra.mxu0 0
        %7586 = vmatprep.mubr.bf16.mxu0 0
        %7587 = vmatmul.mubr.bf16.gmra.mrb[0].mxu0 %v7534
        %v7588 = vpop.f32.mrb[0].mxu0
        %v7589 = vadd.f32 0.0, %v7588
        %v7590 = vpop.f32.mrb[0].mxu0
        %v7591 = vadd.f32 0.0, %v7590
        %v7592 = vpop.f32.mrb[0].mxu0
        %v7593 = vadd.f32 0.0, %v7592
        %v7594 = vpop.f32.mrb[0].mxu0
        %v7595 = vadd.f32 0.0, %v7594
        %7596 = vmatprep.mubr.bf16.mxu0 0
        %7597 = vmatmul.mubr.bf16.gmra.mrb[0].mxu0 %v7535
        %v7598 = vpop.f32.mrb[0].mxu0
        %v7599 = vadd.f32 0.0, %v7598
        %v7600 = vpop.f32.mrb[0].mxu0
        %v7601 = vadd.f32 0.0, %v7600
        %v7602 = vpop.f32.mrb[0].mxu0
        %v7603 = vadd.f32 0.0, %v7602
        %v7604 = vpop.f32.mrb[0].mxu0
        %v7605 = vadd.f32 0.0, %v7604
        %7606 = vmatprep.mubr.bf16.mxu0 0
        %7607 = vmatmul.mubr.bf16.gmra.mrb[0].mxu0 %v7536
        %v7608 = vpop.f32.mrb[0].mxu0
        %v7609 = vadd.f32 0.0, %v7608
        %v7610 = vpop.f32.mrb[0].mxu0
        %v7611 = vadd.f32 0.0, %v7610
        %v7612 = vpop.f32.mrb[0].mxu0
        %v7613 = vadd.f32 0.0, %v7612
        %v7614 = vpop.f32.mrb[0].mxu0
        %v7615 = vadd.f32 0.0, %v7614
        %7616 = vmatprep.mubr.bf16.mxu0 0
        %7617 = vmatmul.mubr.bf16.gmra.mrb[0].mxu0 %v7537
        %v7618 = vpop.f32.mrb[0].mxu0
        %v7619 = vadd.f32 0.0, %v7618
        %v7620 = vpop.f32.mrb[0].mxu0
        %v7621 = vadd.f32 0.0, %v7620
        %v7622 = vpop.f32.mrb[0].mxu0
        %v7623 = vadd.f32 0.0, %v7622
        %v7624 = vpop.f32.mrb[0].mxu0
        %v7625 = vadd.f32 0.0, %v7624
        %7626 = vdwg.mxu0
        %v7628 = vsel %vm6274, %v7490, 0
        %v7631 = vsel %vm6274, %v7491, 0
        %v7634 = vsel %vm6274, %v7492, 0
        %v7637 = vsel %vm6274, %v7493, 0
        %7639 = vmatprep.subr.bf16.mxu0 %v7495
        %7640 = vmatpush1.bf16.msra.mxu0 %v7494
        %7641 = vmatprep.subr.bf16.mxu0 %v7497
        %7642 = vmatpush1.bf16.msra.mxu0 %v7496
        %7643 = vmatprep.subr.bf16.mxu0 %v7499
        %7644 = vmatpush1.bf16.msra.mxu0 %v7498
        %7645 = vmatprep.subr.bf16.mxu0 %v7501
        %7646 = vmatpush1.bf16.msra.mxu0 %v7500
        %7647 = vmatprep.subr.bf16.mxu0 0
        %7648 = vmatpush1.bf16.msra.mxu0 0
        %7649 = vmatprep.subr.bf16.mxu0 0
        %7650 = vmatpush1.bf16.msra.mxu0 0
        %7651 = vmatprep.subr.bf16.mxu0 0
        %7652 = vmatpush1.bf16.msra.mxu0 0
        %7653 = vmatprep.subr.bf16.mxu0 0
        %7654 = vmatpush1.bf16.msra.mxu0 0
        %7655 = vmatprep.subr.bf16.mxu0 0
        %7656 = vmatpush1.bf16.msra.mxu0 0
        %7657 = vmatprep.subr.bf16.mxu0 0
        %7658 = vmatpush1.bf16.msra.mxu0 0
        %7659 = vmatprep.subr.bf16.mxu0 0
        %7660 = vmatpush1.bf16.msra.mxu0 0
        %7661 = vmatprep.subr.bf16.mxu0 0
        %7662 = vmatpush1.bf16.msra.mxu0 0
        %7663 = vmatprep.subr.bf16.mxu0 0
        %7664 = vmatpush1.bf16.msra.mxu0 0
        %7665 = vmatprep.subr.bf16.mxu0 0
        %7666 = vmatpush1.bf16.msra.mxu0 0
        %7667 = vmatprep.subr.bf16.mxu0 0
        %7668 = vmatpush1.bf16.msra.mxu0 0
        %7669 = vmatprep.subr.bf16.mxu0 0
        %7670 = vmatpush1.bf16.msra.mxu0 0
        %7671 = vmatprep.mubr.bf16.mxu0 0
        %7672 = vmatmul.mubr.bf16.gmra.mrb[0].mxu0 %v7628
        %v7673 = vpop.f32.mrb[0].mxu0
        %v7674 = vadd.f32 %v7589, %v7673
        %v7675 = vpop.f32.mrb[0].mxu0
        %v7676 = vadd.f32 %v7591, %v7675
        %v7677 = vpop.f32.mrb[0].mxu0
        %v7678 = vadd.f32 %v7593, %v7677
        %v7679 = vpop.f32.mrb[0].mxu0
        %v7680 = vadd.f32 %v7595, %v7679
        %7681 = vmatprep.mubr.bf16.mxu0 0
        %7682 = vmatmul.mubr.bf16.gmra.mrb[0].mxu0 %v7631
        %v7683 = vpop.f32.mrb[0].mxu0
        %v7684 = vadd.f32 %v7599, %v7683
        %v7685 = vpop.f32.mrb[0].mxu0
        %v7686 = vadd.f32 %v7601, %v7685
        %v7687 = vpop.f32.mrb[0].mxu0
        %v7688 = vadd.f32 %v7603, %v7687
        %v7689 = vpop.f32.mrb[0].mxu0
        %v7690 = vadd.f32 %v7605, %v7689
        %7691 = vmatprep.mubr.bf16.mxu0 0
        %7692 = vmatmul.mubr.bf16.gmra.mrb[0].mxu0 %v7634
        %v7693 = vpop.f32.mrb[0].mxu0
        %v7694 = vadd.f32 %v7609, %v7693
        %v7695 = vpop.f32.mrb[0].mxu0
        %v7696 = vadd.f32 %v7611, %v7695
        %v7697 = vpop.f32.mrb[0].mxu0
        %v7698 = vadd.f32 %v7613, %v7697
        %v7699 = vpop.f32.mrb[0].mxu0
        %v7700 = vadd.f32 %v7615, %v7699
        %7701 = vmatprep.mubr.bf16.mxu0 0
        %7702 = vmatmul.mubr.bf16.gmra.mrb[0].mxu0 %v7637
        %v7703 = vpop.f32.mrb[0].mxu0
        %v7704 = vadd.f32 %v7619, %v7703
        %v7705 = vpop.f32.mrb[0].mxu0
        %v7706 = vadd.f32 %v7621, %v7705
        %v7707 = vpop.f32.mrb[0].mxu0
        %v7708 = vadd.f32 %v7623, %v7707
        %v7709 = vpop.f32.mrb[0].mxu0
        %v7710 = vadd.f32 %v7625, %v7709
        %7711 = vdwg.mxu0
        %v7712 = vld [vmem:[%s127] sm:$0x3]
        %v7714 = vlaneseq
        %v7715 = vshrl.u32 %v7714, 7
        %v7716 = vsub.s32 0, %v7715
        %v7717 = vrot.slane %v7712, %v7716
        %v7718 = vlaneseq
        %v7719 = vshrl.u32 %v7718, 7
        %v7720 = vsub.s32 1, %v7719
        %v7721 = vrot.slane %v7712, %v7720
        %v7724 = vadd.f32 %v7674, %v7717
        %v7725 = vadd.f32 %v7676, %v7721
        %v7726 = vadd.f32 %v7678, %v7717
        %v7727 = vadd.f32 %v7680, %v7721
        %v7728 = vadd.f32 %v7684, %v7717
        %v7729 = vadd.f32 %v7686, %v7721
        %v7730 = vadd.f32 %v7688, %v7717
        %v7731 = vadd.f32 %v7690, %v7721
        %v7732 = vadd.f32 %v7694, %v7717
        %v7733 = vadd.f32 %v7696, %v7721
        %v7734 = vadd.f32 %v7698, %v7717
        %v7735 = vadd.f32 %v7700, %v7721
        %v7736 = vadd.f32 %v7704, %v7717
        %v7737 = vadd.f32 %v7706, %v7721
        %v7738 = vadd.f32 %v7708, %v7717
        %v7739 = vadd.f32 %v7710, %v7721
        %v7740 = vmax.f32 %v7724, 0.0
        %v7741 = vmax.f32 %v7725, 0.0
        %v7742 = vmax.f32 %v7726, 0.0
        %v7743 = vmax.f32 %v7727, 0.0
        %v7744 = vmax.f32 %v7728, 0.0
        %v7745 = vmax.f32 %v7729, 0.0
        %v7746 = vmax.f32 %v7730, 0.0
        %v7747 = vmax.f32 %v7731, 0.0
        %v7748 = vmax.f32 %v7732, 0.0
        %v7749 = vmax.f32 %v7733, 0.0
        %v7750 = vmax.f32 %v7734, 0.0
        %v7751 = vmax.f32 %v7735, 0.0
        %v7752 = vmax.f32 %v7736, 0.0
        %v7753 = vmax.f32 %v7737, 0.0
        %v7754 = vmax.f32 %v7738, 0.0
        %v7755 = vmax.f32 %v7739, 0.0
        %v7756 = vld [vmem:[#allocation89] sm:$0xff]
        %v7757 = vld [vmem:[#allocation89 + $0x8] sm:$0xff]
        %v7758 = vld [vmem:[#allocation89 + $0x10] sm:$0xff]
        %v7759 = vld [vmem:[#allocation89 + $0x18] sm:$0xff]
        %v7760 = vld [vmem:[#allocation89 + $0x20] sm:$0xff]
        %v7761 = vld [vmem:[#allocation89 + $0x28] sm:$0xff]
        %v7762 = vld [vmem:[#allocation89 + $0x30] sm:$0xff]
        %v7763 = vld [vmem:[#allocation89 + $0x38] sm:$0xff]
        %v7764 = vld [vmem:[#allocation89 + $0x40] sm:$0xff]
        %v7765 = vld [vmem:[#allocation89 + $0x48] sm:$0xff]
        %v7766 = vld [vmem:[#allocation89 + $0x50] sm:$0xff]
        %v7767 = vld [vmem:[#allocation89 + $0x58] sm:$0xff]
        %v7768 = vld [vmem:[#allocation89 + $0x60] sm:$0xff]
        %v7769 = vld [vmem:[#allocation89 + $0x68] sm:$0xff]
        %v7770 = vld [vmem:[#allocation89 + $0x70] sm:$0xff]
        %v7771 = vld [vmem:[#allocation89 + $0x78] sm:$0xff]
        %v7772 = vld [vmem:[#allocation89 + $0x80] sm:$0xff]
        %v7773 = vld [vmem:[#allocation89 + $0x88] sm:$0xff]
        %v7774 = vld [vmem:[#allocation89 + $0x90] sm:$0xff]
        %v7775 = vld [vmem:[#allocation89 + $0x98] sm:$0xff]
        %v7776 = vld [vmem:[#allocation89 + $0xa0] sm:$0xff]
        %v7777 = vld [vmem:[#allocation89 + $0xa8] sm:$0xff]
        %v7778 = vld [vmem:[#allocation89 + $0xb0] sm:$0xff]
        %v7779 = vld [vmem:[#allocation89 + $0xb8] sm:$0xff]
        %v7780 = vld [vmem:[#allocation89 + $0xc0] sm:$0xff]
        %v7781 = vld [vmem:[#allocation89 + $0xc8] sm:$0xff]
        %v7782 = vld [vmem:[#allocation89 + $0xd0] sm:$0xff]
        %v7783 = vld [vmem:[#allocation89 + $0xd8] sm:$0xff]
        %v7784 = vld [vmem:[#allocation89 + $0xe0] sm:$0xff]
        %v7785 = vld [vmem:[#allocation89 + $0xe8] sm:$0xff]
        %v7786 = vld [vmem:[#allocation89 + $0xf0] sm:$0xff]
        %v7787 = vld [vmem:[#allocation89 + $0xf8] sm:$0xff]
        %v7788 = vld [vmem:[#allocation89 + $0x100] sm:$0xff]
        %v7789 = vld [vmem:[#allocation89 + $0x108] sm:$0xff]
        %v7790 = vld [vmem:[#allocation89 + $0x110] sm:$0xff]
        %v7791 = vld [vmem:[#allocation89 + $0x118] sm:$0xff]
        %v7792 = vld [vmem:[#allocation89 + $0x120] sm:$0xff]
        %v7793 = vld [vmem:[#allocation89 + $0x128] sm:$0xff]
        %v7794 = vld [vmem:[#allocation89 + $0x130] sm:$0xff]
        %v7795 = vld [vmem:[#allocation89 + $0x138] sm:$0xff]
        %v7796 = vld [vmem:[#allocation89 + $0x140] sm:$0xff]
        %v7797 = vld [vmem:[#allocation89 + $0x148] sm:$0xff]
        %v7798 = vld [vmem:[#allocation89 + $0x150] sm:$0xff]
        %v7799 = vld [vmem:[#allocation89 + $0x158] sm:$0xff]
        %v7800 = vld [vmem:[#allocation89 + $0x160] sm:$0xff]
        %v7801 = vld [vmem:[#allocation89 + $0x168] sm:$0xff]
        %v7802 = vld [vmem:[#allocation89 + $0x170] sm:$0xff]
        %v7803 = vld [vmem:[#allocation89 + $0x178] sm:$0xff]
        %v7804 = vld [vmem:[#allocation89 + $0x180] sm:$0xff]
        %v7805 = vld [vmem:[#allocation89 + $0x188] sm:$0xff]
        %v7806 = vld [vmem:[#allocation89 + $0x190] sm:$0xff]
        %v7807 = vld [vmem:[#allocation89 + $0x198] sm:$0xff]
        %v7808 = vld [vmem:[#allocation89 + $0x1a0] sm:$0xff]
        %v7809 = vld [vmem:[#allocation89 + $0x1a8] sm:$0xff]
        %v7810 = vld [vmem:[#allocation89 + $0x1b0] sm:$0xff]
        %v7811 = vld [vmem:[#allocation89 + $0x1b8] sm:$0xff]
        %v7812 = vld [vmem:[#allocation89 + $0x1c0] sm:$0xff]
        %v7813 = vld [vmem:[#allocation89 + $0x1c8] sm:$0xff]
        %v7814 = vld [vmem:[#allocation89 + $0x1d0] sm:$0xff]
        %v7815 = vld [vmem:[#allocation89 + $0x1d8] sm:$0xff]
        %v7816 = vld [vmem:[#allocation89 + $0x1e0] sm:$0xff]
        %v7817 = vld [vmem:[#allocation89 + $0x1e8] sm:$0xff]
        %v7818 = vld [vmem:[#allocation89 + $0x1f0] sm:$0xff]
        %v7819 = vld [vmem:[#allocation89 + $0x1f8] sm:$0xff]
        %v7820 = vld [vmem:[#allocation89 + $0x200] sm:$0xff]
        %v7821 = vld [vmem:[#allocation89 + $0x208] sm:$0xff]
        %v7822 = vld [vmem:[#allocation89 + $0x210] sm:$0xff]
        %v7823 = vld [vmem:[#allocation89 + $0x218] sm:$0xff]
        %v7824 = vld [vmem:[#allocation89 + $0x220] sm:$0xff]
        %v7825 = vld [vmem:[#allocation89 + $0x228] sm:$0xff]
        %v7826 = vld [vmem:[#allocation89 + $0x230] sm:$0xff]
        %v7827 = vld [vmem:[#allocation89 + $0x238] sm:$0xff]
        %v7828 = vld [vmem:[#allocation89 + $0x240] sm:$0xff]
        %v7829 = vld [vmem:[#allocation89 + $0x248] sm:$0xff]
        %v7830 = vld [vmem:[#allocation89 + $0x250] sm:$0xff]
        %v7831 = vld [vmem:[#allocation89 + $0x258] sm:$0xff]
        %v7832 = vld [vmem:[#allocation89 + $0x260] sm:$0xff]
        %v7833 = vld [vmem:[#allocation89 + $0x268] sm:$0xff]
        %v7834 = vld [vmem:[#allocation89 + $0x270] sm:$0xff]
        %v7835 = vld [vmem:[#allocation89 + $0x278] sm:$0xff]
        %v7836 = vld [vmem:[#allocation89 + $0x280] sm:$0xff]
        %v7837 = vld [vmem:[#allocation89 + $0x288] sm:$0xff]
        %v7838 = vld [vmem:[#allocation89 + $0x290] sm:$0xff]
        %v7839 = vld [vmem:[#allocation89 + $0x298] sm:$0xff]
        %v7840 = vld [vmem:[#allocation89 + $0x2a0] sm:$0xff]
        %v7841 = vld [vmem:[#allocation89 + $0x2a8] sm:$0xff]
        %v7842 = vld [vmem:[#allocation89 + $0x2b0] sm:$0xff]
        %v7843 = vld [vmem:[#allocation89 + $0x2b8] sm:$0xff]
        %v7844 = vld [vmem:[#allocation89 + $0x2c0] sm:$0xff]
        %v7845 = vld [vmem:[#allocation89 + $0x2c8] sm:$0xff]
        %v7846 = vld [vmem:[#allocation89 + $0x2d0] sm:$0xff]
        %v7847 = vld [vmem:[#allocation89 + $0x2d8] sm:$0xff]
        %v7848 = vld [vmem:[#allocation89 + $0x2e0] sm:$0xff]
        %v7849 = vld [vmem:[#allocation89 + $0x2e8] sm:$0xff]
        %v7850 = vld [vmem:[#allocation89 + $0x2f0] sm:$0xff]
        %v7851 = vld [vmem:[#allocation89 + $0x2f8] sm:$0xff]
        %v7852 = vld [vmem:[#allocation89 + $0x300] sm:$0xff]
        %v7853 = vld [vmem:[#allocation89 + $0x308] sm:$0xff]
        %v7854 = vld [vmem:[#allocation89 + $0x310] sm:$0xff]
        %v7855 = vld [vmem:[#allocation89 + $0x318] sm:$0xff]
        %v7856 = vld [vmem:[#allocation89 + $0x320] sm:$0xff]
        %v7857 = vld [vmem:[#allocation89 + $0x328] sm:$0xff]
        %v7858 = vld [vmem:[#allocation89 + $0x330] sm:$0xff]
        %v7859 = vld [vmem:[#allocation89 + $0x338] sm:$0xff]
        %v7860 = vld [vmem:[#allocation89 + $0x340] sm:$0xff]
        %v7861 = vld [vmem:[#allocation89 + $0x348] sm:$0xff]
        %v7862 = vld [vmem:[#allocation89 + $0x350] sm:$0xff]
        %v7863 = vld [vmem:[#allocation89 + $0x358] sm:$0xff]
        %v7864 = vld [vmem:[#allocation89 + $0x360] sm:$0xff]
        %v7865 = vld [vmem:[#allocation89 + $0x368] sm:$0xff]
        %v7866 = vld [vmem:[#allocation89 + $0x370] sm:$0xff]
        %v7867 = vld [vmem:[#allocation89 + $0x378] sm:$0xff]
        %v7868 = vld [vmem:[#allocation89 + $0x380] sm:$0xff]
        %v7869 = vld [vmem:[#allocation89 + $0x388] sm:$0xff]
        %v7870 = vld [vmem:[#allocation89 + $0x390] sm:$0xff]
        %v7871 = vld [vmem:[#allocation89 + $0x398] sm:$0xff]
        %v7872 = vld [vmem:[#allocation89 + $0x3a0] sm:$0xff]
        %v7873 = vld [vmem:[#allocation89 + $0x3a8] sm:$0xff]
        %v7874 = vld [vmem:[#allocation89 + $0x3b0] sm:$0xff]
        %v7875 = vld [vmem:[#allocation89 + $0x3b8] sm:$0xff]
        %v7876 = vld [vmem:[#allocation89 + $0x3c0] sm:$0xff]
        %v7877 = vld [vmem:[#allocation89 + $0x3c8] sm:$0xff]
        %v7878 = vld [vmem:[#allocation89 + $0x3d0] sm:$0xff]
        %v7879 = vld [vmem:[#allocation89 + $0x3d8] sm:$0xff]
        %v7880 = vld [vmem:[#allocation89 + $0x3e0] sm:$0xff]
        %v7881 = vld [vmem:[#allocation89 + $0x3e8] sm:$0xff]
        %v7882 = vld [vmem:[#allocation89 + $0x3f0] sm:$0xff]
        %v7883 = vld [vmem:[#allocation89 + $0x3f8] sm:$0xff]
        %v7884 = vpack.c.bf16 %v7742, %v7740
        %v7885 = vpack.c.bf16 %v7743, %v7741
        %v7886 = vpack.c.bf16 %v7746, %v7744
        %v7887 = vpack.c.bf16 %v7747, %v7745
        %v7888 = vpack.c.bf16 %v7750, %v7748
        %v7889 = vpack.c.bf16 %v7751, %v7749
        %v7890 = vpack.c.bf16 %v7754, %v7752
        %v7891 = vpack.c.bf16 %v7755, %v7753
        %v7892 = vpack.c.bf16 %v7760, %v7756
        %v7893 = vpack.c.bf16 %v7761, %v7757
        %v7894 = vpack.c.bf16 %v7762, %v7758
        %v7895 = vpack.c.bf16 %v7763, %v7759
        %v7896 = vpack.c.bf16 %v7768, %v7764
        %v7897 = vpack.c.bf16 %v7769, %v7765
        %v7898 = vpack.c.bf16 %v7770, %v7766
        %v7899 = vpack.c.bf16 %v7771, %v7767
        %v7900 = vpack.c.bf16 %v7776, %v7772
        %v7901 = vpack.c.bf16 %v7777, %v7773
        %v7902 = vpack.c.bf16 %v7778, %v7774
        %v7903 = vpack.c.bf16 %v7779, %v7775
        %v7904 = vpack.c.bf16 %v7784, %v7780
        %v7905 = vpack.c.bf16 %v7785, %v7781
        %v7906 = vpack.c.bf16 %v7786, %v7782
        %v7907 = vpack.c.bf16 %v7787, %v7783
        %v7908 = vpack.c.bf16 %v7792, %v7788
        %v7909 = vpack.c.bf16 %v7793, %v7789
        %v7910 = vpack.c.bf16 %v7794, %v7790
        %v7911 = vpack.c.bf16 %v7795, %v7791
        %v7912 = vpack.c.bf16 %v7800, %v7796
        %v7913 = vpack.c.bf16 %v7801, %v7797
        %v7914 = vpack.c.bf16 %v7802, %v7798
        %v7915 = vpack.c.bf16 %v7803, %v7799
        %v7916 = vpack.c.bf16 %v7808, %v7804
        %v7917 = vpack.c.bf16 %v7809, %v7805
        %v7918 = vpack.c.bf16 %v7810, %v7806
        %v7919 = vpack.c.bf16 %v7811, %v7807
        %v7920 = vpack.c.bf16 %v7816, %v7812
        %v7921 = vpack.c.bf16 %v7817, %v7813
        %v7922 = vpack.c.bf16 %v7818, %v7814
        %v7923 = vpack.c.bf16 %v7819, %v7815
        %v7924 = vpack.c.bf16 %v7824, %v7820
        %v7925 = vpack.c.bf16 %v7825, %v7821
        %v7926 = vpack.c.bf16 %v7826, %v7822
        %v7927 = vpack.c.bf16 %v7827, %v7823
        %v7928 = vpack.c.bf16 %v7832, %v7828
        %v7929 = vpack.c.bf16 %v7833, %v7829
        %v7930 = vpack.c.bf16 %v7834, %v7830
        %v7931 = vpack.c.bf16 %v7835, %v7831
        %v7932 = vpack.c.bf16 %v7840, %v7836
        %v7933 = vpack.c.bf16 %v7841, %v7837
        %v7934 = vpack.c.bf16 %v7842, %v7838
        %v7935 = vpack.c.bf16 %v7843, %v7839
        %v7936 = vpack.c.bf16 %v7848, %v7844
        %v7937 = vpack.c.bf16 %v7849, %v7845
        %v7938 = vpack.c.bf16 %v7850, %v7846
        %v7939 = vpack.c.bf16 %v7851, %v7847
        %v7940 = vpack.c.bf16 %v7856, %v7852
        %v7941 = vpack.c.bf16 %v7857, %v7853
        %v7942 = vpack.c.bf16 %v7858, %v7854
        %v7943 = vpack.c.bf16 %v7859, %v7855
        %v7944 = vpack.c.bf16 %v7864, %v7860
        %v7945 = vpack.c.bf16 %v7865, %v7861
        %v7946 = vpack.c.bf16 %v7866, %v7862
        %v7947 = vpack.c.bf16 %v7867, %v7863
        %v7948 = vpack.c.bf16 %v7872, %v7868
        %v7949 = vpack.c.bf16 %v7873, %v7869
        %v7950 = vpack.c.bf16 %v7874, %v7870
        %v7951 = vpack.c.bf16 %v7875, %v7871
        %v7952 = vpack.c.bf16 %v7880, %v7876
        %v7953 = vpack.c.bf16 %v7881, %v7877
        %v7954 = vpack.c.bf16 %v7882, %v7878
        %v7955 = vpack.c.bf16 %v7883, %v7879
        %v7956 = vld [vmem:[%s131] sm:$0xf]
        %v7958 = vlaneseq
        %v7959 = vshrl.u32 %v7958, 7
        %v7960 = vsub.s32 0, %v7959
        %v7961 = vrot.slane %v7956, %v7960
        %v7962 = vlaneseq
        %v7963 = vshrl.u32 %v7962, 7
        %v7964 = vsub.s32 1, %v7963
        %v7965 = vrot.slane %v7956, %v7964
        %v7966 = vlaneseq
        %v7967 = vshrl.u32 %v7966, 7
        %v7968 = vsub.s32 2, %v7967
        %v7969 = vrot.slane %v7956, %v7968
        %v7970 = vlaneseq
        %v7971 = vshrl.u32 %v7970, 7
        %v7972 = vsub.s32 3, %v7971
        %v7973 = vrot.slane %v7956, %v7972
        %7978 = vmatprep.subr.bf16.mxu0 %v7893
        %7979 = vmatpush1.bf16.msra.mxu0 %v7892
        %7980 = vmatprep.subr.bf16.mxu0 %v7897
        %7981 = vmatpush1.bf16.msra.mxu0 %v7896
        %7982 = vmatprep.subr.bf16.mxu0 %v7901
        %7983 = vmatpush1.bf16.msra.mxu0 %v7900
        %7984 = vmatprep.subr.bf16.mxu0 %v7905
        %7985 = vmatpush1.bf16.msra.mxu0 %v7904
        %7986 = vmatprep.subr.bf16.mxu0 %v7909
        %7987 = vmatpush1.bf16.msra.mxu0 %v7908
        %7988 = vmatprep.subr.bf16.mxu0 %v7913
        %7989 = vmatpush1.bf16.msra.mxu0 %v7912
        %7990 = vmatprep.subr.bf16.mxu0 %v7917
        %7991 = vmatpush1.bf16.msra.mxu0 %v7916
        %7992 = vmatprep.subr.bf16.mxu0 %v7921
        %7993 = vmatpush1.bf16.msra.mxu0 %v7920
        %7994 = vmatprep.subr.bf16.mxu0 %v7925
        %7995 = vmatpush1.bf16.msra.mxu0 %v7924
        %7996 = vmatprep.subr.bf16.mxu0 %v7929
        %7997 = vmatpush1.bf16.msra.mxu0 %v7928
        %7998 = vmatprep.subr.bf16.mxu0 %v7933
        %7999 = vmatpush1.bf16.msra.mxu0 %v7932
        %8000 = vmatprep.subr.bf16.mxu0 %v7937
        %8001 = vmatpush1.bf16.msra.mxu0 %v7936
        %8002 = vmatprep.subr.bf16.mxu0 %v7941
        %8003 = vmatpush1.bf16.msra.mxu0 %v7940
        %8004 = vmatprep.subr.bf16.mxu0 %v7945
        %8005 = vmatpush1.bf16.msra.mxu0 %v7944
        %8006 = vmatprep.subr.bf16.mxu0 %v7949
        %8007 = vmatpush1.bf16.msra.mxu0 %v7948
        %8008 = vmatprep.subr.bf16.mxu0 %v7953
        %8009 = vmatpush1.bf16.msra.mxu0 %v7952
        %8010 = vmatprep.mubr.bf16.mxu0 %v7885
        %8011 = vmatmul.mubr.bf16.gmra.mrb[0].mxu0 %v7884
        %v8012 = vpop.f32.mrb[0].mxu0
        %v8013 = vadd.f32 %v7961, %v8012
        %v8014 = vpop.f32.mrb[0].mxu0
        %v8015 = vadd.f32 %v7965, %v8014
        %v8016 = vpop.f32.mrb[0].mxu0
        %v8017 = vadd.f32 %v7961, %v8016
        %v8018 = vpop.f32.mrb[0].mxu0
        %v8019 = vadd.f32 %v7965, %v8018
        %8020 = vmatprep.mubr.bf16.mxu0 %v7887
        %8021 = vmatmul.mubr.bf16.gmra.mrb[0].mxu0 %v7886
        %v8022 = vpop.f32.mrb[0].mxu0
        %v8023 = vadd.f32 %v7961, %v8022
        %v8024 = vpop.f32.mrb[0].mxu0
        %v8025 = vadd.f32 %v7965, %v8024
        %v8026 = vpop.f32.mrb[0].mxu0
        %v8027 = vadd.f32 %v7961, %v8026
        %v8028 = vpop.f32.mrb[0].mxu0
        %v8029 = vadd.f32 %v7965, %v8028
        %8030 = vmatprep.mubr.bf16.mxu0 %v7889
        %8031 = vmatmul.mubr.bf16.gmra.mrb[0].mxu0 %v7888
        %v8032 = vpop.f32.mrb[0].mxu0
        %v8033 = vadd.f32 %v7961, %v8032
        %v8034 = vpop.f32.mrb[0].mxu0
        %v8035 = vadd.f32 %v7965, %v8034
        %v8036 = vpop.f32.mrb[0].mxu0
        %v8037 = vadd.f32 %v7961, %v8036
        %v8038 = vpop.f32.mrb[0].mxu0
        %v8039 = vadd.f32 %v7965, %v8038
        %8040 = vmatprep.mubr.bf16.mxu0 %v7891
        %8041 = vmatmul.mubr.bf16.gmra.mrb[0].mxu0 %v7890
        %v8042 = vpop.f32.mrb[0].mxu0
        %v8043 = vadd.f32 %v7961, %v8042
        %v8044 = vpop.f32.mrb[0].mxu0
        %v8045 = vadd.f32 %v7965, %v8044
        %v8046 = vpop.f32.mrb[0].mxu0
        %v8047 = vadd.f32 %v7961, %v8046
        %v8048 = vpop.f32.mrb[0].mxu0
        %v8049 = vadd.f32 %v7965, %v8048
        %8050 = vdwg.mxu0
        %8051 = vmatprep.subr.bf16.mxu0 %v7895
        %8052 = vmatpush1.bf16.msra.mxu0 %v7894
        %8053 = vmatprep.subr.bf16.mxu0 %v7899
        %8054 = vmatpush1.bf16.msra.mxu0 %v7898
        %8055 = vmatprep.subr.bf16.mxu0 %v7903
        %8056 = vmatpush1.bf16.msra.mxu0 %v7902
        %8057 = vmatprep.subr.bf16.mxu0 %v7907
        %8058 = vmatpush1.bf16.msra.mxu0 %v7906
        %8059 = vmatprep.subr.bf16.mxu0 %v7911
        %8060 = vmatpush1.bf16.msra.mxu0 %v7910
        %8061 = vmatprep.subr.bf16.mxu0 %v7915
        %8062 = vmatpush1.bf16.msra.mxu0 %v7914
        %8063 = vmatprep.subr.bf16.mxu0 %v7919
        %8064 = vmatpush1.bf16.msra.mxu0 %v7918
        %8065 = vmatprep.subr.bf16.mxu0 %v7923
        %8066 = vmatpush1.bf16.msra.mxu0 %v7922
        %8067 = vmatprep.subr.bf16.mxu0 %v7927
        %8068 = vmatpush1.bf16.msra.mxu0 %v7926
        %8069 = vmatprep.subr.bf16.mxu0 %v7931
        %8070 = vmatpush1.bf16.msra.mxu0 %v7930
        %8071 = vmatprep.subr.bf16.mxu0 %v7935
        %8072 = vmatpush1.bf16.msra.mxu0 %v7934
        %8073 = vmatprep.subr.bf16.mxu0 %v7939
        %8074 = vmatpush1.bf16.msra.mxu0 %v7938
        %8075 = vmatprep.subr.bf16.mxu0 %v7943
        %8076 = vmatpush1.bf16.msra.mxu0 %v7942
        %8077 = vmatprep.subr.bf16.mxu0 %v7947
        %8078 = vmatpush1.bf16.msra.mxu0 %v7946
        %8079 = vmatprep.subr.bf16.mxu0 %v7951
        %8080 = vmatpush1.bf16.msra.mxu0 %v7950
        %8081 = vmatprep.subr.bf16.mxu0 %v7955
        %8082 = vmatpush1.bf16.msra.mxu0 %v7954
        %8083 = vmatprep.mubr.bf16.mxu0 %v7885
        %8084 = vmatmul.mubr.bf16.gmra.mrb[0].mxu0 %v7884
        %v8085 = vpop.f32.mrb[0].mxu0
        %v8086 = vadd.f32 %v7969, %v8085
        %v8087 = vpop.f32.mrb[0].mxu0
        %v8088 = vadd.f32 %v7973, %v8087
        %v8089 = vpop.f32.mrb[0].mxu0
        %v8090 = vadd.f32 %v7969, %v8089
        %v8091 = vpop.f32.mrb[0].mxu0
        %v8092 = vadd.f32 %v7973, %v8091
        %8093 = vmatprep.mubr.bf16.mxu0 %v7887
        %8094 = vmatmul.mubr.bf16.gmra.mrb[0].mxu0 %v7886
        %v8095 = vpop.f32.mrb[0].mxu0
        %v8096 = vadd.f32 %v7969, %v8095
        %v8097 = vpop.f32.mrb[0].mxu0
        %v8098 = vadd.f32 %v7973, %v8097
        %v8099 = vpop.f32.mrb[0].mxu0
        %v8100 = vadd.f32 %v7969, %v8099
        %v8101 = vpop.f32.mrb[0].mxu0
        %v8102 = vadd.f32 %v7973, %v8101
        %8103 = vmatprep.mubr.bf16.mxu0 %v7889
        %8104 = vmatmul.mubr.bf16.gmra.mrb[0].mxu0 %v7888
        %v8105 = vpop.f32.mrb[0].mxu0
        %v8106 = vadd.f32 %v7969, %v8105
        %v8107 = vpop.f32.mrb[0].mxu0
        %v8108 = vadd.f32 %v7973, %v8107
        %v8109 = vpop.f32.mrb[0].mxu0
        %v8110 = vadd.f32 %v7969, %v8109
        %v8111 = vpop.f32.mrb[0].mxu0
        %v8112 = vadd.f32 %v7973, %v8111
        %8113 = vmatprep.mubr.bf16.mxu0 %v7891
        %8114 = vmatmul.mubr.bf16.gmra.mrb[0].mxu0 %v7890
        %v8115 = vpop.f32.mrb[0].mxu0
        %v8116 = vadd.f32 %v7969, %v8115
        %v8117 = vpop.f32.mrb[0].mxu0
        %v8118 = vadd.f32 %v7973, %v8117
        %v8119 = vpop.f32.mrb[0].mxu0
        %v8120 = vadd.f32 %v7969, %v8119
        %v8121 = vpop.f32.mrb[0].mxu0
        %v8122 = vadd.f32 %v7973, %v8121
        %8123 = vdwg.mxu0
        %v8124 = vmax.f32 %v8013, 0.0
        %v8125 = vmax.f32 %v8015, 0.0
        %v8126 = vmax.f32 %v8086, 0.0
        %v8127 = vmax.f32 %v8088, 0.0
        %v8128 = vmax.f32 %v8017, 0.0
        %v8129 = vmax.f32 %v8019, 0.0
        %v8130 = vmax.f32 %v8090, 0.0
        %v8131 = vmax.f32 %v8092, 0.0
        %v8132 = vmax.f32 %v8023, 0.0
        %v8133 = vmax.f32 %v8025, 0.0
        %v8134 = vmax.f32 %v8096, 0.0
        %v8135 = vmax.f32 %v8098, 0.0
        %v8136 = vmax.f32 %v8027, 0.0
        %v8137 = vmax.f32 %v8029, 0.0
        %v8138 = vmax.f32 %v8100, 0.0
        %v8139 = vmax.f32 %v8102, 0.0
        %v8140 = vmax.f32 %v8033, 0.0
        %v8141 = vmax.f32 %v8035, 0.0
        %v8142 = vmax.f32 %v8106, 0.0
        %v8143 = vmax.f32 %v8108, 0.0
        %v8144 = vmax.f32 %v8037, 0.0
        %v8145 = vmax.f32 %v8039, 0.0
        %v8146 = vmax.f32 %v8110, 0.0
        %v8147 = vmax.f32 %v8112, 0.0
        %v8148 = vmax.f32 %v8043, 0.0
        %v8149 = vmax.f32 %v8045, 0.0
        %v8150 = vmax.f32 %v8116, 0.0
        %v8151 = vmax.f32 %v8118, 0.0
        %v8152 = vmax.f32 %v8047, 0.0
        %v8153 = vmax.f32 %v8049, 0.0
        %v8154 = vmax.f32 %v8120, 0.0
        %v8155 = vmax.f32 %v8122, 0.0
        %v8156 = vmax.f32 %v8124, %v8128
        %v8157 = vmax.f32 %v8156, %v8132
        %v8158 = vmax.f32 %v8157, %v8136
        %v8159 = vmax.f32 %v8158, %v8140
        %v8160 = vmax.f32 %v8159, %v8144
        %v8161 = vmax.f32 %v8160, %v8148
        %v8162 = vmax.f32 %v8161, %v8152
        %v8163 = vrot.slane %v8162, 4
        %v8164 = vmax.f32 %v8162, %v8163
        %v8165 = vrot.slane %v8164, 2
        %v8166 = vmax.f32 %v8164, %v8165
        %v8167 = vrot.slane %v8166, 1
        %v8168 = vmax.f32 %v8166, %v8167
        %v8169 = vmax.f32 %v8125, %v8129
        %v8170 = vmax.f32 %v8169, %v8133
        %v8171 = vmax.f32 %v8170, %v8137
        %v8172 = vmax.f32 %v8171, %v8141
        %v8173 = vmax.f32 %v8172, %v8145
        %v8174 = vmax.f32 %v8173, %v8149
        %v8175 = vmax.f32 %v8174, %v8153
        %v8176 = vrot.slane %v8175, 4
        %v8177 = vmax.f32 %v8175, %v8176
        %v8178 = vrot.slane %v8177, 2
        %v8179 = vmax.f32 %v8177, %v8178
        %v8180 = vrot.slane %v8179, 1
        %v8181 = vmax.f32 %v8179, %v8180
        %v8182 = vmax.f32 %v8126, %v8130
        %v8183 = vmax.f32 %v8182, %v8134
        %v8184 = vmax.f32 %v8183, %v8138
        %v8185 = vmax.f32 %v8184, %v8142
        %v8186 = vmax.f32 %v8185, %v8146
        %v8187 = vmax.f32 %v8186, %v8150
        %v8188 = vmax.f32 %v8187, %v8154
        %v8189 = vrot.slane %v8188, 4
        %v8190 = vmax.f32 %v8188, %v8189
        %v8191 = vrot.slane %v8190, 2
        %v8192 = vmax.f32 %v8190, %v8191
        %v8193 = vrot.slane %v8192, 1
        %v8194 = vmax.f32 %v8192, %v8193
        %v8195 = vmax.f32 %v8127, %v8131
        %v8196 = vmax.f32 %v8195, %v8135
        %v8197 = vmax.f32 %v8196, %v8139
        %v8198 = vmax.f32 %v8197, %v8143
        %v8199 = vmax.f32 %v8198, %v8147
        %v8200 = vmax.f32 %v8199, %v8151
        %v8201 = vmax.f32 %v8200, %v8155
        %v8202 = vrot.slane %v8201, 4
        %v8203 = vmax.f32 %v8201, %v8202
        %v8204 = vrot.slane %v8203, 2
        %v8205 = vmax.f32 %v8203, %v8204
        %v8206 = vrot.slane %v8205, 1
        %v8207 = vmax.f32 %v8205, %v8206
        %v8212 = vcombine.low %v8168, %v8181
        %v8213 = vcombine.low %v8194, %v8207
        %v8215 = vunpack.c.l.s4 1966171168
        %v8216 = vunpack.c.0.s8 %v8215
        %v8217 = vlaneseq
        %v8218 = vshrl.u32 %v8217, 7
        %v8219 = vsub.s32 %v8216, %v8218
        %v8220 = vrot.slane %v8212, %v8219
        %v8222 = vunpack.c.l.s4 1966171168
        %v8223 = vunpack.c.0.s8 %v8222
        %v8224 = vlaneseq
        %v8225 = vshrl.u32 %v8224, 7
        %v8226 = vsub.s32 %v8223, %v8225
        %v8227 = vrot.slane %v8213, %v8226
        %v8228 = vcombine.low %v8220, %v8227
        %v8230 = vunpack.c.l.s4 1966171168
        %v8231 = vunpack.c.0.s8 %v8230
        %v8232 = vlaneseq
        %v8233 = vshrl.u32 %v8232, 7
        %v8234 = vsub.s32 %v8231, %v8233
        %v8235 = vrot.slane %v8228, %v8234
        %v8237 = vlaneseq
        %vm8238 = vcmp.ge.s32.totalorder %v8237, 0
        %vm8239 = vcmp.lt.s32.totalorder %v8237, 512
        %vm8240 = vmand %vm8238, %vm8239
        %8241 = vst.msk [vmem:[%s2778] sm:$0xf] %vm8240, %v8235
        %p8242 = scmp.lt.s32.totalorder %s179, 1
        %s8243 = scalar_select %p8242, %s179, 1
        %s8244 = smul.addr %s8243, 4
        %s8245 = scalar_lea.vmem %s133, %s8244
        // Predicated region
        $region517: #{pose_refine_net_feat.1} parent=283 // pred_check
          %p8246 = pneg %p1598
        $region518: #{pose_refine_net_feat.1} parent=283 // pred_check_branch
          %8248 = sbr.rel (%p8246) target = $region520
        $region519: #{pose_refine_net_feat.1} parent=283 // pred_region
          _
        $region520: #{pose_refine_net_feat.1} parent=283 // pred_fallthru
          _
      $region284: #{pose_refine_net_feat.1} parent=5 // pred_fallthru
        _
      %p8249 = scmp.le.s32.totalorder 2, %s174
      // Predicated region
      $region521: #{pose_refine_net_feat.1} parent=5 // pred_check
        %p8250 = pneg %p8249
      $region522: #{pose_refine_net_feat.1} parent=5 // pred_check_branch
        %8252 = sbr.rel (%p8250) target = $region524
      $region523: #{pose_refine_net_feat.1} parent=5 // pred_region
        %s8253 = ssub.s32 %s174, 2
        // Predicated region
        $region525: #{pose_refine_net_feat.1} parent=523 // pred_check
          %p8254 = pneg %p1604
        $region526: #{pose_refine_net_feat.1} parent=523 // pred_check_branch
          %8256 = sbr.rel (%p8254) target = $region528
        $region527: #{pose_refine_net_feat.1} parent=523 // pred_region
          %p8257 = scmp.lt.s32.totalorder %s180, 1
          %s8258 = scalar_select %p8257, %s180, 1
          %s8259 = smul.addr %s8258, 4
          %s8260 = scalar_lea.vmem %s133, %s8259
        $region528: #{pose_refine_net_feat.1} parent=523 // pred_fallthru
          _
      $region524: #{pose_refine_net_feat.1} parent=5 // pred_fallthru
        _
    $region6: #{pose_refine_net_feat.1} parent=1 // loop_footer
      %s178 = sadd.s32 1, %s174
    $region7: #{pose_refine_net_feat.1} parent=1 // loop_footer_branch
      %173 = sbr.rel target = $region3
    $region8: #{pose_refine_net_feat.1} parent=1 // loop_exit
      _
    %8261 = vsyncpa [#allocation3], 1
    %s8262 = scalar_lea.sflag [#allocation3], 1
    %8263 = vsyncpa %s8262, 1
    %8264 = vsyncpa [#allocation9], 1
    %s8265 = scalar_lea.sflag [#allocation9], 1
    %8266 = vsyncpa %s8265, 1
    %8267 = vsyncpa [#allocation12], 1
    %8268 = vsyncpa [#allocation15], 1
    %8269 = vsyncpa [#allocation18], 1
    %8270 = vsyncpa [#allocation21], 1
    %8271 = vsyncpa [#allocation24], 1
    %8272 = vsyncpa [#allocation27], 1
    %8273 = vsyncpa [#allocation30], 1
    %8274 = vsyncpa [#allocation33], 1
    %8275 = vsyncpa [#allocation36], 1
    %8276 = vsyncpa [#allocation39], 1
    %8277 = vsyncpa [#allocation42], 1
    %8278 = vsyncpa [#allocation45], 1
    %8279 = vsyncpa [#allocation48], 1
    %8280 = vsyncpa [#allocation51], 1
    %8281 = vsyncpa [#allocation54], 1
    %8282 = vsyncpa [#allocation57], 1
    %8283 = vsyncpa [#allocation60], 1
    %8284 = vsyncpa [#allocation63], 1
    %8285 = vsyncpa [#allocation66], 1
    %8286 = vsyncpa [#allocation69], 1
    %8287 = vsyncpa [#allocation72], 1
    %8288 = vsyncpa [#allocation75], 1
    %8289 = vsyncpa [#allocation78], 1
    %8290 = vsyncpa [#allocation81], 1
    %8291 = vsyncpa [#allocation84], 1
    %8292 = vsyncpa [#allocation87], 1
    %8293 = vsyncpa [#allocation90], 1
    %8294 = vsyncpa [#allocation4], 1
    %s8295 = scalar_lea.sflag [#allocation4], 1
    %8296 = vsyncpa %s8295, 1
    %8297 = vsyncpa [#allocation6], 1

</llo_original>
